<compile_context>
chip_gen: v6e
topology: v6e:2x2x1
jax: 0.10.0
libtpu: 0.0.40
codegen_flags: <defaults>
</compile_context>

<pallas_src>
import functools
import math

import jax
import jax.numpy as jnp
import numpy as np
from jax import lax
from jax.experimental import pallas as pl
from jax.experimental.pallas import tpu as pltpu


# --------------------------------------------------------------------- HW-aware config

def _tpu_vmem_capacity_bytes():
    try:
        return int(pltpu.get_tpu_info().vmem_capacity_bytes)
    except Exception:
        return 64 * 1024 * 1024     # conservative default (v7x-sized)


_VMEM_CAP = _tpu_vmem_capacity_bytes()
# Leave headroom for XLA fusions around the kernels: ~60% of physical, capped.
_VMEM_LIMIT = min(int(_VMEM_CAP * 0.6), 96 * 1024 * 1024)
_BIG_VMEM = _VMEM_CAP >= 100 * 1024 * 1024          # v5e/v6e (128 MiB) vs v7x (64 MiB)

# Matmul tile targets (bigger on 128 MiB parts, per measured HBM-roofline data).
_TM = 512 if _BIG_VMEM else 256
_TN = 1024 if _BIG_VMEM else 512
_TK = 512


def _round_up(x, m):
    return ((x + m - 1) // m) * m


def _largest_divisor(n, target, align, lo):
    t = (target // align) * align
    while t >= lo:
        if n % t == 0:
            return t
        t -= align
    return None


def _pick_tile(dim, target, align):
    """For feature (N/K) dims: largest aligned exact divisor <= target, else full dim."""
    if dim <= target:
        return dim
    t = _largest_divisor(dim, target, align, align)
    return dim if t is None else t


def _row_tiling(M, target):
    """(tile, padded_M) for the row axis.

    Full-dim block for small M; a large multiple-of-8 exact divisor when one
    exists; otherwise pad M up to a multiple of 256 (padded rows are zero and
    sliced off) so the tile stays 256-512 and the M axis stays megacore-shardable
    for awkward B*L (e.g. 2210)."""
    if M <= target:
        return M, M
    t = _largest_divisor(M, target, 8, max(128, target // 4))
    if t is not None:
        return t, M
    Mp = _round_up(M, 256)
    t = _largest_divisor(Mp, target, 8, 256) or 256
    return t, Mp


# ----------------------------------------------------------------------------- matmul

def _matmul_kernel(*refs, n_pairs, has_bias, has_residual, activation, has_norm,
                   n_k, eps):
    # refs = [x1, w1, (x2, w2, ...), (bias), (residual), (gamma, beta), out, acc]
    o_ref, acc_ref = refs[-2], refs[-1]
    k = pl.program_id(2)

    @pl.when(k == 0)
    def _():
        acc_ref[...] = jnp.zeros_like(acc_ref)

    part = None
    for p in range(n_pairs):
        x = refs[2 * p][...].astype(jnp.bfloat16)
        w = refs[2 * p + 1][...].astype(jnp.bfloat16)
        d = jnp.dot(x, w, preferred_element_type=jnp.float32)
        part = d if part is None else part + d
    acc_ref[...] += part

    @pl.when(k == n_k - 1)
    def _():
        y = acc_ref[...]
        idx = 2 * n_pairs
        if has_bias:
            y = y + refs[idx][...]
            idx += 1
        if activation == "gelu":
            # Exact erf GELU (PyTorch / TRT reference semantics).
            # TODO(synk): switch to the tanh approximation (runs on the EUP slot)
            # if bit parity with the erf reference is not required.
            y = 0.5 * y * (1.0 + lax.erf(y * (1.0 / math.sqrt(2.0))))
        if has_residual:
            y = y + refs[idx][...].astype(jnp.float32)
            idx += 1
        if has_norm:
            g = refs[idx][...]
            b = refs[idx + 1][...]
            mu = jnp.mean(y, axis=-1, keepdims=True)
            var = jnp.mean(jnp.square(y - mu), axis=-1, keepdims=True)
            y = (y - mu) * lax.rsqrt(var + eps)
            y = y * g + b
        o_ref[...] = y.astype(o_ref.dtype)


def fused_linear(pairs, bias=None, activation=None, residual=None, norm=None,
                 out_dtype=jnp.bfloat16, eps=1e-5):
    """sum_i(x_i @ w_i) [+ bias] [-> gelu] [+ residual] [-> layernorm].

    All x_i share the same leading shape and contraction dim K; all w_i share N.
    Tiled over (M, N, K) with an f32 VMEM accumulator.  When `norm` is given the
    N axis is kept as a single full-row block so mean/var run in the epilogue.
    """
    x0, w0 = pairs[0]
    lead = x0.shape[:-1]
    K = x0.shape[-1]
    N = w0.shape[-1]
    M = int(np.prod(lead))

    tm, Mp = _row_tiling(M, _TM)
    pad = Mp - M
    tn = N if norm is not None else _pick_tile(N, _TN, 128)
    tk = _pick_tile(K, _TK, 128)
    nk = K // tk
    grid = (Mp // tm, N // tn, nk)

    operands, in_specs = [], []
    for x, w in pairs:
        x2 = x.reshape(M, K)
        if pad:
            x2 = jnp.pad(x2, ((0, pad), (0, 0)))
        operands += [x2, w]
        in_specs += [pl.BlockSpec((tm, tk), lambda i, j, k: (i, k)),
                     pl.BlockSpec((tk, tn), lambda i, j, k: (k, j))]
        # TODO(synk): if K-loop DMA is exposed on v7x after the bf16 change, add
        # pipeline_mode=pl.Buffered(3) to the x/w specs (VMEM budget permitting).

    if bias is not None:
        operands.append(bias.reshape(1, N).astype(jnp.float32))
        in_specs.append(pl.BlockSpec((1, tn), lambda i, j, k: (0, j)))
    if residual is not None:
        r2 = residual.reshape(M, N)
        if pad:
            r2 = jnp.pad(r2, ((0, pad), (0, 0)))
        operands.append(r2)
        in_specs.append(pl.BlockSpec((tm, tn), lambda i, j, k: (i, j)))
    if norm is not None:
        g, b = norm
        operands += [g.reshape(1, N).astype(jnp.float32),
                     b.reshape(1, N).astype(jnp.float32)]
        in_specs += [pl.BlockSpec((1, tn), lambda i, j, k: (0, j)),
                     pl.BlockSpec((1, tn), lambda i, j, k: (0, j))]

    out = pl.pallas_call(
        functools.partial(_matmul_kernel, n_pairs=len(pairs),
                          has_bias=bias is not None,
                          has_residual=residual is not None,
                          activation=activation, has_norm=norm is not None,
                          n_k=nk, eps=eps),
        out_shape=jax.ShapeDtypeStruct((Mp, N), out_dtype),
        grid=grid,
        in_specs=in_specs,
        out_specs=pl.BlockSpec((tm, tn), lambda i, j, k: (i, j)),
        scratch_shapes=[pltpu.VMEM((tm, tn), jnp.float32)],
        compiler_params=pltpu.CompilerParams(
            dimension_semantics=("parallel", "parallel", "arbitrary"),
            vmem_limit_bytes=_VMEM_LIMIT),
    )(*operands)
    if pad:
        out = out[:M]
    return out.reshape(lead + (N,))


def linear(x, w, b=None, activation=None, residual=None, norm=None,
           out_dtype=jnp.bfloat16):
    return fused_linear([(x, w)], bias=b, activation=activation, residual=residual,
                        norm=norm, out_dtype=out_dtype)


# ----------------------------------------------------------------------------- layernorm
# Only used once per forward (the model-final norm); block-internal LNs are fused
# into the matmul epilogue above.

def _layernorm_kernel(x_ref, g_ref, b_ref, o_ref, *, eps):
    x = x_ref[...].astype(jnp.float32)
    mu = jnp.mean(x, axis=-1, keepdims=True)
    var = jnp.mean(jnp.square(x - mu), axis=-1, keepdims=True)
    y = (x - mu) * lax.rsqrt(var + eps)
    o_ref[...] = (y * g_ref[...] + b_ref[...]).astype(o_ref.dtype)


def layernorm(x, gamma, beta, eps=1e-5, out_dtype=jnp.bfloat16):
    shape = x.shape
    D = shape[-1]
    M = int(np.prod(shape[:-1]))
    x2 = x.reshape(M, D)
    tm, Mp = _row_tiling(M, _TM)
    pad = Mp - M
    if pad:
        x2 = jnp.pad(x2, ((0, pad), (0, 0)))
    out = pl.pallas_call(
        functools.partial(_layernorm_kernel, eps=eps),
        out_shape=jax.ShapeDtypeStruct((Mp, D), out_dtype),
        grid=(Mp // tm,),
        in_specs=[
            pl.BlockSpec((tm, D), lambda i: (i, 0)),
            pl.BlockSpec((1, D), lambda i: (0, 0)),
            pl.BlockSpec((1, D), lambda i: (0, 0)),
        ],
        out_specs=pl.BlockSpec((tm, D), lambda i: (i, 0)),
        compiler_params=pltpu.CompilerParams(
            dimension_semantics=("parallel",),
            vmem_limit_bytes=_VMEM_LIMIT),
    )(x2, gamma.reshape(1, D).astype(jnp.float32), beta.reshape(1, D).astype(jnp.float32))
    if pad:
        out = out[:M]
    return out.reshape(shape)


# ----------------------------------------------------------------------------- attention

def _attn_heads(q, k, v, o_ref, *, scale, heads, head_dim):
    """q, k, v: (L, heads*head_dim). Writes each head's context straight into its
    column range of o_ref (no lane concatenate; per-head live ranges are committed
    to the output block immediately)."""
    q = (q.astype(jnp.float32) * scale).astype(jnp.bfloat16)   # pre-scale q once
    k = k.astype(jnp.bfloat16)
    v = v.astype(jnp.bfloat16)
    for h in range(heads):
        lo, hi = h * head_dim, (h + 1) * head_dim
        s = lax.dot_general(q[:, lo:hi], k[:, lo:hi], (((1,), (1,)), ((), ())),
                            preferred_element_type=jnp.float32)      # (L, L)
        s = s - jnp.max(s, axis=-1, keepdims=True)
        p = jnp.exp(s)
        p = p * pl.reciprocal(jnp.sum(p, axis=-1, keepdims=True), approx=True)
        ctx = lax.dot_general(p.astype(jnp.bfloat16), v[:, lo:hi],
                              (((1,), (0,)), ((), ())),
                              preferred_element_type=jnp.float32)    # (L, Dh)
        o_ref[0, :, lo:hi] = ctx.astype(o_ref.dtype)


def _attn_kernel_grouped(q_ref, k_ref, v_ref, o_ref, *, scale, heads, head_dim):
    _attn_heads(q_ref[0], k_ref[0], v_ref[0], o_ref,
                scale=scale, heads=heads, head_dim=head_dim)


def _attn_kernel_packed(qkv_ref, o_ref, *, scale, heads, head_dim):
    # Tiny-config fallback: one (1, L, 3C) block; slice q/k/v in VMEM (no HBM copies).
    C = heads * head_dim
    x = qkv_ref[0]
    _attn_heads(x[:, :C], x[:, C:2 * C], x[:, 2 * C:], o_ref,
                scale=scale, heads=heads, head_dim=head_dim)


def attention(x, qkv_w, proj_w, proj_b, num_heads, residual=None, norm=None):
    B, L, C = x.shape
    Dh = C // num_heads
    scale = Dh ** (-0.5)
    qkv = fused_linear([(x, qkv_w)])              # (B, L, 3C) bf16; qkv_bias=False

    # Smallest head group whose width is a 128-lane multiple (lane-dense blocks).
    group = None
    for g in range(1, num_heads + 1):
        if num_heads % g == 0 and (g * Dh) % 128 == 0:
            group = g
            break

    # TODO(synk): for very long L on v7x (64 MiB VMEM), tile the KV axis with an
    # online-softmax (flash-style) accumulator instead of the full LxL score matrix.
    # At UViT's L (~1.1K) the per-group working set fits comfortably in VMEM.
    if group is not None:
        gw = group * Dh
        ngroups = num_heads // group
        out = pl.pallas_call(
            functools.partial(_attn_kernel_grouped, scale=scale, heads=group,
                              head_dim=Dh),
            out_shape=jax.ShapeDtypeStruct((B, L, C), jnp.bfloat16),
            grid=(B, ngroups),
            in_specs=[
                pl.BlockSpec((1, L, gw), lambda b, g: (b, 0, g)),
                pl.BlockSpec((1, L, gw), lambda b, g, o=ngroups: (b, 0, o + g)),
                pl.BlockSpec((1, L, gw), lambda b, g, o=2 * ngroups: (b, 0, o + g)),
            ],
            out_specs=pl.BlockSpec((1, L, gw), lambda b, g: (b, 0, g)),
            compiler_params=pltpu.CompilerParams(
                dimension_semantics=("parallel", "parallel"),
                vmem_limit_bytes=_VMEM_LIMIT),
        )(qkv, qkv, qkv)
    else:
        out = pl.pallas_call(
            functools.partial(_attn_kernel_packed, scale=scale, heads=num_heads,
                              head_dim=Dh),
            out_shape=jax.ShapeDtypeStruct((B, L, C), jnp.bfloat16),
            grid=(B,),
            in_specs=[pl.BlockSpec((1, L, 3 * C), lambda b: (b, 0, 0))],
            out_specs=pl.BlockSpec((1, L, C), lambda b: (b, 0, 0)),
            compiler_params=pltpu.CompilerParams(
                dimension_semantics=("parallel",),
                vmem_limit_bytes=_VMEM_LIMIT),
        )(qkv)

    # output projection: "x + attn(x)" residual AND the following norm2 fused in.
    return fused_linear([(out, proj_w)], bias=proj_b, residual=residual, norm=norm)


# ----------------------------------------------------------------------------- model glue

def timestep_embedding(t, dim, max_period=10000):
    half = dim // 2
    freqs = jnp.exp(-math.log(max_period) * jnp.arange(half, dtype=jnp.float32) / half)
    args = t.astype(jnp.float32)[:, None] * freqs[None, :]
    emb = jnp.concatenate([jnp.cos(args), jnp.sin(args)], axis=1)
    if dim % 2:
        emb = jnp.concatenate([emb, jnp.zeros_like(emb[:, :1])], axis=1)
    return emb


def patch_embed(img, conv_w, conv_b, patch_size):
    # img: (B, C, H, W) NCHW; conv_w: (E, C, p, p); stride == kernel == p
    B, C, H, W = img.shape
    p = patch_size
    x = img.reshape(B, C, H // p, p, W // p, p)
    x = x.transpose(0, 2, 4, 1, 3, 5).reshape(B, (H // p) * (W // p), C * p * p)
    wf = conv_w.reshape(conv_w.shape[0], C * p * p).T          # (C*p*p, E)
    return linear(x, wf, conv_b, out_dtype=jnp.float32)        # (B, num_patches, E)


def unpatchify(x, in_chans):
    B, hw, pd = x.shape
    p = int((pd // in_chans) ** 0.5)
    h = w = int(hw ** 0.5)
    C = pd // (p * p)
    x = x.reshape(B, h, w, p, p, C).transpose(0, 5, 1, 3, 2, 4).reshape(B, C, h * p, w * p)
    return x


def block_forward(x, bp, num_heads, skip=None):
    if skip is not None:
        # skip_linear(concat([x, skip], -1)) == x @ W[:E] + skip @ W[E:]  (no concat);
        # norm1 fused into the epilogue.
        x = fused_linear([(x, bp["skip_w1"]), (skip, bp["skip_w2"])], bias=bp["skip_b"],
                         norm=(bp["n1_g"], bp["n1_b"]))
    # x = norm2(x + attn(x)) with residual + norm2 fused into the proj matmul.
    x = attention(x, bp["qkv_w"], bp["proj_w"], bp["proj_b"], num_heads,
                  residual=x, norm=(bp["n2_g"], bp["n2_b"]))
    h = fused_linear([(x, bp["fc1_w"])], bias=bp["fc1_b"], activation="gelu")
    # x = norm3(x + mlp(x)) with residual + norm3 fused into the fc2 matmul.
    x = fused_linear([(h, bp["fc2_w"])], bias=bp["fc2_b"], residual=x,
                     norm=(bp["n3_g"], bp["n3_b"]))
    return x


def uvit_forward(P, cfg, img, clip_img, text, t_img, t_text, data_type):
    E = cfg["embed_dim"]
    num_heads = cfg["num_heads"]

    x_img = patch_embed(img, P["patch_w"], P["patch_b"], cfg["patch_size"])  # (bs, P, E) f32

    # mlp_time_embed=False -> identity time embed
    t_img_token = timestep_embedding(t_img, E)[:, None, :]      # (bs, 1, E)
    t_text_token = timestep_embedding(t_text, E)[:, None, :]    # (2*bs, 1, E)

    text_e = linear(text, P["text_w"], P["text_b"], out_dtype=jnp.float32)
    clip_e = linear(clip_img, P["clip_w"], P["clip_b"], out_dtype=jnp.float32)
    token_embed = P["token_emb"][data_type][:, None, :]          # (bs, 1, E)

    text0, text1 = text_e[0:1], text_e[1:2]
    tt0, tt1 = t_text_token[0:1], t_text_token[1:2]

    x0 = jnp.concatenate([t_img_token, tt0, token_embed, text0, clip_e, x_img], axis=1)
    x1 = jnp.concatenate([t_img_token, tt1, token_embed, text1, clip_e, x_img], axis=1)
    x = jnp.concatenate([x0, x1], axis=0)                        # (2*bs, L, E)

    num_text_tokens = text_e.shape[1]
    num_img_tokens = x_img.shape[1]

    pos_embed = jnp.concatenate(
        [P["pos_embed"][:, :2], P["pos_embed_token"], P["pos_embed"][:, 2:]], axis=1)
    # H == img_size here, so the bilinear pos-emb interpolation branch is not taken.
    # TODO(synk): interpolate_pos_emb (bilinear resize) not implemented for mismatched H/W.
    x = (x + pos_embed).astype(jnp.bfloat16)   # bf16 activations for the whole trunk

    skips = []
    for bp in P["in_blocks"]:
        x = block_forward(x, bp, num_heads)
        skips.append(x)
    x = block_forward(x, P["mid_block"], num_heads)
    for bp in P["out_blocks"]:
        x = block_forward(x, bp, num_heads, skip=skips.pop())

    x = layernorm(x, P["norm_g"], P["norm_b"])

    start = 1 + 1 + 1 + num_text_tokens + 1
    img_tok = x[:, start:start + num_img_tokens]
    clip_tok = x[:, start - 1:start]

    img_out = linear(img_tok, P["dec_w"], P["dec_b"], out_dtype=jnp.float32)
    img_out = unpatchify(img_out, cfg["in_chans"])
    clip_out = linear(clip_tok, P["cout_w"], P["cout_b"], out_dtype=jnp.float32)
    return img_out, clip_out


# ----------------------------------------------------------------------------- params

def init_params(key, cfg):
    E = cfg["embed_dim"]
    hidden = int(E * cfg["mlp_ratio"])
    num_patches = (cfg["img_size"] // cfg["patch_size"]) ** 2
    num_tokens = 1 + 1 + cfg["num_text_tokens"] + 1 + num_patches
    patch_dim = cfg["patch_size"] ** 2 * cfg["in_chans"]

    keys = iter(jax.random.split(key, 512))

    def W(shape, dtype=jnp.bfloat16, scale=0.02):
        # Matmul weights stored as bf16 (MXU operand dtype, halves weight DMA);
        # anything added inside the f32 epilogue (biases, LN params, pos embeds)
        # stays f32.
        return (jax.random.normal(next(keys), shape, jnp.float32) * scale).astype(dtype)

    def zeros(shape):
        return jnp.zeros(shape, jnp.float32)

    def ones(shape):
        return jnp.ones(shape, jnp.float32)

    def make_block(skip):
        p = {}
        if skip:
            p["skip_w1"] = W((E, E))          # skip_linear weight pre-split: [x | skip]
            p["skip_w2"] = W((E, E))
            p["skip_b"] = zeros((E,))
            p["n1_g"] = ones((E,)); p["n1_b"] = zeros((E,))
        p["qkv_w"] = W((E, 3 * E))            # qkv_bias=False
        p["proj_w"] = W((E, E)); p["proj_b"] = zeros((E,))
        p["n2_g"] = ones((E,)); p["n2_b"] = zeros((E,))
        p["fc1_w"] = W((E, hidden)); p["fc1_b"] = zeros((hidden,))
        p["fc2_w"] = W((hidden, E)); p["fc2_b"] = zeros((E,))
        p["n3_g"] = ones((E,)); p["n3_b"] = zeros((E,))
        return p

    depth = cfg["depth"]
    P = {
        "patch_w": W((E, cfg["in_chans"], cfg["patch_size"], cfg["patch_size"])),
        "patch_b": zeros((E,)),
        "text_w": W((cfg["text_dim"], E)), "text_b": zeros((E,)),
        "clip_w": W((cfg["clip_img_dim"], E)), "clip_b": zeros((E,)),
        "cout_w": W((E, cfg["clip_img_dim"])), "cout_b": zeros((cfg["clip_img_dim"],)),
        "token_emb": W((2, E), dtype=jnp.float32),
        "pos_embed": W((1, num_tokens, E), dtype=jnp.float32),
        "pos_embed_token": W((1, 1, E), dtype=jnp.float32),
        "in_blocks": [make_block(False) for _ in range(depth // 2)],
        "mid_block": make_block(False),
        "out_blocks": [make_block(True) for _ in range(depth // 2)],
        "norm_g": ones((E,)), "norm_b": zeros((E,)),
        "dec_w": W((E, patch_dim)), "dec_b": zeros((patch_dim,)),
    }
    return P


# ----------------------------------------------------------------------------- main

if __name__ == "__main__":
    cfg = dict(
        img_size=16, in_chans=4, patch_size=2, embed_dim=64, depth=2,
        num_heads=4, mlp_ratio=4.0, text_dim=32, num_text_tokens=8,
        clip_img_dim=32,
    )

    key = jax.random.PRNGKey(0)
    kp, k1, k2, k3 = jax.random.split(key, 4)
    P = init_params(kp, cfg)

    bs = 1
    img = jax.random.normal(k1, (bs, cfg["in_chans"], cfg["img_size"], cfg["img_size"]),
                            jnp.float32)
    clip_img = jax.random.normal(k2, (bs, 1, cfg["clip_img_dim"]), jnp.float32)
    text = jax.random.normal(k3, (2 * bs, cfg["num_text_tokens"], cfg["text_dim"]),
                             jnp.float32)
    t_img = jnp.array([3.0], jnp.float32)
    t_text = jnp.array([5.0, 7.0], jnp.float32)
    data_type = jnp.array([1], jnp.int32)

    @jax.jit
    def forward(P, img, clip_img, text, t_img, t_text, data_type):
        return uvit_forward(P, cfg, img, clip_img, text, t_img, t_text, data_type)

    img_out, clip_out = forward(P, img, clip_img, text, t_img, t_text, data_type)
    jax.block_until_ready((img_out, clip_out))

    assert img_out.shape == (2 * bs, cfg["in_chans"], cfg["img_size"], cfg["img_size"])
    assert clip_out.shape == (2 * bs, 1, cfg["clip_img_dim"])
    assert bool(jnp.isfinite(img_out).all()) and bool(jnp.isfinite(clip_out).all())
    print("KERNEL_OK")
</pallas_src>

<mosaic_0001>
module attributes {stable_mosaic.version = 11 : i64} {
  func.func @_matmul_kernel(%arg0: i32, %arg1: i32, %arg2: i32, %arg3: memref<16x32xf32, #tpu.memory_space<vmem>>, %arg4: memref<32x64xbf16, #tpu.memory_space<vmem>>, %arg5: memref<1x64xf32, #tpu.memory_space<vmem>>, %arg6: memref<16x64xf32, #tpu.memory_space<vmem>>, %arg7: memref<16x64xf32, #tpu.memory_space<vmem>>) attributes {dimension_semantics = [#tpu.dimension_semantics<parallel>, #tpu.dimension_semantics<parallel>, #tpu.dimension_semantics<arbitrary>], iteration_bounds = array<i64: 1, 1, 1>, scalar_prefetch = 0 : i64, scratch_operands = 1 : i64, tpu.core_type = #tpu.core_type<tc>, window_params = [{transform_indices = @transform_0, window_bounds = array<i64: 16, 32>}, {transform_indices = @transform_1, window_bounds = array<i64: 32, 64>}, {transform_indices = @transform_2, window_bounds = array<i64: 1, 64>}, {transform_indices = @transform_3, window_bounds = array<i64: 16, 64>}]} {
    %c0_i32 = arith.constant 0 : i32
    %0 = arith.cmpi eq, %arg2, %c0_i32 : i32
    %1 = arith.extui %0 : i1 to i32
    %c0_i32_0 = arith.constant 0 : i32
    %2 = arith.cmpi ne, %1, %c0_i32_0 : i32
    scf.if %2 {
      %cst_10 = arith.constant 0.000000e+00 : f32
      %13 = vector.broadcast %cst_10 : f32 to vector<16x64xf32>
      %c0_11 = arith.constant 0 : index
      %c0_12 = arith.constant 0 : index
      %14 = vector.load %arg7[%c0_11, %c0_12] : memref<16x64xf32, #tpu.memory_space<vmem>>, vector<16x64xf32>
      tpu.vector_store %arg7[%c0_11, %c0_12], %13 {strides = array<i32>} : memref<16x64xf32, #tpu.memory_space<vmem>>, vector<16x64xf32>,
    } else {
    }
    %c0 = arith.constant 0 : index
    %c0_1 = arith.constant 0 : index
    %3 = vector.load %arg3[%c0, %c0_1] : memref<16x32xf32, #tpu.memory_space<vmem>>, vector<16x32xf32>
    %4 = arith.truncf %3 : vector<16x32xf32> to vector<16x32xbf16>
    %c0_2 = arith.constant 0 : index
    %c0_3 = arith.constant 0 : index
    %5 = vector.load %arg4[%c0_2, %c0_3] : memref<32x64xbf16, #tpu.memory_space<vmem>>, vector<32x64xbf16>
    %cst = arith.constant dense<0.000000e+00> : vector<16x64xf32>
    %6 = tpu.matmul %4, %5, %cst {dimension_numbers = #tpu.dot_dimension_numbers<[1], [0], [0], [1], [0, 0, 1, 1], [], []>} : vector<16x32xbf16>, vector<32x64xbf16>, vector<16x64xf32> -> vector<16x64xf32>
    %c0_4 = arith.constant 0 : index
    %c0_5 = arith.constant 0 : index
    %7 = vector.load %arg7[%c0_4, %c0_5] : memref<16x64xf32, #tpu.memory_space<vmem>>, vector<16x64xf32>
    %8 = arith.addf %7, %6 : vector<16x64xf32>
    %c0_6 = arith.constant 0 : index
    %c0_7 = arith.constant 0 : index
    %9 = vector.load %arg7[%c0_6, %c0_7] : memref<16x64xf32, #tpu.memory_space<vmem>>, vector<16x64xf32>
    tpu.vector_store %arg7[%c0_6, %c0_7], %8 {strides = array<i32>} : memref<16x64xf32, #tpu.memory_space<vmem>>, vector<16x64xf32>,
    %c0_i32_8 = arith.constant 0 : i32
    %10 = arith.cmpi eq, %arg2, %c0_i32_8 : i32
    %11 = arith.extui %10 : i1 to i32
    %c0_i32_9 = arith.constant 0 : i32
    %12 = arith.cmpi ne, %11, %c0_i32_9 : i32
    scf.if %12 {
      %c0_10 = arith.constant 0 : index
      %c0_11 = arith.constant 0 : index
      %13 = vector.load %arg7[%c0_10, %c0_11] : memref<16x64xf32, #tpu.memory_space<vmem>>, vector<16x64xf32>
      %c0_12 = arith.constant 0 : index
      %c0_13 = arith.constant 0 : index
      %14 = vector.load %arg5[%c0_12, %c0_13] : memref<1x64xf32, #tpu.memory_space<vmem>>, vector<1x64xf32>
      %15 = vector.broadcast %14 : vector<1x64xf32> to vector<16x64xf32>
      %16 = arith.addf %13, %15 : vector<16x64xf32>
      %c0_14 = arith.constant 0 : index
      %c0_15 = arith.constant 0 : index
      %17 = vector.load %arg6[%c0_14, %c0_15] : memref<16x64xf32, #tpu.memory_space<vmem>>, vector<16x64xf32>
      tpu.vector_store %arg6[%c0_14, %c0_15], %16 {strides = array<i32>} : memref<16x64xf32, #tpu.memory_space<vmem>>, vector<16x64xf32>,
    } else {
    }
    return
  }
  func.func @transform_0(%arg0: i32, %arg1: i32, %arg2: i32) -> (i32, i32) {
    %c0_i32 = arith.constant 0 : i32
    return %arg0, %arg2 : i32, i32
  }
  func.func @transform_1(%arg0: i32, %arg1: i32, %arg2: i32) -> (i32, i32) {
    %c0_i32 = arith.constant 0 : i32
    return %arg2, %arg1 : i32, i32
  }
  func.func @transform_2(%arg0: i32, %arg1: i32, %arg2: i32) -> (i32, i32) {
    %c0_i32 = arith.constant 0 : i32
    %c0_i32_0 = arith.constant 0 : i32
    return %c0_i32, %arg1 : i32, i32
  }
  func.func @transform_3(%arg0: i32, %arg1: i32, %arg2: i32) -> (i32, i32) {
    %c0_i32 = arith.constant 0 : i32
    return %arg0, %arg1 : i32, i32
  }
}

module attributes {stable_mosaic.version = 11 : i64} {
  func.func @_matmul_kernel(%arg0: i32, %arg1: i32, %arg2: i32, %arg3: memref<1x32xf32, #tpu.memory_space<vmem>>, %arg4: memref<32x64xbf16, #tpu.memory_space<vmem>>, %arg5: memref<1x64xf32, #tpu.memory_space<vmem>>, %arg6: memref<1x64xf32, #tpu.memory_space<vmem>>, %arg7: memref<1x64xf32, #tpu.memory_space<vmem>>) attributes {dimension_semantics = [#tpu.dimension_semantics<parallel>, #tpu.dimension_semantics<parallel>, #tpu.dimension_semantics<arbitrary>], iteration_bounds = array<i64: 1, 1, 1>, scalar_prefetch = 0 : i64, scratch_operands = 1 : i64, tpu.core_type = #tpu.core_type<tc>, window_params = [{transform_indices = @transform_0, window_bounds = array<i64: 1, 32>}, {transform_indices = @transform_1, window_bounds = array<i64: 32, 64>}, {transform_indices = @transform_2, window_bounds = array<i64: 1, 64>}, {transform_indices = @transform_3, window_bounds = array<i64: 1, 64>}]} {
    %c0_i32 = arith.constant 0 : i32
    %0 = arith.cmpi eq, %arg2, %c0_i32 : i32
    %1 = arith.extui %0 : i1 to i32
    %c0_i32_0 = arith.constant 0 : i32
    %2 = arith.cmpi ne, %1, %c0_i32_0 : i32
    scf.if %2 {
      %cst_10 = arith.constant 0.000000e+00 : f32
      %13 = vector.broadcast %cst_10 : f32 to vector<1x64xf32>
      %c0_11 = arith.constant 0 : index
      %c0_12 = arith.constant 0 : index
      %14 = vector.load %arg7[%c0_11, %c0_12] : memref<1x64xf32, #tpu.memory_space<vmem>>, vector<1x64xf32>
      tpu.vector_store %arg7[%c0_11, %c0_12], %13 {strides = array<i32>} : memref<1x64xf32, #tpu.memory_space<vmem>>, vector<1x64xf32>,
    } else {
    }
    %c0 = arith.constant 0 : index
    %c0_1 = arith.constant 0 : index
    %3 = vector.load %arg3[%c0, %c0_1] : memref<1x32xf32, #tpu.memory_space<vmem>>, vector<1x32xf32>
    %4 = arith.truncf %3 : vector<1x32xf32> to vector<1x32xbf16>
    %c0_2 = arith.constant 0 : index
    %c0_3 = arith.constant 0 : index
    %5 = vector.load %arg4[%c0_2, %c0_3] : memref<32x64xbf16, #tpu.memory_space<vmem>>, vector<32x64xbf16>
    %cst = arith.constant dense<0.000000e+00> : vector<1x64xf32>
    %6 = tpu.matmul %4, %5, %cst {dimension_numbers = #tpu.dot_dimension_numbers<[1], [0], [0], [1], [0, 0, 1, 1], [], []>} : vector<1x32xbf16>, vector<32x64xbf16>, vector<1x64xf32> -> vector<1x64xf32>
    %c0_4 = arith.constant 0 : index
    %c0_5 = arith.constant 0 : index
    %7 = vector.load %arg7[%c0_4, %c0_5] : memref<1x64xf32, #tpu.memory_space<vmem>>, vector<1x64xf32>
    %8 = arith.addf %7, %6 : vector<1x64xf32>
    %c0_6 = arith.constant 0 : index
    %c0_7 = arith.constant 0 : index
    %9 = vector.load %arg7[%c0_6, %c0_7] : memref<1x64xf32, #tpu.memory_space<vmem>>, vector<1x64xf32>
    tpu.vector_store %arg7[%c0_6, %c0_7], %8 {strides = array<i32>} : memref<1x64xf32, #tpu.memory_space<vmem>>, vector<1x64xf32>,
    %c0_i32_8 = arith.constant 0 : i32
    %10 = arith.cmpi eq, %arg2, %c0_i32_8 : i32
    %11 = arith.extui %10 : i1 to i32
    %c0_i32_9 = arith.constant 0 : i32
    %12 = arith.cmpi ne, %11, %c0_i32_9 : i32
    scf.if %12 {
      %c0_10 = arith.constant 0 : index
      %c0_11 = arith.constant 0 : index
      %13 = vector.load %arg7[%c0_10, %c0_11] : memref<1x64xf32, #tpu.memory_space<vmem>>, vector<1x64xf32>
      %c0_12 = arith.constant 0 : index
      %c0_13 = arith.constant 0 : index
      %14 = vector.load %arg5[%c0_12, %c0_13] : memref<1x64xf32, #tpu.memory_space<vmem>>, vector<1x64xf32>
      %15 = arith.addf %13, %14 : vector<1x64xf32>
      %c0_14 = arith.constant 0 : index
      %c0_15 = arith.constant 0 : index
      %16 = vector.load %arg6[%c0_14, %c0_15] : memref<1x64xf32, #tpu.memory_space<vmem>>, vector<1x64xf32>
      tpu.vector_store %arg6[%c0_14, %c0_15], %15 {strides = array<i32>} : memref<1x64xf32, #tpu.memory_space<vmem>>, vector<1x64xf32>,
    } else {
    }
    return
  }
  func.func @transform_0(%arg0: i32, %arg1: i32, %arg2: i32) -> (i32, i32) {
    %c0_i32 = arith.constant 0 : i32
    return %arg0, %arg2 : i32, i32
  }
  func.func @transform_1(%arg0: i32, %arg1: i32, %arg2: i32) -> (i32, i32) {
    %c0_i32 = arith.constant 0 : i32
    return %arg2, %arg1 : i32, i32
  }
  func.func @transform_2(%arg0: i32, %arg1: i32, %arg2: i32) -> (i32, i32) {
    %c0_i32 = arith.constant 0 : i32
    %c0_i32_0 = arith.constant 0 : i32
    return %c0_i32, %arg1 : i32, i32
  }
  func.func @transform_3(%arg0: i32, %arg1: i32, %arg2: i32) -> (i32, i32) {
    %c0_i32 = arith.constant 0 : i32
    return %arg0, %arg1 : i32, i32
  }
}

module attributes {stable_mosaic.version = 11 : i64} {
  func.func @_matmul_kernel(%arg0: i32, %arg1: i32, %arg2: i32, %arg3: memref<64x16xf32, #tpu.memory_space<vmem>>, %arg4: memref<16x64xbf16, #tpu.memory_space<vmem>>, %arg5: memref<1x64xf32, #tpu.memory_space<vmem>>, %arg6: memref<64x64xf32, #tpu.memory_space<vmem>>, %arg7: memref<64x64xf32, #tpu.memory_space<vmem>>) attributes {dimension_semantics = [#tpu.dimension_semantics<parallel>, #tpu.dimension_semantics<parallel>, #tpu.dimension_semantics<arbitrary>], iteration_bounds = array<i64: 1, 1, 1>, scalar_prefetch = 0 : i64, scratch_operands = 1 : i64, tpu.core_type = #tpu.core_type<tc>, window_params = [{transform_indices = @transform_0, window_bounds = array<i64: 64, 16>}, {transform_indices = @transform_1, window_bounds = array<i64: 16, 64>}, {transform_indices = @transform_2, window_bounds = array<i64: 1, 64>}, {transform_indices = @transform_3, window_bounds = array<i64: 64, 64>}]} {
    %c0_i32 = arith.constant 0 : i32
    %0 = arith.cmpi eq, %arg2, %c0_i32 : i32
    %1 = arith.extui %0 : i1 to i32
    %c0_i32_0 = arith.constant 0 : i32
    %2 = arith.cmpi ne, %1, %c0_i32_0 : i32
    scf.if %2 {
      %cst_10 = arith.constant 0.000000e+00 : f32
      %13 = vector.broadcast %cst_10 : f32 to vector<64x64xf32>
      %c0_11 = arith.constant 0 : index
      %c0_12 = arith.constant 0 : index
      %14 = vector.load %arg7[%c0_11, %c0_12] : memref<64x64xf32, #tpu.memory_space<vmem>>, vector<64x64xf32>
      tpu.vector_store %arg7[%c0_11, %c0_12], %13 {strides = array<i32>} : memref<64x64xf32, #tpu.memory_space<vmem>>, vector<64x64xf32>,
    } else {
    }
    %c0 = arith.constant 0 : index
    %c0_1 = arith.constant 0 : index
    %3 = vector.load %arg3[%c0, %c0_1] : memref<64x16xf32, #tpu.memory_space<vmem>>, vector<64x16xf32>
    %4 = arith.truncf %3 : vector<64x16xf32> to vector<64x16xbf16>
    %c0_2 = arith.constant 0 : index
    %c0_3 = arith.constant 0 : index
    %5 = vector.load %arg4[%c0_2, %c0_3] : memref<16x64xbf16, #tpu.memory_space<vmem>>, vector<16x64xbf16>
    %cst = arith.constant dense<0.000000e+00> : vector<64x64xf32>
    %6 = tpu.matmul %4, %5, %cst {dimension_numbers = #tpu.dot_dimension_numbers<[1], [0], [0], [1], [0, 0, 1, 1], [], []>} : vector<64x16xbf16>, vector<16x64xbf16>, vector<64x64xf32> -> vector<64x64xf32>
    %c0_4 = arith.constant 0 : index
    %c0_5 = arith.constant 0 : index
    %7 = vector.load %arg7[%c0_4, %c0_5] : memref<64x64xf32, #tpu.memory_space<vmem>>, vector<64x64xf32>
    %8 = arith.addf %7, %6 : vector<64x64xf32>
    %c0_6 = arith.constant 0 : index
    %c0_7 = arith.constant 0 : index
    %9 = vector.load %arg7[%c0_6, %c0_7] : memref<64x64xf32, #tpu.memory_space<vmem>>, vector<64x64xf32>
    tpu.vector_store %arg7[%c0_6, %c0_7], %8 {strides = array<i32>} : memref<64x64xf32, #tpu.memory_space<vmem>>, vector<64x64xf32>,
    %c0_i32_8 = arith.constant 0 : i32
    %10 = arith.cmpi eq, %arg2, %c0_i32_8 : i32
    %11 = arith.extui %10 : i1 to i32
    %c0_i32_9 = arith.constant 0 : i32
    %12 = arith.cmpi ne, %11, %c0_i32_9 : i32
    scf.if %12 {
      %c0_10 = arith.constant 0 : index
      %c0_11 = arith.constant 0 : index
      %13 = vector.load %arg7[%c0_10, %c0_11] : memref<64x64xf32, #tpu.memory_space<vmem>>, vector<64x64xf32>
      %c0_12 = arith.constant 0 : index
      %c0_13 = arith.constant 0 : index
      %14 = vector.load %arg5[%c0_12, %c0_13] : memref<1x64xf32, #tpu.memory_space<vmem>>, vector<1x64xf32>
      %15 = vector.broadcast %14 : vector<1x64xf32> to vector<64x64xf32>
      %16 = arith.addf %13, %15 : vector<64x64xf32>
      %c0_14 = arith.constant 0 : index
      %c0_15 = arith.constant 0 : index
      %17 = vector.load %arg6[%c0_14, %c0_15] : memref<64x64xf32, #tpu.memory_space<vmem>>, vector<64x64xf32>
      tpu.vector_store %arg6[%c0_14, %c0_15], %16 {strides = array<i32>} : memref<64x64xf32, #tpu.memory_space<vmem>>, vector<64x64xf32>,
    } else {
    }
    return
  }
  func.func @transform_0(%arg0: i32, %arg1: i32, %arg2: i32) -> (i32, i32) {
    %c0_i32 = arith.constant 0 : i32
    return %arg0, %arg2 : i32, i32
  }
  func.func @transform_1(%arg0: i32, %arg1: i32, %arg2: i32) -> (i32, i32) {
    %c0_i32 = arith.constant 0 : i32
    return %arg2, %arg1 : i32, i32
  }
  func.func @transform_2(%arg0: i32, %arg1: i32, %arg2: i32) -> (i32, i32) {
    %c0_i32 = arith.constant 0 : i32
    %c0_i32_0 = arith.constant 0 : i32
    return %c0_i32, %arg1 : i32, i32
  }
  func.func @transform_3(%arg0: i32, %arg1: i32, %arg2: i32) -> (i32, i32) {
    %c0_i32 = arith.constant 0 : i32
    return %arg0, %arg1 : i32, i32
  }
}

module attributes {stable_mosaic.version = 11 : i64} {
  func.func @_attn_kernel_packed(%arg0: i32, %arg1: memref<1x76x192xbf16, #tpu.memory_space<vmem>>, %arg2: memref<1x76x64xbf16, #tpu.memory_space<vmem>>) attributes {dimension_semantics = [#tpu.dimension_semantics<parallel>], iteration_bounds = array<i64: 2>, scalar_prefetch = 0 : i64, scratch_operands = 0 : i64, tpu.core_type = #tpu.core_type<tc>, window_params = [{transform_indices = @transform_0, window_bounds = array<i64: 1, 76, 192>}, {transform_indices = @transform_1, window_bounds = array<i64: 1, 76, 64>}]} {
    %c0 = arith.constant 0 : index
    %c0_0 = arith.constant 0 : index
    %c0_1 = arith.constant 0 : index
    %0 = vector.load %arg1[%c0, %c0_0, %c0_1] : memref<1x76x192xbf16, #tpu.memory_space<vmem>>, vector<1x76x192xbf16>
    %1 = vector.shape_cast %0 : vector<1x76x192xbf16> to vector<76x192xbf16>
    %2 = vector.extract_strided_slice %1 {offsets = [0, 0], sizes = [76, 64], strides = [1, 1]} : vector<76x192xbf16> to vector<76x64xbf16>
    %3 = vector.extract_strided_slice %1 {offsets = [0, 64], sizes = [76, 64], strides = [1, 1]} : vector<76x192xbf16> to vector<76x64xbf16>
    %4 = vector.extract_strided_slice %1 {offsets = [0, 128], sizes = [76, 64], strides = [1, 1]} : vector<76x192xbf16> to vector<76x64xbf16>
    %5 = arith.extf %2 : vector<76x64xbf16> to vector<76x64xf32>
    %cst = arith.constant 2.500000e-01 : f32
    %6 = vector.broadcast %cst : f32 to vector<76x64xf32>
    %7 = arith.mulf %5, %6 : vector<76x64xf32>
    %8 = arith.truncf %7 : vector<76x64xf32> to vector<76x64xbf16>
    %9 = vector.extract_strided_slice %8 {offsets = [0, 0], sizes = [76, 16], strides = [1, 1]} : vector<76x64xbf16> to vector<76x16xbf16>
    %10 = vector.extract_strided_slice %3 {offsets = [0, 0], sizes = [76, 16], strides = [1, 1]} : vector<76x64xbf16> to vector<76x16xbf16>
    %cst_2 = arith.constant dense<0.000000e+00> : vector<76x76xf32>
    %11 = tpu.matmul %9, %10, %cst_2 {dimension_numbers = #tpu.dot_dimension_numbers<[1], [1], [0], [0], [0, 0, 1, 0], [], []>} : vector<76x16xbf16>, vector<76x16xbf16>, vector<76x76xf32> -> vector<76x76xf32>
    %cst_3 = arith.constant dense<0xFF800000> : vector<76xf32>
    %12 = vector.multi_reduction <maximumf>, %11, %cst_3 [1] : vector<76x76xf32> to vector<76xf32>
    %13 = vector.shape_cast %12 : vector<76xf32> to vector<76x1xf32>
    %14 = vector.broadcast %13 : vector<76x1xf32> to vector<76x76xf32>
    %15 = arith.subf %11, %14 : vector<76x76xf32>
    %16 = math.exp %15 : vector<76x76xf32>
    %cst_4 = arith.constant dense<0.000000e+00> : vector<76xf32>
    %17 = vector.multi_reduction <add>, %16, %cst_4 [1] : vector<76x76xf32> to vector<76xf32>
    %18 = vector.shape_cast %17 : vector<76xf32> to vector<76x1xf32>
    %19 = tpu.reciprocal %18 {approx = true} : vector<76x1xf32> -> vector<76x1xf32>
    %20 = vector.broadcast %19 : vector<76x1xf32> to vector<76x76xf32>
    %21 = arith.mulf %16, %20 : vector<76x76xf32>
    %22 = arith.truncf %21 : vector<76x76xf32> to vector<76x76xbf16>
    %23 = vector.extract_strided_slice %4 {offsets = [0, 0], sizes = [76, 16], strides = [1, 1]} : vector<76x64xbf16> to vector<76x16xbf16>
    %cst_5 = arith.constant dense<0.000000e+00> : vector<76x16xf32>
    %24 = tpu.matmul %22, %23, %cst_5 {dimension_numbers = #tpu.dot_dimension_numbers<[1], [0], [0], [1], [0, 0, 1, 1], [], []>} : vector<76x76xbf16>, vector<76x16xbf16>, vector<76x16xf32> -> vector<76x16xf32>
    %25 = arith.truncf %24 : vector<76x16xf32> to vector<76x16xbf16>
    %c0_6 = arith.constant 0 : index
    %c0_7 = arith.constant 0 : index
    %c0_8 = arith.constant 0 : index
    %26 = vector.load %arg2[%c0_6, %c0_7, %c0_8] : memref<1x76x64xbf16, #tpu.memory_space<vmem>>, vector<1x76x16xbf16>
    %27 = vector.shape_cast %26 : vector<1x76x16xbf16> to vector<76x16xbf16>
    %28 = vector.shape_cast %25 : vector<76x16xbf16> to vector<1x76x16xbf16>
    tpu.vector_store %arg2[%c0_6, %c0_7, %c0_8], %28 {strides = array<i32>} : memref<1x76x64xbf16, #tpu.memory_space<vmem>>, vector<1x76x16xbf16>,
    %29 = vector.extract_strided_slice %8 {offsets = [0, 16], sizes = [76, 16], strides = [1, 1]} : vector<76x64xbf16> to vector<76x16xbf16>
    %30 = vector.extract_strided_slice %3 {offsets = [0, 16], sizes = [76, 16], strides = [1, 1]} : vector<76x64xbf16> to vector<76x16xbf16>
    %cst_9 = arith.constant dense<0.000000e+00> : vector<76x76xf32>
    %31 = tpu.matmul %29, %30, %cst_9 {dimension_numbers = #tpu.dot_dimension_numbers<[1], [1], [0], [0], [0, 0, 1, 0], [], []>} : vector<76x16xbf16>, vector<76x16xbf16>, vector<76x76xf32> -> vector<76x76xf32>
    %cst_10 = arith.constant dense<0xFF800000> : vector<76xf32>
    %32 = vector.multi_reduction <maximumf>, %31, %cst_10 [1] : vector<76x76xf32> to vector<76xf32>
    %33 = vector.shape_cast %32 : vector<76xf32> to vector<76x1xf32>
    %34 = vector.broadcast %33 : vector<76x1xf32> to vector<76x76xf32>
    %35 = arith.subf %31, %34 : vector<76x76xf32>
    %36 = math.exp %35 : vector<76x76xf32>
    %cst_11 = arith.constant dense<0.000000e+00> : vector<76xf32>
    %37 = vector.multi_reduction <add>, %36, %cst_11 [1] : vector<76x76xf32> to vector<76xf32>
    %38 = vector.shape_cast %37 : vector<76xf32> to vector<76x1xf32>
    %39 = tpu.reciprocal %38 {approx = true} : vector<76x1xf32> -> vector<76x1xf32>
    %40 = vector.broadcast %39 : vector<76x1xf32> to vector<76x76xf32>
    %41 = arith.mulf %36, %40 : vector<76x76xf32>
    %42 = arith.truncf %41 : vector<76x76xf32> to vector<76x76xbf16>
    %43 = vector.extract_strided_slice %4 {offsets = [0, 16], sizes = [76, 16], strides = [1, 1]} : vector<76x64xbf16> to vector<76x16xbf16>
    %cst_12 = arith.constant dense<0.000000e+00> : vector<76x16xf32>
    %44 = tpu.matmul %42, %43, %cst_12 {dimension_numbers = #tpu.dot_dimension_numbers<[1], [0], [0], [1], [0, 0, 1, 1], [], []>} : vector<76x76xbf16>, vector<76x16xbf16>, vector<76x16xf32> -> vector<76x16xf32>
    %45 = arith.truncf %44 : vector<76x16xf32> to vector<76x16xbf16>
    %c0_13 = arith.constant 0 : index
    %c0_14 = arith.constant 0 : index
    %c16 = arith.constant 16 : index
    %46 = vector.load %arg2[%c0_13, %c0_14, %c16] : memref<1x76x64xbf16, #tpu.memory_space<vmem>>, vector<1x76x16xbf16>
    %47 = vector.shape_cast %46 : vector<1x76x16xbf16> to vector<76x16xbf16>
    %48 = vector.shape_cast %45 : vector<76x16xbf16> to vector<1x76x16xbf16>
    tpu.vector_store %arg2[%c0_13, %c0_14, %c16], %48 {strides = array<i32>} : memref<1x76x64xbf16, #tpu.memory_space<vmem>>, vector<1x76x16xbf16>,
    %49 = vector.extract_strided_slice %8 {offsets = [0, 32], sizes = [76, 16], strides = [1, 1]} : vector<76x64xbf16> to vector<76x16xbf16>
    %50 = vector.extract_strided_slice %3 {offsets = [0, 32], sizes = [76, 16], strides = [1, 1]} : vector<76x64xbf16> to vector<76x16xbf16>
    %cst_15 = arith.constant dense<0.000000e+00> : vector<76x76xf32>
    %51 = tpu.matmul %49, %50, %cst_15 {dimension_numbers = #tpu.dot_dimension_numbers<[1], [1], [0], [0], [0, 0, 1, 0], [], []>} : vector<76x16xbf16>, vector<76x16xbf16>, vector<76x76xf32> -> vector<76x76xf32>
    %cst_16 = arith.constant dense<0xFF800000> : vector<76xf32>
    %52 = vector.multi_reduction <maximumf>, %51, %cst_16 [1] : vector<76x76xf32> to vector<76xf32>
    %53 = vector.shape_cast %52 : vector<76xf32> to vector<76x1xf32>
    %54 = vector.broadcast %53 : vector<76x1xf32> to vector<76x76xf32>
    %55 = arith.subf %51, %54 : vector<76x76xf32>
    %56 = math.exp %55 : vector<76x76xf32>
    %cst_17 = arith.constant dense<0.000000e+00> : vector<76xf32>
    %57 = vector.multi_reduction <add>, %56, %cst_17 [1] : vector<76x76xf32> to vector<76xf32>
    %58 = vector.shape_cast %57 : vector<76xf32> to vector<76x1xf32>
    %59 = tpu.reciprocal %58 {approx = true} : vector<76x1xf32> -> vector<76x1xf32>
    %60 = vector.broadcast %59 : vector<76x1xf32> to vector<76x76xf32>
    %61 = arith.mulf %56, %60 : vector<76x76xf32>
    %62 = arith.truncf %61 : vector<76x76xf32> to vector<76x76xbf16>
    %63 = vector.extract_strided_slice %4 {offsets = [0, 32], sizes = [76, 16], strides = [1, 1]} : vector<76x64xbf16> to vector<76x16xbf16>
    %cst_18 = arith.constant dense<0.000000e+00> : vector<76x16xf32>
    %64 = tpu.matmul %62, %63, %cst_18 {dimension_numbers = #tpu.dot_dimension_numbers<[1], [0], [0], [1], [0, 0, 1, 1], [], []>} : vector<76x76xbf16>, vector<76x16xbf16>, vector<76x16xf32> -> vector<76x16xf32>
    %65 = arith.truncf %64 : vector<76x16xf32> to vector<76x16xbf16>
    %c0_19 = arith.constant 0 : index
    %c0_20 = arith.constant 0 : index
    %c32 = arith.constant 32 : index
    %66 = vector.load %arg2[%c0_19, %c0_20, %c32] : memref<1x76x64xbf16, #tpu.memory_space<vmem>>, vector<1x76x16xbf16>
    %67 = vector.shape_cast %66 : vector<1x76x16xbf16> to vector<76x16xbf16>
    %68 = vector.shape_cast %65 : vector<76x16xbf16> to vector<1x76x16xbf16>
    tpu.vector_store %arg2[%c0_19, %c0_20, %c32], %68 {strides = array<i32>} : memref<1x76x64xbf16, #tpu.memory_space<vmem>>, vector<1x76x16xbf16>,
    %69 = vector.extract_strided_slice %8 {offsets = [0, 48], sizes = [76, 16], strides = [1, 1]} : vector<76x64xbf16> to vector<76x16xbf16>
    %70 = vector.extract_strided_slice %3 {offsets = [0, 48], sizes = [76, 16], strides = [1, 1]} : vector<76x64xbf16> to vector<76x16xbf16>
    %cst_21 = arith.constant dense<0.000000e+00> : vector<76x76xf32>
    %71 = tpu.matmul %69, %70, %cst_21 {dimension_numbers = #tpu.dot_dimension_numbers<[1], [1], [0], [0], [0, 0, 1, 0], [], []>} : vector<76x16xbf16>, vector<76x16xbf16>, vector<76x76xf32> -> vector<76x76xf32>
    %cst_22 = arith.constant dense<0xFF800000> : vector<76xf32>
    %72 = vector.multi_reduction <maximumf>, %71, %cst_22 [1] : vector<76x76xf32> to vector<76xf32>
    %73 = vector.shape_cast %72 : vector<76xf32> to vector<76x1xf32>
    %74 = vector.broadcast %73 : vector<76x1xf32> to vector<76x76xf32>
    %75 = arith.subf %71, %74 : vector<76x76xf32>
    %76 = math.exp %75 : vector<76x76xf32>
    %cst_23 = arith.constant dense<0.000000e+00> : vector<76xf32>
    %77 = vector.multi_reduction <add>, %76, %cst_23 [1] : vector<76x76xf32> to vector<76xf32>
    %78 = vector.shape_cast %77 : vector<76xf32> to vector<76x1xf32>
    %79 = tpu.reciprocal %78 {approx = true} : vector<76x1xf32> -> vector<76x1xf32>
    %80 = vector.broadcast %79 : vector<76x1xf32> to vector<76x76xf32>
    %81 = arith.mulf %76, %80 : vector<76x76xf32>
    %82 = arith.truncf %81 : vector<76x76xf32> to vector<76x76xbf16>
    %83 = vector.extract_strided_slice %4 {offsets = [0, 48], sizes = [76, 16], strides = [1, 1]} : vector<76x64xbf16> to vector<76x16xbf16>
    %cst_24 = arith.constant dense<0.000000e+00> : vector<76x16xf32>
    %84 = tpu.matmul %82, %83, %cst_24 {dimension_numbers = #tpu.dot_dimension_numbers<[1], [0], [0], [1], [0, 0, 1, 1], [], []>} : vector<76x76xbf16>, vector<76x16xbf16>, vector<76x16xf32> -> vector<76x16xf32>
    %85 = arith.truncf %84 : vector<76x16xf32> to vector<76x16xbf16>
    %c0_25 = arith.constant 0 : index
    %c0_26 = arith.constant 0 : index
    %c48 = arith.constant 48 : index
    %86 = vector.load %arg2[%c0_25, %c0_26, %c48] : memref<1x76x64xbf16, #tpu.memory_space<vmem>>, vector<1x76x16xbf16>
    %87 = vector.shape_cast %86 : vector<1x76x16xbf16> to vector<76x16xbf16>
    %88 = vector.shape_cast %85 : vector<76x16xbf16> to vector<1x76x16xbf16>
    tpu.vector_store %arg2[%c0_25, %c0_26, %c48], %88 {strides = array<i32>} : memref<1x76x64xbf16, #tpu.memory_space<vmem>>, vector<1x76x16xbf16>,
    return
  }
  func.func @transform_0(%arg0: i32) -> (i32, i32, i32) {
    %c0_i32 = arith.constant 0 : i32
    %c0_i32_0 = arith.constant 0 : i32
    %c0_i32_1 = arith.constant 0 : i32
    return %arg0, %c0_i32, %c0_i32_0 : i32, i32, i32
  }
  func.func @transform_1(%arg0: i32) -> (i32, i32, i32) {
    %c0_i32 = arith.constant 0 : i32
    %c0_i32_0 = arith.constant 0 : i32
    %c0_i32_1 = arith.constant 0 : i32
    return %arg0, %c0_i32, %c0_i32_0 : i32, i32, i32
  }
}

module attributes {stable_mosaic.version = 11 : i64} {
  func.func @_matmul_kernel(%arg0: i32, %arg1: i32, %arg2: i32, %arg3: memref<152x64xbf16, #tpu.memory_space<vmem>>, %arg4: memref<64x64xbf16, #tpu.memory_space<vmem>>, %arg5: memref<1x64xf32, #tpu.memory_space<vmem>>, %arg6: memref<152x64xbf16, #tpu.memory_space<vmem>>, %arg7: memref<1x64xf32, #tpu.memory_space<vmem>>, %arg8: memref<1x64xf32, #tpu.memory_space<vmem>>, %arg9: memref<152x64xbf16, #tpu.memory_space<vmem>>, %arg10: memref<152x64xf32, #tpu.memory_space<vmem>>) attributes {dimension_semantics = [#tpu.dimension_semantics<parallel>, #tpu.dimension_semantics<parallel>, #tpu.dimension_semantics<arbitrary>], iteration_bounds = array<i64: 1, 1, 1>, scalar_prefetch = 0 : i64, scratch_operands = 1 : i64, tpu.core_type = #tpu.core_type<tc>, window_params = [{transform_indices = @transform_0, window_bounds = array<i64: 152, 64>}, {transform_indices = @transform_1, window_bounds = array<i64: 64, 64>}, {transform_indices = @transform_2, window_bounds = array<i64: 1, 64>}, {transform_indices = @transform_3, window_bounds = array<i64: 152, 64>}, {transform_indices = @transform_4, window_bounds = array<i64: 1, 64>}, {transform_indices = @transform_5, window_bounds = array<i64: 1, 64>}, {transform_indices = @transform_6, window_bounds = array<i64: 152, 64>}]} {
    %c0_i32 = arith.constant 0 : i32
    %0 = arith.cmpi eq, %arg2, %c0_i32 : i32
    %1 = arith.extui %0 : i1 to i32
    %c0_i32_0 = arith.constant 0 : i32
    %2 = arith.cmpi ne, %1, %c0_i32_0 : i32
    scf.if %2 {
      %cst_10 = arith.constant 0.000000e+00 : f32
      %12 = vector.broadcast %cst_10 : f32 to vector<152x64xf32>
      %c0_11 = arith.constant 0 : index
      %c0_12 = arith.constant 0 : index
      %13 = vector.load %arg10[%c0_11, %c0_12] : memref<152x64xf32, #tpu.memory_space<vmem>>, vector<152x64xf32>
      tpu.vector_store %arg10[%c0_11, %c0_12], %12 {strides = array<i32>} : memref<152x64xf32, #tpu.memory_space<vmem>>, vector<152x64xf32>,
    } else {
    }
    %c0 = arith.constant 0 : index
    %c0_1 = arith.constant 0 : index
    %3 = vector.load %arg3[%c0, %c0_1] : memref<152x64xbf16, #tpu.memory_space<vmem>>, vector<152x64xbf16>
    %c0_2 = arith.constant 0 : index
    %c0_3 = arith.constant 0 : index
    %4 = vector.load %arg4[%c0_2, %c0_3] : memref<64x64xbf16, #tpu.memory_space<vmem>>, vector<64x64xbf16>
    %cst = arith.constant dense<0.000000e+00> : vector<152x64xf32>
    %5 = tpu.matmul %3, %4, %cst {dimension_numbers = #tpu.dot_dimension_numbers<[1], [0], [0], [1], [0, 0, 1, 1], [], []>} : vector<152x64xbf16>, vector<64x64xbf16>, vector<152x64xf32> -> vector<152x64xf32>
    %c0_4 = arith.constant 0 : index
    %c0_5 = arith.constant 0 : index
    %6 = vector.load %arg10[%c0_4, %c0_5] : memref<152x64xf32, #tpu.memory_space<vmem>>, vector<152x64xf32>
    %7 = arith.addf %6, %5 : vector<152x64xf32>
    %c0_6 = arith.constant 0 : index
    %c0_7 = arith.constant 0 : index
    %8 = vector.load %arg10[%c0_6, %c0_7] : memref<152x64xf32, #tpu.memory_space<vmem>>, vector<152x64xf32>
    tpu.vector_store %arg10[%c0_6, %c0_7], %7 {strides = array<i32>} : memref<152x64xf32, #tpu.memory_space<vmem>>, vector<152x64xf32>,
    %c0_i32_8 = arith.constant 0 : i32
    %9 = arith.cmpi eq, %arg2, %c0_i32_8 : i32
    %10 = arith.extui %9 : i1 to i32
    %c0_i32_9 = arith.constant 0 : i32
    %11 = arith.cmpi ne, %10, %c0_i32_9 : i32
    scf.if %11 {
      %c0_10 = arith.constant 0 : index
      %c0_11 = arith.constant 0 : index
      %12 = vector.load %arg10[%c0_10, %c0_11] : memref<152x64xf32, #tpu.memory_space<vmem>>, vector<152x64xf32>
      %c0_12 = arith.constant 0 : index
      %c0_13 = arith.constant 0 : index
      %13 = vector.load %arg5[%c0_12, %c0_13] : memref<1x64xf32, #tpu.memory_space<vmem>>, vector<1x64xf32>
      %14 = vector.broadcast %13 : vector<1x64xf32> to vector<152x64xf32>
      %15 = arith.addf %12, %14 : vector<152x64xf32>
      %c0_14 = arith.constant 0 : index
      %c0_15 = arith.constant 0 : index
      %16 = vector.load %arg6[%c0_14, %c0_15] : memref<152x64xbf16, #tpu.memory_space<vmem>>, vector<152x64xbf16>
      %17 = arith.extf %16 : vector<152x64xbf16> to vector<152x64xf32>
      %18 = arith.addf %15, %17 : vector<152x64xf32>
      %c0_16 = arith.constant 0 : index
      %c0_17 = arith.constant 0 : index
      %19 = vector.load %arg7[%c0_16, %c0_17] : memref<1x64xf32, #tpu.memory_space<vmem>>, vector<1x64xf32>
      %c0_18 = arith.constant 0 : index
      %c0_19 = arith.constant 0 : index
      %20 = vector.load %arg8[%c0_18, %c0_19] : memref<1x64xf32, #tpu.memory_space<vmem>>, vector<1x64xf32>
      %cst_20 = arith.constant dense<0.000000e+00> : vector<152xf32>
      %21 = vector.multi_reduction <add>, %18, %cst_20 [1] : vector<152x64xf32> to vector<152xf32>
      %22 = vector.shape_cast %21 : vector<152xf32> to vector<152x1xf32>
      %cst_21 = arith.constant 6.400000e+01 : f32
      %23 = vector.broadcast %cst_21 : f32 to vector<152x1xf32>
      %24 = arith.divf %22, %23 : vector<152x1xf32>
      %25 = vector.broadcast %24 : vector<152x1xf32> to vector<152x64xf32>
      %26 = arith.subf %18, %25 : vector<152x64xf32>
      %27 = arith.mulf %26, %26 : vector<152x64xf32>
      %cst_22 = arith.constant dense<0.000000e+00> : vector<152xf32>
      %28 = vector.multi_reduction <add>, %27, %cst_22 [1] : vector<152x64xf32> to vector<152xf32>
      %29 = vector.shape_cast %28 : vector<152xf32> to vector<152x1xf32>
      %cst_23 = arith.constant 6.400000e+01 : f32
      %30 = vector.broadcast %cst_23 : f32 to vector<152x1xf32>
      %31 = arith.divf %29, %30 : vector<152x1xf32>
      %32 = vector.broadcast %24 : vector<152x1xf32> to vector<152x64xf32>
      %33 = arith.subf %18, %32 : vector<152x64xf32>
      %cst_24 = arith.constant 9.99999974E-6 : f32
      %34 = vector.broadcast %cst_24 : f32 to vector<152x1xf32>
      %35 = arith.addf %31, %34 : vector<152x1xf32>
      %36 = math.rsqrt %35 : vector<152x1xf32>
      %37 = vector.broadcast %36 : vector<152x1xf32> to vector<152x64xf32>
      %38 = arith.mulf %33, %37 : vector<152x64xf32>
      %39 = vector.broadcast %19 : vector<1x64xf32> to vector<152x64xf32>
      %40 = arith.mulf %38, %39 : vector<152x64xf32>
      %41 = vector.broadcast %20 : vector<1x64xf32> to vector<152x64xf32>
      %42 = arith.addf %40, %41 : vector<152x64xf32>
      %43 = arith.truncf %42 : vector<152x64xf32> to vector<152x64xbf16>
      %c0_25 = arith.constant 0 : index
      %c0_26 = arith.constant 0 : index
      %44 = vector.load %arg9[%c0_25, %c0_26] : memref<152x64xbf16, #tpu.memory_space<vmem>>, vector<152x64xbf16>
      tpu.vector_store %arg9[%c0_25, %c0_26], %43 {strides = array<i32>} : memref<152x64xbf16, #tpu.memory_space<vmem>>, vector<152x64xbf16>,
    } else {
    }
    return
  }
  func.func @transform_0(%arg0: i32, %arg1: i32, %arg2: i32) -> (i32, i32) {
    %c0_i32 = arith.constant 0 : i32
    return %arg0, %arg2 : i32, i32
  }
  func.func @transform_1(%arg0: i32, %arg1: i32, %arg2: i32) -> (i32, i32) {
    %c0_i32 = arith.constant 0 : i32
    return %arg2, %arg1 : i32, i32
  }
  func.func @transform_2(%arg0: i32, %arg1: i32, %arg2: i32) -> (i32, i32) {
    %c0_i32 = arith.constant 0 : i32
    %c0_i32_0 = arith.constant 0 : i32
    return %c0_i32, %arg1 : i32, i32
  }
  func.func @transform_3(%arg0: i32, %arg1: i32, %arg2: i32) -> (i32, i32) {
    %c0_i32 = arith.constant 0 : i32
    return %arg0, %arg1 : i32, i32
  }
  func.func @transform_4(%arg0: i32, %arg1: i32, %arg2: i32) -> (i32, i32) {
    %c0_i32 = arith.constant 0 : i32
    %c0_i32_0 = arith.constant 0 : i32
    return %c0_i32, %arg1 : i32, i32
  }
  func.func @transform_5(%arg0: i32, %arg1: i32, %arg2: i32) -> (i32, i32) {
    %c0_i32 = arith.constant 0 : i32
    %c0_i32_0 = arith.constant 0 : i32
    return %c0_i32, %arg1 : i32, i32
  }
  func.func @transform_6(%arg0: i32, %arg1: i32, %arg2: i32) -> (i32, i32) {
    %c0_i32 = arith.constant 0 : i32
    return %arg0, %arg1 : i32, i32
  }
}

module attributes {stable_mosaic.version = 11 : i64} {
  func.func @_matmul_kernel(%arg0: i32, %arg1: i32, %arg2: i32, %arg3: memref<152x64xbf16, #tpu.memory_space<vmem>>, %arg4: memref<64x256xbf16, #tpu.memory_space<vmem>>, %arg5: memref<1x256xf32, #tpu.memory_space<vmem>>, %arg6: memref<152x256xbf16, #tpu.memory_space<vmem>>, %arg7: memref<152x256xf32, #tpu.memory_space<vmem>>) attributes {dimension_semantics = [#tpu.dimension_semantics<parallel>, #tpu.dimension_semantics<parallel>, #tpu.dimension_semantics<arbitrary>], iteration_bounds = array<i64: 1, 1, 1>, scalar_prefetch = 0 : i64, scratch_operands = 1 : i64, tpu.core_type = #tpu.core_type<tc>, window_params = [{transform_indices = @transform_0, window_bounds = array<i64: 152, 64>}, {transform_indices = @transform_1, window_bounds = array<i64: 64, 256>}, {transform_indices = @transform_2, window_bounds = array<i64: 1, 256>}, {transform_indices = @transform_3, window_bounds = array<i64: 152, 256>}]} {
    %c0_i32 = arith.constant 0 : i32
    %0 = arith.cmpi eq, %arg2, %c0_i32 : i32
    %1 = arith.extui %0 : i1 to i32
    %c0_i32_0 = arith.constant 0 : i32
    %2 = arith.cmpi ne, %1, %c0_i32_0 : i32
    scf.if %2 {
      %cst_10 = arith.constant 0.000000e+00 : f32
      %12 = vector.broadcast %cst_10 : f32 to vector<152x256xf32>
      %c0_11 = arith.constant 0 : index
      %c0_12 = arith.constant 0 : index
      %13 = vector.load %arg7[%c0_11, %c0_12] : memref<152x256xf32, #tpu.memory_space<vmem>>, vector<152x256xf32>
      tpu.vector_store %arg7[%c0_11, %c0_12], %12 {strides = array<i32>} : memref<152x256xf32, #tpu.memory_space<vmem>>, vector<152x256xf32>,
    } else {
    }
    %c0 = arith.constant 0 : index
    %c0_1 = arith.constant 0 : index
    %3 = vector.load %arg3[%c0, %c0_1] : memref<152x64xbf16, #tpu.memory_space<vmem>>, vector<152x64xbf16>
    %c0_2 = arith.constant 0 : index
    %c0_3 = arith.constant 0 : index
    %4 = vector.load %arg4[%c0_2, %c0_3] : memref<64x256xbf16, #tpu.memory_space<vmem>>, vector<64x256xbf16>
    %cst = arith.constant dense<0.000000e+00> : vector<152x256xf32>
    %5 = tpu.matmul %3, %4, %cst {dimension_numbers = #tpu.dot_dimension_numbers<[1], [0], [0], [1], [0, 0, 1, 1], [], []>} : vector<152x64xbf16>, vector<64x256xbf16>, vector<152x256xf32> -> vector<152x256xf32>
    %c0_4 = arith.constant 0 : index
    %c0_5 = arith.constant 0 : index
    %6 = vector.load %arg7[%c0_4, %c0_5] : memref<152x256xf32, #tpu.memory_space<vmem>>, vector<152x256xf32>
    %7 = arith.addf %6, %5 : vector<152x256xf32>
    %c0_6 = arith.constant 0 : index
    %c0_7 = arith.constant 0 : index
    %8 = vector.load %arg7[%c0_6, %c0_7] : memref<152x256xf32, #tpu.memory_space<vmem>>, vector<152x256xf32>
    tpu.vector_store %arg7[%c0_6, %c0_7], %7 {strides = array<i32>} : memref<152x256xf32, #tpu.memory_space<vmem>>, vector<152x256xf32>,
    %c0_i32_8 = arith.constant 0 : i32
    %9 = arith.cmpi eq, %arg2, %c0_i32_8 : i32
    %10 = arith.extui %9 : i1 to i32
    %c0_i32_9 = arith.constant 0 : i32
    %11 = arith.cmpi ne, %10, %c0_i32_9 : i32
    scf.if %11 {
      %c0_10 = arith.constant 0 : index
      %c0_11 = arith.constant 0 : index
      %12 = vector.load %arg7[%c0_10, %c0_11] : memref<152x256xf32, #tpu.memory_space<vmem>>, vector<152x256xf32>
      %c0_12 = arith.constant 0 : index
      %c0_13 = arith.constant 0 : index
      %13 = vector.load %arg5[%c0_12, %c0_13] : memref<1x256xf32, #tpu.memory_space<vmem>>, vector<1x256xf32>
      %14 = vector.broadcast %13 : vector<1x256xf32> to vector<152x256xf32>
      %15 = arith.addf %12, %14 : vector<152x256xf32>
      %cst_14 = arith.constant 5.000000e-01 : f32
      %16 = vector.broadcast %cst_14 : f32 to vector<152x256xf32>
      %17 = arith.mulf %16, %15 : vector<152x256xf32>
      %cst_15 = arith.constant 0.707106769 : f32
      %18 = vector.broadcast %cst_15 : f32 to vector<152x256xf32>
      %19 = arith.mulf %15, %18 : vector<152x256xf32>
      %20 = math.erf %19 : vector<152x256xf32>
      %cst_16 = arith.constant 1.000000e+00 : f32
      %21 = vector.broadcast %cst_16 : f32 to vector<152x256xf32>
      %22 = arith.addf %21, %20 : vector<152x256xf32>
      %23 = arith.mulf %17, %22 : vector<152x256xf32>
      %24 = arith.truncf %23 : vector<152x256xf32> to vector<152x256xbf16>
      %c0_17 = arith.constant 0 : index
      %c0_18 = arith.constant 0 : index
      %25 = vector.load %arg6[%c0_17, %c0_18] : memref<152x256xbf16, #tpu.memory_space<vmem>>, vector<152x256xbf16>
      tpu.vector_store %arg6[%c0_17, %c0_18], %24 {strides = array<i32>} : memref<152x256xbf16, #tpu.memory_space<vmem>>, vector<152x256xbf16>,
    } else {
    }
    return
  }
  func.func @transform_0(%arg0: i32, %arg1: i32, %arg2: i32) -> (i32, i32) {
    %c0_i32 = arith.constant 0 : i32
    return %arg0, %arg2 : i32, i32
  }
  func.func @transform_1(%arg0: i32, %arg1: i32, %arg2: i32) -> (i32, i32) {
    %c0_i32 = arith.constant 0 : i32
    return %arg2, %arg1 : i32, i32
  }
  func.func @transform_2(%arg0: i32, %arg1: i32, %arg2: i32) -> (i32, i32) {
    %c0_i32 = arith.constant 0 : i32
    %c0_i32_0 = arith.constant 0 : i32
    return %c0_i32, %arg1 : i32, i32
  }
  func.func @transform_3(%arg0: i32, %arg1: i32, %arg2: i32) -> (i32, i32) {
    %c0_i32 = arith.constant 0 : i32
    return %arg0, %arg1 : i32, i32
  }
}

module attributes {stable_mosaic.version = 11 : i64} {
  func.func @_matmul_kernel(%arg0: i32, %arg1: i32, %arg2: i32, %arg3: memref<152x64xbf16, #tpu.memory_space<vmem>>, %arg4: memref<64x192xbf16, #tpu.memory_space<vmem>>, %arg5: memref<152x192xbf16, #tpu.memory_space<vmem>>, %arg6: memref<152x192xf32, #tpu.memory_space<vmem>>) attributes {dimension_semantics = [#tpu.dimension_semantics<parallel>, #tpu.dimension_semantics<parallel>, #tpu.dimension_semantics<arbitrary>], iteration_bounds = array<i64: 1, 1, 1>, scalar_prefetch = 0 : i64, scratch_operands = 1 : i64, tpu.core_type = #tpu.core_type<tc>, window_params = [{transform_indices = @transform_0, window_bounds = array<i64: 152, 64>}, {transform_indices = @transform_1, window_bounds = array<i64: 64, 192>}, {transform_indices = @transform_2, window_bounds = array<i64: 152, 192>}]} {
    %c0_i32 = arith.constant 0 : i32
    %0 = arith.cmpi eq, %arg2, %c0_i32 : i32
    %1 = arith.extui %0 : i1 to i32
    %c0_i32_0 = arith.constant 0 : i32
    %2 = arith.cmpi ne, %1, %c0_i32_0 : i32
    scf.if %2 {
      %cst_10 = arith.constant 0.000000e+00 : f32
      %12 = vector.broadcast %cst_10 : f32 to vector<152x192xf32>
      %c0_11 = arith.constant 0 : index
      %c0_12 = arith.constant 0 : index
      %13 = vector.load %arg6[%c0_11, %c0_12] : memref<152x192xf32, #tpu.memory_space<vmem>>, vector<152x192xf32>
      tpu.vector_store %arg6[%c0_11, %c0_12], %12 {strides = array<i32>} : memref<152x192xf32, #tpu.memory_space<vmem>>, vector<152x192xf32>,
    } else {
    }
    %c0 = arith.constant 0 : index
    %c0_1 = arith.constant 0 : index
    %3 = vector.load %arg3[%c0, %c0_1] : memref<152x64xbf16, #tpu.memory_space<vmem>>, vector<152x64xbf16>
    %c0_2 = arith.constant 0 : index
    %c0_3 = arith.constant 0 : index
    %4 = vector.load %arg4[%c0_2, %c0_3] : memref<64x192xbf16, #tpu.memory_space<vmem>>, vector<64x192xbf16>
    %cst = arith.constant dense<0.000000e+00> : vector<152x192xf32>
    %5 = tpu.matmul %3, %4, %cst {dimension_numbers = #tpu.dot_dimension_numbers<[1], [0], [0], [1], [0, 0, 1, 1], [], []>} : vector<152x64xbf16>, vector<64x192xbf16>, vector<152x192xf32> -> vector<152x192xf32>
    %c0_4 = arith.constant 0 : index
    %c0_5 = arith.constant 0 : index
    %6 = vector.load %arg6[%c0_4, %c0_5] : memref<152x192xf32, #tpu.memory_space<vmem>>, vector<152x192xf32>
    %7 = arith.addf %6, %5 : vector<152x192xf32>
    %c0_6 = arith.constant 0 : index
    %c0_7 = arith.constant 0 : index
    %8 = vector.load %arg6[%c0_6, %c0_7] : memref<152x192xf32, #tpu.memory_space<vmem>>, vector<152x192xf32>
    tpu.vector_store %arg6[%c0_6, %c0_7], %7 {strides = array<i32>} : memref<152x192xf32, #tpu.memory_space<vmem>>, vector<152x192xf32>,
    %c0_i32_8 = arith.constant 0 : i32
    %9 = arith.cmpi eq, %arg2, %c0_i32_8 : i32
    %10 = arith.extui %9 : i1 to i32
    %c0_i32_9 = arith.constant 0 : i32
    %11 = arith.cmpi ne, %10, %c0_i32_9 : i32
    scf.if %11 {
      %c0_10 = arith.constant 0 : index
      %c0_11 = arith.constant 0 : index
      %12 = vector.load %arg6[%c0_10, %c0_11] : memref<152x192xf32, #tpu.memory_space<vmem>>, vector<152x192xf32>
      %13 = arith.truncf %12 : vector<152x192xf32> to vector<152x192xbf16>
      %c0_12 = arith.constant 0 : index
      %c0_13 = arith.constant 0 : index
      %14 = vector.load %arg5[%c0_12, %c0_13] : memref<152x192xbf16, #tpu.memory_space<vmem>>, vector<152x192xbf16>
      tpu.vector_store %arg5[%c0_12, %c0_13], %13 {strides = array<i32>} : memref<152x192xbf16, #tpu.memory_space<vmem>>, vector<152x192xbf16>,
    } else {
    }
    return
  }
  func.func @transform_0(%arg0: i32, %arg1: i32, %arg2: i32) -> (i32, i32) {
    %c0_i32 = arith.constant 0 : i32
    return %arg0, %arg2 : i32, i32
  }
  func.func @transform_1(%arg0: i32, %arg1: i32, %arg2: i32) -> (i32, i32) {
    %c0_i32 = arith.constant 0 : i32
    return %arg2, %arg1 : i32, i32
  }
  func.func @transform_2(%arg0: i32, %arg1: i32, %arg2: i32) -> (i32, i32) {
    %c0_i32 = arith.constant 0 : i32
    return %arg0, %arg1 : i32, i32
  }
}

module attributes {stable_mosaic.version = 11 : i64} {
  func.func @_matmul_kernel(%arg0: i32, %arg1: i32, %arg2: i32, %arg3: memref<152x256xbf16, #tpu.memory_space<vmem>>, %arg4: memref<256x64xbf16, #tpu.memory_space<vmem>>, %arg5: memref<1x64xf32, #tpu.memory_space<vmem>>, %arg6: memref<152x64xbf16, #tpu.memory_space<vmem>>, %arg7: memref<1x64xf32, #tpu.memory_space<vmem>>, %arg8: memref<1x64xf32, #tpu.memory_space<vmem>>, %arg9: memref<152x64xbf16, #tpu.memory_space<vmem>>, %arg10: memref<152x64xf32, #tpu.memory_space<vmem>>) attributes {dimension_semantics = [#tpu.dimension_semantics<parallel>, #tpu.dimension_semantics<parallel>, #tpu.dimension_semantics<arbitrary>], iteration_bounds = array<i64: 1, 1, 1>, scalar_prefetch = 0 : i64, scratch_operands = 1 : i64, tpu.core_type = #tpu.core_type<tc>, window_params = [{transform_indices = @transform_0, window_bounds = array<i64: 152, 256>}, {transform_indices = @transform_1, window_bounds = array<i64: 256, 64>}, {transform_indices = @transform_2, window_bounds = array<i64: 1, 64>}, {transform_indices = @transform_3, window_bounds = array<i64: 152, 64>}, {transform_indices = @transform_4, window_bounds = array<i64: 1, 64>}, {transform_indices = @transform_5, window_bounds = array<i64: 1, 64>}, {transform_indices = @transform_6, window_bounds = array<i64: 152, 64>}]} {
    %c0_i32 = arith.constant 0 : i32
    %0 = arith.cmpi eq, %arg2, %c0_i32 : i32
    %1 = arith.extui %0 : i1 to i32
    %c0_i32_0 = arith.constant 0 : i32
    %2 = arith.cmpi ne, %1, %c0_i32_0 : i32
    scf.if %2 {
      %cst_10 = arith.constant 0.000000e+00 : f32
      %12 = vector.broadcast %cst_10 : f32 to vector<152x64xf32>
      %c0_11 = arith.constant 0 : index
      %c0_12 = arith.constant 0 : index
      %13 = vector.load %arg10[%c0_11, %c0_12] : memref<152x64xf32, #tpu.memory_space<vmem>>, vector<152x64xf32>
      tpu.vector_store %arg10[%c0_11, %c0_12], %12 {strides = array<i32>} : memref<152x64xf32, #tpu.memory_space<vmem>>, vector<152x64xf32>,
    } else {
    }
    %c0 = arith.constant 0 : index
    %c0_1 = arith.constant 0 : index
    %3 = vector.load %arg3[%c0, %c0_1] : memref<152x256xbf16, #tpu.memory_space<vmem>>, vector<152x256xbf16>
    %c0_2 = arith.constant 0 : index
    %c0_3 = arith.constant 0 : index
    %4 = vector.load %arg4[%c0_2, %c0_3] : memref<256x64xbf16, #tpu.memory_space<vmem>>, vector<256x64xbf16>
    %cst = arith.constant dense<0.000000e+00> : vector<152x64xf32>
    %5 = tpu.matmul %3, %4, %cst {dimension_numbers = #tpu.dot_dimension_numbers<[1], [0], [0], [1], [0, 0, 1, 1], [], []>} : vector<152x256xbf16>, vector<256x64xbf16>, vector<152x64xf32> -> vector<152x64xf32>
    %c0_4 = arith.constant 0 : index
    %c0_5 = arith.constant 0 : index
    %6 = vector.load %arg10[%c0_4, %c0_5] : memref<152x64xf32, #tpu.memory_space<vmem>>, vector<152x64xf32>
    %7 = arith.addf %6, %5 : vector<152x64xf32>
    %c0_6 = arith.constant 0 : index
    %c0_7 = arith.constant 0 : index
    %8 = vector.load %arg10[%c0_6, %c0_7] : memref<152x64xf32, #tpu.memory_space<vmem>>, vector<152x64xf32>
    tpu.vector_store %arg10[%c0_6, %c0_7], %7 {strides = array<i32>} : memref<152x64xf32, #tpu.memory_space<vmem>>, vector<152x64xf32>,
    %c0_i32_8 = arith.constant 0 : i32
    %9 = arith.cmpi eq, %arg2, %c0_i32_8 : i32
    %10 = arith.extui %9 : i1 to i32
    %c0_i32_9 = arith.constant 0 : i32
    %11 = arith.cmpi ne, %10, %c0_i32_9 : i32
    scf.if %11 {
      %c0_10 = arith.constant 0 : index
      %c0_11 = arith.constant 0 : index
      %12 = vector.load %arg10[%c0_10, %c0_11] : memref<152x64xf32, #tpu.memory_space<vmem>>, vector<152x64xf32>
      %c0_12 = arith.constant 0 : index
      %c0_13 = arith.constant 0 : index
      %13 = vector.load %arg5[%c0_12, %c0_13] : memref<1x64xf32, #tpu.memory_space<vmem>>, vector<1x64xf32>
      %14 = vector.broadcast %13 : vector<1x64xf32> to vector<152x64xf32>
      %15 = arith.addf %12, %14 : vector<152x64xf32>
      %c0_14 = arith.constant 0 : index
      %c0_15 = arith.constant 0 : index
      %16 = vector.load %arg6[%c0_14, %c0_15] : memref<152x64xbf16, #tpu.memory_space<vmem>>, vector<152x64xbf16>
      %17 = arith.extf %16 : vector<152x64xbf16> to vector<152x64xf32>
      %18 = arith.addf %15, %17 : vector<152x64xf32>
      %c0_16 = arith.constant 0 : index
      %c0_17 = arith.constant 0 : index
      %19 = vector.load %arg7[%c0_16, %c0_17] : memref<1x64xf32, #tpu.memory_space<vmem>>, vector<1x64xf32>
      %c0_18 = arith.constant 0 : index
      %c0_19 = arith.constant 0 : index
      %20 = vector.load %arg8[%c0_18, %c0_19] : memref<1x64xf32, #tpu.memory_space<vmem>>, vector<1x64xf32>
      %cst_20 = arith.constant dense<0.000000e+00> : vector<152xf32>
      %21 = vector.multi_reduction <add>, %18, %cst_20 [1] : vector<152x64xf32> to vector<152xf32>
      %22 = vector.shape_cast %21 : vector<152xf32> to vector<152x1xf32>
      %cst_21 = arith.constant 6.400000e+01 : f32
      %23 = vector.broadcast %cst_21 : f32 to vector<152x1xf32>
      %24 = arith.divf %22, %23 : vector<152x1xf32>
      %25 = vector.broadcast %24 : vector<152x1xf32> to vector<152x64xf32>
      %26 = arith.subf %18, %25 : vector<152x64xf32>
      %27 = arith.mulf %26, %26 : vector<152x64xf32>
      %cst_22 = arith.constant dense<0.000000e+00> : vector<152xf32>
      %28 = vector.multi_reduction <add>, %27, %cst_22 [1] : vector<152x64xf32> to vector<152xf32>
      %29 = vector.shape_cast %28 : vector<152xf32> to vector<152x1xf32>
      %cst_23 = arith.constant 6.400000e+01 : f32
      %30 = vector.broadcast %cst_23 : f32 to vector<152x1xf32>
      %31 = arith.divf %29, %30 : vector<152x1xf32>
      %32 = vector.broadcast %24 : vector<152x1xf32> to vector<152x64xf32>
      %33 = arith.subf %18, %32 : vector<152x64xf32>
      %cst_24 = arith.constant 9.99999974E-6 : f32
      %34 = vector.broadcast %cst_24 : f32 to vector<152x1xf32>
      %35 = arith.addf %31, %34 : vector<152x1xf32>
      %36 = math.rsqrt %35 : vector<152x1xf32>
      %37 = vector.broadcast %36 : vector<152x1xf32> to vector<152x64xf32>
      %38 = arith.mulf %33, %37 : vector<152x64xf32>
      %39 = vector.broadcast %19 : vector<1x64xf32> to vector<152x64xf32>
      %40 = arith.mulf %38, %39 : vector<152x64xf32>
      %41 = vector.broadcast %20 : vector<1x64xf32> to vector<152x64xf32>
      %42 = arith.addf %40, %41 : vector<152x64xf32>
      %43 = arith.truncf %42 : vector<152x64xf32> to vector<152x64xbf16>
      %c0_25 = arith.constant 0 : index
      %c0_26 = arith.constant 0 : index
      %44 = vector.load %arg9[%c0_25, %c0_26] : memref<152x64xbf16, #tpu.memory_space<vmem>>, vector<152x64xbf16>
      tpu.vector_store %arg9[%c0_25, %c0_26], %43 {strides = array<i32>} : memref<152x64xbf16, #tpu.memory_space<vmem>>, vector<152x64xbf16>,
    } else {
    }
    return
  }
  func.func @transform_0(%arg0: i32, %arg1: i32, %arg2: i32) -> (i32, i32) {
    %c0_i32 = arith.constant 0 : i32
    return %arg0, %arg2 : i32, i32
  }
  func.func @transform_1(%arg0: i32, %arg1: i32, %arg2: i32) -> (i32, i32) {
    %c0_i32 = arith.constant 0 : i32
    return %arg2, %arg1 : i32, i32
  }
  func.func @transform_2(%arg0: i32, %arg1: i32, %arg2: i32) -> (i32, i32) {
    %c0_i32 = arith.constant 0 : i32
    %c0_i32_0 = arith.constant 0 : i32
    return %c0_i32, %arg1 : i32, i32
  }
  func.func @transform_3(%arg0: i32, %arg1: i32, %arg2: i32) -> (i32, i32) {
    %c0_i32 = arith.constant 0 : i32
    return %arg0, %arg1 : i32, i32
  }
  func.func @transform_4(%arg0: i32, %arg1: i32, %arg2: i32) -> (i32, i32) {
    %c0_i32 = arith.constant 0 : i32
    %c0_i32_0 = arith.constant 0 : i32
    return %c0_i32, %arg1 : i32, i32
  }
  func.func @transform_5(%arg0: i32, %arg1: i32, %arg2: i32) -> (i32, i32) {
    %c0_i32 = arith.constant 0 : i32
    %c0_i32_0 = arith.constant 0 : i32
    return %c0_i32, %arg1 : i32, i32
  }
  func.func @transform_6(%arg0: i32, %arg1: i32, %arg2: i32) -> (i32, i32) {
    %c0_i32 = arith.constant 0 : i32
    return %arg0, %arg1 : i32, i32
  }
}

module attributes {stable_mosaic.version = 11 : i64} {
  func.func @_layernorm_kernel(%arg0: i32, %arg1: memref<152x64xbf16, #tpu.memory_space<vmem>>, %arg2: memref<1x64xf32, #tpu.memory_space<vmem>>, %arg3: memref<1x64xf32, #tpu.memory_space<vmem>>, %arg4: memref<152x64xbf16, #tpu.memory_space<vmem>>) attributes {dimension_semantics = [#tpu.dimension_semantics<parallel>], iteration_bounds = array<i64: 1>, scalar_prefetch = 0 : i64, scratch_operands = 0 : i64, tpu.core_type = #tpu.core_type<tc>, window_params = [{transform_indices = @transform_0, window_bounds = array<i64: 152, 64>}, {pipeline_mode = #tpu.pipeline_mode<synchronous>, transform_indices = @transform_1, window_bounds = array<i64: 1, 64>}, {pipeline_mode = #tpu.pipeline_mode<synchronous>, transform_indices = @transform_2, window_bounds = array<i64: 1, 64>}, {transform_indices = @transform_3, window_bounds = array<i64: 152, 64>}]} {
    %c0 = arith.constant 0 : index
    %c0_0 = arith.constant 0 : index
    %0 = vector.load %arg1[%c0, %c0_0] : memref<152x64xbf16, #tpu.memory_space<vmem>>, vector<152x64xbf16>
    %1 = arith.extf %0 : vector<152x64xbf16> to vector<152x64xf32>
    %cst = arith.constant dense<0.000000e+00> : vector<152xf32>
    %2 = vector.multi_reduction <add>, %1, %cst [1] : vector<152x64xf32> to vector<152xf32>
    %3 = vector.shape_cast %2 : vector<152xf32> to vector<152x1xf32>
    %cst_1 = arith.constant 6.400000e+01 : f32
    %4 = vector.broadcast %cst_1 : f32 to vector<152x1xf32>
    %5 = arith.divf %3, %4 : vector<152x1xf32>
    %6 = vector.broadcast %5 : vector<152x1xf32> to vector<152x64xf32>
    %7 = arith.subf %1, %6 : vector<152x64xf32>
    %8 = arith.mulf %7, %7 : vector<152x64xf32>
    %cst_2 = arith.constant dense<0.000000e+00> : vector<152xf32>
    %9 = vector.multi_reduction <add>, %8, %cst_2 [1] : vector<152x64xf32> to vector<152xf32>
    %10 = vector.shape_cast %9 : vector<152xf32> to vector<152x1xf32>
    %cst_3 = arith.constant 6.400000e+01 : f32
    %11 = vector.broadcast %cst_3 : f32 to vector<152x1xf32>
    %12 = arith.divf %10, %11 : vector<152x1xf32>
    %13 = vector.broadcast %5 : vector<152x1xf32> to vector<152x64xf32>
    %14 = arith.subf %1, %13 : vector<152x64xf32>
    %cst_4 = arith.constant 9.99999974E-6 : f32
    %15 = vector.broadcast %cst_4 : f32 to vector<152x1xf32>
    %16 = arith.addf %12, %15 : vector<152x1xf32>
    %17 = math.rsqrt %16 : vector<152x1xf32>
    %18 = vector.broadcast %17 : vector<152x1xf32> to vector<152x64xf32>
    %19 = arith.mulf %14, %18 : vector<152x64xf32>
    %c0_5 = arith.constant 0 : index
    %c0_6 = arith.constant 0 : index
    %20 = vector.load %arg2[%c0_5, %c0_6] : memref<1x64xf32, #tpu.memory_space<vmem>>, vector<1x64xf32>
    %21 = vector.broadcast %20 : vector<1x64xf32> to vector<152x64xf32>
    %22 = arith.mulf %19, %21 : vector<152x64xf32>
    %c0_7 = arith.constant 0 : index
    %c0_8 = arith.constant 0 : index
    %23 = vector.load %arg3[%c0_7, %c0_8] : memref<1x64xf32, #tpu.memory_space<vmem>>, vector<1x64xf32>
    %24 = vector.broadcast %23 : vector<1x64xf32> to vector<152x64xf32>
    %25 = arith.addf %22, %24 : vector<152x64xf32>
    %26 = arith.truncf %25 : vector<152x64xf32> to vector<152x64xbf16>
    %c0_9 = arith.constant 0 : index
    %c0_10 = arith.constant 0 : index
    %27 = vector.load %arg4[%c0_9, %c0_10] : memref<152x64xbf16, #tpu.memory_space<vmem>>, vector<152x64xbf16>
    tpu.vector_store %arg4[%c0_9, %c0_10], %26 {strides = array<i32>} : memref<152x64xbf16, #tpu.memory_space<vmem>>, vector<152x64xbf16>,
    return
  }
  func.func @transform_0(%arg0: i32) -> (i32, i32) {
    %c0_i32 = arith.constant 0 : i32
    %c0_i32_0 = arith.constant 0 : i32
    return %arg0, %c0_i32 : i32, i32
  }
  func.func @transform_1(%arg0: i32) -> (i32, i32) {
    %c0_i32 = arith.constant 0 : i32
    %c0_i32_0 = arith.constant 0 : i32
    %c0_i32_1 = arith.constant 0 : i32
    return %c0_i32, %c0_i32_0 : i32, i32
  }
  func.func @transform_2(%arg0: i32) -> (i32, i32) {
    %c0_i32 = arith.constant 0 : i32
    %c0_i32_0 = arith.constant 0 : i32
    %c0_i32_1 = arith.constant 0 : i32
    return %c0_i32, %c0_i32_0 : i32, i32
  }
  func.func @transform_3(%arg0: i32) -> (i32, i32) {
    %c0_i32 = arith.constant 0 : i32
    %c0_i32_0 = arith.constant 0 : i32
    return %arg0, %c0_i32 : i32, i32
  }
}

module attributes {stable_mosaic.version = 11 : i64} {
  func.func @_matmul_kernel(%arg0: i32, %arg1: i32, %arg2: i32, %arg3: memref<152x64xbf16, #tpu.memory_space<vmem>>, %arg4: memref<64x64xbf16, #tpu.memory_space<vmem>>, %arg5: memref<152x64xbf16, #tpu.memory_space<vmem>>, %arg6: memref<64x64xbf16, #tpu.memory_space<vmem>>, %arg7: memref<1x64xf32, #tpu.memory_space<vmem>>, %arg8: memref<1x64xf32, #tpu.memory_space<vmem>>, %arg9: memref<1x64xf32, #tpu.memory_space<vmem>>, %arg10: memref<152x64xbf16, #tpu.memory_space<vmem>>, %arg11: memref<152x64xf32, #tpu.memory_space<vmem>>) attributes {dimension_semantics = [#tpu.dimension_semantics<parallel>, #tpu.dimension_semantics<parallel>, #tpu.dimension_semantics<arbitrary>], iteration_bounds = array<i64: 1, 1, 1>, scalar_prefetch = 0 : i64, scratch_operands = 1 : i64, tpu.core_type = #tpu.core_type<tc>, window_params = [{transform_indices = @transform_0, window_bounds = array<i64: 152, 64>}, {transform_indices = @transform_1, window_bounds = array<i64: 64, 64>}, {transform_indices = @transform_2, window_bounds = array<i64: 152, 64>}, {transform_indices = @transform_3, window_bounds = array<i64: 64, 64>}, {transform_indices = @transform_4, window_bounds = array<i64: 1, 64>}, {transform_indices = @transform_5, window_bounds = array<i64: 1, 64>}, {transform_indices = @transform_6, window_bounds = array<i64: 1, 64>}, {transform_indices = @transform_7, window_bounds = array<i64: 152, 64>}]} {
    %c0_i32 = arith.constant 0 : i32
    %0 = arith.cmpi eq, %arg2, %c0_i32 : i32
    %1 = arith.extui %0 : i1 to i32
    %c0_i32_0 = arith.constant 0 : i32
    %2 = arith.cmpi ne, %1, %c0_i32_0 : i32
    scf.if %2 {
      %cst_15 = arith.constant 0.000000e+00 : f32
      %16 = vector.broadcast %cst_15 : f32 to vector<152x64xf32>
      %c0_16 = arith.constant 0 : index
      %c0_17 = arith.constant 0 : index
      %17 = vector.load %arg11[%c0_16, %c0_17] : memref<152x64xf32, #tpu.memory_space<vmem>>, vector<152x64xf32>
      tpu.vector_store %arg11[%c0_16, %c0_17], %16 {strides = array<i32>} : memref<152x64xf32, #tpu.memory_space<vmem>>, vector<152x64xf32>,
    } else {
    }
    %c0 = arith.constant 0 : index
    %c0_1 = arith.constant 0 : index
    %3 = vector.load %arg3[%c0, %c0_1] : memref<152x64xbf16, #tpu.memory_space<vmem>>, vector<152x64xbf16>
    %c0_2 = arith.constant 0 : index
    %c0_3 = arith.constant 0 : index
    %4 = vector.load %arg4[%c0_2, %c0_3] : memref<64x64xbf16, #tpu.memory_space<vmem>>, vector<64x64xbf16>
    %cst = arith.constant dense<0.000000e+00> : vector<152x64xf32>
    %5 = tpu.matmul %3, %4, %cst {dimension_numbers = #tpu.dot_dimension_numbers<[1], [0], [0], [1], [0, 0, 1, 1], [], []>} : vector<152x64xbf16>, vector<64x64xbf16>, vector<152x64xf32> -> vector<152x64xf32>
    %c0_4 = arith.constant 0 : index
    %c0_5 = arith.constant 0 : index
    %6 = vector.load %arg5[%c0_4, %c0_5] : memref<152x64xbf16, #tpu.memory_space<vmem>>, vector<152x64xbf16>
    %c0_6 = arith.constant 0 : index
    %c0_7 = arith.constant 0 : index
    %7 = vector.load %arg6[%c0_6, %c0_7] : memref<64x64xbf16, #tpu.memory_space<vmem>>, vector<64x64xbf16>
    %cst_8 = arith.constant dense<0.000000e+00> : vector<152x64xf32>
    %8 = tpu.matmul %6, %7, %cst_8 {dimension_numbers = #tpu.dot_dimension_numbers<[1], [0], [0], [1], [0, 0, 1, 1], [], []>} : vector<152x64xbf16>, vector<64x64xbf16>, vector<152x64xf32> -> vector<152x64xf32>
    %9 = arith.addf %5, %8 : vector<152x64xf32>
    %c0_9 = arith.constant 0 : index
    %c0_10 = arith.constant 0 : index
    %10 = vector.load %arg11[%c0_9, %c0_10] : memref<152x64xf32, #tpu.memory_space<vmem>>, vector<152x64xf32>
    %11 = arith.addf %10, %9 : vector<152x64xf32>
    %c0_11 = arith.constant 0 : index
    %c0_12 = arith.constant 0 : index
    %12 = vector.load %arg11[%c0_11, %c0_12] : memref<152x64xf32, #tpu.memory_space<vmem>>, vector<152x64xf32>
    tpu.vector_store %arg11[%c0_11, %c0_12], %11 {strides = array<i32>} : memref<152x64xf32, #tpu.memory_space<vmem>>, vector<152x64xf32>,
    %c0_i32_13 = arith.constant 0 : i32
    %13 = arith.cmpi eq, %arg2, %c0_i32_13 : i32
    %14 = arith.extui %13 : i1 to i32
    %c0_i32_14 = arith.constant 0 : i32
    %15 = arith.cmpi ne, %14, %c0_i32_14 : i32
    scf.if %15 {
      %c0_15 = arith.constant 0 : index
      %c0_16 = arith.constant 0 : index
      %16 = vector.load %arg11[%c0_15, %c0_16] : memref<152x64xf32, #tpu.memory_space<vmem>>, vector<152x64xf32>
      %c0_17 = arith.constant 0 : index
      %c0_18 = arith.constant 0 : index
      %17 = vector.load %arg7[%c0_17, %c0_18] : memref<1x64xf32, #tpu.memory_space<vmem>>, vector<1x64xf32>
      %18 = vector.broadcast %17 : vector<1x64xf32> to vector<152x64xf32>
      %19 = arith.addf %16, %18 : vector<152x64xf32>
      %c0_19 = arith.constant 0 : index
      %c0_20 = arith.constant 0 : index
      %20 = vector.load %arg8[%c0_19, %c0_20] : memref<1x64xf32, #tpu.memory_space<vmem>>, vector<1x64xf32>
      %c0_21 = arith.constant 0 : index
      %c0_22 = arith.constant 0 : index
      %21 = vector.load %arg9[%c0_21, %c0_22] : memref<1x64xf32, #tpu.memory_space<vmem>>, vector<1x64xf32>
      %cst_23 = arith.constant dense<0.000000e+00> : vector<152xf32>
      %22 = vector.multi_reduction <add>, %19, %cst_23 [1] : vector<152x64xf32> to vector<152xf32>
      %23 = vector.shape_cast %22 : vector<152xf32> to vector<152x1xf32>
      %cst_24 = arith.constant 6.400000e+01 : f32
      %24 = vector.broadcast %cst_24 : f32 to vector<152x1xf32>
      %25 = arith.divf %23, %24 : vector<152x1xf32>
      %26 = vector.broadcast %25 : vector<152x1xf32> to vector<152x64xf32>
      %27 = arith.subf %19, %26 : vector<152x64xf32>
      %28 = arith.mulf %27, %27 : vector<152x64xf32>
      %cst_25 = arith.constant dense<0.000000e+00> : vector<152xf32>
      %29 = vector.multi_reduction <add>, %28, %cst_25 [1] : vector<152x64xf32> to vector<152xf32>
      %30 = vector.shape_cast %29 : vector<152xf32> to vector<152x1xf32>
      %cst_26 = arith.constant 6.400000e+01 : f32
      %31 = vector.broadcast %cst_26 : f32 to vector<152x1xf32>
      %32 = arith.divf %30, %31 : vector<152x1xf32>
      %33 = vector.broadcast %25 : vector<152x1xf32> to vector<152x64xf32>
      %34 = arith.subf %19, %33 : vector<152x64xf32>
      %cst_27 = arith.constant 9.99999974E-6 : f32
      %35 = vector.broadcast %cst_27 : f32 to vector<152x1xf32>
      %36 = arith.addf %32, %35 : vector<152x1xf32>
      %37 = math.rsqrt %36 : vector<152x1xf32>
      %38 = vector.broadcast %37 : vector<152x1xf32> to vector<152x64xf32>
      %39 = arith.mulf %34, %38 : vector<152x64xf32>
      %40 = vector.broadcast %20 : vector<1x64xf32> to vector<152x64xf32>
      %41 = arith.mulf %39, %40 : vector<152x64xf32>
      %42 = vector.broadcast %21 : vector<1x64xf32> to vector<152x64xf32>
      %43 = arith.addf %41, %42 : vector<152x64xf32>
      %44 = arith.truncf %43 : vector<152x64xf32> to vector<152x64xbf16>
      %c0_28 = arith.constant 0 : index
      %c0_29 = arith.constant 0 : index
      %45 = vector.load %arg10[%c0_28, %c0_29] : memref<152x64xbf16, #tpu.memory_space<vmem>>, vector<152x64xbf16>
      tpu.vector_store %arg10[%c0_28, %c0_29], %44 {strides = array<i32>} : memref<152x64xbf16, #tpu.memory_space<vmem>>, vector<152x64xbf16>,
    } else {
    }
    return
  }
  func.func @transform_0(%arg0: i32, %arg1: i32, %arg2: i32) -> (i32, i32) {
    %c0_i32 = arith.constant 0 : i32
    return %arg0, %arg2 : i32, i32
  }
  func.func @transform_1(%arg0: i32, %arg1: i32, %arg2: i32) -> (i32, i32) {
    %c0_i32 = arith.constant 0 : i32
    return %arg2, %arg1 : i32, i32
  }
  func.func @transform_2(%arg0: i32, %arg1: i32, %arg2: i32) -> (i32, i32) {
    %c0_i32 = arith.constant 0 : i32
    return %arg0, %arg2 : i32, i32
  }
  func.func @transform_3(%arg0: i32, %arg1: i32, %arg2: i32) -> (i32, i32) {
    %c0_i32 = arith.constant 0 : i32
    return %arg2, %arg1 : i32, i32
  }
  func.func @transform_4(%arg0: i32, %arg1: i32, %arg2: i32) -> (i32, i32) {
    %c0_i32 = arith.constant 0 : i32
    %c0_i32_0 = arith.constant 0 : i32
    return %c0_i32, %arg1 : i32, i32
  }
  func.func @transform_5(%arg0: i32, %arg1: i32, %arg2: i32) -> (i32, i32) {
    %c0_i32 = arith.constant 0 : i32
    %c0_i32_0 = arith.constant 0 : i32
    return %c0_i32, %arg1 : i32, i32
  }
  func.func @transform_6(%arg0: i32, %arg1: i32, %arg2: i32) -> (i32, i32) {
    %c0_i32 = arith.constant 0 : i32
    %c0_i32_0 = arith.constant 0 : i32
    return %c0_i32, %arg1 : i32, i32
  }
  func.func @transform_7(%arg0: i32, %arg1: i32, %arg2: i32) -> (i32, i32) {
    %c0_i32 = arith.constant 0 : i32
    return %arg0, %arg1 : i32, i32
  }
}

module attributes {stable_mosaic.version = 11 : i64} {
  func.func @_matmul_kernel(%arg0: i32, %arg1: i32, %arg2: i32, %arg3: memref<128x64xbf16, #tpu.memory_space<vmem>>, %arg4: memref<64x16xbf16, #tpu.memory_space<vmem>>, %arg5: memref<1x16xf32, #tpu.memory_space<vmem>>, %arg6: memref<128x16xf32, #tpu.memory_space<vmem>>, %arg7: memref<128x16xf32, #tpu.memory_space<vmem>>) attributes {dimension_semantics = [#tpu.dimension_semantics<parallel>, #tpu.dimension_semantics<parallel>, #tpu.dimension_semantics<arbitrary>], iteration_bounds = array<i64: 1, 1, 1>, scalar_prefetch = 0 : i64, scratch_operands = 1 : i64, tpu.core_type = #tpu.core_type<tc>, window_params = [{transform_indices = @transform_0, window_bounds = array<i64: 128, 64>}, {transform_indices = @transform_1, window_bounds = array<i64: 64, 16>}, {transform_indices = @transform_2, window_bounds = array<i64: 1, 16>}, {transform_indices = @transform_3, window_bounds = array<i64: 128, 16>}]} {
    %c0_i32 = arith.constant 0 : i32
    %0 = arith.cmpi eq, %arg2, %c0_i32 : i32
    %1 = arith.extui %0 : i1 to i32
    %c0_i32_0 = arith.constant 0 : i32
    %2 = arith.cmpi ne, %1, %c0_i32_0 : i32
    scf.if %2 {
      %cst_10 = arith.constant 0.000000e+00 : f32
      %12 = vector.broadcast %cst_10 : f32 to vector<128x16xf32>
      %c0_11 = arith.constant 0 : index
      %c0_12 = arith.constant 0 : index
      %13 = vector.load %arg7[%c0_11, %c0_12] : memref<128x16xf32, #tpu.memory_space<vmem>>, vector<128x16xf32>
      tpu.vector_store %arg7[%c0_11, %c0_12], %12 {strides = array<i32>} : memref<128x16xf32, #tpu.memory_space<vmem>>, vector<128x16xf32>,
    } else {
    }
    %c0 = arith.constant 0 : index
    %c0_1 = arith.constant 0 : index
    %3 = vector.load %arg3[%c0, %c0_1] : memref<128x64xbf16, #tpu.memory_space<vmem>>, vector<128x64xbf16>
    %c0_2 = arith.constant 0 : index
    %c0_3 = arith.constant 0 : index
    %4 = vector.load %arg4[%c0_2, %c0_3] : memref<64x16xbf16, #tpu.memory_space<vmem>>, vector<64x16xbf16>
    %cst = arith.constant dense<0.000000e+00> : vector<128x16xf32>
    %5 = tpu.matmul %3, %4, %cst {dimension_numbers = #tpu.dot_dimension_numbers<[1], [0], [0], [1], [0, 0, 1, 1], [], []>} : vector<128x64xbf16>, vector<64x16xbf16>, vector<128x16xf32> -> vector<128x16xf32>
    %c0_4 = arith.constant 0 : index
    %c0_5 = arith.constant 0 : index
    %6 = vector.load %arg7[%c0_4, %c0_5] : memref<128x16xf32, #tpu.memory_space<vmem>>, vector<128x16xf32>
    %7 = arith.addf %6, %5 : vector<128x16xf32>
    %c0_6 = arith.constant 0 : index
    %c0_7 = arith.constant 0 : index
    %8 = vector.load %arg7[%c0_6, %c0_7] : memref<128x16xf32, #tpu.memory_space<vmem>>, vector<128x16xf32>
    tpu.vector_store %arg7[%c0_6, %c0_7], %7 {strides = array<i32>} : memref<128x16xf32, #tpu.memory_space<vmem>>, vector<128x16xf32>,
    %c0_i32_8 = arith.constant 0 : i32
    %9 = arith.cmpi eq, %arg2, %c0_i32_8 : i32
    %10 = arith.extui %9 : i1 to i32
    %c0_i32_9 = arith.constant 0 : i32
    %11 = arith.cmpi ne, %10, %c0_i32_9 : i32
    scf.if %11 {
      %c0_10 = arith.constant 0 : index
      %c0_11 = arith.constant 0 : index
      %12 = vector.load %arg7[%c0_10, %c0_11] : memref<128x16xf32, #tpu.memory_space<vmem>>, vector<128x16xf32>
      %c0_12 = arith.constant 0 : index
      %c0_13 = arith.constant 0 : index
      %13 = vector.load %arg5[%c0_12, %c0_13] : memref<1x16xf32, #tpu.memory_space<vmem>>, vector<1x16xf32>
      %14 = vector.broadcast %13 : vector<1x16xf32> to vector<128x16xf32>
      %15 = arith.addf %12, %14 : vector<128x16xf32>
      %c0_14 = arith.constant 0 : index
      %c0_15 = arith.constant 0 : index
      %16 = vector.load %arg6[%c0_14, %c0_15] : memref<128x16xf32, #tpu.memory_space<vmem>>, vector<128x16xf32>
      tpu.vector_store %arg6[%c0_14, %c0_15], %15 {strides = array<i32>} : memref<128x16xf32, #tpu.memory_space<vmem>>, vector<128x16xf32>,
    } else {
    }
    return
  }
  func.func @transform_0(%arg0: i32, %arg1: i32, %arg2: i32) -> (i32, i32) {
    %c0_i32 = arith.constant 0 : i32
    return %arg0, %arg2 : i32, i32
  }
  func.func @transform_1(%arg0: i32, %arg1: i32, %arg2: i32) -> (i32, i32) {
    %c0_i32 = arith.constant 0 : i32
    return %arg2, %arg1 : i32, i32
  }
  func.func @transform_2(%arg0: i32, %arg1: i32, %arg2: i32) -> (i32, i32) {
    %c0_i32 = arith.constant 0 : i32
    %c0_i32_0 = arith.constant 0 : i32
    return %c0_i32, %arg1 : i32, i32
  }
  func.func @transform_3(%arg0: i32, %arg1: i32, %arg2: i32) -> (i32, i32) {
    %c0_i32 = arith.constant 0 : i32
    return %arg0, %arg1 : i32, i32
  }
}

module attributes {stable_mosaic.version = 11 : i64} {
  func.func @_matmul_kernel(%arg0: i32, %arg1: i32, %arg2: i32, %arg3: memref<2x64xbf16, #tpu.memory_space<vmem>>, %arg4: memref<64x32xbf16, #tpu.memory_space<vmem>>, %arg5: memref<1x32xf32, #tpu.memory_space<vmem>>, %arg6: memref<2x32xf32, #tpu.memory_space<vmem>>, %arg7: memref<2x32xf32, #tpu.memory_space<vmem>>) attributes {dimension_semantics = [#tpu.dimension_semantics<parallel>, #tpu.dimension_semantics<parallel>, #tpu.dimension_semantics<arbitrary>], iteration_bounds = array<i64: 1, 1, 1>, scalar_prefetch = 0 : i64, scratch_operands = 1 : i64, tpu.core_type = #tpu.core_type<tc>, window_params = [{transform_indices = @transform_0, window_bounds = array<i64: 2, 64>}, {transform_indices = @transform_1, window_bounds = array<i64: 64, 32>}, {transform_indices = @transform_2, window_bounds = array<i64: 1, 32>}, {transform_indices = @transform_3, window_bounds = array<i64: 2, 32>}]} {
    %c0_i32 = arith.constant 0 : i32
    %0 = arith.cmpi eq, %arg2, %c0_i32 : i32
    %1 = arith.extui %0 : i1 to i32
    %c0_i32_0 = arith.constant 0 : i32
    %2 = arith.cmpi ne, %1, %c0_i32_0 : i32
    scf.if %2 {
      %cst_10 = arith.constant 0.000000e+00 : f32
      %12 = vector.broadcast %cst_10 : f32 to vector<2x32xf32>
      %c0_11 = arith.constant 0 : index
      %c0_12 = arith.constant 0 : index
      %13 = vector.load %arg7[%c0_11, %c0_12] : memref<2x32xf32, #tpu.memory_space<vmem>>, vector<2x32xf32>
      tpu.vector_store %arg7[%c0_11, %c0_12], %12 {strides = array<i32>} : memref<2x32xf32, #tpu.memory_space<vmem>>, vector<2x32xf32>,
    } else {
    }
    %c0 = arith.constant 0 : index
    %c0_1 = arith.constant 0 : index
    %3 = vector.load %arg3[%c0, %c0_1] : memref<2x64xbf16, #tpu.memory_space<vmem>>, vector<2x64xbf16>
    %c0_2 = arith.constant 0 : index
    %c0_3 = arith.constant 0 : index
    %4 = vector.load %arg4[%c0_2, %c0_3] : memref<64x32xbf16, #tpu.memory_space<vmem>>, vector<64x32xbf16>
    %cst = arith.constant dense<0.000000e+00> : vector<2x32xf32>
    %5 = tpu.matmul %3, %4, %cst {dimension_numbers = #tpu.dot_dimension_numbers<[1], [0], [0], [1], [0, 0, 1, 1], [], []>} : vector<2x64xbf16>, vector<64x32xbf16>, vector<2x32xf32> -> vector<2x32xf32>
    %c0_4 = arith.constant 0 : index
    %c0_5 = arith.constant 0 : index
    %6 = vector.load %arg7[%c0_4, %c0_5] : memref<2x32xf32, #tpu.memory_space<vmem>>, vector<2x32xf32>
    %7 = arith.addf %6, %5 : vector<2x32xf32>
    %c0_6 = arith.constant 0 : index
    %c0_7 = arith.constant 0 : index
    %8 = vector.load %arg7[%c0_6, %c0_7] : memref<2x32xf32, #tpu.memory_space<vmem>>, vector<2x32xf32>
    tpu.vector_store %arg7[%c0_6, %c0_7], %7 {strides = array<i32>} : memref<2x32xf32, #tpu.memory_space<vmem>>, vector<2x32xf32>,
    %c0_i32_8 = arith.constant 0 : i32
    %9 = arith.cmpi eq, %arg2, %c0_i32_8 : i32
    %10 = arith.extui %9 : i1 to i32
    %c0_i32_9 = arith.constant 0 : i32
    %11 = arith.cmpi ne, %10, %c0_i32_9 : i32
    scf.if %11 {
      %c0_10 = arith.constant 0 : index
      %c0_11 = arith.constant 0 : index
      %12 = vector.load %arg7[%c0_10, %c0_11] : memref<2x32xf32, #tpu.memory_space<vmem>>, vector<2x32xf32>
      %c0_12 = arith.constant 0 : index
      %c0_13 = arith.constant 0 : index
      %13 = vector.load %arg5[%c0_12, %c0_13] : memref<1x32xf32, #tpu.memory_space<vmem>>, vector<1x32xf32>
      %14 = vector.broadcast %13 : vector<1x32xf32> to vector<2x32xf32>
      %15 = arith.addf %12, %14 : vector<2x32xf32>
      %c0_14 = arith.constant 0 : index
      %c0_15 = arith.constant 0 : index
      %16 = vector.load %arg6[%c0_14, %c0_15] : memref<2x32xf32, #tpu.memory_space<vmem>>, vector<2x32xf32>
      tpu.vector_store %arg6[%c0_14, %c0_15], %15 {strides = array<i32>} : memref<2x32xf32, #tpu.memory_space<vmem>>, vector<2x32xf32>,
    } else {
    }
    return
  }
  func.func @transform_0(%arg0: i32, %arg1: i32, %arg2: i32) -> (i32, i32) {
    %c0_i32 = arith.constant 0 : i32
    return %arg0, %arg2 : i32, i32
  }
  func.func @transform_1(%arg0: i32, %arg1: i32, %arg2: i32) -> (i32, i32) {
    %c0_i32 = arith.constant 0 : i32
    return %arg2, %arg1 : i32, i32
  }
  func.func @transform_2(%arg0: i32, %arg1: i32, %arg2: i32) -> (i32, i32) {
    %c0_i32 = arith.constant 0 : i32
    %c0_i32_0 = arith.constant 0 : i32
    return %c0_i32, %arg1 : i32, i32
  }
  func.func @transform_3(%arg0: i32, %arg1: i32, %arg2: i32) -> (i32, i32) {
    %c0_i32 = arith.constant 0 : i32
    return %arg0, %arg1 : i32, i32
  }
}

</mosaic_0001>

<llo_original>
// kernel: forward.24
$region0: #{forward.24}
  #allocation0 [shape = 'u32[]', space=smem, size = 0x4, offset = 0x4, fixed_abs, tag = 'smem constant byte address 0x4 - core index']
  #allocation1 [shape = 'u32[144,128]{1,0:T(1,128)}', space=vmem, size = 0x12000, scoped, tag = 'internal scratch']
  #allocation2 [shape = 'f32[1,64]{1,0:T(1,128)}', space=vmem, size = 0x200, scoped, tag = 'scratch operand']
  %s0 = inlined_call_operand.vmem [shape: f32[1,32], index: 0, kind: input, shape index: {}]
  %s1 = inlined_call_operand.vmem [shape: bf16[32,64], index: 1, kind: input, shape index: {}]
  %s2 = inlined_call_operand.vmem [shape: f32[1,64], index: 2, kind: input, shape index: {}]
  %s3 = inlined_call_operand.vmem [shape: f32[1,64], index: 3, kind: output, shape index: {}]
  %s4 = sld [smem:[#allocation0]]
  $region30: #{forward.24} parent=0
    _
  %s6 = ssub.s32 1, %s4
  %s7 = scalar_select 0, %s6, %s4
  // Predicated region
  $region2: #{forward.24} parent=0 // pred_check
    _
  $region3: #{forward.24} parent=0 // pred_check_branch
    %9 = sbr.rel (0) target = $region5
  $region4: #{forward.24} parent=0 // pred_region
    _
  $region5: #{forward.24} parent=0 // pred_fallthru
    _
  // Predicated region
  $region6: #{forward.24} parent=0 // pred_check
    _
  $region7: #{forward.24} parent=0 // pred_check_branch
    %11 = sbr.rel (0) target = $region9
  $region8: #{forward.24} parent=0 // pred_region
    _
  $region9: #{forward.24} parent=0 // pred_fallthru
    _
  // Predicated region
  $region10: #{forward.24} parent=0 // pred_check
    _
  $region11: #{forward.24} parent=0 // pred_check_branch
    %13 = sbr.rel (0) target = $region13
  $region12: #{forward.24} parent=0 // pred_region
    _
  $region13: #{forward.24} parent=0 // pred_fallthru
    _
  %p15 = scmp.eq.s32.totalorder 0, 0
  // Predicated region
  $region14: #{forward.24} parent=0 // pred_check
    %p16 = pneg %p15
  $region15: #{forward.24} parent=0 // pred_check_branch
    %18 = sbr.rel (%p16) target = $region17
  $region16: #{forward.24} parent=0 // pred_region
    %vm19 = vcmask 516096
    %20 = vst.msk [vmem:[#allocation2] sm:$0x1] %vm19, 0.0
  $region17: #{forward.24} parent=0 // pred_fallthru
    _
  %v21 = vld [vmem:[%s0] sm:$0x1]
  %v22 = vpack.c.bf16 %v21, %v21
  %v23 = vld [vmem:[%s1] sm:$0xf]
  %v24 = vld [vmem:[%s1 + $0x4] sm:$0xf]
  %v25 = vld [vmem:[%s1 + $0x8] sm:$0xf]
  %v26 = vld [vmem:[%s1 + $0xc] sm:$0xf]
  %v31 = vunpack.c.l.b16 %v23
  %v32 = vunpack.c.l.b16 %v24
  %v33 = vunpack.c.l.b16 %v25
  %v34 = vunpack.c.l.b16 %v26
  %v35 = vpack.c.b16 %v32, %v31
  %v36 = vpack.c.b16 %v34, %v33
  %vm39 = vcmask 261120
  %v41 = vsel %vm39, %v22, 0
  %43 = vmatprep.subr.bf16.mxu0 0
  %44 = vmatpush1.bf16.msra.mxu0 0
  %45 = vmatprep.subr.bf16.mxu0 0
  %46 = vmatpush1.bf16.msra.mxu0 0
  %47 = vmatprep.subr.bf16.mxu0 0
  %48 = vmatpush1.bf16.msra.mxu0 0
  %49 = vmatprep.subr.bf16.mxu0 0
  %50 = vmatpush1.bf16.msra.mxu0 0
  %51 = vmatprep.subr.bf16.mxu0 0
  %52 = vmatpush1.bf16.msra.mxu0 0
  %53 = vmatprep.subr.bf16.mxu0 0
  %54 = vmatpush1.bf16.msra.mxu0 0
  %55 = vmatprep.subr.bf16.mxu0 0
  %56 = vmatpush1.bf16.msra.mxu0 %v36
  %57 = vmatprep.subr.bf16.mxu0 0
  %58 = vmatpush1.bf16.msra.mxu0 %v35
  %59 = vmatprep.subr.bf16.mxu0 0
  %60 = vmatpush2.bf16.msra.mxu0 0
  %61 = vmatprep.subr.bf16.mxu0 0
  %62 = vmatpush2.bf16.msra.mxu0 0
  %63 = vmatprep.subr.bf16.mxu0 0
  %64 = vmatpush2.bf16.msra.mxu0 0
  %65 = vmatprep.subr.bf16.mxu0 0
  %66 = vmatpush2.bf16.msra.mxu0 0
  %67 = vmatprep.subr.bf16.mxu0 0
  %68 = vmatpush2.bf16.msra.mxu0 0
  %69 = vmatprep.subr.bf16.mxu0 0
  %70 = vmatpush2.bf16.msra.mxu0 0
  %71 = vmatprep.subr.bf16.mxu0 0
  %72 = vmatpush2.bf16.msra.mxu0 0
  %73 = vmatprep.subr.bf16.mxu0 0
  %74 = vmatpush2.bf16.msra.mxu0 0
  %75 = vmatprep.mubr.bf16.mxu0 0
  %76 = vmatmul.mubr.bf16.gmra.mxu0 %v41
  %v77 = vpop.f32.mrf.mxu0
  %v78 = vadd.f32 0.0, %v77
  %v79 = vpop.f32.mrf.mxu0
  %v80 = vpop.f32.mrf.mxu0
  %v81 = vpop.f32.mrf.mxu0
  %82 = vdwg.mxu0
  %v83 = vld [vmem:[#allocation2] sm:$0x1]
  %v84 = vadd.f32 %v83, %v78
  %vm85 = vcmask 516096
  %86 = vst.msk [vmem:[#allocation2] sm:$0x1] %vm85, %v84
  // Predicated region
  $region18: #{forward.24} parent=0 // pred_check
    %p87 = pneg %p15
  $region19: #{forward.24} parent=0 // pred_check_branch
    %89 = sbr.rel (%p87) target = $region21
  $region20: #{forward.24} parent=0 // pred_region
    %v90 = vld [vmem:[#allocation2] sm:$0x1]
    %v91 = vld [vmem:[%s2] sm:$0x1]
    %v92 = vadd.f32 %v90, %v91
    %93 = vst.msk [vmem:[%s3] sm:$0x1] %vm85, %v92
  $region21: #{forward.24} parent=0 // pred_fallthru
    _
  // Predicated region
  $region22: #{forward.24} parent=0 // pred_check
    _
  $region23: #{forward.24} parent=0 // pred_check_branch
    %95 = sbr.rel (0) target = $region25
  $region24: #{forward.24} parent=0 // pred_region
    _
  $region25: #{forward.24} parent=0 // pred_fallthru
    _
  // Predicated region
  $region26: #{forward.24} parent=0 // pred_check
    _
  $region27: #{forward.24} parent=0 // pred_check_branch
    %97 = sbr.rel (0) target = $region29
  $region28: #{forward.24} parent=0 // pred_region
    _
  $region29: #{forward.24} parent=0 // pred_fallthru
    _

// kernel: forward.23
$region0: #{forward.23}
  #allocation0 [shape = 'u32[]', space=smem, size = 0x4, offset = 0x4, fixed_abs, tag = 'smem constant byte address 0x4 - core index']
  #allocation1 [shape = 'u32[144,128]{1,0:T(1,128)}', space=vmem, size = 0x12000, scoped, tag = 'internal scratch']
  #allocation2 [shape = 'f32[16,64]{1,0:T(8,128)}', space=vmem, size = 0x2000, scoped, tag = 'scratch operand']
  %s0 = inlined_call_operand.vmem [shape: f32[16,32], index: 0, kind: input, shape index: {}]
  %s1 = inlined_call_operand.vmem [shape: bf16[32,64], index: 1, kind: input, shape index: {}]
  %s2 = inlined_call_operand.vmem [shape: f32[1,64], index: 2, kind: input, shape index: {}]
  %s3 = inlined_call_operand.vmem [shape: f32[16,64], index: 3, kind: output, shape index: {}]
  %s4 = sld [smem:[#allocation0]]
  $region30: #{forward.23} parent=0
    _
  %s6 = ssub.s32 1, %s4
  %s7 = scalar_select 0, %s6, %s4
  // Predicated region
  $region2: #{forward.23} parent=0 // pred_check
    _
  $region3: #{forward.23} parent=0 // pred_check_branch
    %9 = sbr.rel (0) target = $region5
  $region4: #{forward.23} parent=0 // pred_region
    _
  $region5: #{forward.23} parent=0 // pred_fallthru
    _
  // Predicated region
  $region6: #{forward.23} parent=0 // pred_check
    _
  $region7: #{forward.23} parent=0 // pred_check_branch
    %11 = sbr.rel (0) target = $region9
  $region8: #{forward.23} parent=0 // pred_region
    _
  $region9: #{forward.23} parent=0 // pred_fallthru
    _
  // Predicated region
  $region10: #{forward.23} parent=0 // pred_check
    _
  $region11: #{forward.23} parent=0 // pred_check_branch
    %13 = sbr.rel (0) target = $region13
  $region12: #{forward.23} parent=0 // pred_region
    _
  $region13: #{forward.23} parent=0 // pred_fallthru
    _
  %p15 = scmp.eq.s32.totalorder 0, 0
  // Predicated region
  $region14: #{forward.23} parent=0 // pred_check
    %p16 = pneg %p15
  $region15: #{forward.23} parent=0 // pred_check_branch
    %18 = sbr.rel (%p16) target = $region17
  $region16: #{forward.23} parent=0 // pred_region
    %vm19 = vcmask 523264
    %20 = vst.msk [vmem:[#allocation2] sm:$0xff] %vm19, 0.0
    %21 = vst.msk [vmem:[#allocation2 + $0x8] sm:$0xff] %vm19, 0.0
  $region17: #{forward.23} parent=0 // pred_fallthru
    _
  %v22 = vld [vmem:[%s0] sm:$0xff]
  %v23 = vld [vmem:[%s0 + $0x8] sm:$0xff]
  %v24 = vpack.c.bf16 %v23, %v22
  %v25 = vld [vmem:[%s1] sm:$0xf]
  %v26 = vld [vmem:[%s1 + $0x4] sm:$0xf]
  %v27 = vld [vmem:[%s1 + $0x8] sm:$0xf]
  %v28 = vld [vmem:[%s1 + $0xc] sm:$0xf]
  %v33 = vunpack.c.l.b16 %v25
  %v34 = vunpack.c.l.b16 %v26
  %v35 = vunpack.c.l.b16 %v27
  %v36 = vunpack.c.l.b16 %v28
  %v37 = vpack.c.b16 %v34, %v33
  %v38 = vpack.c.b16 %v36, %v35
  %vm41 = vcmask 261120
  %v43 = vsel %vm41, %v24, 0
  %45 = vmatprep.subr.bf16.mxu0 0
  %46 = vmatpush1.bf16.msra.mxu0 0
  %47 = vmatprep.subr.bf16.mxu0 0
  %48 = vmatpush1.bf16.msra.mxu0 0
  %49 = vmatprep.subr.bf16.mxu0 0
  %50 = vmatpush1.bf16.msra.mxu0 0
  %51 = vmatprep.subr.bf16.mxu0 0
  %52 = vmatpush1.bf16.msra.mxu0 0
  %53 = vmatprep.subr.bf16.mxu0 0
  %54 = vmatpush1.bf16.msra.mxu0 0
  %55 = vmatprep.subr.bf16.mxu0 0
  %56 = vmatpush1.bf16.msra.mxu0 0
  %57 = vmatprep.subr.bf16.mxu0 0
  %58 = vmatpush1.bf16.msra.mxu0 %v38
  %59 = vmatprep.subr.bf16.mxu0 0
  %60 = vmatpush1.bf16.msra.mxu0 %v37
  %61 = vmatprep.subr.bf16.mxu0 0
  %62 = vmatpush2.bf16.msra.mxu0 0
  %63 = vmatprep.subr.bf16.mxu0 0
  %64 = vmatpush2.bf16.msra.mxu0 0
  %65 = vmatprep.subr.bf16.mxu0 0
  %66 = vmatpush2.bf16.msra.mxu0 0
  %67 = vmatprep.subr.bf16.mxu0 0
  %68 = vmatpush2.bf16.msra.mxu0 0
  %69 = vmatprep.subr.bf16.mxu0 0
  %70 = vmatpush2.bf16.msra.mxu0 0
  %71 = vmatprep.subr.bf16.mxu0 0
  %72 = vmatpush2.bf16.msra.mxu0 0
  %73 = vmatprep.subr.bf16.mxu0 0
  %74 = vmatpush2.bf16.msra.mxu0 0
  %75 = vmatprep.subr.bf16.mxu0 0
  %76 = vmatpush2.bf16.msra.mxu0 0
  %77 = vmatprep.mubr.bf16.mxu0 0
  %78 = vmatmul.mubr.bf16.gmra.mxu0 %v43
  %v79 = vpop.f32.mrf.mxu0
  %v80 = vadd.f32 0.0, %v79
  %v81 = vpop.f32.mrf.mxu0
  %v82 = vpop.f32.mrf.mxu0
  %v83 = vadd.f32 0.0, %v82
  %v84 = vpop.f32.mrf.mxu0
  %85 = vdwg.mxu0
  %v86 = vld [vmem:[#allocation2] sm:$0xff]
  %v87 = vld [vmem:[#allocation2 + $0x8] sm:$0xff]
  %v88 = vadd.f32 %v86, %v80
  %v89 = vadd.f32 %v87, %v83
  %vm90 = vcmask 523264
  %91 = vst.msk [vmem:[#allocation2] sm:$0xff] %vm90, %v88
  %92 = vst.msk [vmem:[#allocation2 + $0x8] sm:$0xff] %vm90, %v89
  // Predicated region
  $region18: #{forward.23} parent=0 // pred_check
    %p93 = pneg %p15
  $region19: #{forward.23} parent=0 // pred_check_branch
    %95 = sbr.rel (%p93) target = $region21
  $region20: #{forward.23} parent=0 // pred_region
    %v96 = vld [vmem:[#allocation2] sm:$0xff]
    %v97 = vld [vmem:[#allocation2 + $0x8] sm:$0xff]
    %v98 = vld [vmem:[%s2] sm:$0x1]
    %v100 = vlaneseq
    %v101 = vshrl.u32 %v100, 7
    %v102 = vsub.s32 0, %v101
    %v103 = vrot.slane %v98, %v102
    %v105 = vadd.f32 %v96, %v103
    %v106 = vadd.f32 %v97, %v103
    %107 = vst.msk [vmem:[%s3] sm:$0xff] %vm90, %v105
    %108 = vst.msk [vmem:[%s3 + $0x8] sm:$0xff] %vm90, %v106
  $region21: #{forward.23} parent=0 // pred_fallthru
    _
  // Predicated region
  $region22: #{forward.23} parent=0 // pred_check
    _
  $region23: #{forward.23} parent=0 // pred_check_branch
    %110 = sbr.rel (0) target = $region25
  $region24: #{forward.23} parent=0 // pred_region
    _
  $region25: #{forward.23} parent=0 // pred_fallthru
    _
  // Predicated region
  $region26: #{forward.23} parent=0 // pred_check
    _
  $region27: #{forward.23} parent=0 // pred_check_branch
    %112 = sbr.rel (0) target = $region29
  $region28: #{forward.23} parent=0 // pred_region
    _
  $region29: #{forward.23} parent=0 // pred_fallthru
    _

// kernel: forward.22
$region0: #{forward.22}
  #allocation0 [shape = 'u32[]', space=smem, size = 0x4, offset = 0x4, fixed_abs, tag = 'smem constant byte address 0x4 - core index']
  #allocation1 [shape = 'u32[144,128]{1,0:T(1,128)}', space=vmem, size = 0x12000, scoped, tag = 'internal scratch']
  #allocation2 [shape = 'f32[64,64]{1,0:T(8,128)}', space=vmem, size = 0x8000, scoped, tag = 'scratch operand']
  %s0 = inlined_call_operand.vmem [shape: f32[64,16], index: 0, kind: input, shape index: {}]
  %s1 = inlined_call_operand.vmem [shape: bf16[16,64], index: 1, kind: input, shape index: {}]
  %s2 = inlined_call_operand.vmem [shape: f32[1,64], index: 2, kind: input, shape index: {}]
  %s3 = inlined_call_operand.vmem [shape: f32[64,64], index: 3, kind: output, shape index: {}]
  %s4 = sld [smem:[#allocation0]]
  $region30: #{forward.22} parent=0
    _
  %s6 = ssub.s32 1, %s4
  %s7 = scalar_select 0, %s6, %s4
  // Predicated region
  $region2: #{forward.22} parent=0 // pred_check
    _
  $region3: #{forward.22} parent=0 // pred_check_branch
    %9 = sbr.rel (0) target = $region5
  $region4: #{forward.22} parent=0 // pred_region
    _
  $region5: #{forward.22} parent=0 // pred_fallthru
    _
  // Predicated region
  $region6: #{forward.22} parent=0 // pred_check
    _
  $region7: #{forward.22} parent=0 // pred_check_branch
    %11 = sbr.rel (0) target = $region9
  $region8: #{forward.22} parent=0 // pred_region
    _
  $region9: #{forward.22} parent=0 // pred_fallthru
    _
  // Predicated region
  $region10: #{forward.22} parent=0 // pred_check
    _
  $region11: #{forward.22} parent=0 // pred_check_branch
    %13 = sbr.rel (0) target = $region13
  $region12: #{forward.22} parent=0 // pred_region
    _
  $region13: #{forward.22} parent=0 // pred_fallthru
    _
  %p15 = scmp.eq.s32.totalorder 0, 0
  // Predicated region
  $region14: #{forward.22} parent=0 // pred_check
    %p16 = pneg %p15
  $region15: #{forward.22} parent=0 // pred_check_branch
    %18 = sbr.rel (%p16) target = $region17
  $region16: #{forward.22} parent=0 // pred_region
    %vm19 = vcmask 523264
    %20 = vst.msk [vmem:[#allocation2] sm:$0xff] %vm19, 0.0
    %21 = vst.msk [vmem:[#allocation2 + $0x8] sm:$0xff] %vm19, 0.0
    %22 = vst.msk [vmem:[#allocation2 + $0x10] sm:$0xff] %vm19, 0.0
    %23 = vst.msk [vmem:[#allocation2 + $0x18] sm:$0xff] %vm19, 0.0
    %24 = vst.msk [vmem:[#allocation2 + $0x20] sm:$0xff] %vm19, 0.0
    %25 = vst.msk [vmem:[#allocation2 + $0x28] sm:$0xff] %vm19, 0.0
    %26 = vst.msk [vmem:[#allocation2 + $0x30] sm:$0xff] %vm19, 0.0
    %27 = vst.msk [vmem:[#allocation2 + $0x38] sm:$0xff] %vm19, 0.0
  $region17: #{forward.22} parent=0 // pred_fallthru
    _
  %v28 = vld [vmem:[%s0] sm:$0xff]
  %v29 = vld [vmem:[%s0 + $0x8] sm:$0xff]
  %v30 = vld [vmem:[%s0 + $0x10] sm:$0xff]
  %v31 = vld [vmem:[%s0 + $0x18] sm:$0xff]
  %v32 = vld [vmem:[%s0 + $0x20] sm:$0xff]
  %v33 = vld [vmem:[%s0 + $0x28] sm:$0xff]
  %v34 = vld [vmem:[%s0 + $0x30] sm:$0xff]
  %v35 = vld [vmem:[%s0 + $0x38] sm:$0xff]
  %v36 = vpack.c.bf16 %v29, %v28
  %v37 = vpack.c.bf16 %v31, %v30
  %v38 = vpack.c.bf16 %v33, %v32
  %v39 = vpack.c.bf16 %v35, %v34
  %v40 = vld [vmem:[%s1] sm:$0xf]
  %v41 = vld [vmem:[%s1 + $0x4] sm:$0xf]
  %v44 = vunpack.c.l.b16 %v40
  %v45 = vunpack.c.l.b16 %v41
  %v46 = vpack.c.b16 %v45, %v44
  %vm48 = vcmask 130048
  %v50 = vsel %vm48, %v36, 0
  %v53 = vsel %vm48, %v37, 0
  %v56 = vsel %vm48, %v38, 0
  %v59 = vsel %vm48, %v39, 0
  %61 = vmatprep.subr.bf16.mxu0 0
  %62 = vmatpush1.bf16.msra.mxu0 0
  %63 = vmatprep.subr.bf16.mxu0 0
  %64 = vmatpush1.bf16.msra.mxu0 0
  %65 = vmatprep.subr.bf16.mxu0 0
  %66 = vmatpush1.bf16.msra.mxu0 0
  %67 = vmatprep.subr.bf16.mxu0 0
  %68 = vmatpush1.bf16.msra.mxu0 0
  %69 = vmatprep.subr.bf16.mxu0 0
  %70 = vmatpush1.bf16.msra.mxu0 0
  %71 = vmatprep.subr.bf16.mxu0 0
  %72 = vmatpush1.bf16.msra.mxu0 0
  %73 = vmatprep.subr.bf16.mxu0 0
  %74 = vmatpush1.bf16.msra.mxu0 0
  %75 = vmatprep.subr.bf16.mxu0 0
  %76 = vmatpush1.bf16.msra.mxu0 %v46
  %77 = vmatprep.subr.bf16.mxu0 0
  %78 = vmatpush2.bf16.msra.mxu0 0
  %79 = vmatprep.subr.bf16.mxu0 0
  %80 = vmatpush2.bf16.msra.mxu0 0
  %81 = vmatprep.subr.bf16.mxu0 0
  %82 = vmatpush2.bf16.msra.mxu0 0
  %83 = vmatprep.subr.bf16.mxu0 0
  %84 = vmatpush2.bf16.msra.mxu0 0
  %85 = vmatprep.subr.bf16.mxu0 0
  %86 = vmatpush2.bf16.msra.mxu0 0
  %87 = vmatprep.subr.bf16.mxu0 0
  %88 = vmatpush2.bf16.msra.mxu0 0
  %89 = vmatprep.subr.bf16.mxu0 0
  %90 = vmatpush2.bf16.msra.mxu0 0
  %91 = vmatprep.subr.bf16.mxu0 0
  %92 = vmatpush2.bf16.msra.mxu0 0
  %93 = vmatprep.mubr.bf16.mxu0 0
  %94 = vmatmul.mubr.bf16.gmra.mxu0 %v50
  %v95 = vpop.f32.mrf.mxu0
  %v96 = vadd.f32 0.0, %v95
  %v97 = vpop.f32.mrf.mxu0
  %v98 = vpop.f32.mrf.mxu0
  %v99 = vadd.f32 0.0, %v98
  %v100 = vpop.f32.mrf.mxu0
  %101 = vmatprep.mubr.bf16.mxu0 0
  %102 = vmatmul.mubr.bf16.gmra.mxu0 %v53
  %v103 = vpop.f32.mrf.mxu0
  %v104 = vadd.f32 0.0, %v103
  %v105 = vpop.f32.mrf.mxu0
  %v106 = vpop.f32.mrf.mxu0
  %v107 = vadd.f32 0.0, %v106
  %v108 = vpop.f32.mrf.mxu0
  %109 = vmatprep.mubr.bf16.mxu0 0
  %110 = vmatmul.mubr.bf16.gmra.mxu0 %v56
  %v111 = vpop.f32.mrf.mxu0
  %v112 = vadd.f32 0.0, %v111
  %v113 = vpop.f32.mrf.mxu0
  %v114 = vpop.f32.mrf.mxu0
  %v115 = vadd.f32 0.0, %v114
  %v116 = vpop.f32.mrf.mxu0
  %117 = vmatprep.mubr.bf16.mxu0 0
  %118 = vmatmul.mubr.bf16.gmra.mxu0 %v59
  %v119 = vpop.f32.mrf.mxu0
  %v120 = vadd.f32 0.0, %v119
  %v121 = vpop.f32.mrf.mxu0
  %v122 = vpop.f32.mrf.mxu0
  %v123 = vadd.f32 0.0, %v122
  %v124 = vpop.f32.mrf.mxu0
  %125 = vdwg.mxu0
  %v126 = vld [vmem:[#allocation2] sm:$0xff]
  %v127 = vld [vmem:[#allocation2 + $0x8] sm:$0xff]
  %v128 = vld [vmem:[#allocation2 + $0x10] sm:$0xff]
  %v129 = vld [vmem:[#allocation2 + $0x18] sm:$0xff]
  %v130 = vld [vmem:[#allocation2 + $0x20] sm:$0xff]
  %v131 = vld [vmem:[#allocation2 + $0x28] sm:$0xff]
  %v132 = vld [vmem:[#allocation2 + $0x30] sm:$0xff]
  %v133 = vld [vmem:[#allocation2 + $0x38] sm:$0xff]
  %v134 = vadd.f32 %v126, %v96
  %v135 = vadd.f32 %v127, %v99
  %v136 = vadd.f32 %v128, %v104
  %v137 = vadd.f32 %v129, %v107
  %v138 = vadd.f32 %v130, %v112
  %v139 = vadd.f32 %v131, %v115
  %v140 = vadd.f32 %v132, %v120
  %v141 = vadd.f32 %v133, %v123
  %vm142 = vcmask 523264
  %143 = vst.msk [vmem:[#allocation2] sm:$0xff] %vm142, %v134
  %144 = vst.msk [vmem:[#allocation2 + $0x8] sm:$0xff] %vm142, %v135
  %145 = vst.msk [vmem:[#allocation2 + $0x10] sm:$0xff] %vm142, %v136
  %146 = vst.msk [vmem:[#allocation2 + $0x18] sm:$0xff] %vm142, %v137
  %147 = vst.msk [vmem:[#allocation2 + $0x20] sm:$0xff] %vm142, %v138
  %148 = vst.msk [vmem:[#allocation2 + $0x28] sm:$0xff] %vm142, %v139
  %149 = vst.msk [vmem:[#allocation2 + $0x30] sm:$0xff] %vm142, %v140
  %150 = vst.msk [vmem:[#allocation2 + $0x38] sm:$0xff] %vm142, %v141
  // Predicated region
  $region18: #{forward.22} parent=0 // pred_check
    %p151 = pneg %p15
  $region19: #{forward.22} parent=0 // pred_check_branch
    %153 = sbr.rel (%p151) target = $region21
  $region20: #{forward.22} parent=0 // pred_region
    %v154 = vld [vmem:[#allocation2] sm:$0xff]
    %v155 = vld [vmem:[#allocation2 + $0x8] sm:$0xff]
    %v156 = vld [vmem:[#allocation2 + $0x10] sm:$0xff]
    %v157 = vld [vmem:[#allocation2 + $0x18] sm:$0xff]
    %v158 = vld [vmem:[#allocation2 + $0x20] sm:$0xff]
    %v159 = vld [vmem:[#allocation2 + $0x28] sm:$0xff]
    %v160 = vld [vmem:[#allocation2 + $0x30] sm:$0xff]
    %v161 = vld [vmem:[#allocation2 + $0x38] sm:$0xff]
    %v162 = vld [vmem:[%s2] sm:$0x1]
    %v164 = vlaneseq
    %v165 = vshrl.u32 %v164, 7
    %v166 = vsub.s32 0, %v165
    %v167 = vrot.slane %v162, %v166
    %v169 = vadd.f32 %v154, %v167
    %v170 = vadd.f32 %v155, %v167
    %v171 = vadd.f32 %v156, %v167
    %v172 = vadd.f32 %v157, %v167
    %v173 = vadd.f32 %v158, %v167
    %v174 = vadd.f32 %v159, %v167
    %v175 = vadd.f32 %v160, %v167
    %v176 = vadd.f32 %v161, %v167
    %177 = vst.msk [vmem:[%s3] sm:$0xff] %vm142, %v169
    %178 = vst.msk [vmem:[%s3 + $0x8] sm:$0xff] %vm142, %v170
    %179 = vst.msk [vmem:[%s3 + $0x10] sm:$0xff] %vm142, %v171
    %180 = vst.msk [vmem:[%s3 + $0x18] sm:$0xff] %vm142, %v172
    %181 = vst.msk [vmem:[%s3 + $0x20] sm:$0xff] %vm142, %v173
    %182 = vst.msk [vmem:[%s3 + $0x28] sm:$0xff] %vm142, %v174
    %183 = vst.msk [vmem:[%s3 + $0x30] sm:$0xff] %vm142, %v175
    %184 = vst.msk [vmem:[%s3 + $0x38] sm:$0xff] %vm142, %v176
  $region21: #{forward.22} parent=0 // pred_fallthru
    _
  // Predicated region
  $region22: #{forward.22} parent=0 // pred_check
    _
  $region23: #{forward.22} parent=0 // pred_check_branch
    %186 = sbr.rel (0) target = $region25
  $region24: #{forward.22} parent=0 // pred_region
    _
  $region25: #{forward.22} parent=0 // pred_fallthru
    _
  // Predicated region
  $region26: #{forward.22} parent=0 // pred_check
    _
  $region27: #{forward.22} parent=0 // pred_check_branch
    %188 = sbr.rel (0) target = $region29
  $region28: #{forward.22} parent=0 // pred_region
    _
  $region29: #{forward.22} parent=0 // pred_fallthru
    _

// kernel: forward.27
$region0: #{forward.27}
  #allocation0 [shape = 'u32[]', space=smem, size = 0x4, offset = 0x4, fixed_abs, tag = 'smem constant byte address 0x4 - core index']
  #allocation1 [shape = 'u32[144,128]{1,0:T(1,128)}', space=vmem, size = 0x12000, scoped, tag = 'internal scratch']
  #allocation2 [shape = 'f32[152,64]{1,0:T(8,128)}', space=vmem, size = 0x13000, scoped, tag = 'scratch operand']
  %s0 = inlined_call_operand.vmem [shape: bf16[152,64], index: 0, kind: input, shape index: {}]
  %s1 = inlined_call_operand.vmem [shape: bf16[64,64], index: 1, kind: input, shape index: {}]
  %s2 = inlined_call_operand.vmem [shape: f32[1,64], index: 2, kind: input, shape index: {}]
  %s3 = inlined_call_operand.vmem [shape: bf16[152,64], index: 3, kind: input, shape index: {}]
  %s4 = inlined_call_operand.vmem [shape: f32[1,64], index: 4, kind: input, shape index: {}]
  %s5 = inlined_call_operand.vmem [shape: f32[1,64], index: 5, kind: input, shape index: {}]
  %s6 = inlined_call_operand.vmem [shape: bf16[152,64], index: 6, kind: output, shape index: {}]
  %s7 = sld [smem:[#allocation0]]
  $region42: #{forward.27} parent=0
    _
  %s9 = ssub.s32 1, %s7
  %s10 = scalar_select 0, %s9, %s7
  // Predicated region
  $region2: #{forward.27} parent=0 // pred_check
    _
  $region3: #{forward.27} parent=0 // pred_check_branch
    %12 = sbr.rel (0) target = $region5
  $region4: #{forward.27} parent=0 // pred_region
    _
  $region5: #{forward.27} parent=0 // pred_fallthru
    _
  // Predicated region
  $region6: #{forward.27} parent=0 // pred_check
    _
  $region7: #{forward.27} parent=0 // pred_check_branch
    %14 = sbr.rel (0) target = $region9
  $region8: #{forward.27} parent=0 // pred_region
    _
  $region9: #{forward.27} parent=0 // pred_fallthru
    _
  // Predicated region
  $region10: #{forward.27} parent=0 // pred_check
    _
  $region11: #{forward.27} parent=0 // pred_check_branch
    %16 = sbr.rel (0) target = $region13
  $region12: #{forward.27} parent=0 // pred_region
    _
  $region13: #{forward.27} parent=0 // pred_fallthru
    _
  // Predicated region
  $region14: #{forward.27} parent=0 // pred_check
    _
  $region15: #{forward.27} parent=0 // pred_check_branch
    %18 = sbr.rel (0) target = $region17
  $region16: #{forward.27} parent=0 // pred_region
    _
  $region17: #{forward.27} parent=0 // pred_fallthru
    _
  // Predicated region
  $region18: #{forward.27} parent=0 // pred_check
    _
  $region19: #{forward.27} parent=0 // pred_check_branch
    %20 = sbr.rel (0) target = $region21
  $region20: #{forward.27} parent=0 // pred_region
    _
  $region21: #{forward.27} parent=0 // pred_fallthru
    _
  // Predicated region
  $region22: #{forward.27} parent=0 // pred_check
    _
  $region23: #{forward.27} parent=0 // pred_check_branch
    %22 = sbr.rel (0) target = $region25
  $region24: #{forward.27} parent=0 // pred_region
    _
  $region25: #{forward.27} parent=0 // pred_fallthru
    _
  %p24 = scmp.eq.s32.totalorder 0, 0
  // Predicated region
  $region26: #{forward.27} parent=0 // pred_check
    %p25 = pneg %p24
  $region27: #{forward.27} parent=0 // pred_check_branch
    %27 = sbr.rel (%p25) target = $region29
  $region28: #{forward.27} parent=0 // pred_region
    %vm28 = vcmask 523264
    %29 = vst.msk [vmem:[#allocation2] sm:$0xff] %vm28, 0.0
    %30 = vst.msk [vmem:[#allocation2 + $0x8] sm:$0xff] %vm28, 0.0
    %31 = vst.msk [vmem:[#allocation2 + $0x10] sm:$0xff] %vm28, 0.0
    %32 = vst.msk [vmem:[#allocation2 + $0x18] sm:$0xff] %vm28, 0.0
    %33 = vst.msk [vmem:[#allocation2 + $0x20] sm:$0xff] %vm28, 0.0
    %34 = vst.msk [vmem:[#allocation2 + $0x28] sm:$0xff] %vm28, 0.0
    %35 = vst.msk [vmem:[#allocation2 + $0x30] sm:$0xff] %vm28, 0.0
    %36 = vst.msk [vmem:[#allocation2 + $0x38] sm:$0xff] %vm28, 0.0
    %37 = vst.msk [vmem:[#allocation2 + $0x40] sm:$0xff] %vm28, 0.0
    %38 = vst.msk [vmem:[#allocation2 + $0x48] sm:$0xff] %vm28, 0.0
    %39 = vst.msk [vmem:[#allocation2 + $0x50] sm:$0xff] %vm28, 0.0
    %40 = vst.msk [vmem:[#allocation2 + $0x58] sm:$0xff] %vm28, 0.0
    %41 = vst.msk [vmem:[#allocation2 + $0x60] sm:$0xff] %vm28, 0.0
    %42 = vst.msk [vmem:[#allocation2 + $0x68] sm:$0xff] %vm28, 0.0
    %43 = vst.msk [vmem:[#allocation2 + $0x70] sm:$0xff] %vm28, 0.0
    %44 = vst.msk [vmem:[#allocation2 + $0x78] sm:$0xff] %vm28, 0.0
    %45 = vst.msk [vmem:[#allocation2 + $0x80] sm:$0xff] %vm28, 0.0
    %46 = vst.msk [vmem:[#allocation2 + $0x88] sm:$0xff] %vm28, 0.0
    %47 = vst.msk [vmem:[#allocation2 + $0x90] sm:$0xff] %vm28, 0.0
  $region29: #{forward.27} parent=0 // pred_fallthru
    _
  %v48 = vld [vmem:[%s0] sm:$0xf]
  %v49 = vld [vmem:[%s0 + $0x4] sm:$0xf]
  %v50 = vld [vmem:[%s0 + $0x8] sm:$0xf]
  %v51 = vld [vmem:[%s0 + $0xc] sm:$0xf]
  %v52 = vld [vmem:[%s0 + $0x10] sm:$0xf]
  %v53 = vld [vmem:[%s0 + $0x14] sm:$0xf]
  %v54 = vld [vmem:[%s0 + $0x18] sm:$0xf]
  %v55 = vld [vmem:[%s0 + $0x1c] sm:$0xf]
  %v56 = vld [vmem:[%s0 + $0x20] sm:$0xf]
  %v57 = vld [vmem:[%s0 + $0x24] sm:$0xf]
  %v58 = vld [vmem:[%s0 + $0x28] sm:$0xf]
  %v59 = vld [vmem:[%s0 + $0x2c] sm:$0xf]
  %v60 = vld [vmem:[%s0 + $0x30] sm:$0xf]
  %v61 = vld [vmem:[%s0 + $0x34] sm:$0xf]
  %v62 = vld [vmem:[%s0 + $0x38] sm:$0xf]
  %v63 = vld [vmem:[%s0 + $0x3c] sm:$0xf]
  %v64 = vld [vmem:[%s0 + $0x40] sm:$0xf]
  %v65 = vld [vmem:[%s0 + $0x44] sm:$0xf]
  %v66 = vld [vmem:[%s0 + $0x48] sm:$0xf]
  %v67 = vld [vmem:[%s1] sm:$0xf]
  %v68 = vld [vmem:[%s1 + $0x4] sm:$0xf]
  %v69 = vld [vmem:[%s1 + $0x8] sm:$0xf]
  %v70 = vld [vmem:[%s1 + $0xc] sm:$0xf]
  %v71 = vld [vmem:[%s1 + $0x10] sm:$0xf]
  %v72 = vld [vmem:[%s1 + $0x14] sm:$0xf]
  %v73 = vld [vmem:[%s1 + $0x18] sm:$0xf]
  %v74 = vld [vmem:[%s1 + $0x1c] sm:$0xf]
  %v94 = vunpack.c.l.b16 %v48
  %v95 = vunpack.c.l.b16 %v49
  %v96 = vunpack.c.l.b16 %v50
  %v97 = vunpack.c.l.b16 %v51
  %v98 = vunpack.c.l.b16 %v52
  %v99 = vunpack.c.l.b16 %v53
  %v100 = vunpack.c.l.b16 %v54
  %v101 = vunpack.c.l.b16 %v55
  %v102 = vunpack.c.l.b16 %v56
  %v103 = vunpack.c.l.b16 %v57
  %v104 = vunpack.c.l.b16 %v58
  %v105 = vunpack.c.l.b16 %v59
  %v106 = vunpack.c.l.b16 %v60
  %v107 = vunpack.c.l.b16 %v61
  %v108 = vunpack.c.l.b16 %v62
  %v109 = vunpack.c.l.b16 %v63
  %v110 = vunpack.c.l.b16 %v64
  %v111 = vunpack.c.l.b16 %v65
  %v112 = vunpack.c.l.b16 %v66
  %v113 = vpack.c.b16 %v95, %v94
  %v114 = vpack.c.b16 %v97, %v96
  %v115 = vpack.c.b16 %v99, %v98
  %v116 = vpack.c.b16 %v101, %v100
  %v117 = vpack.c.b16 %v103, %v102
  %v118 = vpack.c.b16 %v105, %v104
  %v119 = vpack.c.b16 %v107, %v106
  %v120 = vpack.c.b16 %v109, %v108
  %v121 = vpack.c.b16 %v111, %v110
  %v122 = vpack.c.b16 %v112, %v112
  %v131 = vunpack.c.l.b16 %v67
  %v132 = vunpack.c.l.b16 %v68
  %v133 = vunpack.c.l.b16 %v69
  %v134 = vunpack.c.l.b16 %v70
  %v135 = vunpack.c.l.b16 %v71
  %v136 = vunpack.c.l.b16 %v72
  %v137 = vunpack.c.l.b16 %v73
  %v138 = vunpack.c.l.b16 %v74
  %v139 = vpack.c.b16 %v132, %v131
  %v140 = vpack.c.b16 %v134, %v133
  %v141 = vpack.c.b16 %v136, %v135
  %v142 = vpack.c.b16 %v138, %v137
  %vm147 = vcmask 523264
  %v149 = vsel %vm147, %v113, 0
  %v152 = vsel %vm147, %v114, 0
  %v155 = vsel %vm147, %v115, 0
  %v158 = vsel %vm147, %v116, 0
  %v161 = vsel %vm147, %v117, 0
  %v164 = vsel %vm147, %v118, 0
  %v167 = vsel %vm147, %v119, 0
  %v170 = vsel %vm147, %v120, 0
  %v173 = vsel %vm147, %v121, 0
  %v176 = vsel %vm147, %v122, 0
  %178 = vmatprep.subr.bf16.mxu0 0
  %179 = vmatpush1.bf16.msra.mxu0 0
  %180 = vmatprep.subr.bf16.mxu0 0
  %181 = vmatpush1.bf16.msra.mxu0 0
  %182 = vmatprep.subr.bf16.mxu0 0
  %183 = vmatpush1.bf16.msra.mxu0 0
  %184 = vmatprep.subr.bf16.mxu0 0
  %185 = vmatpush1.bf16.msra.mxu0 0
  %186 = vmatprep.subr.bf16.mxu0 0
  %187 = vmatpush1.bf16.msra.mxu0 %v142
  %188 = vmatprep.subr.bf16.mxu0 0
  %189 = vmatpush1.bf16.msra.mxu0 %v141
  %190 = vmatprep.subr.bf16.mxu0 0
  %191 = vmatpush1.bf16.msra.mxu0 %v140
  %192 = vmatprep.subr.bf16.mxu0 0
  %193 = vmatpush1.bf16.msra.mxu0 %v139
  %194 = vmatprep.subr.bf16.mxu0 0
  %195 = vmatpush2.bf16.msra.mxu0 0
  %196 = vmatprep.subr.bf16.mxu0 0
  %197 = vmatpush2.bf16.msra.mxu0 0
  %198 = vmatprep.subr.bf16.mxu0 0
  %199 = vmatpush2.bf16.msra.mxu0 0
  %200 = vmatprep.subr.bf16.mxu0 0
  %201 = vmatpush2.bf16.msra.mxu0 0
  %202 = vmatprep.subr.bf16.mxu0 0
  %203 = vmatpush2.bf16.msra.mxu0 0
  %204 = vmatprep.subr.bf16.mxu0 0
  %205 = vmatpush2.bf16.msra.mxu0 0
  %206 = vmatprep.subr.bf16.mxu0 0
  %207 = vmatpush2.bf16.msra.mxu0 0
  %208 = vmatprep.subr.bf16.mxu0 0
  %209 = vmatpush2.bf16.msra.mxu0 0
  %210 = vmatprep.mubr.bf16.mxu0 0
  %211 = vmatmul.mubr.bf16.gmra.mxu0 %v149
  %v212 = vpop.f32.mrf.mxu0
  %v213 = vadd.f32 0.0, %v212
  %v214 = vpop.f32.mrf.mxu0
  %v215 = vpop.f32.mrf.mxu0
  %v216 = vadd.f32 0.0, %v215
  %v217 = vpop.f32.mrf.mxu0
  %218 = vmatprep.mubr.bf16.mxu0 0
  %219 = vmatmul.mubr.bf16.gmra.mxu0 %v152
  %v220 = vpop.f32.mrf.mxu0
  %v221 = vadd.f32 0.0, %v220
  %v222 = vpop.f32.mrf.mxu0
  %v223 = vpop.f32.mrf.mxu0
  %v224 = vadd.f32 0.0, %v223
  %v225 = vpop.f32.mrf.mxu0
  %226 = vmatprep.mubr.bf16.mxu0 0
  %227 = vmatmul.mubr.bf16.gmra.mxu0 %v155
  %v228 = vpop.f32.mrf.mxu0
  %v229 = vadd.f32 0.0, %v228
  %v230 = vpop.f32.mrf.mxu0
  %v231 = vpop.f32.mrf.mxu0
  %v232 = vadd.f32 0.0, %v231
  %v233 = vpop.f32.mrf.mxu0
  %234 = vmatprep.mubr.bf16.mxu0 0
  %235 = vmatmul.mubr.bf16.gmra.mxu0 %v158
  %v236 = vpop.f32.mrf.mxu0
  %v237 = vadd.f32 0.0, %v236
  %v238 = vpop.f32.mrf.mxu0
  %v239 = vpop.f32.mrf.mxu0
  %v240 = vadd.f32 0.0, %v239
  %v241 = vpop.f32.mrf.mxu0
  %242 = vmatprep.mubr.bf16.mxu0 0
  %243 = vmatmul.mubr.bf16.gmra.mxu0 %v161
  %v244 = vpop.f32.mrf.mxu0
  %v245 = vadd.f32 0.0, %v244
  %v246 = vpop.f32.mrf.mxu0
  %v247 = vpop.f32.mrf.mxu0
  %v248 = vadd.f32 0.0, %v247
  %v249 = vpop.f32.mrf.mxu0
  %250 = vmatprep.mubr.bf16.mxu0 0
  %251 = vmatmul.mubr.bf16.gmra.mxu0 %v164
  %v252 = vpop.f32.mrf.mxu0
  %v253 = vadd.f32 0.0, %v252
  %v254 = vpop.f32.mrf.mxu0
  %v255 = vpop.f32.mrf.mxu0
  %v256 = vadd.f32 0.0, %v255
  %v257 = vpop.f32.mrf.mxu0
  %258 = vmatprep.mubr.bf16.mxu0 0
  %259 = vmatmul.mubr.bf16.gmra.mxu0 %v167
  %v260 = vpop.f32.mrf.mxu0
  %v261 = vadd.f32 0.0, %v260
  %v262 = vpop.f32.mrf.mxu0
  %v263 = vpop.f32.mrf.mxu0
  %v264 = vadd.f32 0.0, %v263
  %v265 = vpop.f32.mrf.mxu0
  %266 = vmatprep.mubr.bf16.mxu0 0
  %267 = vmatmul.mubr.bf16.gmra.mxu0 %v170
  %v268 = vpop.f32.mrf.mxu0
  %v269 = vadd.f32 0.0, %v268
  %v270 = vpop.f32.mrf.mxu0
  %v271 = vpop.f32.mrf.mxu0
  %v272 = vadd.f32 0.0, %v271
  %v273 = vpop.f32.mrf.mxu0
  %274 = vmatprep.mubr.bf16.mxu0 0
  %275 = vmatmul.mubr.bf16.gmra.mxu0 %v173
  %v276 = vpop.f32.mrf.mxu0
  %v277 = vadd.f32 0.0, %v276
  %v278 = vpop.f32.mrf.mxu0
  %v279 = vpop.f32.mrf.mxu0
  %v280 = vadd.f32 0.0, %v279
  %v281 = vpop.f32.mrf.mxu0
  %282 = vmatprep.mubr.bf16.mxu0 0
  %283 = vmatmul.mubr.bf16.gmra.mxu0 %v176
  %v284 = vpop.f32.mrf.mxu0
  %v285 = vadd.f32 0.0, %v284
  %v286 = vpop.f32.mrf.mxu0
  %v287 = vpop.f32.mrf.mxu0
  %v288 = vpop.f32.mrf.mxu0
  %289 = vdwg.mxu0
  %v290 = vld [vmem:[#allocation2] sm:$0xff]
  %v291 = vld [vmem:[#allocation2 + $0x8] sm:$0xff]
  %v292 = vld [vmem:[#allocation2 + $0x10] sm:$0xff]
  %v293 = vld [vmem:[#allocation2 + $0x18] sm:$0xff]
  %v294 = vld [vmem:[#allocation2 + $0x20] sm:$0xff]
  %v295 = vld [vmem:[#allocation2 + $0x28] sm:$0xff]
  %v296 = vld [vmem:[#allocation2 + $0x30] sm:$0xff]
  %v297 = vld [vmem:[#allocation2 + $0x38] sm:$0xff]
  %v298 = vld [vmem:[#allocation2 + $0x40] sm:$0xff]
  %v299 = vld [vmem:[#allocation2 + $0x48] sm:$0xff]
  %v300 = vld [vmem:[#allocation2 + $0x50] sm:$0xff]
  %v301 = vld [vmem:[#allocation2 + $0x58] sm:$0xff]
  %v302 = vld [vmem:[#allocation2 + $0x60] sm:$0xff]
  %v303 = vld [vmem:[#allocation2 + $0x68] sm:$0xff]
  %v304 = vld [vmem:[#allocation2 + $0x70] sm:$0xff]
  %v305 = vld [vmem:[#allocation2 + $0x78] sm:$0xff]
  %v306 = vld [vmem:[#allocation2 + $0x80] sm:$0xff]
  %v307 = vld [vmem:[#allocation2 + $0x88] sm:$0xff]
  %v308 = vld [vmem:[#allocation2 + $0x90] sm:$0xff]
  %v309 = vadd.f32 %v290, %v213
  %v310 = vadd.f32 %v291, %v216
  %v311 = vadd.f32 %v292, %v221
  %v312 = vadd.f32 %v293, %v224
  %v313 = vadd.f32 %v294, %v229
  %v314 = vadd.f32 %v295, %v232
  %v315 = vadd.f32 %v296, %v237
  %v316 = vadd.f32 %v297, %v240
  %v317 = vadd.f32 %v298, %v245
  %v318 = vadd.f32 %v299, %v248
  %v319 = vadd.f32 %v300, %v253
  %v320 = vadd.f32 %v301, %v256
  %v321 = vadd.f32 %v302, %v261
  %v322 = vadd.f32 %v303, %v264
  %v323 = vadd.f32 %v304, %v269
  %v324 = vadd.f32 %v305, %v272
  %v325 = vadd.f32 %v306, %v277
  %v326 = vadd.f32 %v307, %v280
  %v327 = vadd.f32 %v308, %v285
  %328 = vst.msk [vmem:[#allocation2] sm:$0xff] %vm147, %v309
  %329 = vst.msk [vmem:[#allocation2 + $0x8] sm:$0xff] %vm147, %v310
  %330 = vst.msk [vmem:[#allocation2 + $0x10] sm:$0xff] %vm147, %v311
  %331 = vst.msk [vmem:[#allocation2 + $0x18] sm:$0xff] %vm147, %v312
  %332 = vst.msk [vmem:[#allocation2 + $0x20] sm:$0xff] %vm147, %v313
  %333 = vst.msk [vmem:[#allocation2 + $0x28] sm:$0xff] %vm147, %v314
  %334 = vst.msk [vmem:[#allocation2 + $0x30] sm:$0xff] %vm147, %v315
  %335 = vst.msk [vmem:[#allocation2 + $0x38] sm:$0xff] %vm147, %v316
  %336 = vst.msk [vmem:[#allocation2 + $0x40] sm:$0xff] %vm147, %v317
  %337 = vst.msk [vmem:[#allocation2 + $0x48] sm:$0xff] %vm147, %v318
  %338 = vst.msk [vmem:[#allocation2 + $0x50] sm:$0xff] %vm147, %v319
  %339 = vst.msk [vmem:[#allocation2 + $0x58] sm:$0xff] %vm147, %v320
  %340 = vst.msk [vmem:[#allocation2 + $0x60] sm:$0xff] %vm147, %v321
  %341 = vst.msk [vmem:[#allocation2 + $0x68] sm:$0xff] %vm147, %v322
  %342 = vst.msk [vmem:[#allocation2 + $0x70] sm:$0xff] %vm147, %v323
  %343 = vst.msk [vmem:[#allocation2 + $0x78] sm:$0xff] %vm147, %v324
  %344 = vst.msk [vmem:[#allocation2 + $0x80] sm:$0xff] %vm147, %v325
  %345 = vst.msk [vmem:[#allocation2 + $0x88] sm:$0xff] %vm147, %v326
  %346 = vst.msk [vmem:[#allocation2 + $0x90] sm:$0xff] %vm147, %v327
  // Predicated region
  $region30: #{forward.27} parent=0 // pred_check
    %p347 = pneg %p24
  $region31: #{forward.27} parent=0 // pred_check_branch
    %349 = sbr.rel (%p347) target = $region33
  $region32: #{forward.27} parent=0 // pred_region
    %v350 = vld [vmem:[#allocation2] sm:$0xff]
    %v351 = vld [vmem:[#allocation2 + $0x8] sm:$0xff]
    %v352 = vld [vmem:[#allocation2 + $0x10] sm:$0xff]
    %v353 = vld [vmem:[#allocation2 + $0x18] sm:$0xff]
    %v354 = vld [vmem:[#allocation2 + $0x20] sm:$0xff]
    %v355 = vld [vmem:[#allocation2 + $0x28] sm:$0xff]
    %v356 = vld [vmem:[#allocation2 + $0x30] sm:$0xff]
    %v357 = vld [vmem:[#allocation2 + $0x38] sm:$0xff]
    %v358 = vld [vmem:[#allocation2 + $0x40] sm:$0xff]
    %v359 = vld [vmem:[#allocation2 + $0x48] sm:$0xff]
    %v360 = vld [vmem:[#allocation2 + $0x50] sm:$0xff]
    %v361 = vld [vmem:[#allocation2 + $0x58] sm:$0xff]
    %v362 = vld [vmem:[#allocation2 + $0x60] sm:$0xff]
    %v363 = vld [vmem:[#allocation2 + $0x68] sm:$0xff]
    %v364 = vld [vmem:[#allocation2 + $0x70] sm:$0xff]
    %v365 = vld [vmem:[#allocation2 + $0x78] sm:$0xff]
    %v366 = vld [vmem:[#allocation2 + $0x80] sm:$0xff]
    %v367 = vld [vmem:[#allocation2 + $0x88] sm:$0xff]
    %v368 = vld [vmem:[#allocation2 + $0x90] sm:$0xff]
    %v369 = vld [vmem:[%s2] sm:$0x1]
    %v371 = vlaneseq
    %v372 = vshrl.u32 %v371, 7
    %v373 = vsub.s32 0, %v372
    %v374 = vrot.slane %v369, %v373
    %v376 = vadd.f32 %v350, %v374
    %v377 = vadd.f32 %v351, %v374
    %v378 = vadd.f32 %v352, %v374
    %v379 = vadd.f32 %v353, %v374
    %v380 = vadd.f32 %v354, %v374
    %v381 = vadd.f32 %v355, %v374
    %v382 = vadd.f32 %v356, %v374
    %v383 = vadd.f32 %v357, %v374
    %v384 = vadd.f32 %v358, %v374
    %v385 = vadd.f32 %v359, %v374
    %v386 = vadd.f32 %v360, %v374
    %v387 = vadd.f32 %v361, %v374
    %v388 = vadd.f32 %v362, %v374
    %v389 = vadd.f32 %v363, %v374
    %v390 = vadd.f32 %v364, %v374
    %v391 = vadd.f32 %v365, %v374
    %v392 = vadd.f32 %v366, %v374
    %v393 = vadd.f32 %v367, %v374
    %v394 = vadd.f32 %v368, %v374
    %v395 = vld [vmem:[%s3] sm:$0xf]
    %v396 = vld [vmem:[%s3 + $0x4] sm:$0xf]
    %v397 = vld [vmem:[%s3 + $0x8] sm:$0xf]
    %v398 = vld [vmem:[%s3 + $0xc] sm:$0xf]
    %v399 = vld [vmem:[%s3 + $0x10] sm:$0xf]
    %v400 = vld [vmem:[%s3 + $0x14] sm:$0xf]
    %v401 = vld [vmem:[%s3 + $0x18] sm:$0xf]
    %v402 = vld [vmem:[%s3 + $0x1c] sm:$0xf]
    %v403 = vld [vmem:[%s3 + $0x20] sm:$0xf]
    %v404 = vld [vmem:[%s3 + $0x24] sm:$0xf]
    %v405 = vld [vmem:[%s3 + $0x28] sm:$0xf]
    %v406 = vld [vmem:[%s3 + $0x2c] sm:$0xf]
    %v407 = vld [vmem:[%s3 + $0x30] sm:$0xf]
    %v408 = vld [vmem:[%s3 + $0x34] sm:$0xf]
    %v409 = vld [vmem:[%s3 + $0x38] sm:$0xf]
    %v410 = vld [vmem:[%s3 + $0x3c] sm:$0xf]
    %v411 = vld [vmem:[%s3 + $0x40] sm:$0xf]
    %v412 = vld [vmem:[%s3 + $0x44] sm:$0xf]
    %v413 = vld [vmem:[%s3 + $0x48] sm:$0xf]
    %v414 = vunpack.c.l.bf16 %v395
    %v415 = vunpack.c.l.bf16 %v396
    %v416 = vunpack.c.l.bf16 %v397
    %v417 = vunpack.c.l.bf16 %v398
    %v418 = vunpack.c.l.bf16 %v399
    %v419 = vunpack.c.l.bf16 %v400
    %v420 = vunpack.c.l.bf16 %v401
    %v421 = vunpack.c.l.bf16 %v402
    %v422 = vunpack.c.l.bf16 %v403
    %v423 = vunpack.c.l.bf16 %v404
    %v424 = vunpack.c.l.bf16 %v405
    %v425 = vunpack.c.l.bf16 %v406
    %v426 = vunpack.c.l.bf16 %v407
    %v427 = vunpack.c.l.bf16 %v408
    %v428 = vunpack.c.l.bf16 %v409
    %v429 = vunpack.c.l.bf16 %v410
    %v430 = vunpack.c.l.bf16 %v411
    %v431 = vunpack.c.l.bf16 %v412
    %v432 = vunpack.c.l.bf16 %v413
    %v433 = vadd.f32 %v376, %v414
    %v434 = vadd.f32 %v377, %v415
    %v435 = vadd.f32 %v378, %v416
    %v436 = vadd.f32 %v379, %v417
    %v437 = vadd.f32 %v380, %v418
    %v438 = vadd.f32 %v381, %v419
    %v439 = vadd.f32 %v382, %v420
    %v440 = vadd.f32 %v383, %v421
    %v441 = vadd.f32 %v384, %v422
    %v442 = vadd.f32 %v385, %v423
    %v443 = vadd.f32 %v386, %v424
    %v444 = vadd.f32 %v387, %v425
    %v445 = vadd.f32 %v388, %v426
    %v446 = vadd.f32 %v389, %v427
    %v447 = vadd.f32 %v390, %v428
    %v448 = vadd.f32 %v391, %v429
    %v449 = vadd.f32 %v392, %v430
    %v450 = vadd.f32 %v393, %v431
    %v451 = vadd.f32 %v394, %v432
    %v452 = vld [vmem:[%s4] sm:$0x1]
    %v453 = vld [vmem:[%s5] sm:$0x1]
    %v454 = vsel %vm147, %v433, 0.0
    %455 = vadd.xlane.f32.xlu0 %v454
    %v456 = vpop.xlane.xlu0 %455
    %v457 = vsel %vm147, %v434, 0.0
    %458 = vadd.xlane.f32.xlu0 %v457
    %v459 = vpop.xlane.xlu0 %458
    %v460 = vsel %vm147, %v435, 0.0
    %461 = vadd.xlane.f32.xlu0 %v460
    %v462 = vpop.xlane.xlu0 %461
    %v463 = vsel %vm147, %v436, 0.0
    %464 = vadd.xlane.f32.xlu0 %v463
    %v465 = vpop.xlane.xlu0 %464
    %v466 = vsel %vm147, %v437, 0.0
    %467 = vadd.xlane.f32.xlu0 %v466
    %v468 = vpop.xlane.xlu0 %467
    %v469 = vsel %vm147, %v438, 0.0
    %470 = vadd.xlane.f32.xlu0 %v469
    %v471 = vpop.xlane.xlu0 %470
    %v472 = vsel %vm147, %v439, 0.0
    %473 = vadd.xlane.f32.xlu0 %v472
    %v474 = vpop.xlane.xlu0 %473
    %v475 = vsel %vm147, %v440, 0.0
    %476 = vadd.xlane.f32.xlu0 %v475
    %v477 = vpop.xlane.xlu0 %476
    %v478 = vsel %vm147, %v441, 0.0
    %479 = vadd.xlane.f32.xlu0 %v478
    %v480 = vpop.xlane.xlu0 %479
    %v481 = vsel %vm147, %v442, 0.0
    %482 = vadd.xlane.f32.xlu0 %v481
    %v483 = vpop.xlane.xlu0 %482
    %v484 = vsel %vm147, %v443, 0.0
    %485 = vadd.xlane.f32.xlu0 %v484
    %v486 = vpop.xlane.xlu0 %485
    %v487 = vsel %vm147, %v444, 0.0
    %488 = vadd.xlane.f32.xlu0 %v487
    %v489 = vpop.xlane.xlu0 %488
    %v490 = vsel %vm147, %v445, 0.0
    %491 = vadd.xlane.f32.xlu0 %v490
    %v492 = vpop.xlane.xlu0 %491
    %v493 = vsel %vm147, %v446, 0.0
    %494 = vadd.xlane.f32.xlu0 %v493
    %v495 = vpop.xlane.xlu0 %494
    %v496 = vsel %vm147, %v447, 0.0
    %497 = vadd.xlane.f32.xlu0 %v496
    %v498 = vpop.xlane.xlu0 %497
    %v499 = vsel %vm147, %v448, 0.0
    %500 = vadd.xlane.f32.xlu0 %v499
    %v501 = vpop.xlane.xlu0 %500
    %v502 = vsel %vm147, %v449, 0.0
    %503 = vadd.xlane.f32.xlu0 %v502
    %v504 = vpop.xlane.xlu0 %503
    %v505 = vsel %vm147, %v450, 0.0
    %506 = vadd.xlane.f32.xlu0 %v505
    %v507 = vpop.xlane.xlu0 %506
    %v508 = vsel %vm147, %v451, 0.0
    %509 = vadd.xlane.f32.xlu0 %v508
    %v510 = vpop.xlane.xlu0 %509
    %v511 = vrcp.pop 64.0
    %v512 = vmul.f32 %v456, %v511
    %v513 = vmul.f32 %v459, %v511
    %v514 = vmul.f32 %v462, %v511
    %v515 = vmul.f32 %v465, %v511
    %v516 = vmul.f32 %v468, %v511
    %v517 = vmul.f32 %v471, %v511
    %v518 = vmul.f32 %v474, %v511
    %v519 = vmul.f32 %v477, %v511
    %v520 = vmul.f32 %v480, %v511
    %v521 = vmul.f32 %v483, %v511
    %v522 = vmul.f32 %v486, %v511
    %v523 = vmul.f32 %v489, %v511
    %v524 = vmul.f32 %v492, %v511
    %v525 = vmul.f32 %v495, %v511
    %v526 = vmul.f32 %v498, %v511
    %v527 = vmul.f32 %v501, %v511
    %v528 = vmul.f32 %v504, %v511
    %v529 = vmul.f32 %v507, %v511
    %v530 = vmul.f32 %v510, %v511
    %v531 = vsub.f32 %v433, %v512
    %v532 = vsub.f32 %v434, %v513
    %v533 = vsub.f32 %v435, %v514
    %v534 = vsub.f32 %v436, %v515
    %v535 = vsub.f32 %v437, %v516
    %v536 = vsub.f32 %v438, %v517
    %v537 = vsub.f32 %v439, %v518
    %v538 = vsub.f32 %v440, %v519
    %v539 = vsub.f32 %v441, %v520
    %v540 = vsub.f32 %v442, %v521
    %v541 = vsub.f32 %v443, %v522
    %v542 = vsub.f32 %v444, %v523
    %v543 = vsub.f32 %v445, %v524
    %v544 = vsub.f32 %v446, %v525
    %v545 = vsub.f32 %v447, %v526
    %v546 = vsub.f32 %v448, %v527
    %v547 = vsub.f32 %v449, %v528
    %v548 = vsub.f32 %v450, %v529
    %v549 = vsub.f32 %v451, %v530
    %v550 = vmul.f32 %v531, %v531
    %v551 = vmul.f32 %v532, %v532
    %v552 = vmul.f32 %v533, %v533
    %v553 = vmul.f32 %v534, %v534
    %v554 = vmul.f32 %v535, %v535
    %v555 = vmul.f32 %v536, %v536
    %v556 = vmul.f32 %v537, %v537
    %v557 = vmul.f32 %v538, %v538
    %v558 = vmul.f32 %v539, %v539
    %v559 = vmul.f32 %v540, %v540
    %v560 = vmul.f32 %v541, %v541
    %v561 = vmul.f32 %v542, %v542
    %v562 = vmul.f32 %v543, %v543
    %v563 = vmul.f32 %v544, %v544
    %v564 = vmul.f32 %v545, %v545
    %v565 = vmul.f32 %v546, %v546
    %v566 = vmul.f32 %v547, %v547
    %v567 = vmul.f32 %v548, %v548
    %v568 = vmul.f32 %v549, %v549
    %v569 = vsel %vm147, %v550, 0.0
    %570 = vadd.xlane.f32.xlu0 %v569
    %v571 = vpop.xlane.xlu0 %570
    %v572 = vsel %vm147, %v551, 0.0
    %573 = vadd.xlane.f32.xlu0 %v572
    %v574 = vpop.xlane.xlu0 %573
    %v575 = vsel %vm147, %v552, 0.0
    %576 = vadd.xlane.f32.xlu0 %v575
    %v577 = vpop.xlane.xlu0 %576
    %v578 = vsel %vm147, %v553, 0.0
    %579 = vadd.xlane.f32.xlu0 %v578
    %v580 = vpop.xlane.xlu0 %579
    %v581 = vsel %vm147, %v554, 0.0
    %582 = vadd.xlane.f32.xlu0 %v581
    %v583 = vpop.xlane.xlu0 %582
    %v584 = vsel %vm147, %v555, 0.0
    %585 = vadd.xlane.f32.xlu0 %v584
    %v586 = vpop.xlane.xlu0 %585
    %v587 = vsel %vm147, %v556, 0.0
    %588 = vadd.xlane.f32.xlu0 %v587
    %v589 = vpop.xlane.xlu0 %588
    %v590 = vsel %vm147, %v557, 0.0
    %591 = vadd.xlane.f32.xlu0 %v590
    %v592 = vpop.xlane.xlu0 %591
    %v593 = vsel %vm147, %v558, 0.0
    %594 = vadd.xlane.f32.xlu0 %v593
    %v595 = vpop.xlane.xlu0 %594
    %v596 = vsel %vm147, %v559, 0.0
    %597 = vadd.xlane.f32.xlu0 %v596
    %v598 = vpop.xlane.xlu0 %597
    %v599 = vsel %vm147, %v560, 0.0
    %600 = vadd.xlane.f32.xlu0 %v599
    %v601 = vpop.xlane.xlu0 %600
    %v602 = vsel %vm147, %v561, 0.0
    %603 = vadd.xlane.f32.xlu0 %v602
    %v604 = vpop.xlane.xlu0 %603
    %v605 = vsel %vm147, %v562, 0.0
    %606 = vadd.xlane.f32.xlu0 %v605
    %v607 = vpop.xlane.xlu0 %606
    %v608 = vsel %vm147, %v563, 0.0
    %609 = vadd.xlane.f32.xlu0 %v608
    %v610 = vpop.xlane.xlu0 %609
    %v611 = vsel %vm147, %v564, 0.0
    %612 = vadd.xlane.f32.xlu0 %v611
    %v613 = vpop.xlane.xlu0 %612
    %v614 = vsel %vm147, %v565, 0.0
    %615 = vadd.xlane.f32.xlu0 %v614
    %v616 = vpop.xlane.xlu0 %615
    %v617 = vsel %vm147, %v566, 0.0
    %618 = vadd.xlane.f32.xlu0 %v617
    %v619 = vpop.xlane.xlu0 %618
    %v620 = vsel %vm147, %v567, 0.0
    %621 = vadd.xlane.f32.xlu0 %v620
    %v622 = vpop.xlane.xlu0 %621
    %v623 = vsel %vm147, %v568, 0.0
    %624 = vadd.xlane.f32.xlu0 %v623
    %v625 = vpop.xlane.xlu0 %624
    %v626 = vmul.f32 %v571, %v511
    %v627 = vmul.f32 %v574, %v511
    %v628 = vmul.f32 %v577, %v511
    %v629 = vmul.f32 %v580, %v511
    %v630 = vmul.f32 %v583, %v511
    %v631 = vmul.f32 %v586, %v511
    %v632 = vmul.f32 %v589, %v511
    %v633 = vmul.f32 %v592, %v511
    %v634 = vmul.f32 %v595, %v511
    %v635 = vmul.f32 %v598, %v511
    %v636 = vmul.f32 %v601, %v511
    %v637 = vmul.f32 %v604, %v511
    %v638 = vmul.f32 %v607, %v511
    %v639 = vmul.f32 %v610, %v511
    %v640 = vmul.f32 %v613, %v511
    %v641 = vmul.f32 %v616, %v511
    %v642 = vmul.f32 %v619, %v511
    %v643 = vmul.f32 %v622, %v511
    %v644 = vmul.f32 %v625, %v511
    %v645 = vadd.f32 %v626, 1e-05
    %v646 = vadd.f32 %v627, 1e-05
    %v647 = vadd.f32 %v628, 1e-05
    %v648 = vadd.f32 %v629, 1e-05
    %v649 = vadd.f32 %v630, 1e-05
    %v650 = vadd.f32 %v631, 1e-05
    %v651 = vadd.f32 %v632, 1e-05
    %v652 = vadd.f32 %v633, 1e-05
    %v653 = vadd.f32 %v634, 1e-05
    %v654 = vadd.f32 %v635, 1e-05
    %v655 = vadd.f32 %v636, 1e-05
    %v656 = vadd.f32 %v637, 1e-05
    %v657 = vadd.f32 %v638, 1e-05
    %v658 = vadd.f32 %v639, 1e-05
    %v659 = vadd.f32 %v640, 1e-05
    %v660 = vadd.f32 %v641, 1e-05
    %v661 = vadd.f32 %v642, 1e-05
    %v662 = vadd.f32 %v643, 1e-05
    %v663 = vadd.f32 %v644, 1e-05
    %v664 = vrsqrt.pop %v645
    %v665 = vrsqrt.pop %v646
    %v666 = vrsqrt.pop %v647
    %v667 = vrsqrt.pop %v648
    %v668 = vrsqrt.pop %v649
    %v669 = vrsqrt.pop %v650
    %v670 = vrsqrt.pop %v651
    %v671 = vrsqrt.pop %v652
    %v672 = vrsqrt.pop %v653
    %v673 = vrsqrt.pop %v654
    %v674 = vrsqrt.pop %v655
    %v675 = vrsqrt.pop %v656
    %v676 = vrsqrt.pop %v657
    %v677 = vrsqrt.pop %v658
    %v678 = vrsqrt.pop %v659
    %v679 = vrsqrt.pop %v660
    %v680 = vrsqrt.pop %v661
    %v681 = vrsqrt.pop %v662
    %v682 = vrsqrt.pop %v663
    %v683 = vmul.f32 %v531, %v664
    %v684 = vmul.f32 %v532, %v665
    %v685 = vmul.f32 %v533, %v666
    %v686 = vmul.f32 %v534, %v667
    %v687 = vmul.f32 %v535, %v668
    %v688 = vmul.f32 %v536, %v669
    %v689 = vmul.f32 %v537, %v670
    %v690 = vmul.f32 %v538, %v671
    %v691 = vmul.f32 %v539, %v672
    %v692 = vmul.f32 %v540, %v673
    %v693 = vmul.f32 %v541, %v674
    %v694 = vmul.f32 %v542, %v675
    %v695 = vmul.f32 %v543, %v676
    %v696 = vmul.f32 %v544, %v677
    %v697 = vmul.f32 %v545, %v678
    %v698 = vmul.f32 %v546, %v679
    %v699 = vmul.f32 %v547, %v680
    %v700 = vmul.f32 %v548, %v681
    %v701 = vmul.f32 %v549, %v682
    %v703 = vlaneseq
    %v704 = vshrl.u32 %v703, 7
    %v705 = vsub.s32 0, %v704
    %v706 = vrot.slane %v452, %v705
    %v708 = vmul.f32 %v683, %v706
    %v709 = vmul.f32 %v684, %v706
    %v710 = vmul.f32 %v685, %v706
    %v711 = vmul.f32 %v686, %v706
    %v712 = vmul.f32 %v687, %v706
    %v713 = vmul.f32 %v688, %v706
    %v714 = vmul.f32 %v689, %v706
    %v715 = vmul.f32 %v690, %v706
    %v716 = vmul.f32 %v691, %v706
    %v717 = vmul.f32 %v692, %v706
    %v718 = vmul.f32 %v693, %v706
    %v719 = vmul.f32 %v694, %v706
    %v720 = vmul.f32 %v695, %v706
    %v721 = vmul.f32 %v696, %v706
    %v722 = vmul.f32 %v697, %v706
    %v723 = vmul.f32 %v698, %v706
    %v724 = vmul.f32 %v699, %v706
    %v725 = vmul.f32 %v700, %v706
    %v726 = vmul.f32 %v701, %v706
    %v728 = vlaneseq
    %v729 = vshrl.u32 %v728, 7
    %v730 = vsub.s32 0, %v729
    %v731 = vrot.slane %v453, %v730
    %v733 = vadd.f32 %v708, %v731
    %v734 = vadd.f32 %v709, %v731
    %v735 = vadd.f32 %v710, %v731
    %v736 = vadd.f32 %v711, %v731
    %v737 = vadd.f32 %v712, %v731
    %v738 = vadd.f32 %v713, %v731
    %v739 = vadd.f32 %v714, %v731
    %v740 = vadd.f32 %v715, %v731
    %v741 = vadd.f32 %v716, %v731
    %v742 = vadd.f32 %v717, %v731
    %v743 = vadd.f32 %v718, %v731
    %v744 = vadd.f32 %v719, %v731
    %v745 = vadd.f32 %v720, %v731
    %v746 = vadd.f32 %v721, %v731
    %v747 = vadd.f32 %v722, %v731
    %v748 = vadd.f32 %v723, %v731
    %v749 = vadd.f32 %v724, %v731
    %v750 = vadd.f32 %v725, %v731
    %v751 = vadd.f32 %v726, %v731
    %v752 = vpack.c.bf16 %v734, %v733
    %v753 = vpack.c.bf16 %v736, %v735
    %v754 = vpack.c.bf16 %v738, %v737
    %v755 = vpack.c.bf16 %v740, %v739
    %v756 = vpack.c.bf16 %v742, %v741
    %v757 = vpack.c.bf16 %v744, %v743
    %v758 = vpack.c.bf16 %v746, %v745
    %v759 = vpack.c.bf16 %v748, %v747
    %v760 = vpack.c.bf16 %v750, %v749
    %v761 = vpack.c.bf16 %v751, %v751
    %v772 = vunpack.c.l.b16 %v752
    %v773 = vunpack.c.h.b16 %v752
    %v774 = vunpack.c.l.b16 %v753
    %v775 = vunpack.c.h.b16 %v753
    %v776 = vunpack.c.l.b16 %v754
    %v777 = vunpack.c.h.b16 %v754
    %v778 = vunpack.c.l.b16 %v755
    %v779 = vunpack.c.h.b16 %v755
    %v780 = vunpack.c.l.b16 %v756
    %v781 = vunpack.c.h.b16 %v756
    %v782 = vunpack.c.l.b16 %v757
    %v783 = vunpack.c.h.b16 %v757
    %v784 = vunpack.c.l.b16 %v758
    %v785 = vunpack.c.h.b16 %v758
    %v786 = vunpack.c.l.b16 %v759
    %v787 = vunpack.c.h.b16 %v759
    %v788 = vunpack.c.l.b16 %v760
    %v789 = vunpack.c.h.b16 %v760
    %v790 = vunpack.c.l.b16 %v761
    %v791 = vpack.c.b16 %v772, %v772
    %v792 = vpack.c.b16 %v773, %v773
    %v793 = vpack.c.b16 %v774, %v774
    %v794 = vpack.c.b16 %v775, %v775
    %v795 = vpack.c.b16 %v776, %v776
    %v796 = vpack.c.b16 %v777, %v777
    %v797 = vpack.c.b16 %v778, %v778
    %v798 = vpack.c.b16 %v779, %v779
    %v799 = vpack.c.b16 %v780, %v780
    %v800 = vpack.c.b16 %v781, %v781
    %v801 = vpack.c.b16 %v782, %v782
    %v802 = vpack.c.b16 %v783, %v783
    %v803 = vpack.c.b16 %v784, %v784
    %v804 = vpack.c.b16 %v785, %v785
    %v805 = vpack.c.b16 %v786, %v786
    %v806 = vpack.c.b16 %v787, %v787
    %v807 = vpack.c.b16 %v788, %v788
    %v808 = vpack.c.b16 %v789, %v789
    %v809 = vpack.c.b16 %v790, %v790
    %vm829 = vcmask 519168
    %830 = vst.msk [vmem:[%s6] sm:$0xf] %vm829, %v791
    %831 = vst.msk [vmem:[%s6 + $0x4] sm:$0xf] %vm829, %v792
    %832 = vst.msk [vmem:[%s6 + $0x8] sm:$0xf] %vm829, %v793
    %833 = vst.msk [vmem:[%s6 + $0xc] sm:$0xf] %vm829, %v794
    %834 = vst.msk [vmem:[%s6 + $0x10] sm:$0xf] %vm829, %v795
    %835 = vst.msk [vmem:[%s6 + $0x14] sm:$0xf] %vm829, %v796
    %836 = vst.msk [vmem:[%s6 + $0x18] sm:$0xf] %vm829, %v797
    %837 = vst.msk [vmem:[%s6 + $0x1c] sm:$0xf] %vm829, %v798
    %838 = vst.msk [vmem:[%s6 + $0x20] sm:$0xf] %vm829, %v799
    %839 = vst.msk [vmem:[%s6 + $0x24] sm:$0xf] %vm829, %v800
    %840 = vst.msk [vmem:[%s6 + $0x28] sm:$0xf] %vm829, %v801
    %841 = vst.msk [vmem:[%s6 + $0x2c] sm:$0xf] %vm829, %v802
    %842 = vst.msk [vmem:[%s6 + $0x30] sm:$0xf] %vm829, %v803
    %843 = vst.msk [vmem:[%s6 + $0x34] sm:$0xf] %vm829, %v804
    %844 = vst.msk [vmem:[%s6 + $0x38] sm:$0xf] %vm829, %v805
    %845 = vst.msk [vmem:[%s6 + $0x3c] sm:$0xf] %vm829, %v806
    %846 = vst.msk [vmem:[%s6 + $0x40] sm:$0xf] %vm829, %v807
    %847 = vst.msk [vmem:[%s6 + $0x44] sm:$0xf] %vm829, %v808
    %848 = vst.msk [vmem:[%s6 + $0x48] sm:$0xf] %vm829, %v809
  $region33: #{forward.27} parent=0 // pred_fallthru
    _
  // Predicated region
  $region34: #{forward.27} parent=0 // pred_check
    _
  $region35: #{forward.27} parent=0 // pred_check_branch
    %850 = sbr.rel (0) target = $region37
  $region36: #{forward.27} parent=0 // pred_region
    _
  $region37: #{forward.27} parent=0 // pred_fallthru
    _
  // Predicated region
  $region38: #{forward.27} parent=0 // pred_check
    _
  $region39: #{forward.27} parent=0 // pred_check_branch
    %852 = sbr.rel (0) target = $region41
  $region40: #{forward.27} parent=0 // pred_region
    _
  $region41: #{forward.27} parent=0 // pred_fallthru
    _

// kernel: forward.28
$region0: #{forward.28}
  #allocation0 [shape = 'u32[]', space=smem, size = 0x4, offset = 0x4, fixed_abs, tag = 'smem constant byte address 0x4 - core index']
  #allocation1 [shape = 'u32[144,128]{1,0:T(1,128)}', space=vmem, size = 0x12000, scoped, tag = 'internal scratch']
  #allocation2 [shape = 'f32[152,256]{1,0:T(8,128)}', space=vmem, size = 0x26000, scoped, tag = 'scratch operand']
  %s0 = inlined_call_operand.vmem [shape: bf16[152,64], index: 0, kind: input, shape index: {}]
  %s1 = inlined_call_operand.vmem [shape: bf16[64,256], index: 1, kind: input, shape index: {}]
  %s2 = inlined_call_operand.vmem [shape: f32[1,256], index: 2, kind: input, shape index: {}]
  %s3 = inlined_call_operand.vmem [shape: bf16[152,256], index: 3, kind: output, shape index: {}]
  %s4 = sld [smem:[#allocation0]]
  $region30: #{forward.28} parent=0
    _
  %s6 = ssub.s32 1, %s4
  %s7 = scalar_select 0, %s6, %s4
  // Predicated region
  $region2: #{forward.28} parent=0 // pred_check
    _
  $region3: #{forward.28} parent=0 // pred_check_branch
    %9 = sbr.rel (0) target = $region5
  $region4: #{forward.28} parent=0 // pred_region
    _
  $region5: #{forward.28} parent=0 // pred_fallthru
    _
  // Predicated region
  $region6: #{forward.28} parent=0 // pred_check
    _
  $region7: #{forward.28} parent=0 // pred_check_branch
    %11 = sbr.rel (0) target = $region9
  $region8: #{forward.28} parent=0 // pred_region
    _
  $region9: #{forward.28} parent=0 // pred_fallthru
    _
  // Predicated region
  $region10: #{forward.28} parent=0 // pred_check
    _
  $region11: #{forward.28} parent=0 // pred_check_branch
    %13 = sbr.rel (0) target = $region13
  $region12: #{forward.28} parent=0 // pred_region
    _
  $region13: #{forward.28} parent=0 // pred_fallthru
    _
  %p15 = scmp.eq.s32.totalorder 0, 0
  // Predicated region
  $region14: #{forward.28} parent=0 // pred_check
    %p16 = pneg %p15
  $region15: #{forward.28} parent=0 // pred_check_branch
    %18 = sbr.rel (%p16) target = $region17
  $region16: #{forward.28} parent=0 // pred_region
    %19 = vst [vmem:[#allocation2] sm:$0xff] 0.0
    %20 = vst [vmem:[#allocation2 + $0x8] sm:$0xff] 0.0
    %21 = vst [vmem:[#allocation2 + $0x10] sm:$0xff] 0.0
    %22 = vst [vmem:[#allocation2 + $0x18] sm:$0xff] 0.0
    %23 = vst [vmem:[#allocation2 + $0x20] sm:$0xff] 0.0
    %24 = vst [vmem:[#allocation2 + $0x28] sm:$0xff] 0.0
    %25 = vst [vmem:[#allocation2 + $0x30] sm:$0xff] 0.0
    %26 = vst [vmem:[#allocation2 + $0x38] sm:$0xff] 0.0
    %27 = vst [vmem:[#allocation2 + $0x40] sm:$0xff] 0.0
    %28 = vst [vmem:[#allocation2 + $0x48] sm:$0xff] 0.0
    %29 = vst [vmem:[#allocation2 + $0x50] sm:$0xff] 0.0
    %30 = vst [vmem:[#allocation2 + $0x58] sm:$0xff] 0.0
    %31 = vst [vmem:[#allocation2 + $0x60] sm:$0xff] 0.0
    %32 = vst [vmem:[#allocation2 + $0x68] sm:$0xff] 0.0
    %33 = vst [vmem:[#allocation2 + $0x70] sm:$0xff] 0.0
    %34 = vst [vmem:[#allocation2 + $0x78] sm:$0xff] 0.0
    %35 = vst [vmem:[#allocation2 + $0x80] sm:$0xff] 0.0
    %36 = vst [vmem:[#allocation2 + $0x88] sm:$0xff] 0.0
    %37 = vst [vmem:[#allocation2 + $0x90] sm:$0xff] 0.0
    %38 = vst [vmem:[#allocation2 + $0x98] sm:$0xff] 0.0
    %39 = vst [vmem:[#allocation2 + $0xa0] sm:$0xff] 0.0
    %40 = vst [vmem:[#allocation2 + $0xa8] sm:$0xff] 0.0
    %41 = vst [vmem:[#allocation2 + $0xb0] sm:$0xff] 0.0
    %42 = vst [vmem:[#allocation2 + $0xb8] sm:$0xff] 0.0
    %43 = vst [vmem:[#allocation2 + $0xc0] sm:$0xff] 0.0
    %44 = vst [vmem:[#allocation2 + $0xc8] sm:$0xff] 0.0
    %45 = vst [vmem:[#allocation2 + $0xd0] sm:$0xff] 0.0
    %46 = vst [vmem:[#allocation2 + $0xd8] sm:$0xff] 0.0
    %47 = vst [vmem:[#allocation2 + $0xe0] sm:$0xff] 0.0
    %48 = vst [vmem:[#allocation2 + $0xe8] sm:$0xff] 0.0
    %49 = vst [vmem:[#allocation2 + $0xf0] sm:$0xff] 0.0
    %50 = vst [vmem:[#allocation2 + $0xf8] sm:$0xff] 0.0
    %51 = vst [vmem:[#allocation2 + $0x100] sm:$0xff] 0.0
    %52 = vst [vmem:[#allocation2 + $0x108] sm:$0xff] 0.0
    %53 = vst [vmem:[#allocation2 + $0x110] sm:$0xff] 0.0
    %54 = vst [vmem:[#allocation2 + $0x118] sm:$0xff] 0.0
    %55 = vst [vmem:[#allocation2 + $0x120] sm:$0xff] 0.0
    %56 = vst [vmem:[#allocation2 + $0x128] sm:$0xff] 0.0
  $region17: #{forward.28} parent=0 // pred_fallthru
    _
  %v57 = vld [vmem:[%s0] sm:$0xf]
  %v58 = vld [vmem:[%s0 + $0x4] sm:$0xf]
  %v59 = vld [vmem:[%s0 + $0x8] sm:$0xf]
  %v60 = vld [vmem:[%s0 + $0xc] sm:$0xf]
  %v61 = vld [vmem:[%s0 + $0x10] sm:$0xf]
  %v62 = vld [vmem:[%s0 + $0x14] sm:$0xf]
  %v63 = vld [vmem:[%s0 + $0x18] sm:$0xf]
  %v64 = vld [vmem:[%s0 + $0x1c] sm:$0xf]
  %v65 = vld [vmem:[%s0 + $0x20] sm:$0xf]
  %v66 = vld [vmem:[%s0 + $0x24] sm:$0xf]
  %v67 = vld [vmem:[%s0 + $0x28] sm:$0xf]
  %v68 = vld [vmem:[%s0 + $0x2c] sm:$0xf]
  %v69 = vld [vmem:[%s0 + $0x30] sm:$0xf]
  %v70 = vld [vmem:[%s0 + $0x34] sm:$0xf]
  %v71 = vld [vmem:[%s0 + $0x38] sm:$0xf]
  %v72 = vld [vmem:[%s0 + $0x3c] sm:$0xf]
  %v73 = vld [vmem:[%s0 + $0x40] sm:$0xf]
  %v74 = vld [vmem:[%s0 + $0x44] sm:$0xf]
  %v75 = vld [vmem:[%s0 + $0x48] sm:$0xf]
  %v76 = vld [vmem:[%s1] sm:$0xff]
  %v77 = vld [vmem:[%s1 + $0x8] sm:$0xff]
  %v78 = vld [vmem:[%s1 + $0x10] sm:$0xff]
  %v79 = vld [vmem:[%s1 + $0x18] sm:$0xff]
  %v80 = vld [vmem:[%s1 + $0x20] sm:$0xff]
  %v81 = vld [vmem:[%s1 + $0x28] sm:$0xff]
  %v82 = vld [vmem:[%s1 + $0x30] sm:$0xff]
  %v83 = vld [vmem:[%s1 + $0x38] sm:$0xff]
  %v103 = vunpack.c.l.b16 %v57
  %v104 = vunpack.c.l.b16 %v58
  %v105 = vunpack.c.l.b16 %v59
  %v106 = vunpack.c.l.b16 %v60
  %v107 = vunpack.c.l.b16 %v61
  %v108 = vunpack.c.l.b16 %v62
  %v109 = vunpack.c.l.b16 %v63
  %v110 = vunpack.c.l.b16 %v64
  %v111 = vunpack.c.l.b16 %v65
  %v112 = vunpack.c.l.b16 %v66
  %v113 = vunpack.c.l.b16 %v67
  %v114 = vunpack.c.l.b16 %v68
  %v115 = vunpack.c.l.b16 %v69
  %v116 = vunpack.c.l.b16 %v70
  %v117 = vunpack.c.l.b16 %v71
  %v118 = vunpack.c.l.b16 %v72
  %v119 = vunpack.c.l.b16 %v73
  %v120 = vunpack.c.l.b16 %v74
  %v121 = vunpack.c.l.b16 %v75
  %v122 = vpack.c.b16 %v104, %v103
  %v123 = vpack.c.b16 %v106, %v105
  %v124 = vpack.c.b16 %v108, %v107
  %v125 = vpack.c.b16 %v110, %v109
  %v126 = vpack.c.b16 %v112, %v111
  %v127 = vpack.c.b16 %v114, %v113
  %v128 = vpack.c.b16 %v116, %v115
  %v129 = vpack.c.b16 %v118, %v117
  %v130 = vpack.c.b16 %v120, %v119
  %v131 = vpack.c.b16 %v121, %v121
  %v140 = vunpack.c.l.b16 %v76
  %v141 = vunpack.c.h.b16 %v76
  %v142 = vunpack.c.l.b16 %v77
  %v143 = vunpack.c.h.b16 %v77
  %v144 = vunpack.c.l.b16 %v78
  %v145 = vunpack.c.h.b16 %v78
  %v146 = vunpack.c.l.b16 %v79
  %v147 = vunpack.c.h.b16 %v79
  %v148 = vunpack.c.l.b16 %v80
  %v149 = vunpack.c.h.b16 %v80
  %v150 = vunpack.c.l.b16 %v81
  %v151 = vunpack.c.h.b16 %v81
  %v152 = vunpack.c.l.b16 %v82
  %v153 = vunpack.c.h.b16 %v82
  %v154 = vunpack.c.l.b16 %v83
  %v155 = vunpack.c.h.b16 %v83
  %v156 = vpack.c.b16 %v142, %v140
  %v157 = vpack.c.b16 %v143, %v141
  %v158 = vpack.c.b16 %v146, %v144
  %v159 = vpack.c.b16 %v147, %v145
  %v160 = vpack.c.b16 %v150, %v148
  %v161 = vpack.c.b16 %v151, %v149
  %v162 = vpack.c.b16 %v154, %v152
  %v163 = vpack.c.b16 %v155, %v153
  %vm172 = vcmask 523264
  %v174 = vsel %vm172, %v122, 0
  %v177 = vsel %vm172, %v123, 0
  %v180 = vsel %vm172, %v124, 0
  %v183 = vsel %vm172, %v125, 0
  %v186 = vsel %vm172, %v126, 0
  %v189 = vsel %vm172, %v127, 0
  %v192 = vsel %vm172, %v128, 0
  %v195 = vsel %vm172, %v129, 0
  %v198 = vsel %vm172, %v130, 0
  %v201 = vsel %vm172, %v131, 0
  %203 = vmatprep.subr.bf16.mxu0 0
  %204 = vmatpush1.bf16.msra.mxu0 0
  %205 = vmatprep.subr.bf16.mxu0 0
  %206 = vmatpush1.bf16.msra.mxu0 0
  %207 = vmatprep.subr.bf16.mxu0 0
  %208 = vmatpush1.bf16.msra.mxu0 0
  %209 = vmatprep.subr.bf16.mxu0 0
  %210 = vmatpush1.bf16.msra.mxu0 0
  %211 = vmatprep.subr.bf16.mxu0 %v163
  %212 = vmatpush1.bf16.msra.mxu0 %v162
  %213 = vmatprep.subr.bf16.mxu0 %v161
  %214 = vmatpush1.bf16.msra.mxu0 %v160
  %215 = vmatprep.subr.bf16.mxu0 %v159
  %216 = vmatpush1.bf16.msra.mxu0 %v158
  %217 = vmatprep.subr.bf16.mxu0 %v157
  %218 = vmatpush1.bf16.msra.mxu0 %v156
  %219 = vmatprep.subr.bf16.mxu0 0
  %220 = vmatpush2.bf16.msra.mxu0 0
  %221 = vmatprep.subr.bf16.mxu0 0
  %222 = vmatpush2.bf16.msra.mxu0 0
  %223 = vmatprep.subr.bf16.mxu0 0
  %224 = vmatpush2.bf16.msra.mxu0 0
  %225 = vmatprep.subr.bf16.mxu0 0
  %226 = vmatpush2.bf16.msra.mxu0 0
  %227 = vmatprep.subr.bf16.mxu0 0
  %228 = vmatpush2.bf16.msra.mxu0 0
  %229 = vmatprep.subr.bf16.mxu0 0
  %230 = vmatpush2.bf16.msra.mxu0 0
  %231 = vmatprep.subr.bf16.mxu0 0
  %232 = vmatpush2.bf16.msra.mxu0 0
  %233 = vmatprep.subr.bf16.mxu0 0
  %234 = vmatpush2.bf16.msra.mxu0 0
  %235 = vmatprep.mubr.bf16.mxu0 0
  %236 = vmatmul.mubr.bf16.gmra.mxu0 %v174
  %v237 = vpop.f32.mrf.mxu0
  %v238 = vadd.f32 0.0, %v237
  %v239 = vpop.f32.mrf.mxu0
  %v240 = vadd.f32 0.0, %v239
  %v241 = vpop.f32.mrf.mxu0
  %v242 = vadd.f32 0.0, %v241
  %v243 = vpop.f32.mrf.mxu0
  %v244 = vadd.f32 0.0, %v243
  %245 = vmatprep.mubr.bf16.mxu0 0
  %246 = vmatmul.mubr.bf16.gmra.mxu0 %v177
  %v247 = vpop.f32.mrf.mxu0
  %v248 = vadd.f32 0.0, %v247
  %v249 = vpop.f32.mrf.mxu0
  %v250 = vadd.f32 0.0, %v249
  %v251 = vpop.f32.mrf.mxu0
  %v252 = vadd.f32 0.0, %v251
  %v253 = vpop.f32.mrf.mxu0
  %v254 = vadd.f32 0.0, %v253
  %255 = vmatprep.mubr.bf16.mxu0 0
  %256 = vmatmul.mubr.bf16.gmra.mxu0 %v180
  %v257 = vpop.f32.mrf.mxu0
  %v258 = vadd.f32 0.0, %v257
  %v259 = vpop.f32.mrf.mxu0
  %v260 = vadd.f32 0.0, %v259
  %v261 = vpop.f32.mrf.mxu0
  %v262 = vadd.f32 0.0, %v261
  %v263 = vpop.f32.mrf.mxu0
  %v264 = vadd.f32 0.0, %v263
  %265 = vmatprep.mubr.bf16.mxu0 0
  %266 = vmatmul.mubr.bf16.gmra.mxu0 %v183
  %v267 = vpop.f32.mrf.mxu0
  %v268 = vadd.f32 0.0, %v267
  %v269 = vpop.f32.mrf.mxu0
  %v270 = vadd.f32 0.0, %v269
  %v271 = vpop.f32.mrf.mxu0
  %v272 = vadd.f32 0.0, %v271
  %v273 = vpop.f32.mrf.mxu0
  %v274 = vadd.f32 0.0, %v273
  %275 = vmatprep.mubr.bf16.mxu0 0
  %276 = vmatmul.mubr.bf16.gmra.mxu0 %v186
  %v277 = vpop.f32.mrf.mxu0
  %v278 = vadd.f32 0.0, %v277
  %v279 = vpop.f32.mrf.mxu0
  %v280 = vadd.f32 0.0, %v279
  %v281 = vpop.f32.mrf.mxu0
  %v282 = vadd.f32 0.0, %v281
  %v283 = vpop.f32.mrf.mxu0
  %v284 = vadd.f32 0.0, %v283
  %285 = vmatprep.mubr.bf16.mxu0 0
  %286 = vmatmul.mubr.bf16.gmra.mxu0 %v189
  %v287 = vpop.f32.mrf.mxu0
  %v288 = vadd.f32 0.0, %v287
  %v289 = vpop.f32.mrf.mxu0
  %v290 = vadd.f32 0.0, %v289
  %v291 = vpop.f32.mrf.mxu0
  %v292 = vadd.f32 0.0, %v291
  %v293 = vpop.f32.mrf.mxu0
  %v294 = vadd.f32 0.0, %v293
  %295 = vmatprep.mubr.bf16.mxu0 0
  %296 = vmatmul.mubr.bf16.gmra.mxu0 %v192
  %v297 = vpop.f32.mrf.mxu0
  %v298 = vadd.f32 0.0, %v297
  %v299 = vpop.f32.mrf.mxu0
  %v300 = vadd.f32 0.0, %v299
  %v301 = vpop.f32.mrf.mxu0
  %v302 = vadd.f32 0.0, %v301
  %v303 = vpop.f32.mrf.mxu0
  %v304 = vadd.f32 0.0, %v303
  %305 = vmatprep.mubr.bf16.mxu0 0
  %306 = vmatmul.mubr.bf16.gmra.mxu0 %v195
  %v307 = vpop.f32.mrf.mxu0
  %v308 = vadd.f32 0.0, %v307
  %v309 = vpop.f32.mrf.mxu0
  %v310 = vadd.f32 0.0, %v309
  %v311 = vpop.f32.mrf.mxu0
  %v312 = vadd.f32 0.0, %v311
  %v313 = vpop.f32.mrf.mxu0
  %v314 = vadd.f32 0.0, %v313
  %315 = vmatprep.mubr.bf16.mxu0 0
  %316 = vmatmul.mubr.bf16.gmra.mxu0 %v198
  %v317 = vpop.f32.mrf.mxu0
  %v318 = vadd.f32 0.0, %v317
  %v319 = vpop.f32.mrf.mxu0
  %v320 = vadd.f32 0.0, %v319
  %v321 = vpop.f32.mrf.mxu0
  %v322 = vadd.f32 0.0, %v321
  %v323 = vpop.f32.mrf.mxu0
  %v324 = vadd.f32 0.0, %v323
  %325 = vmatprep.mubr.bf16.mxu0 0
  %326 = vmatmul.mubr.bf16.gmra.mxu0 %v201
  %v327 = vpop.f32.mrf.mxu0
  %v328 = vadd.f32 0.0, %v327
  %v329 = vpop.f32.mrf.mxu0
  %v330 = vadd.f32 0.0, %v329
  %v331 = vpop.f32.mrf.mxu0
  %v332 = vpop.f32.mrf.mxu0
  %333 = vdwg.mxu0
  %v334 = vld [vmem:[#allocation2] sm:$0xff]
  %v335 = vld [vmem:[#allocation2 + $0x8] sm:$0xff]
  %v336 = vld [vmem:[#allocation2 + $0x10] sm:$0xff]
  %v337 = vld [vmem:[#allocation2 + $0x18] sm:$0xff]
  %v338 = vld [vmem:[#allocation2 + $0x20] sm:$0xff]
  %v339 = vld [vmem:[#allocation2 + $0x28] sm:$0xff]
  %v340 = vld [vmem:[#allocation2 + $0x30] sm:$0xff]
  %v341 = vld [vmem:[#allocation2 + $0x38] sm:$0xff]
  %v342 = vld [vmem:[#allocation2 + $0x40] sm:$0xff]
  %v343 = vld [vmem:[#allocation2 + $0x48] sm:$0xff]
  %v344 = vld [vmem:[#allocation2 + $0x50] sm:$0xff]
  %v345 = vld [vmem:[#allocation2 + $0x58] sm:$0xff]
  %v346 = vld [vmem:[#allocation2 + $0x60] sm:$0xff]
  %v347 = vld [vmem:[#allocation2 + $0x68] sm:$0xff]
  %v348 = vld [vmem:[#allocation2 + $0x70] sm:$0xff]
  %v349 = vld [vmem:[#allocation2 + $0x78] sm:$0xff]
  %v350 = vld [vmem:[#allocation2 + $0x80] sm:$0xff]
  %v351 = vld [vmem:[#allocation2 + $0x88] sm:$0xff]
  %v352 = vld [vmem:[#allocation2 + $0x90] sm:$0xff]
  %v353 = vld [vmem:[#allocation2 + $0x98] sm:$0xff]
  %v354 = vld [vmem:[#allocation2 + $0xa0] sm:$0xff]
  %v355 = vld [vmem:[#allocation2 + $0xa8] sm:$0xff]
  %v356 = vld [vmem:[#allocation2 + $0xb0] sm:$0xff]
  %v357 = vld [vmem:[#allocation2 + $0xb8] sm:$0xff]
  %v358 = vld [vmem:[#allocation2 + $0xc0] sm:$0xff]
  %v359 = vld [vmem:[#allocation2 + $0xc8] sm:$0xff]
  %v360 = vld [vmem:[#allocation2 + $0xd0] sm:$0xff]
  %v361 = vld [vmem:[#allocation2 + $0xd8] sm:$0xff]
  %v362 = vld [vmem:[#allocation2 + $0xe0] sm:$0xff]
  %v363 = vld [vmem:[#allocation2 + $0xe8] sm:$0xff]
  %v364 = vld [vmem:[#allocation2 + $0xf0] sm:$0xff]
  %v365 = vld [vmem:[#allocation2 + $0xf8] sm:$0xff]
  %v366 = vld [vmem:[#allocation2 + $0x100] sm:$0xff]
  %v367 = vld [vmem:[#allocation2 + $0x108] sm:$0xff]
  %v368 = vld [vmem:[#allocation2 + $0x110] sm:$0xff]
  %v369 = vld [vmem:[#allocation2 + $0x118] sm:$0xff]
  %v370 = vld [vmem:[#allocation2 + $0x120] sm:$0xff]
  %v371 = vld [vmem:[#allocation2 + $0x128] sm:$0xff]
  %v372 = vadd.f32 %v334, %v238
  %v373 = vadd.f32 %v335, %v240
  %v374 = vadd.f32 %v336, %v242
  %v375 = vadd.f32 %v337, %v244
  %v376 = vadd.f32 %v338, %v248
  %v377 = vadd.f32 %v339, %v250
  %v378 = vadd.f32 %v340, %v252
  %v379 = vadd.f32 %v341, %v254
  %v380 = vadd.f32 %v342, %v258
  %v381 = vadd.f32 %v343, %v260
  %v382 = vadd.f32 %v344, %v262
  %v383 = vadd.f32 %v345, %v264
  %v384 = vadd.f32 %v346, %v268
  %v385 = vadd.f32 %v347, %v270
  %v386 = vadd.f32 %v348, %v272
  %v387 = vadd.f32 %v349, %v274
  %v388 = vadd.f32 %v350, %v278
  %v389 = vadd.f32 %v351, %v280
  %v390 = vadd.f32 %v352, %v282
  %v391 = vadd.f32 %v353, %v284
  %v392 = vadd.f32 %v354, %v288
  %v393 = vadd.f32 %v355, %v290
  %v394 = vadd.f32 %v356, %v292
  %v395 = vadd.f32 %v357, %v294
  %v396 = vadd.f32 %v358, %v298
  %v397 = vadd.f32 %v359, %v300
  %v398 = vadd.f32 %v360, %v302
  %v399 = vadd.f32 %v361, %v304
  %v400 = vadd.f32 %v362, %v308
  %v401 = vadd.f32 %v363, %v310
  %v402 = vadd.f32 %v364, %v312
  %v403 = vadd.f32 %v365, %v314
  %v404 = vadd.f32 %v366, %v318
  %v405 = vadd.f32 %v367, %v320
  %v406 = vadd.f32 %v368, %v322
  %v407 = vadd.f32 %v369, %v324
  %v408 = vadd.f32 %v370, %v328
  %v409 = vadd.f32 %v371, %v330
  %410 = vst [vmem:[#allocation2] sm:$0xff] %v372
  %411 = vst [vmem:[#allocation2 + $0x8] sm:$0xff] %v373
  %412 = vst [vmem:[#allocation2 + $0x10] sm:$0xff] %v374
  %413 = vst [vmem:[#allocation2 + $0x18] sm:$0xff] %v375
  %414 = vst [vmem:[#allocation2 + $0x20] sm:$0xff] %v376
  %415 = vst [vmem:[#allocation2 + $0x28] sm:$0xff] %v377
  %416 = vst [vmem:[#allocation2 + $0x30] sm:$0xff] %v378
  %417 = vst [vmem:[#allocation2 + $0x38] sm:$0xff] %v379
  %418 = vst [vmem:[#allocation2 + $0x40] sm:$0xff] %v380
  %419 = vst [vmem:[#allocation2 + $0x48] sm:$0xff] %v381
  %420 = vst [vmem:[#allocation2 + $0x50] sm:$0xff] %v382
  %421 = vst [vmem:[#allocation2 + $0x58] sm:$0xff] %v383
  %422 = vst [vmem:[#allocation2 + $0x60] sm:$0xff] %v384
  %423 = vst [vmem:[#allocation2 + $0x68] sm:$0xff] %v385
  %424 = vst [vmem:[#allocation2 + $0x70] sm:$0xff] %v386
  %425 = vst [vmem:[#allocation2 + $0x78] sm:$0xff] %v387
  %426 = vst [vmem:[#allocation2 + $0x80] sm:$0xff] %v388
  %427 = vst [vmem:[#allocation2 + $0x88] sm:$0xff] %v389
  %428 = vst [vmem:[#allocation2 + $0x90] sm:$0xff] %v390
  %429 = vst [vmem:[#allocation2 + $0x98] sm:$0xff] %v391
  %430 = vst [vmem:[#allocation2 + $0xa0] sm:$0xff] %v392
  %431 = vst [vmem:[#allocation2 + $0xa8] sm:$0xff] %v393
  %432 = vst [vmem:[#allocation2 + $0xb0] sm:$0xff] %v394
  %433 = vst [vmem:[#allocation2 + $0xb8] sm:$0xff] %v395
  %434 = vst [vmem:[#allocation2 + $0xc0] sm:$0xff] %v396
  %435 = vst [vmem:[#allocation2 + $0xc8] sm:$0xff] %v397
  %436 = vst [vmem:[#allocation2 + $0xd0] sm:$0xff] %v398
  %437 = vst [vmem:[#allocation2 + $0xd8] sm:$0xff] %v399
  %438 = vst [vmem:[#allocation2 + $0xe0] sm:$0xff] %v400
  %439 = vst [vmem:[#allocation2 + $0xe8] sm:$0xff] %v401
  %440 = vst [vmem:[#allocation2 + $0xf0] sm:$0xff] %v402
  %441 = vst [vmem:[#allocation2 + $0xf8] sm:$0xff] %v403
  %442 = vst [vmem:[#allocation2 + $0x100] sm:$0xff] %v404
  %443 = vst [vmem:[#allocation2 + $0x108] sm:$0xff] %v405
  %444 = vst [vmem:[#allocation2 + $0x110] sm:$0xff] %v406
  %445 = vst [vmem:[#allocation2 + $0x118] sm:$0xff] %v407
  %446 = vst [vmem:[#allocation2 + $0x120] sm:$0xff] %v408
  %447 = vst [vmem:[#allocation2 + $0x128] sm:$0xff] %v409
  // Predicated region
  $region18: #{forward.28} parent=0 // pred_check
    %p448 = pneg %p15
  $region19: #{forward.28} parent=0 // pred_check_branch
    %450 = sbr.rel (%p448) target = $region21
  $region20: #{forward.28} parent=0 // pred_region
    %v451 = vld [vmem:[#allocation2] sm:$0xff]
    %v452 = vld [vmem:[#allocation2 + $0x8] sm:$0xff]
    %v453 = vld [vmem:[#allocation2 + $0x10] sm:$0xff]
    %v454 = vld [vmem:[#allocation2 + $0x18] sm:$0xff]
    %v455 = vld [vmem:[#allocation2 + $0x20] sm:$0xff]
    %v456 = vld [vmem:[#allocation2 + $0x28] sm:$0xff]
    %v457 = vld [vmem:[#allocation2 + $0x30] sm:$0xff]
    %v458 = vld [vmem:[#allocation2 + $0x38] sm:$0xff]
    %v459 = vld [vmem:[#allocation2 + $0x40] sm:$0xff]
    %v460 = vld [vmem:[#allocation2 + $0x48] sm:$0xff]
    %v461 = vld [vmem:[#allocation2 + $0x50] sm:$0xff]
    %v462 = vld [vmem:[#allocation2 + $0x58] sm:$0xff]
    %v463 = vld [vmem:[#allocation2 + $0x60] sm:$0xff]
    %v464 = vld [vmem:[#allocation2 + $0x68] sm:$0xff]
    %v465 = vld [vmem:[#allocation2 + $0x70] sm:$0xff]
    %v466 = vld [vmem:[#allocation2 + $0x78] sm:$0xff]
    %v467 = vld [vmem:[#allocation2 + $0x80] sm:$0xff]
    %v468 = vld [vmem:[#allocation2 + $0x88] sm:$0xff]
    %v469 = vld [vmem:[#allocation2 + $0x90] sm:$0xff]
    %v470 = vld [vmem:[#allocation2 + $0x98] sm:$0xff]
    %v471 = vld [vmem:[#allocation2 + $0xa0] sm:$0xff]
    %v472 = vld [vmem:[#allocation2 + $0xa8] sm:$0xff]
    %v473 = vld [vmem:[#allocation2 + $0xb0] sm:$0xff]
    %v474 = vld [vmem:[#allocation2 + $0xb8] sm:$0xff]
    %v475 = vld [vmem:[#allocation2 + $0xc0] sm:$0xff]
    %v476 = vld [vmem:[#allocation2 + $0xc8] sm:$0xff]
    %v477 = vld [vmem:[#allocation2 + $0xd0] sm:$0xff]
    %v478 = vld [vmem:[#allocation2 + $0xd8] sm:$0xff]
    %v479 = vld [vmem:[#allocation2 + $0xe0] sm:$0xff]
    %v480 = vld [vmem:[#allocation2 + $0xe8] sm:$0xff]
    %v481 = vld [vmem:[#allocation2 + $0xf0] sm:$0xff]
    %v482 = vld [vmem:[#allocation2 + $0xf8] sm:$0xff]
    %v483 = vld [vmem:[#allocation2 + $0x100] sm:$0xff]
    %v484 = vld [vmem:[#allocation2 + $0x108] sm:$0xff]
    %v485 = vld [vmem:[#allocation2 + $0x110] sm:$0xff]
    %v486 = vld [vmem:[#allocation2 + $0x118] sm:$0xff]
    %v487 = vld [vmem:[#allocation2 + $0x120] sm:$0xff]
    %v488 = vld [vmem:[#allocation2 + $0x128] sm:$0xff]
    %v489 = vld [vmem:[%s2] sm:$0x3]
    %v491 = vlaneseq
    %v492 = vshrl.u32 %v491, 7
    %v493 = vsub.s32 0, %v492
    %v494 = vrot.slane %v489, %v493
    %v495 = vlaneseq
    %v496 = vshrl.u32 %v495, 7
    %v497 = vsub.s32 1, %v496
    %v498 = vrot.slane %v489, %v497
    %v501 = vadd.f32 %v451, %v494
    %v502 = vadd.f32 %v452, %v498
    %v503 = vadd.f32 %v453, %v494
    %v504 = vadd.f32 %v454, %v498
    %v505 = vadd.f32 %v455, %v494
    %v506 = vadd.f32 %v456, %v498
    %v507 = vadd.f32 %v457, %v494
    %v508 = vadd.f32 %v458, %v498
    %v509 = vadd.f32 %v459, %v494
    %v510 = vadd.f32 %v460, %v498
    %v511 = vadd.f32 %v461, %v494
    %v512 = vadd.f32 %v462, %v498
    %v513 = vadd.f32 %v463, %v494
    %v514 = vadd.f32 %v464, %v498
    %v515 = vadd.f32 %v465, %v494
    %v516 = vadd.f32 %v466, %v498
    %v517 = vadd.f32 %v467, %v494
    %v518 = vadd.f32 %v468, %v498
    %v519 = vadd.f32 %v469, %v494
    %v520 = vadd.f32 %v470, %v498
    %v521 = vadd.f32 %v471, %v494
    %v522 = vadd.f32 %v472, %v498
    %v523 = vadd.f32 %v473, %v494
    %v524 = vadd.f32 %v474, %v498
    %v525 = vadd.f32 %v475, %v494
    %v526 = vadd.f32 %v476, %v498
    %v527 = vadd.f32 %v477, %v494
    %v528 = vadd.f32 %v478, %v498
    %v529 = vadd.f32 %v479, %v494
    %v530 = vadd.f32 %v480, %v498
    %v531 = vadd.f32 %v481, %v494
    %v532 = vadd.f32 %v482, %v498
    %v533 = vadd.f32 %v483, %v494
    %v534 = vadd.f32 %v484, %v498
    %v535 = vadd.f32 %v485, %v494
    %v536 = vadd.f32 %v486, %v498
    %v537 = vadd.f32 %v487, %v494
    %v538 = vadd.f32 %v488, %v498
    %v539 = vmul.f32 %v501, 0.5
    %v540 = vmul.f32 %v502, 0.5
    %v541 = vmul.f32 %v503, 0.5
    %v542 = vmul.f32 %v504, 0.5
    %v543 = vmul.f32 %v505, 0.5
    %v544 = vmul.f32 %v506, 0.5
    %v545 = vmul.f32 %v507, 0.5
    %v546 = vmul.f32 %v508, 0.5
    %v547 = vmul.f32 %v509, 0.5
    %v548 = vmul.f32 %v510, 0.5
    %v549 = vmul.f32 %v511, 0.5
    %v550 = vmul.f32 %v512, 0.5
    %v551 = vmul.f32 %v513, 0.5
    %v552 = vmul.f32 %v514, 0.5
    %v553 = vmul.f32 %v515, 0.5
    %v554 = vmul.f32 %v516, 0.5
    %v555 = vmul.f32 %v517, 0.5
    %v556 = vmul.f32 %v518, 0.5
    %v557 = vmul.f32 %v519, 0.5
    %v558 = vmul.f32 %v520, 0.5
    %v559 = vmul.f32 %v521, 0.5
    %v560 = vmul.f32 %v522, 0.5
    %v561 = vmul.f32 %v523, 0.5
    %v562 = vmul.f32 %v524, 0.5
    %v563 = vmul.f32 %v525, 0.5
    %v564 = vmul.f32 %v526, 0.5
    %v565 = vmul.f32 %v527, 0.5
    %v566 = vmul.f32 %v528, 0.5
    %v567 = vmul.f32 %v529, 0.5
    %v568 = vmul.f32 %v530, 0.5
    %v569 = vmul.f32 %v531, 0.5
    %v570 = vmul.f32 %v532, 0.5
    %v571 = vmul.f32 %v533, 0.5
    %v572 = vmul.f32 %v534, 0.5
    %v573 = vmul.f32 %v535, 0.5
    %v574 = vmul.f32 %v536, 0.5
    %v575 = vmul.f32 %v537, 0.5
    %v576 = vmul.f32 %v538, 0.5
    %v577 = vmul.f32 %v501, 0.70710677
    %v578 = vmul.f32 %v502, 0.70710677
    %v579 = vmul.f32 %v503, 0.70710677
    %v580 = vmul.f32 %v504, 0.70710677
    %v581 = vmul.f32 %v505, 0.70710677
    %v582 = vmul.f32 %v506, 0.70710677
    %v583 = vmul.f32 %v507, 0.70710677
    %v584 = vmul.f32 %v508, 0.70710677
    %v585 = vmul.f32 %v509, 0.70710677
    %v586 = vmul.f32 %v510, 0.70710677
    %v587 = vmul.f32 %v511, 0.70710677
    %v588 = vmul.f32 %v512, 0.70710677
    %v589 = vmul.f32 %v513, 0.70710677
    %v590 = vmul.f32 %v514, 0.70710677
    %v591 = vmul.f32 %v515, 0.70710677
    %v592 = vmul.f32 %v516, 0.70710677
    %v593 = vmul.f32 %v517, 0.70710677
    %v594 = vmul.f32 %v518, 0.70710677
    %v595 = vmul.f32 %v519, 0.70710677
    %v596 = vmul.f32 %v520, 0.70710677
    %v597 = vmul.f32 %v521, 0.70710677
    %v598 = vmul.f32 %v522, 0.70710677
    %v599 = vmul.f32 %v523, 0.70710677
    %v600 = vmul.f32 %v524, 0.70710677
    %v601 = vmul.f32 %v525, 0.70710677
    %v602 = vmul.f32 %v526, 0.70710677
    %v603 = vmul.f32 %v527, 0.70710677
    %v604 = vmul.f32 %v528, 0.70710677
    %v605 = vmul.f32 %v529, 0.70710677
    %v606 = vmul.f32 %v530, 0.70710677
    %v607 = vmul.f32 %v531, 0.70710677
    %v608 = vmul.f32 %v532, 0.70710677
    %v609 = vmul.f32 %v533, 0.70710677
    %v610 = vmul.f32 %v534, 0.70710677
    %v611 = vmul.f32 %v535, 0.70710677
    %v612 = vmul.f32 %v536, 0.70710677
    %v613 = vmul.f32 %v537, 0.70710677
    %v614 = vmul.f32 %v538, 0.70710677
    %v615 = verf.f32.pop %v577
    %v616 = verf.f32.pop %v578
    %v617 = verf.f32.pop %v579
    %v618 = verf.f32.pop %v580
    %v619 = verf.f32.pop %v581
    %v620 = verf.f32.pop %v582
    %v621 = verf.f32.pop %v583
    %v622 = verf.f32.pop %v584
    %v623 = verf.f32.pop %v585
    %v624 = verf.f32.pop %v586
    %v625 = verf.f32.pop %v587
    %v626 = verf.f32.pop %v588
    %v627 = verf.f32.pop %v589
    %v628 = verf.f32.pop %v590
    %v629 = verf.f32.pop %v591
    %v630 = verf.f32.pop %v592
    %v631 = verf.f32.pop %v593
    %v632 = verf.f32.pop %v594
    %v633 = verf.f32.pop %v595
    %v634 = verf.f32.pop %v596
    %v635 = verf.f32.pop %v597
    %v636 = verf.f32.pop %v598
    %v637 = verf.f32.pop %v599
    %v638 = verf.f32.pop %v600
    %v639 = verf.f32.pop %v601
    %v640 = verf.f32.pop %v602
    %v641 = verf.f32.pop %v603
    %v642 = verf.f32.pop %v604
    %v643 = verf.f32.pop %v605
    %v644 = verf.f32.pop %v606
    %v645 = verf.f32.pop %v607
    %v646 = verf.f32.pop %v608
    %v647 = verf.f32.pop %v609
    %v648 = verf.f32.pop %v610
    %v649 = verf.f32.pop %v611
    %v650 = verf.f32.pop %v612
    %v651 = verf.f32.pop %v613
    %v652 = verf.f32.pop %v614
    %v653 = vadd.f32 %v615, 1.0
    %v654 = vadd.f32 %v616, 1.0
    %v655 = vadd.f32 %v617, 1.0
    %v656 = vadd.f32 %v618, 1.0
    %v657 = vadd.f32 %v619, 1.0
    %v658 = vadd.f32 %v620, 1.0
    %v659 = vadd.f32 %v621, 1.0
    %v660 = vadd.f32 %v622, 1.0
    %v661 = vadd.f32 %v623, 1.0
    %v662 = vadd.f32 %v624, 1.0
    %v663 = vadd.f32 %v625, 1.0
    %v664 = vadd.f32 %v626, 1.0
    %v665 = vadd.f32 %v627, 1.0
    %v666 = vadd.f32 %v628, 1.0
    %v667 = vadd.f32 %v629, 1.0
    %v668 = vadd.f32 %v630, 1.0
    %v669 = vadd.f32 %v631, 1.0
    %v670 = vadd.f32 %v632, 1.0
    %v671 = vadd.f32 %v633, 1.0
    %v672 = vadd.f32 %v634, 1.0
    %v673 = vadd.f32 %v635, 1.0
    %v674 = vadd.f32 %v636, 1.0
    %v675 = vadd.f32 %v637, 1.0
    %v676 = vadd.f32 %v638, 1.0
    %v677 = vadd.f32 %v639, 1.0
    %v678 = vadd.f32 %v640, 1.0
    %v679 = vadd.f32 %v641, 1.0
    %v680 = vadd.f32 %v642, 1.0
    %v681 = vadd.f32 %v643, 1.0
    %v682 = vadd.f32 %v644, 1.0
    %v683 = vadd.f32 %v645, 1.0
    %v684 = vadd.f32 %v646, 1.0
    %v685 = vadd.f32 %v647, 1.0
    %v686 = vadd.f32 %v648, 1.0
    %v687 = vadd.f32 %v649, 1.0
    %v688 = vadd.f32 %v650, 1.0
    %v689 = vadd.f32 %v651, 1.0
    %v690 = vadd.f32 %v652, 1.0
    %v691 = vmul.f32 %v539, %v653
    %v692 = vmul.f32 %v540, %v654
    %v693 = vmul.f32 %v541, %v655
    %v694 = vmul.f32 %v542, %v656
    %v695 = vmul.f32 %v543, %v657
    %v696 = vmul.f32 %v544, %v658
    %v697 = vmul.f32 %v545, %v659
    %v698 = vmul.f32 %v546, %v660
    %v699 = vmul.f32 %v547, %v661
    %v700 = vmul.f32 %v548, %v662
    %v701 = vmul.f32 %v549, %v663
    %v702 = vmul.f32 %v550, %v664
    %v703 = vmul.f32 %v551, %v665
    %v704 = vmul.f32 %v552, %v666
    %v705 = vmul.f32 %v553, %v667
    %v706 = vmul.f32 %v554, %v668
    %v707 = vmul.f32 %v555, %v669
    %v708 = vmul.f32 %v556, %v670
    %v709 = vmul.f32 %v557, %v671
    %v710 = vmul.f32 %v558, %v672
    %v711 = vmul.f32 %v559, %v673
    %v712 = vmul.f32 %v560, %v674
    %v713 = vmul.f32 %v561, %v675
    %v714 = vmul.f32 %v562, %v676
    %v715 = vmul.f32 %v563, %v677
    %v716 = vmul.f32 %v564, %v678
    %v717 = vmul.f32 %v565, %v679
    %v718 = vmul.f32 %v566, %v680
    %v719 = vmul.f32 %v567, %v681
    %v720 = vmul.f32 %v568, %v682
    %v721 = vmul.f32 %v569, %v683
    %v722 = vmul.f32 %v570, %v684
    %v723 = vmul.f32 %v571, %v685
    %v724 = vmul.f32 %v572, %v686
    %v725 = vmul.f32 %v573, %v687
    %v726 = vmul.f32 %v574, %v688
    %v727 = vmul.f32 %v575, %v689
    %v728 = vmul.f32 %v576, %v690
    %v729 = vpack.c.bf16 %v693, %v691
    %v730 = vpack.c.bf16 %v694, %v692
    %v731 = vpack.c.bf16 %v697, %v695
    %v732 = vpack.c.bf16 %v698, %v696
    %v733 = vpack.c.bf16 %v701, %v699
    %v734 = vpack.c.bf16 %v702, %v700
    %v735 = vpack.c.bf16 %v705, %v703
    %v736 = vpack.c.bf16 %v706, %v704
    %v737 = vpack.c.bf16 %v709, %v707
    %v738 = vpack.c.bf16 %v710, %v708
    %v739 = vpack.c.bf16 %v713, %v711
    %v740 = vpack.c.bf16 %v714, %v712
    %v741 = vpack.c.bf16 %v717, %v715
    %v742 = vpack.c.bf16 %v718, %v716
    %v743 = vpack.c.bf16 %v721, %v719
    %v744 = vpack.c.bf16 %v722, %v720
    %v745 = vpack.c.bf16 %v725, %v723
    %v746 = vpack.c.bf16 %v726, %v724
    %v747 = vpack.c.bf16 %v727, %v727
    %v748 = vpack.c.bf16 %v728, %v728
    %v769 = vunpack.c.l.b16 %v729
    %v770 = vunpack.c.l.b16 %v730
    %v771 = vunpack.c.h.b16 %v729
    %v772 = vunpack.c.h.b16 %v730
    %v773 = vunpack.c.l.b16 %v731
    %v774 = vunpack.c.l.b16 %v732
    %v775 = vunpack.c.h.b16 %v731
    %v776 = vunpack.c.h.b16 %v732
    %v777 = vunpack.c.l.b16 %v733
    %v778 = vunpack.c.l.b16 %v734
    %v779 = vunpack.c.h.b16 %v733
    %v780 = vunpack.c.h.b16 %v734
    %v781 = vunpack.c.l.b16 %v735
    %v782 = vunpack.c.l.b16 %v736
    %v783 = vunpack.c.h.b16 %v735
    %v784 = vunpack.c.h.b16 %v736
    %v785 = vunpack.c.l.b16 %v737
    %v786 = vunpack.c.l.b16 %v738
    %v787 = vunpack.c.h.b16 %v737
    %v788 = vunpack.c.h.b16 %v738
    %v789 = vunpack.c.l.b16 %v739
    %v790 = vunpack.c.l.b16 %v740
    %v791 = vunpack.c.h.b16 %v739
    %v792 = vunpack.c.h.b16 %v740
    %v793 = vunpack.c.l.b16 %v741
    %v794 = vunpack.c.l.b16 %v742
    %v795 = vunpack.c.h.b16 %v741
    %v796 = vunpack.c.h.b16 %v742
    %v797 = vunpack.c.l.b16 %v743
    %v798 = vunpack.c.l.b16 %v744
    %v799 = vunpack.c.h.b16 %v743
    %v800 = vunpack.c.h.b16 %v744
    %v801 = vunpack.c.l.b16 %v745
    %v802 = vunpack.c.l.b16 %v746
    %v803 = vunpack.c.h.b16 %v745
    %v804 = vunpack.c.h.b16 %v746
    %v805 = vunpack.c.l.b16 %v747
    %v806 = vunpack.c.l.b16 %v748
    %v807 = vpack.c.b16 %v770, %v769
    %v808 = vpack.c.b16 %v772, %v771
    %v809 = vpack.c.b16 %v774, %v773
    %v810 = vpack.c.b16 %v776, %v775
    %v811 = vpack.c.b16 %v778, %v777
    %v812 = vpack.c.b16 %v780, %v779
    %v813 = vpack.c.b16 %v782, %v781
    %v814 = vpack.c.b16 %v784, %v783
    %v815 = vpack.c.b16 %v786, %v785
    %v816 = vpack.c.b16 %v788, %v787
    %v817 = vpack.c.b16 %v790, %v789
    %v818 = vpack.c.b16 %v792, %v791
    %v819 = vpack.c.b16 %v794, %v793
    %v820 = vpack.c.b16 %v796, %v795
    %v821 = vpack.c.b16 %v798, %v797
    %v822 = vpack.c.b16 %v800, %v799
    %v823 = vpack.c.b16 %v802, %v801
    %v824 = vpack.c.b16 %v804, %v803
    %v825 = vpack.c.b16 %v806, %v805
    %845 = vst [vmem:[%s3] sm:$0xff] %v807
    %846 = vst [vmem:[%s3 + $0x8] sm:$0xff] %v808
    %847 = vst [vmem:[%s3 + $0x10] sm:$0xff] %v809
    %848 = vst [vmem:[%s3 + $0x18] sm:$0xff] %v810
    %849 = vst [vmem:[%s3 + $0x20] sm:$0xff] %v811
    %850 = vst [vmem:[%s3 + $0x28] sm:$0xff] %v812
    %851 = vst [vmem:[%s3 + $0x30] sm:$0xff] %v813
    %852 = vst [vmem:[%s3 + $0x38] sm:$0xff] %v814
    %853 = vst [vmem:[%s3 + $0x40] sm:$0xff] %v815
    %854 = vst [vmem:[%s3 + $0x48] sm:$0xff] %v816
    %855 = vst [vmem:[%s3 + $0x50] sm:$0xff] %v817
    %856 = vst [vmem:[%s3 + $0x58] sm:$0xff] %v818
    %857 = vst [vmem:[%s3 + $0x60] sm:$0xff] %v819
    %858 = vst [vmem:[%s3 + $0x68] sm:$0xff] %v820
    %859 = vst [vmem:[%s3 + $0x70] sm:$0xff] %v821
    %860 = vst [vmem:[%s3 + $0x78] sm:$0xff] %v822
    %861 = vst [vmem:[%s3 + $0x80] sm:$0xff] %v823
    %862 = vst [vmem:[%s3 + $0x88] sm:$0xff] %v824
    %863 = vst [vmem:[%s3 + $0x90] sm:$0xff] %v825
  $region21: #{forward.28} parent=0 // pred_fallthru
    _
  // Predicated region
  $region22: #{forward.28} parent=0 // pred_check
    _
  $region23: #{forward.28} parent=0 // pred_check_branch
    %865 = sbr.rel (0) target = $region25
  $region24: #{forward.28} parent=0 // pred_region
    _
  $region25: #{forward.28} parent=0 // pred_fallthru
    _
  // Predicated region
  $region26: #{forward.28} parent=0 // pred_check
    _
  $region27: #{forward.28} parent=0 // pred_check_branch
    %867 = sbr.rel (0) target = $region29
  $region28: #{forward.28} parent=0 // pred_region
    _
  $region29: #{forward.28} parent=0 // pred_fallthru
    _

// kernel: forward.26
$region0: #{forward.26}
  #allocation0 [shape = 'u32[]', space=smem, size = 0x4, offset = 0x4, fixed_abs, tag = 'smem constant byte address 0x4 - core index']
  #allocation1 [shape = 'u32[144,128]{1,0:T(1,128)}', space=vmem, size = 0x12000, scoped, tag = 'internal scratch']
  %s0 = inlined_call_operand.vmem [shape: bf16[2,76,192], index: 0, kind: input, shape index: {}]
  %s1 = inlined_call_operand.vmem [shape: bf16[2,76,64], index: 1, kind: output, shape index: {}]
  %s2 = sld [smem:[#allocation0]]
  $region37: #{forward.26} parent=0
    _
  %s4 = ssub.s32 1, %s2
  %s5 = scalar_select 0, %s4, %s2
  loop: start=0, step=1, limit=4
  $region2: #{forward.26} parent=0 // loop_pre_header
    _
  $region3: #{forward.26} parent=0 // loop_header
    %s7 = sphi 0, %s11
    %p8 = scmp.ge.s32.totalorder %s7, 4
    %s17 = sphi 0, %s19
    %s20 = sphi 0, %s17
    %s21 = sphi 0, %s20
    %s37 = sphi 0, %s21
    %s43 = sphi 0, %s45
    %s46 = sphi 0, %s43
    %s47 = sphi 0, %s46
    %s63 = sphi 0, %s47
  $region4: #{forward.26} parent=0 // loop_header_branch
    %10 = sbr.rel (%p8) target = $region8
  $region5: #{forward.26} parent=0 // loop_body
    %s12 = ssub.s32 %s7, 1
    %s13 = ssub.s32 %s7, 2
    %s14 = sadd.s32 %s7, 1
    %s15 = ssub.s32 %s7, %s14
    %p16 = scmp.eq.s32.totalorder %s15, 0
    %s18 = sadd.s32 %s17, 1
    %s19 = scalar_select %p16, %s17, %s18
    %p22 = pneg %p16
    %p23 = scmp.eq.s32.totalorder %s7, 1
    %p24 = por %p22, %p23
    %p25 = scmp.ne.s32.totalorder %s17, %s20
    %p26 = scmp.eq.s32.totalorder %s7, 0
    %p27 = por %p25, %p26
    %p28 = scmp.ne.s32.totalorder %s17, %s20
    %p29 = scmp.eq.s32.totalorder %s12, 1
    %p30 = por %p28, %p29
    %p31 = scmp.ne.s32.totalorder %s20, %s21
    %p32 = scmp.eq.s32.totalorder %s12, 0
    %p33 = por %p31, %p32
    %p34 = scmp.ne.s32.totalorder %s20, %s21
    %p35 = scmp.eq.s32.totalorder %s13, 1
    %p36 = por %p34, %p35
    %p38 = scmp.ne.s32.totalorder %s21, %s37
    %p39 = scmp.eq.s32.totalorder %s13, 0
    %p40 = por %p38, %p39
    %s41 = ssub.s32 %s7, %s14
    %p42 = scmp.eq.s32.totalorder %s41, 0
    %s44 = sadd.s32 %s43, 1
    %s45 = scalar_select %p42, %s43, %s44
    %p48 = pneg %p42
    %p49 = scmp.eq.s32.totalorder %s7, 1
    %p50 = por %p48, %p49
    %p51 = scmp.ne.s32.totalorder %s43, %s46
    %p52 = scmp.eq.s32.totalorder %s7, 0
    %p53 = por %p51, %p52
    %p54 = scmp.ne.s32.totalorder %s43, %s46
    %p55 = scmp.eq.s32.totalorder %s12, 1
    %p56 = por %p54, %p55
    %p57 = scmp.ne.s32.totalorder %s46, %s47
    %p58 = scmp.eq.s32.totalorder %s12, 0
    %p59 = por %p57, %p58
    %p60 = scmp.ne.s32.totalorder %s46, %s47
    %p61 = scmp.eq.s32.totalorder %s13, 1
    %p62 = por %p60, %p61
    %p64 = scmp.ne.s32.totalorder %s47, %s63
    %p65 = scmp.eq.s32.totalorder %s13, 0
    %p66 = por %p64, %p65
    %p67 = scmp.le.s32.totalorder 1, %s7
    %p68 = scmp.lt.s32.totalorder %s7, 3
    %p69 = pnand %p67, %p68
    %p70 = pneg %p69
    // Predicated region
    $region9: #{forward.26} parent=5 // pred_check
      _
    $region10: #{forward.26} parent=5 // pred_check_branch
      %72 = sbr.rel (%p69) target = $region12
    $region11: #{forward.26} parent=5 // pred_region
      %s73 = ssub.s32 %s7, 1
    $region12: #{forward.26} parent=5 // pred_fallthru
      _
    %p74 = scmp.lt.s32.totalorder %s7, 2
    // Predicated region
    $region13: #{forward.26} parent=5 // pred_check
      %p75 = pneg %p74
    $region14: #{forward.26} parent=5 // pred_check_branch
      %77 = sbr.rel (%p75) target = $region16
    $region15: #{forward.26} parent=5 // pred_region
      // Predicated region
      $region17: #{forward.26} parent=15 // pred_check
        %p78 = pneg %p27
      $region18: #{forward.26} parent=15 // pred_check_branch
        %80 = sbr.rel (%p78) target = $region20
      $region19: #{forward.26} parent=15 // pred_region
        %p81 = scmp.lt.s32.totalorder %s7, 1
        %s82 = scalar_select %p81, %s7, 1
        %s83 = smul.addr %s82, 20
        %s84 = smul.addr %s83, 4
        %s85 = scalar_lea.vmem %s0, %s84
      $region20: #{forward.26} parent=15 // pred_fallthru
        _
    $region16: #{forward.26} parent=5 // pred_fallthru
      _
    %p86 = scmp.le.s32.totalorder 1, %s7
    %p87 = scmp.lt.s32.totalorder %s7, 3
    %p88 = pnand %p86, %p87
    %p89 = pneg %p88
    // Predicated region
    $region21: #{forward.26} parent=5 // pred_check
      _
    $region22: #{forward.26} parent=5 // pred_check_branch
      %91 = sbr.rel (%p88) target = $region24
    $region23: #{forward.26} parent=5 // pred_region
      %s92 = ssub.s32 %s7, 1
      %p93 = scmp.lt.s32.totalorder %s12, 1
      %s94 = scalar_select %p93, %s12, 1
      %s95 = smul.addr %s94, 20
      %s96 = smul.addr %s95, 4
      %s97 = scalar_lea.vmem %s0, %s96
      %p98 = pneg %p33
      %p99 = pneg %p30
      %p100 = pneg %p59
      %p101 = pneg %p56
      %p102 = scmp.lt.s32.totalorder %s12, 1
      %s103 = scalar_select %p102, %s12, 1
      %s104 = smul.addr %s103, 10
      %s105 = smul.addr %s104, 4
      %s106 = scalar_lea.vmem %s1, %s105
      %p107 = scmp.lt.s32.totalorder %s12, 1
      %s108 = scalar_select %p107, %s12, 1
      %s109 = smul.addr %s108, 20
      %s110 = smul.addr %s109, 4
      %s111 = scalar_lea.vmem %s0, %s110
      %p112 = scmp.lt.s32.totalorder %s12, 1
      %s113 = scalar_select %p112, %s12, 1
      %s114 = smul.addr %s113, 10
      %s115 = smul.addr %s114, 4
      %s116 = scalar_lea.vmem %s1, %s115
      %v118 = vld [vmem:[%s111] sm:$0xff]
      %v119 = vld [vmem:[%s111 + $0x8] sm:$0xff]
      %v120 = vld [vmem:[%s111 + $0x10] sm:$0xff]
      %v121 = vld [vmem:[%s111 + $0x18] sm:$0xff]
      %v122 = vld [vmem:[%s111 + $0x20] sm:$0xff]
      %v123 = vld [vmem:[%s111 + $0x28] sm:$0xff]
      %v124 = vld [vmem:[%s111 + $0x30] sm:$0xff]
      %v125 = vld [vmem:[%s111 + $0x38] sm:$0xff]
      %v126 = vld [vmem:[%s111 + $0x40] sm:$0xff]
      %v127 = vld [vmem:[%s111 + $0x48] sm:$0x33]
      %v128 = vunpack.c.l.bf16 %v118
      %v129 = vunpack.c.l.bf16 %v119
      %v130 = vunpack.c.l.bf16 %v120
      %v131 = vunpack.c.l.bf16 %v121
      %v132 = vunpack.c.l.bf16 %v122
      %v133 = vunpack.c.l.bf16 %v123
      %v134 = vunpack.c.l.bf16 %v124
      %v135 = vunpack.c.l.bf16 %v125
      %v136 = vunpack.c.l.bf16 %v126
      %v137 = vunpack.c.l.bf16 %v127
      %v138 = vmul.f32 %v128, 0.25
      %v139 = vmul.f32 %v129, 0.25
      %v140 = vmul.f32 %v130, 0.25
      %v141 = vmul.f32 %v131, 0.25
      %v142 = vmul.f32 %v132, 0.25
      %v143 = vmul.f32 %v133, 0.25
      %v144 = vmul.f32 %v134, 0.25
      %v145 = vmul.f32 %v135, 0.25
      %v146 = vmul.f32 %v136, 0.25
      %v147 = vmul.f32 %v137, 0.25
      %v148 = vpack.c.bf16 %v139, %v138
      %v149 = vpack.c.bf16 %v141, %v140
      %v150 = vpack.c.bf16 %v143, %v142
      %v151 = vpack.c.bf16 %v145, %v144
      %v152 = vpack.c.bf16 %v147, %v146
      %v163 = vunpack.c.l.b16 %v118
      %v164 = vunpack.c.l.b16 %v119
      %v165 = vunpack.c.l.b16 %v120
      %v166 = vunpack.c.l.b16 %v121
      %v167 = vunpack.c.l.b16 %v122
      %v168 = vunpack.c.l.b16 %v123
      %v169 = vunpack.c.l.b16 %v124
      %v170 = vunpack.c.l.b16 %v125
      %v171 = vunpack.c.l.b16 %v126
      %v172 = vunpack.c.l.b16 %v127
      %v173 = vpack.c.b16 %v164, %v163
      %v174 = vpack.c.b16 %v166, %v165
      %v175 = vpack.c.b16 %v168, %v167
      %v176 = vpack.c.b16 %v170, %v169
      %v177 = vpack.c.b16 %v172, %v171
      %178 = vrot.lane.b32.xlu0 %v173, 64
      %v179 = vpop.permute.xlu0 %178
      %180 = vrot.lane.b32.xlu0 %v174, 64
      %v181 = vpop.permute.xlu0 %180
      %182 = vrot.lane.b32.xlu0 %v175, 64
      %v183 = vpop.permute.xlu0 %182
      %184 = vrot.lane.b32.xlu0 %v176, 64
      %v185 = vpop.permute.xlu0 %184
      %186 = vrot.lane.b32.xlu0 %v177, 64
      %v187 = vpop.permute.xlu0 %186
      %vm188 = vcmask 130048
      %v190 = vsel %vm188, %v148, 0
      %v193 = vsel %vm188, %v149, 0
      %v196 = vsel %vm188, %v150, 0
      %v199 = vsel %vm188, %v151, 0
      %v202 = vsel %vm188, %v152, 0
      %v205 = vsel %vm188, %v179, 0
      %v208 = vsel %vm188, %v181, 0
      %v211 = vsel %vm188, %v183, 0
      %v214 = vsel %vm188, %v185, 0
      %v217 = vsel %vm188, %v187, 0
      %219 = vmatprep.subr.bf16.mxu0 0
      %220 = vmatpush1.bf16.xpose.msra.mxu0 0
      %221 = vmatprep.subr.bf16.mxu0 0
      %222 = vmatpush1.bf16.xpose.msra.mxu0 0
      %223 = vmatprep.subr.bf16.mxu0 0
      %224 = vmatpush1.bf16.xpose.msra.mxu0 0
      %225 = vmatprep.subr.bf16.mxu0 0
      %226 = vmatpush1.bf16.xpose.msra.mxu0 %v217
      %227 = vmatprep.subr.bf16.mxu0 0
      %228 = vmatpush1.bf16.xpose.msra.mxu0 %v214
      %229 = vmatprep.subr.bf16.mxu0 0
      %230 = vmatpush1.bf16.xpose.msra.mxu0 %v211
      %231 = vmatprep.subr.bf16.mxu0 0
      %232 = vmatpush1.bf16.xpose.msra.mxu0 %v208
      %233 = vmatprep.subr.bf16.mxu0 0
      %234 = vmatpush1.bf16.xpose.msra.mxu0 %v205
      %235 = vmatprep.subr.bf16.mxu0 0
      %236 = vmatpush2.bf16.xpose.msra.mxu0 0
      %237 = vmatprep.subr.bf16.mxu0 0
      %238 = vmatpush2.bf16.xpose.msra.mxu0 0
      %239 = vmatprep.subr.bf16.mxu0 0
      %240 = vmatpush2.bf16.xpose.msra.mxu0 0
      %241 = vmatprep.subr.bf16.mxu0 0
      %242 = vmatpush2.bf16.xpose.msra.mxu0 0
      %243 = vmatprep.subr.bf16.mxu0 0
      %244 = vmatpush2.bf16.xpose.msra.mxu0 0
      %245 = vmatprep.subr.bf16.mxu0 0
      %246 = vmatpush2.bf16.xpose.msra.mxu0 0
      %247 = vmatprep.subr.bf16.mxu0 0
      %248 = vmatpush2.bf16.xpose.msra.mxu0 0
      %249 = vmatprep.subr.bf16.mxu0 0
      %250 = vmatpush2.bf16.xpose.msra.mxu0 0
      %251 = vmatprep.mubr.bf16.mxu0 0
      %252 = vmatmul.mubr.bf16.gmra.mxu0 %v190
      %v253 = vpop.f32.mrf.mxu0
      %v254 = vadd.f32 0.0, %v253
      %v255 = vpop.f32.mrf.mxu0
      %v256 = vpop.f32.mrf.mxu0
      %v257 = vadd.f32 0.0, %v256
      %v258 = vpop.f32.mrf.mxu0
      %259 = vmatprep.mubr.bf16.mxu0 0
      %260 = vmatmul.mubr.bf16.gmra.mxu0 %v193
      %v261 = vpop.f32.mrf.mxu0
      %v262 = vadd.f32 0.0, %v261
      %v263 = vpop.f32.mrf.mxu0
      %v264 = vpop.f32.mrf.mxu0
      %v265 = vadd.f32 0.0, %v264
      %v266 = vpop.f32.mrf.mxu0
      %267 = vmatprep.mubr.bf16.mxu0 0
      %268 = vmatmul.mubr.bf16.gmra.mxu0 %v196
      %v269 = vpop.f32.mrf.mxu0
      %v270 = vadd.f32 0.0, %v269
      %v271 = vpop.f32.mrf.mxu0
      %v272 = vpop.f32.mrf.mxu0
      %v273 = vadd.f32 0.0, %v272
      %v274 = vpop.f32.mrf.mxu0
      %275 = vmatprep.mubr.bf16.mxu0 0
      %276 = vmatmul.mubr.bf16.gmra.mxu0 %v199
      %v277 = vpop.f32.mrf.mxu0
      %v278 = vadd.f32 0.0, %v277
      %v279 = vpop.f32.mrf.mxu0
      %v280 = vpop.f32.mrf.mxu0
      %v281 = vadd.f32 0.0, %v280
      %v282 = vpop.f32.mrf.mxu0
      %283 = vmatprep.mubr.bf16.mxu0 0
      %284 = vmatmul.mubr.bf16.gmra.mxu0 %v202
      %v285 = vpop.f32.mrf.mxu0
      %v286 = vadd.f32 0.0, %v285
      %v287 = vpop.f32.mrf.mxu0
      %v288 = vpop.f32.mrf.mxu0
      %v289 = vadd.f32 0.0, %v288
      %v290 = vpop.f32.mrf.mxu0
      %291 = vdwg.mxu0
      %vm292 = vcmask 621568
      %v293 = vsel %vm292, %v254, -inf
      %294 = vmax.xlane.f32.xlu0 %v293
      %v295 = vpop.xlane.xlu0 %294
      %v296 = vsel %vm292, %v257, -inf
      %297 = vmax.xlane.f32.xlu0 %v296
      %v298 = vpop.xlane.xlu0 %297
      %v299 = vsel %vm292, %v262, -inf
      %300 = vmax.xlane.f32.xlu0 %v299
      %v301 = vpop.xlane.xlu0 %300
      %v302 = vsel %vm292, %v265, -inf
      %303 = vmax.xlane.f32.xlu0 %v302
      %v304 = vpop.xlane.xlu0 %303
      %v305 = vsel %vm292, %v270, -inf
      %306 = vmax.xlane.f32.xlu0 %v305
      %v307 = vpop.xlane.xlu0 %306
      %v308 = vsel %vm292, %v273, -inf
      %309 = vmax.xlane.f32.xlu0 %v308
      %v310 = vpop.xlane.xlu0 %309
      %v311 = vsel %vm292, %v278, -inf
      %312 = vmax.xlane.f32.xlu0 %v311
      %v313 = vpop.xlane.xlu0 %312
      %v314 = vsel %vm292, %v281, -inf
      %315 = vmax.xlane.f32.xlu0 %v314
      %v316 = vpop.xlane.xlu0 %315
      %v317 = vsel %vm292, %v286, -inf
      %318 = vmax.xlane.f32.xlu0 %v317
      %v319 = vpop.xlane.xlu0 %318
      %vm320 = vcmask 617472
      %v321 = vsel %vm320, %v289, -inf
      %322 = vmax.xlane.f32.xlu0 %v321
      %v323 = vpop.xlane.xlu0 %322
      %v324 = vsub.f32 %v254, %v295
      %v325 = vsub.f32 %v257, %v298
      %v326 = vsub.f32 %v262, %v301
      %v327 = vsub.f32 %v265, %v304
      %v328 = vsub.f32 %v270, %v307
      %v329 = vsub.f32 %v273, %v310
      %v330 = vsub.f32 %v278, %v313
      %v331 = vsub.f32 %v281, %v316
      %v332 = vsub.f32 %v286, %v319
      %v333 = vsub.f32 %v289, %v323
      %v334 = vmul.f32 %v324, 1.442695
      %v335 = vpow.pop %v334
      %v336 = vmul.f32 %v325, 1.442695
      %v337 = vpow.pop %v336
      %v338 = vmul.f32 %v326, 1.442695
      %v339 = vpow.pop %v338
      %v340 = vmul.f32 %v327, 1.442695
      %v341 = vpow.pop %v340
      %v342 = vmul.f32 %v328, 1.442695
      %v343 = vpow.pop %v342
      %v344 = vmul.f32 %v329, 1.442695
      %v345 = vpow.pop %v344
      %v346 = vmul.f32 %v330, 1.442695
      %v347 = vpow.pop %v346
      %v348 = vmul.f32 %v331, 1.442695
      %v349 = vpow.pop %v348
      %v350 = vmul.f32 %v332, 1.442695
      %v351 = vpow.pop %v350
      %v352 = vmul.f32 %v333, 1.442695
      %v353 = vpow.pop %v352
      %v354 = vsel %vm292, %v335, 0.0
      %355 = vadd.xlane.f32.xlu0 %v354
      %v356 = vpop.xlane.xlu0 %355
      %v357 = vsel %vm292, %v337, 0.0
      %358 = vadd.xlane.f32.xlu0 %v357
      %v359 = vpop.xlane.xlu0 %358
      %v360 = vsel %vm292, %v339, 0.0
      %361 = vadd.xlane.f32.xlu0 %v360
      %v362 = vpop.xlane.xlu0 %361
      %v363 = vsel %vm292, %v341, 0.0
      %364 = vadd.xlane.f32.xlu0 %v363
      %v365 = vpop.xlane.xlu0 %364
      %v366 = vsel %vm292, %v343, 0.0
      %367 = vadd.xlane.f32.xlu0 %v366
      %v368 = vpop.xlane.xlu0 %367
      %v369 = vsel %vm292, %v345, 0.0
      %370 = vadd.xlane.f32.xlu0 %v369
      %v371 = vpop.xlane.xlu0 %370
      %v372 = vsel %vm292, %v347, 0.0
      %373 = vadd.xlane.f32.xlu0 %v372
      %v374 = vpop.xlane.xlu0 %373
      %v375 = vsel %vm292, %v349, 0.0
      %376 = vadd.xlane.f32.xlu0 %v375
      %v377 = vpop.xlane.xlu0 %376
      %v378 = vsel %vm292, %v351, 0.0
      %379 = vadd.xlane.f32.xlu0 %v378
      %v380 = vpop.xlane.xlu0 %379
      %v381 = vsel %vm320, %v353, 0.0
      %382 = vadd.xlane.f32.xlu0 %v381
      %v383 = vpop.xlane.xlu0 %382
      %v384 = vrcp.pop %v356
      %v385 = vrcp.pop %v359
      %v386 = vrcp.pop %v362
      %v387 = vrcp.pop %v365
      %v388 = vrcp.pop %v368
      %v389 = vrcp.pop %v371
      %v390 = vrcp.pop %v374
      %v391 = vrcp.pop %v377
      %v392 = vrcp.pop %v380
      %v393 = vrcp.pop %v383
      %v394 = vmul.f32 %v335, %v384
      %v395 = vmul.f32 %v337, %v385
      %v396 = vmul.f32 %v339, %v386
      %v397 = vmul.f32 %v341, %v387
      %v398 = vmul.f32 %v343, %v388
      %v399 = vmul.f32 %v345, %v389
      %v400 = vmul.f32 %v347, %v390
      %v401 = vmul.f32 %v349, %v391
      %v402 = vmul.f32 %v351, %v392
      %v403 = vmul.f32 %v353, %v393
      %v404 = vpack.c.bf16 %v395, %v394
      %v405 = vpack.c.bf16 %v397, %v396
      %v406 = vpack.c.bf16 %v399, %v398
      %v407 = vpack.c.bf16 %v401, %v400
      %v408 = vpack.c.bf16 %v403, %v402
      %v409 = vunpack.c.h.b16 %v118
      %v410 = vunpack.c.h.b16 %v119
      %v411 = vunpack.c.h.b16 %v120
      %v412 = vunpack.c.h.b16 %v121
      %v413 = vunpack.c.h.b16 %v122
      %v414 = vunpack.c.h.b16 %v123
      %v415 = vunpack.c.h.b16 %v124
      %v416 = vunpack.c.h.b16 %v125
      %v417 = vunpack.c.h.b16 %v126
      %v418 = vunpack.c.h.b16 %v127
      %v419 = vpack.c.b16 %v410, %v409
      %v420 = vpack.c.b16 %v412, %v411
      %v421 = vpack.c.b16 %v414, %v413
      %v422 = vpack.c.b16 %v416, %v415
      %v423 = vpack.c.b16 %v418, %v417
      %v429 = vsel %vm292, %v404, 0
      %v432 = vsel %vm292, %v405, 0
      %v435 = vsel %vm292, %v406, 0
      %v438 = vsel %vm292, %v407, 0
      %v441 = vsel %vm292, %v408, 0
      %vm443 = vcmask 1045504
      %v445 = vsel %vm443, %v423, 0
      %447 = vmatprep.subr.bf16.mxu0 0
      %448 = vmatpush1.bf16.msra.mxu0 0
      %449 = vmatprep.subr.bf16.mxu0 0
      %450 = vmatpush1.bf16.msra.mxu0 0
      %451 = vmatprep.subr.bf16.mxu0 0
      %452 = vmatpush1.bf16.msra.mxu0 0
      %453 = vmatprep.subr.bf16.mxu0 0
      %454 = vmatpush1.bf16.msra.mxu0 %v445
      %455 = vmatprep.subr.bf16.mxu0 0
      %456 = vmatpush1.bf16.msra.mxu0 %v422
      %457 = vmatprep.subr.bf16.mxu0 0
      %458 = vmatpush1.bf16.msra.mxu0 %v421
      %459 = vmatprep.subr.bf16.mxu0 0
      %460 = vmatpush1.bf16.msra.mxu0 %v420
      %461 = vmatprep.subr.bf16.mxu0 0
      %462 = vmatpush1.bf16.msra.mxu0 %v419
      %463 = vmatprep.subr.bf16.mxu0 0
      %464 = vmatpush2.bf16.msra.mxu0 0
      %465 = vmatprep.subr.bf16.mxu0 0
      %466 = vmatpush2.bf16.msra.mxu0 0
      %467 = vmatprep.subr.bf16.mxu0 0
      %468 = vmatpush2.bf16.msra.mxu0 0
      %469 = vmatprep.subr.bf16.mxu0 0
      %470 = vmatpush2.bf16.msra.mxu0 0
      %471 = vmatprep.subr.bf16.mxu0 0
      %472 = vmatpush2.bf16.msra.mxu0 0
      %473 = vmatprep.subr.bf16.mxu0 0
      %474 = vmatpush2.bf16.msra.mxu0 0
      %475 = vmatprep.subr.bf16.mxu0 0
      %476 = vmatpush2.bf16.msra.mxu0 0
      %477 = vmatprep.subr.bf16.mxu0 0
      %478 = vmatpush2.bf16.msra.mxu0 0
      %479 = vmatprep.mubr.bf16.mxu0 0
      %480 = vmatmul.mubr.bf16.gmra.mxu0 %v429
      %v481 = vpop.f32.mrf.mxu0
      %v482 = vadd.f32 0.0, %v481
      %v483 = vpop.f32.mrf.mxu0
      %v484 = vpop.f32.mrf.mxu0
      %v485 = vadd.f32 0.0, %v484
      %v486 = vpop.f32.mrf.mxu0
      %487 = vmatprep.mubr.bf16.mxu0 0
      %488 = vmatmul.mubr.bf16.gmra.mxu0 %v432
      %v489 = vpop.f32.mrf.mxu0
      %v490 = vadd.f32 0.0, %v489
      %v491 = vpop.f32.mrf.mxu0
      %v492 = vpop.f32.mrf.mxu0
      %v493 = vadd.f32 0.0, %v492
      %v494 = vpop.f32.mrf.mxu0
      %495 = vmatprep.mubr.bf16.mxu0 0
      %496 = vmatmul.mubr.bf16.gmra.mxu0 %v435
      %v497 = vpop.f32.mrf.mxu0
      %v498 = vadd.f32 0.0, %v497
      %v499 = vpop.f32.mrf.mxu0
      %v500 = vpop.f32.mrf.mxu0
      %v501 = vadd.f32 0.0, %v500
      %v502 = vpop.f32.mrf.mxu0
      %503 = vmatprep.mubr.bf16.mxu0 0
      %504 = vmatmul.mubr.bf16.gmra.mxu0 %v438
      %v505 = vpop.f32.mrf.mxu0
      %v506 = vadd.f32 0.0, %v505
      %v507 = vpop.f32.mrf.mxu0
      %v508 = vpop.f32.mrf.mxu0
      %v509 = vadd.f32 0.0, %v508
      %v510 = vpop.f32.mrf.mxu0
      %511 = vmatprep.mubr.bf16.mxu0 0
      %512 = vmatmul.mubr.bf16.gmra.mxu0 %v441
      %v513 = vpop.f32.mrf.mxu0
      %v514 = vadd.f32 0.0, %v513
      %v515 = vpop.f32.mrf.mxu0
      %v516 = vpop.f32.mrf.mxu0
      %v517 = vadd.f32 0.0, %v516
      %v518 = vpop.f32.mrf.mxu0
      %519 = vdwg.mxu0
      %v520 = vpack.c.bf16 %v485, %v482
      %v521 = vpack.c.bf16 %v493, %v490
      %v522 = vpack.c.bf16 %v501, %v498
      %v523 = vpack.c.bf16 %v509, %v506
      %v524 = vpack.c.bf16 %v517, %v514
      %v530 = vunpack.c.l.b16 %v520
      %v531 = vunpack.c.h.b16 %v520
      %v532 = vunpack.c.l.b16 %v521
      %v533 = vunpack.c.h.b16 %v521
      %v534 = vunpack.c.l.b16 %v522
      %v535 = vunpack.c.h.b16 %v522
      %v536 = vunpack.c.l.b16 %v523
      %v537 = vunpack.c.h.b16 %v523
      %v538 = vunpack.c.l.b16 %v524
      %v539 = vunpack.c.h.b16 %v524
      %v540 = vpack.c.b16 %v530, %v530
      %v541 = vpack.c.b16 %v531, %v531
      %v542 = vpack.c.b16 %v532, %v532
      %v543 = vpack.c.b16 %v533, %v533
      %v544 = vpack.c.b16 %v534, %v534
      %v545 = vpack.c.b16 %v535, %v535
      %v546 = vpack.c.b16 %v536, %v536
      %v547 = vpack.c.b16 %v537, %v537
      %v548 = vpack.c.b16 %v538, %v538
      %v549 = vpack.c.b16 %v539, %v539
      %vm560 = vcmask 125952
      %561 = vst.msk [vmem:[%s116] sm:$0xf] %vm560, %v540
      %562 = vst.msk [vmem:[%s116 + $0x4] sm:$0xf] %vm560, %v541
      %563 = vst.msk [vmem:[%s116 + $0x8] sm:$0xf] %vm560, %v542
      %564 = vst.msk [vmem:[%s116 + $0xc] sm:$0xf] %vm560, %v543
      %565 = vst.msk [vmem:[%s116 + $0x10] sm:$0xf] %vm560, %v544
      %566 = vst.msk [vmem:[%s116 + $0x14] sm:$0xf] %vm560, %v545
      %567 = vst.msk [vmem:[%s116 + $0x18] sm:$0xf] %vm560, %v546
      %568 = vst.msk [vmem:[%s116 + $0x1c] sm:$0xf] %vm560, %v547
      %569 = vst.msk [vmem:[%s116 + $0x20] sm:$0xf] %vm560, %v548
      %vm570 = vcmask 123904
      %571 = vst.msk [vmem:[%s116 + $0x24] sm:$0x3] %vm570, %v549
      %577 = vrot.lane.b32.xlu0 %v148, 112
      %v578 = vpop.permute.xlu0 %577
      %579 = vrot.lane.b32.xlu0 %v149, 112
      %v580 = vpop.permute.xlu0 %579
      %581 = vrot.lane.b32.xlu0 %v150, 112
      %v582 = vpop.permute.xlu0 %581
      %583 = vrot.lane.b32.xlu0 %v151, 112
      %v584 = vpop.permute.xlu0 %583
      %585 = vrot.lane.b32.xlu0 %v152, 112
      %v586 = vpop.permute.xlu0 %585
      %587 = vrot.lane.b32.xlu0 %v173, 48
      %v588 = vpop.permute.xlu0 %587
      %589 = vrot.lane.b32.xlu0 %v174, 48
      %v590 = vpop.permute.xlu0 %589
      %591 = vrot.lane.b32.xlu0 %v175, 48
      %v592 = vpop.permute.xlu0 %591
      %593 = vrot.lane.b32.xlu0 %v176, 48
      %v594 = vpop.permute.xlu0 %593
      %595 = vrot.lane.b32.xlu0 %v177, 48
      %v596 = vpop.permute.xlu0 %595
      %v598 = vsel %vm188, %v578, 0
      %v601 = vsel %vm188, %v580, 0
      %v604 = vsel %vm188, %v582, 0
      %v607 = vsel %vm188, %v584, 0
      %v610 = vsel %vm188, %v586, 0
      %v613 = vsel %vm188, %v588, 0
      %v616 = vsel %vm188, %v590, 0
      %v619 = vsel %vm188, %v592, 0
      %v622 = vsel %vm188, %v594, 0
      %v625 = vsel %vm188, %v596, 0
      %627 = vmatprep.subr.bf16.mxu0 0
      %628 = vmatpush1.bf16.xpose.msra.mxu0 0
      %629 = vmatprep.subr.bf16.mxu0 0
      %630 = vmatpush1.bf16.xpose.msra.mxu0 0
      %631 = vmatprep.subr.bf16.mxu0 0
      %632 = vmatpush1.bf16.xpose.msra.mxu0 0
      %633 = vmatprep.subr.bf16.mxu0 0
      %634 = vmatpush1.bf16.xpose.msra.mxu0 %v625
      %635 = vmatprep.subr.bf16.mxu0 0
      %636 = vmatpush1.bf16.xpose.msra.mxu0 %v622
      %637 = vmatprep.subr.bf16.mxu0 0
      %638 = vmatpush1.bf16.xpose.msra.mxu0 %v619
      %639 = vmatprep.subr.bf16.mxu0 0
      %640 = vmatpush1.bf16.xpose.msra.mxu0 %v616
      %641 = vmatprep.subr.bf16.mxu0 0
      %642 = vmatpush1.bf16.xpose.msra.mxu0 %v613
      %643 = vmatprep.subr.bf16.mxu0 0
      %644 = vmatpush2.bf16.xpose.msra.mxu0 0
      %645 = vmatprep.subr.bf16.mxu0 0
      %646 = vmatpush2.bf16.xpose.msra.mxu0 0
      %647 = vmatprep.subr.bf16.mxu0 0
      %648 = vmatpush2.bf16.xpose.msra.mxu0 0
      %649 = vmatprep.subr.bf16.mxu0 0
      %650 = vmatpush2.bf16.xpose.msra.mxu0 0
      %651 = vmatprep.subr.bf16.mxu0 0
      %652 = vmatpush2.bf16.xpose.msra.mxu0 0
      %653 = vmatprep.subr.bf16.mxu0 0
      %654 = vmatpush2.bf16.xpose.msra.mxu0 0
      %655 = vmatprep.subr.bf16.mxu0 0
      %656 = vmatpush2.bf16.xpose.msra.mxu0 0
      %657 = vmatprep.subr.bf16.mxu0 0
      %658 = vmatpush2.bf16.xpose.msra.mxu0 0
      %659 = vmatprep.mubr.bf16.mxu0 0
      %660 = vmatmul.mubr.bf16.gmra.mxu0 %v598
      %v661 = vpop.f32.mrf.mxu0
      %v662 = vadd.f32 0.0, %v661
      %v663 = vpop.f32.mrf.mxu0
      %v664 = vpop.f32.mrf.mxu0
      %v665 = vadd.f32 0.0, %v664
      %v666 = vpop.f32.mrf.mxu0
      %667 = vmatprep.mubr.bf16.mxu0 0
      %668 = vmatmul.mubr.bf16.gmra.mxu0 %v601
      %v669 = vpop.f32.mrf.mxu0
      %v670 = vadd.f32 0.0, %v669
      %v671 = vpop.f32.mrf.mxu0
      %v672 = vpop.f32.mrf.mxu0
      %v673 = vadd.f32 0.0, %v672
      %v674 = vpop.f32.mrf.mxu0
      %675 = vmatprep.mubr.bf16.mxu0 0
      %676 = vmatmul.mubr.bf16.gmra.mxu0 %v604
      %v677 = vpop.f32.mrf.mxu0
      %v678 = vadd.f32 0.0, %v677
      %v679 = vpop.f32.mrf.mxu0
      %v680 = vpop.f32.mrf.mxu0
      %v681 = vadd.f32 0.0, %v680
      %v682 = vpop.f32.mrf.mxu0
      %683 = vmatprep.mubr.bf16.mxu0 0
      %684 = vmatmul.mubr.bf16.gmra.mxu0 %v607
      %v685 = vpop.f32.mrf.mxu0
      %v686 = vadd.f32 0.0, %v685
      %v687 = vpop.f32.mrf.mxu0
      %v688 = vpop.f32.mrf.mxu0
      %v689 = vadd.f32 0.0, %v688
      %v690 = vpop.f32.mrf.mxu0
      %691 = vmatprep.mubr.bf16.mxu0 0
      %692 = vmatmul.mubr.bf16.gmra.mxu0 %v610
      %v693 = vpop.f32.mrf.mxu0
      %v694 = vadd.f32 0.0, %v693
      %v695 = vpop.f32.mrf.mxu0
      %v696 = vpop.f32.mrf.mxu0
      %v697 = vadd.f32 0.0, %v696
      %v698 = vpop.f32.mrf.mxu0
      %699 = vdwg.mxu0
      %v700 = vsel %vm292, %v662, -inf
      %701 = vmax.xlane.f32.xlu0 %v700
      %v702 = vpop.xlane.xlu0 %701
      %v703 = vsel %vm292, %v665, -inf
      %704 = vmax.xlane.f32.xlu0 %v703
      %v705 = vpop.xlane.xlu0 %704
      %v706 = vsel %vm292, %v670, -inf
      %707 = vmax.xlane.f32.xlu0 %v706
      %v708 = vpop.xlane.xlu0 %707
      %v709 = vsel %vm292, %v673, -inf
      %710 = vmax.xlane.f32.xlu0 %v709
      %v711 = vpop.xlane.xlu0 %710
      %v712 = vsel %vm292, %v678, -inf
      %713 = vmax.xlane.f32.xlu0 %v712
      %v714 = vpop.xlane.xlu0 %713
      %v715 = vsel %vm292, %v681, -inf
      %716 = vmax.xlane.f32.xlu0 %v715
      %v717 = vpop.xlane.xlu0 %716
      %v718 = vsel %vm292, %v686, -inf
      %719 = vmax.xlane.f32.xlu0 %v718
      %v720 = vpop.xlane.xlu0 %719
      %v721 = vsel %vm292, %v689, -inf
      %722 = vmax.xlane.f32.xlu0 %v721
      %v723 = vpop.xlane.xlu0 %722
      %v724 = vsel %vm292, %v694, -inf
      %725 = vmax.xlane.f32.xlu0 %v724
      %v726 = vpop.xlane.xlu0 %725
      %v727 = vsel %vm320, %v697, -inf
      %728 = vmax.xlane.f32.xlu0 %v727
      %v729 = vpop.xlane.xlu0 %728
      %v730 = vsub.f32 %v662, %v702
      %v731 = vsub.f32 %v665, %v705
      %v732 = vsub.f32 %v670, %v708
      %v733 = vsub.f32 %v673, %v711
      %v734 = vsub.f32 %v678, %v714
      %v735 = vsub.f32 %v681, %v717
      %v736 = vsub.f32 %v686, %v720
      %v737 = vsub.f32 %v689, %v723
      %v738 = vsub.f32 %v694, %v726
      %v739 = vsub.f32 %v697, %v729
      %v740 = vmul.f32 %v730, 1.442695
      %v741 = vpow.pop %v740
      %v742 = vmul.f32 %v731, 1.442695
      %v743 = vpow.pop %v742
      %v744 = vmul.f32 %v732, 1.442695
      %v745 = vpow.pop %v744
      %v746 = vmul.f32 %v733, 1.442695
      %v747 = vpow.pop %v746
      %v748 = vmul.f32 %v734, 1.442695
      %v749 = vpow.pop %v748
      %v750 = vmul.f32 %v735, 1.442695
      %v751 = vpow.pop %v750
      %v752 = vmul.f32 %v736, 1.442695
      %v753 = vpow.pop %v752
      %v754 = vmul.f32 %v737, 1.442695
      %v755 = vpow.pop %v754
      %v756 = vmul.f32 %v738, 1.442695
      %v757 = vpow.pop %v756
      %v758 = vmul.f32 %v739, 1.442695
      %v759 = vpow.pop %v758
      %v760 = vsel %vm292, %v741, 0.0
      %761 = vadd.xlane.f32.xlu0 %v760
      %v762 = vpop.xlane.xlu0 %761
      %v763 = vsel %vm292, %v743, 0.0
      %764 = vadd.xlane.f32.xlu0 %v763
      %v765 = vpop.xlane.xlu0 %764
      %v766 = vsel %vm292, %v745, 0.0
      %767 = vadd.xlane.f32.xlu0 %v766
      %v768 = vpop.xlane.xlu0 %767
      %v769 = vsel %vm292, %v747, 0.0
      %770 = vadd.xlane.f32.xlu0 %v769
      %v771 = vpop.xlane.xlu0 %770
      %v772 = vsel %vm292, %v749, 0.0
      %773 = vadd.xlane.f32.xlu0 %v772
      %v774 = vpop.xlane.xlu0 %773
      %v775 = vsel %vm292, %v751, 0.0
      %776 = vadd.xlane.f32.xlu0 %v775
      %v777 = vpop.xlane.xlu0 %776
      %v778 = vsel %vm292, %v753, 0.0
      %779 = vadd.xlane.f32.xlu0 %v778
      %v780 = vpop.xlane.xlu0 %779
      %v781 = vsel %vm292, %v755, 0.0
      %782 = vadd.xlane.f32.xlu0 %v781
      %v783 = vpop.xlane.xlu0 %782
      %v784 = vsel %vm292, %v757, 0.0
      %785 = vadd.xlane.f32.xlu0 %v784
      %v786 = vpop.xlane.xlu0 %785
      %v787 = vsel %vm320, %v759, 0.0
      %788 = vadd.xlane.f32.xlu0 %v787
      %v789 = vpop.xlane.xlu0 %788
      %v790 = vrcp.pop %v762
      %v791 = vrcp.pop %v765
      %v792 = vrcp.pop %v768
      %v793 = vrcp.pop %v771
      %v794 = vrcp.pop %v774
      %v795 = vrcp.pop %v777
      %v796 = vrcp.pop %v780
      %v797 = vrcp.pop %v783
      %v798 = vrcp.pop %v786
      %v799 = vrcp.pop %v789
      %v800 = vmul.f32 %v741, %v790
      %v801 = vmul.f32 %v743, %v791
      %v802 = vmul.f32 %v745, %v792
      %v803 = vmul.f32 %v747, %v793
      %v804 = vmul.f32 %v749, %v794
      %v805 = vmul.f32 %v751, %v795
      %v806 = vmul.f32 %v753, %v796
      %v807 = vmul.f32 %v755, %v797
      %v808 = vmul.f32 %v757, %v798
      %v809 = vmul.f32 %v759, %v799
      %v810 = vpack.c.bf16 %v801, %v800
      %v811 = vpack.c.bf16 %v803, %v802
      %v812 = vpack.c.bf16 %v805, %v804
      %v813 = vpack.c.bf16 %v807, %v806
      %v814 = vpack.c.bf16 %v809, %v808
      %815 = vrot.lane.b32.xlu0 %v419, 112
      %v816 = vpop.permute.xlu0 %815
      %817 = vrot.lane.b32.xlu0 %v420, 112
      %v818 = vpop.permute.xlu0 %817
      %819 = vrot.lane.b32.xlu0 %v421, 112
      %v820 = vpop.permute.xlu0 %819
      %821 = vrot.lane.b32.xlu0 %v422, 112
      %v822 = vpop.permute.xlu0 %821
      %823 = vrot.lane.b32.xlu0 %v423, 112
      %v824 = vpop.permute.xlu0 %823
      %v830 = vsel %vm292, %v810, 0
      %v833 = vsel %vm292, %v811, 0
      %v836 = vsel %vm292, %v812, 0
      %v839 = vsel %vm292, %v813, 0
      %v842 = vsel %vm292, %v814, 0
      %v845 = vsel %vm443, %v824, 0
      %847 = vmatprep.subr.bf16.mxu0 0
      %848 = vmatpush1.bf16.msra.mxu0 0
      %849 = vmatprep.subr.bf16.mxu0 0
      %850 = vmatpush1.bf16.msra.mxu0 0
      %851 = vmatprep.subr.bf16.mxu0 0
      %852 = vmatpush1.bf16.msra.mxu0 0
      %853 = vmatprep.subr.bf16.mxu0 0
      %854 = vmatpush1.bf16.msra.mxu0 %v845
      %855 = vmatprep.subr.bf16.mxu0 0
      %856 = vmatpush1.bf16.msra.mxu0 %v822
      %857 = vmatprep.subr.bf16.mxu0 0
      %858 = vmatpush1.bf16.msra.mxu0 %v820
      %859 = vmatprep.subr.bf16.mxu0 0
      %860 = vmatpush1.bf16.msra.mxu0 %v818
      %861 = vmatprep.subr.bf16.mxu0 0
      %862 = vmatpush1.bf16.msra.mxu0 %v816
      %863 = vmatprep.subr.bf16.mxu0 0
      %864 = vmatpush2.bf16.msra.mxu0 0
      %865 = vmatprep.subr.bf16.mxu0 0
      %866 = vmatpush2.bf16.msra.mxu0 0
      %867 = vmatprep.subr.bf16.mxu0 0
      %868 = vmatpush2.bf16.msra.mxu0 0
      %869 = vmatprep.subr.bf16.mxu0 0
      %870 = vmatpush2.bf16.msra.mxu0 0
      %871 = vmatprep.subr.bf16.mxu0 0
      %872 = vmatpush2.bf16.msra.mxu0 0
      %873 = vmatprep.subr.bf16.mxu0 0
      %874 = vmatpush2.bf16.msra.mxu0 0
      %875 = vmatprep.subr.bf16.mxu0 0
      %876 = vmatpush2.bf16.msra.mxu0 0
      %877 = vmatprep.subr.bf16.mxu0 0
      %878 = vmatpush2.bf16.msra.mxu0 0
      %879 = vmatprep.mubr.bf16.mxu0 0
      %880 = vmatmul.mubr.bf16.gmra.mxu0 %v830
      %v881 = vpop.f32.mrf.mxu0
      %v882 = vadd.f32 0.0, %v881
      %v883 = vpop.f32.mrf.mxu0
      %v884 = vpop.f32.mrf.mxu0
      %v885 = vadd.f32 0.0, %v884
      %v886 = vpop.f32.mrf.mxu0
      %887 = vmatprep.mubr.bf16.mxu0 0
      %888 = vmatmul.mubr.bf16.gmra.mxu0 %v833
      %v889 = vpop.f32.mrf.mxu0
      %v890 = vadd.f32 0.0, %v889
      %v891 = vpop.f32.mrf.mxu0
      %v892 = vpop.f32.mrf.mxu0
      %v893 = vadd.f32 0.0, %v892
      %v894 = vpop.f32.mrf.mxu0
      %895 = vmatprep.mubr.bf16.mxu0 0
      %896 = vmatmul.mubr.bf16.gmra.mxu0 %v836
      %v897 = vpop.f32.mrf.mxu0
      %v898 = vadd.f32 0.0, %v897
      %v899 = vpop.f32.mrf.mxu0
      %v900 = vpop.f32.mrf.mxu0
      %v901 = vadd.f32 0.0, %v900
      %v902 = vpop.f32.mrf.mxu0
      %903 = vmatprep.mubr.bf16.mxu0 0
      %904 = vmatmul.mubr.bf16.gmra.mxu0 %v839
      %v905 = vpop.f32.mrf.mxu0
      %v906 = vadd.f32 0.0, %v905
      %v907 = vpop.f32.mrf.mxu0
      %v908 = vpop.f32.mrf.mxu0
      %v909 = vadd.f32 0.0, %v908
      %v910 = vpop.f32.mrf.mxu0
      %911 = vmatprep.mubr.bf16.mxu0 0
      %912 = vmatmul.mubr.bf16.gmra.mxu0 %v842
      %v913 = vpop.f32.mrf.mxu0
      %v914 = vadd.f32 0.0, %v913
      %v915 = vpop.f32.mrf.mxu0
      %v916 = vpop.f32.mrf.mxu0
      %v917 = vadd.f32 0.0, %v916
      %v918 = vpop.f32.mrf.mxu0
      %919 = vdwg.mxu0
      %v920 = vpack.c.bf16 %v885, %v882
      %v921 = vpack.c.bf16 %v893, %v890
      %v922 = vpack.c.bf16 %v901, %v898
      %v923 = vpack.c.bf16 %v909, %v906
      %v924 = vpack.c.bf16 %v917, %v914
      %v930 = vunpack.c.l.b16 %v920
      %v931 = vunpack.c.h.b16 %v920
      %v932 = vunpack.c.l.b16 %v921
      %v933 = vunpack.c.h.b16 %v921
      %v934 = vunpack.c.l.b16 %v922
      %v935 = vunpack.c.h.b16 %v922
      %v936 = vunpack.c.l.b16 %v923
      %v937 = vunpack.c.h.b16 %v923
      %v938 = vunpack.c.l.b16 %v924
      %v939 = vunpack.c.h.b16 %v924
      %v940 = vpack.c.b16 %v930, %v930
      %v941 = vpack.c.b16 %v931, %v931
      %v942 = vpack.c.b16 %v932, %v932
      %v943 = vpack.c.b16 %v933, %v933
      %v944 = vpack.c.b16 %v934, %v934
      %v945 = vpack.c.b16 %v935, %v935
      %v946 = vpack.c.b16 %v936, %v936
      %v947 = vpack.c.b16 %v937, %v937
      %v948 = vpack.c.b16 %v938, %v938
      %v949 = vpack.c.b16 %v939, %v939
      %950 = vrot.lane.b32.xlu0 %v940, 16
      %v951 = vpop.permute.xlu0 %950
      %952 = vrot.lane.b32.xlu0 %v941, 16
      %v953 = vpop.permute.xlu0 %952
      %954 = vrot.lane.b32.xlu0 %v942, 16
      %v955 = vpop.permute.xlu0 %954
      %956 = vrot.lane.b32.xlu0 %v943, 16
      %v957 = vpop.permute.xlu0 %956
      %958 = vrot.lane.b32.xlu0 %v944, 16
      %v959 = vpop.permute.xlu0 %958
      %960 = vrot.lane.b32.xlu0 %v945, 16
      %v961 = vpop.permute.xlu0 %960
      %962 = vrot.lane.b32.xlu0 %v946, 16
      %v963 = vpop.permute.xlu0 %962
      %964 = vrot.lane.b32.xlu0 %v947, 16
      %v965 = vpop.permute.xlu0 %964
      %966 = vrot.lane.b32.xlu0 %v948, 16
      %v967 = vpop.permute.xlu0 %966
      %968 = vrot.lane.b32.xlu0 %v949, 16
      %v969 = vpop.permute.xlu0 %968
      %vm980 = vcmask 257152
      %981 = vst.msk [vmem:[%s116] sm:$0xf] %vm980, %v951
      %982 = vst.msk [vmem:[%s116 + $0x4] sm:$0xf] %vm980, %v953
      %983 = vst.msk [vmem:[%s116 + $0x8] sm:$0xf] %vm980, %v955
      %984 = vst.msk [vmem:[%s116 + $0xc] sm:$0xf] %vm980, %v957
      %985 = vst.msk [vmem:[%s116 + $0x10] sm:$0xf] %vm980, %v959
      %986 = vst.msk [vmem:[%s116 + $0x14] sm:$0xf] %vm980, %v961
      %987 = vst.msk [vmem:[%s116 + $0x18] sm:$0xf] %vm980, %v963
      %988 = vst.msk [vmem:[%s116 + $0x1c] sm:$0xf] %vm980, %v965
      %989 = vst.msk [vmem:[%s116 + $0x20] sm:$0xf] %vm980, %v967
      %vm990 = vcmask 255104
      %991 = vst.msk [vmem:[%s116 + $0x24] sm:$0x3] %vm990, %v969
      %992 = vrot.lane.b32.xlu0 %v148, 96
      %v993 = vpop.permute.xlu0 %992
      %994 = vrot.lane.b32.xlu0 %v149, 96
      %v995 = vpop.permute.xlu0 %994
      %996 = vrot.lane.b32.xlu0 %v150, 96
      %v997 = vpop.permute.xlu0 %996
      %998 = vrot.lane.b32.xlu0 %v151, 96
      %v999 = vpop.permute.xlu0 %998
      %1000 = vrot.lane.b32.xlu0 %v152, 96
      %v1001 = vpop.permute.xlu0 %1000
      %1002 = vrot.lane.b32.xlu0 %v173, 32
      %v1003 = vpop.permute.xlu0 %1002
      %1004 = vrot.lane.b32.xlu0 %v174, 32
      %v1005 = vpop.permute.xlu0 %1004
      %1006 = vrot.lane.b32.xlu0 %v175, 32
      %v1007 = vpop.permute.xlu0 %1006
      %1008 = vrot.lane.b32.xlu0 %v176, 32
      %v1009 = vpop.permute.xlu0 %1008
      %1010 = vrot.lane.b32.xlu0 %v177, 32
      %v1011 = vpop.permute.xlu0 %1010
      %v1013 = vsel %vm188, %v993, 0
      %v1016 = vsel %vm188, %v995, 0
      %v1019 = vsel %vm188, %v997, 0
      %v1022 = vsel %vm188, %v999, 0
      %v1025 = vsel %vm188, %v1001, 0
      %v1028 = vsel %vm188, %v1003, 0
      %v1031 = vsel %vm188, %v1005, 0
      %v1034 = vsel %vm188, %v1007, 0
      %v1037 = vsel %vm188, %v1009, 0
      %v1040 = vsel %vm188, %v1011, 0
      %1042 = vmatprep.subr.bf16.mxu0 0
      %1043 = vmatpush1.bf16.xpose.msra.mxu0 0
      %1044 = vmatprep.subr.bf16.mxu0 0
      %1045 = vmatpush1.bf16.xpose.msra.mxu0 0
      %1046 = vmatprep.subr.bf16.mxu0 0
      %1047 = vmatpush1.bf16.xpose.msra.mxu0 0
      %1048 = vmatprep.subr.bf16.mxu0 0
      %1049 = vmatpush1.bf16.xpose.msra.mxu0 %v1040
      %1050 = vmatprep.subr.bf16.mxu0 0
      %1051 = vmatpush1.bf16.xpose.msra.mxu0 %v1037
      %1052 = vmatprep.subr.bf16.mxu0 0
      %1053 = vmatpush1.bf16.xpose.msra.mxu0 %v1034
      %1054 = vmatprep.subr.bf16.mxu0 0
      %1055 = vmatpush1.bf16.xpose.msra.mxu0 %v1031
      %1056 = vmatprep.subr.bf16.mxu0 0
      %1057 = vmatpush1.bf16.xpose.msra.mxu0 %v1028
      %1058 = vmatprep.subr.bf16.mxu0 0
      %1059 = vmatpush2.bf16.xpose.msra.mxu0 0
      %1060 = vmatprep.subr.bf16.mxu0 0
      %1061 = vmatpush2.bf16.xpose.msra.mxu0 0
      %1062 = vmatprep.subr.bf16.mxu0 0
      %1063 = vmatpush2.bf16.xpose.msra.mxu0 0
      %1064 = vmatprep.subr.bf16.mxu0 0
      %1065 = vmatpush2.bf16.xpose.msra.mxu0 0
      %1066 = vmatprep.subr.bf16.mxu0 0
      %1067 = vmatpush2.bf16.xpose.msra.mxu0 0
      %1068 = vmatprep.subr.bf16.mxu0 0
      %1069 = vmatpush2.bf16.xpose.msra.mxu0 0
      %1070 = vmatprep.subr.bf16.mxu0 0
      %1071 = vmatpush2.bf16.xpose.msra.mxu0 0
      %1072 = vmatprep.subr.bf16.mxu0 0
      %1073 = vmatpush2.bf16.xpose.msra.mxu0 0
      %1074 = vmatprep.mubr.bf16.mxu0 0
      %1075 = vmatmul.mubr.bf16.gmra.mxu0 %v1013
      %v1076 = vpop.f32.mrf.mxu0
      %v1077 = vadd.f32 0.0, %v1076
      %v1078 = vpop.f32.mrf.mxu0
      %v1079 = vpop.f32.mrf.mxu0
      %v1080 = vadd.f32 0.0, %v1079
      %v1081 = vpop.f32.mrf.mxu0
      %1082 = vmatprep.mubr.bf16.mxu0 0
      %1083 = vmatmul.mubr.bf16.gmra.mxu0 %v1016
      %v1084 = vpop.f32.mrf.mxu0
      %v1085 = vadd.f32 0.0, %v1084
      %v1086 = vpop.f32.mrf.mxu0
      %v1087 = vpop.f32.mrf.mxu0
      %v1088 = vadd.f32 0.0, %v1087
      %v1089 = vpop.f32.mrf.mxu0
      %1090 = vmatprep.mubr.bf16.mxu0 0
      %1091 = vmatmul.mubr.bf16.gmra.mxu0 %v1019
      %v1092 = vpop.f32.mrf.mxu0
      %v1093 = vadd.f32 0.0, %v1092
      %v1094 = vpop.f32.mrf.mxu0
      %v1095 = vpop.f32.mrf.mxu0
      %v1096 = vadd.f32 0.0, %v1095
      %v1097 = vpop.f32.mrf.mxu0
      %1098 = vmatprep.mubr.bf16.mxu0 0
      %1099 = vmatmul.mubr.bf16.gmra.mxu0 %v1022
      %v1100 = vpop.f32.mrf.mxu0
      %v1101 = vadd.f32 0.0, %v1100
      %v1102 = vpop.f32.mrf.mxu0
      %v1103 = vpop.f32.mrf.mxu0
      %v1104 = vadd.f32 0.0, %v1103
      %v1105 = vpop.f32.mrf.mxu0
      %1106 = vmatprep.mubr.bf16.mxu0 0
      %1107 = vmatmul.mubr.bf16.gmra.mxu0 %v1025
      %v1108 = vpop.f32.mrf.mxu0
      %v1109 = vadd.f32 0.0, %v1108
      %v1110 = vpop.f32.mrf.mxu0
      %v1111 = vpop.f32.mrf.mxu0
      %v1112 = vadd.f32 0.0, %v1111
      %v1113 = vpop.f32.mrf.mxu0
      %1114 = vdwg.mxu0
      %v1115 = vsel %vm292, %v1077, -inf
      %1116 = vmax.xlane.f32.xlu0 %v1115
      %v1117 = vpop.xlane.xlu0 %1116
      %v1118 = vsel %vm292, %v1080, -inf
      %1119 = vmax.xlane.f32.xlu0 %v1118
      %v1120 = vpop.xlane.xlu0 %1119
      %v1121 = vsel %vm292, %v1085, -inf
      %1122 = vmax.xlane.f32.xlu0 %v1121
      %v1123 = vpop.xlane.xlu0 %1122
      %v1124 = vsel %vm292, %v1088, -inf
      %1125 = vmax.xlane.f32.xlu0 %v1124
      %v1126 = vpop.xlane.xlu0 %1125
      %v1127 = vsel %vm292, %v1093, -inf
      %1128 = vmax.xlane.f32.xlu0 %v1127
      %v1129 = vpop.xlane.xlu0 %1128
      %v1130 = vsel %vm292, %v1096, -inf
      %1131 = vmax.xlane.f32.xlu0 %v1130
      %v1132 = vpop.xlane.xlu0 %1131
      %v1133 = vsel %vm292, %v1101, -inf
      %1134 = vmax.xlane.f32.xlu0 %v1133
      %v1135 = vpop.xlane.xlu0 %1134
      %v1136 = vsel %vm292, %v1104, -inf
      %1137 = vmax.xlane.f32.xlu0 %v1136
      %v1138 = vpop.xlane.xlu0 %1137
      %v1139 = vsel %vm292, %v1109, -inf
      %1140 = vmax.xlane.f32.xlu0 %v1139
      %v1141 = vpop.xlane.xlu0 %1140
      %v1142 = vsel %vm320, %v1112, -inf
      %1143 = vmax.xlane.f32.xlu0 %v1142
      %v1144 = vpop.xlane.xlu0 %1143
      %v1145 = vsub.f32 %v1077, %v1117
      %v1146 = vsub.f32 %v1080, %v1120
      %v1147 = vsub.f32 %v1085, %v1123
      %v1148 = vsub.f32 %v1088, %v1126
      %v1149 = vsub.f32 %v1093, %v1129
      %v1150 = vsub.f32 %v1096, %v1132
      %v1151 = vsub.f32 %v1101, %v1135
      %v1152 = vsub.f32 %v1104, %v1138
      %v1153 = vsub.f32 %v1109, %v1141
      %v1154 = vsub.f32 %v1112, %v1144
      %v1155 = vmul.f32 %v1145, 1.442695
      %v1156 = vpow.pop %v1155
      %v1157 = vmul.f32 %v1146, 1.442695
      %v1158 = vpow.pop %v1157
      %v1159 = vmul.f32 %v1147, 1.442695
      %v1160 = vpow.pop %v1159
      %v1161 = vmul.f32 %v1148, 1.442695
      %v1162 = vpow.pop %v1161
      %v1163 = vmul.f32 %v1149, 1.442695
      %v1164 = vpow.pop %v1163
      %v1165 = vmul.f32 %v1150, 1.442695
      %v1166 = vpow.pop %v1165
      %v1167 = vmul.f32 %v1151, 1.442695
      %v1168 = vpow.pop %v1167
      %v1169 = vmul.f32 %v1152, 1.442695
      %v1170 = vpow.pop %v1169
      %v1171 = vmul.f32 %v1153, 1.442695
      %v1172 = vpow.pop %v1171
      %v1173 = vmul.f32 %v1154, 1.442695
      %v1174 = vpow.pop %v1173
      %v1175 = vsel %vm292, %v1156, 0.0
      %1176 = vadd.xlane.f32.xlu0 %v1175
      %v1177 = vpop.xlane.xlu0 %1176
      %v1178 = vsel %vm292, %v1158, 0.0
      %1179 = vadd.xlane.f32.xlu0 %v1178
      %v1180 = vpop.xlane.xlu0 %1179
      %v1181 = vsel %vm292, %v1160, 0.0
      %1182 = vadd.xlane.f32.xlu0 %v1181
      %v1183 = vpop.xlane.xlu0 %1182
      %v1184 = vsel %vm292, %v1162, 0.0
      %1185 = vadd.xlane.f32.xlu0 %v1184
      %v1186 = vpop.xlane.xlu0 %1185
      %v1187 = vsel %vm292, %v1164, 0.0
      %1188 = vadd.xlane.f32.xlu0 %v1187
      %v1189 = vpop.xlane.xlu0 %1188
      %v1190 = vsel %vm292, %v1166, 0.0
      %1191 = vadd.xlane.f32.xlu0 %v1190
      %v1192 = vpop.xlane.xlu0 %1191
      %v1193 = vsel %vm292, %v1168, 0.0
      %1194 = vadd.xlane.f32.xlu0 %v1193
      %v1195 = vpop.xlane.xlu0 %1194
      %v1196 = vsel %vm292, %v1170, 0.0
      %1197 = vadd.xlane.f32.xlu0 %v1196
      %v1198 = vpop.xlane.xlu0 %1197
      %v1199 = vsel %vm292, %v1172, 0.0
      %1200 = vadd.xlane.f32.xlu0 %v1199
      %v1201 = vpop.xlane.xlu0 %1200
      %v1202 = vsel %vm320, %v1174, 0.0
      %1203 = vadd.xlane.f32.xlu0 %v1202
      %v1204 = vpop.xlane.xlu0 %1203
      %v1205 = vrcp.pop %v1177
      %v1206 = vrcp.pop %v1180
      %v1207 = vrcp.pop %v1183
      %v1208 = vrcp.pop %v1186
      %v1209 = vrcp.pop %v1189
      %v1210 = vrcp.pop %v1192
      %v1211 = vrcp.pop %v1195
      %v1212 = vrcp.pop %v1198
      %v1213 = vrcp.pop %v1201
      %v1214 = vrcp.pop %v1204
      %v1215 = vmul.f32 %v1156, %v1205
      %v1216 = vmul.f32 %v1158, %v1206
      %v1217 = vmul.f32 %v1160, %v1207
      %v1218 = vmul.f32 %v1162, %v1208
      %v1219 = vmul.f32 %v1164, %v1209
      %v1220 = vmul.f32 %v1166, %v1210
      %v1221 = vmul.f32 %v1168, %v1211
      %v1222 = vmul.f32 %v1170, %v1212
      %v1223 = vmul.f32 %v1172, %v1213
      %v1224 = vmul.f32 %v1174, %v1214
      %v1225 = vpack.c.bf16 %v1216, %v1215
      %v1226 = vpack.c.bf16 %v1218, %v1217
      %v1227 = vpack.c.bf16 %v1220, %v1219
      %v1228 = vpack.c.bf16 %v1222, %v1221
      %v1229 = vpack.c.bf16 %v1224, %v1223
      %1230 = vrot.lane.b32.xlu0 %v419, 96
      %v1231 = vpop.permute.xlu0 %1230
      %1232 = vrot.lane.b32.xlu0 %v420, 96
      %v1233 = vpop.permute.xlu0 %1232
      %1234 = vrot.lane.b32.xlu0 %v421, 96
      %v1235 = vpop.permute.xlu0 %1234
      %1236 = vrot.lane.b32.xlu0 %v422, 96
      %v1237 = vpop.permute.xlu0 %1236
      %1238 = vrot.lane.b32.xlu0 %v423, 96
      %v1239 = vpop.permute.xlu0 %1238
      %v1245 = vsel %vm292, %v1225, 0
      %v1248 = vsel %vm292, %v1226, 0
      %v1251 = vsel %vm292, %v1227, 0
      %v1254 = vsel %vm292, %v1228, 0
      %v1257 = vsel %vm292, %v1229, 0
      %v1260 = vsel %vm443, %v1239, 0
      %1262 = vmatprep.subr.bf16.mxu0 0
      %1263 = vmatpush1.bf16.msra.mxu0 0
      %1264 = vmatprep.subr.bf16.mxu0 0
      %1265 = vmatpush1.bf16.msra.mxu0 0
      %1266 = vmatprep.subr.bf16.mxu0 0
      %1267 = vmatpush1.bf16.msra.mxu0 0
      %1268 = vmatprep.subr.bf16.mxu0 0
      %1269 = vmatpush1.bf16.msra.mxu0 %v1260
      %1270 = vmatprep.subr.bf16.mxu0 0
      %1271 = vmatpush1.bf16.msra.mxu0 %v1237
      %1272 = vmatprep.subr.bf16.mxu0 0
      %1273 = vmatpush1.bf16.msra.mxu0 %v1235
      %1274 = vmatprep.subr.bf16.mxu0 0
      %1275 = vmatpush1.bf16.msra.mxu0 %v1233
      %1276 = vmatprep.subr.bf16.mxu0 0
      %1277 = vmatpush1.bf16.msra.mxu0 %v1231
      %1278 = vmatprep.subr.bf16.mxu0 0
      %1279 = vmatpush2.bf16.msra.mxu0 0
      %1280 = vmatprep.subr.bf16.mxu0 0
      %1281 = vmatpush2.bf16.msra.mxu0 0
      %1282 = vmatprep.subr.bf16.mxu0 0
      %1283 = vmatpush2.bf16.msra.mxu0 0
      %1284 = vmatprep.subr.bf16.mxu0 0
      %1285 = vmatpush2.bf16.msra.mxu0 0
      %1286 = vmatprep.subr.bf16.mxu0 0
      %1287 = vmatpush2.bf16.msra.mxu0 0
      %1288 = vmatprep.subr.bf16.mxu0 0
      %1289 = vmatpush2.bf16.msra.mxu0 0
      %1290 = vmatprep.subr.bf16.mxu0 0
      %1291 = vmatpush2.bf16.msra.mxu0 0
      %1292 = vmatprep.subr.bf16.mxu0 0
      %1293 = vmatpush2.bf16.msra.mxu0 0
      %1294 = vmatprep.mubr.bf16.mxu0 0
      %1295 = vmatmul.mubr.bf16.gmra.mxu0 %v1245
      %v1296 = vpop.f32.mrf.mxu0
      %v1297 = vadd.f32 0.0, %v1296
      %v1298 = vpop.f32.mrf.mxu0
      %v1299 = vpop.f32.mrf.mxu0
      %v1300 = vadd.f32 0.0, %v1299
      %v1301 = vpop.f32.mrf.mxu0
      %1302 = vmatprep.mubr.bf16.mxu0 0
      %1303 = vmatmul.mubr.bf16.gmra.mxu0 %v1248
      %v1304 = vpop.f32.mrf.mxu0
      %v1305 = vadd.f32 0.0, %v1304
      %v1306 = vpop.f32.mrf.mxu0
      %v1307 = vpop.f32.mrf.mxu0
      %v1308 = vadd.f32 0.0, %v1307
      %v1309 = vpop.f32.mrf.mxu0
      %1310 = vmatprep.mubr.bf16.mxu0 0
      %1311 = vmatmul.mubr.bf16.gmra.mxu0 %v1251
      %v1312 = vpop.f32.mrf.mxu0
      %v1313 = vadd.f32 0.0, %v1312
      %v1314 = vpop.f32.mrf.mxu0
      %v1315 = vpop.f32.mrf.mxu0
      %v1316 = vadd.f32 0.0, %v1315
      %v1317 = vpop.f32.mrf.mxu0
      %1318 = vmatprep.mubr.bf16.mxu0 0
      %1319 = vmatmul.mubr.bf16.gmra.mxu0 %v1254
      %v1320 = vpop.f32.mrf.mxu0
      %v1321 = vadd.f32 0.0, %v1320
      %v1322 = vpop.f32.mrf.mxu0
      %v1323 = vpop.f32.mrf.mxu0
      %v1324 = vadd.f32 0.0, %v1323
      %v1325 = vpop.f32.mrf.mxu0
      %1326 = vmatprep.mubr.bf16.mxu0 0
      %1327 = vmatmul.mubr.bf16.gmra.mxu0 %v1257
      %v1328 = vpop.f32.mrf.mxu0
      %v1329 = vadd.f32 0.0, %v1328
      %v1330 = vpop.f32.mrf.mxu0
      %v1331 = vpop.f32.mrf.mxu0
      %v1332 = vadd.f32 0.0, %v1331
      %v1333 = vpop.f32.mrf.mxu0
      %1334 = vdwg.mxu0
      %v1335 = vpack.c.bf16 %v1300, %v1297
      %v1336 = vpack.c.bf16 %v1308, %v1305
      %v1337 = vpack.c.bf16 %v1316, %v1313
      %v1338 = vpack.c.bf16 %v1324, %v1321
      %v1339 = vpack.c.bf16 %v1332, %v1329
      %v1345 = vunpack.c.l.b16 %v1335
      %v1346 = vunpack.c.h.b16 %v1335
      %v1347 = vunpack.c.l.b16 %v1336
      %v1348 = vunpack.c.h.b16 %v1336
      %v1349 = vunpack.c.l.b16 %v1337
      %v1350 = vunpack.c.h.b16 %v1337
      %v1351 = vunpack.c.l.b16 %v1338
      %v1352 = vunpack.c.h.b16 %v1338
      %v1353 = vunpack.c.l.b16 %v1339
      %v1354 = vunpack.c.h.b16 %v1339
      %v1355 = vpack.c.b16 %v1345, %v1345
      %v1356 = vpack.c.b16 %v1346, %v1346
      %v1357 = vpack.c.b16 %v1347, %v1347
      %v1358 = vpack.c.b16 %v1348, %v1348
      %v1359 = vpack.c.b16 %v1349, %v1349
      %v1360 = vpack.c.b16 %v1350, %v1350
      %v1361 = vpack.c.b16 %v1351, %v1351
      %v1362 = vpack.c.b16 %v1352, %v1352
      %v1363 = vpack.c.b16 %v1353, %v1353
      %v1364 = vpack.c.b16 %v1354, %v1354
      %1365 = vrot.lane.b32.xlu0 %v1355, 32
      %v1366 = vpop.permute.xlu0 %1365
      %1367 = vrot.lane.b32.xlu0 %v1356, 32
      %v1368 = vpop.permute.xlu0 %1367
      %1369 = vrot.lane.b32.xlu0 %v1357, 32
      %v1370 = vpop.permute.xlu0 %1369
      %1371 = vrot.lane.b32.xlu0 %v1358, 32
      %v1372 = vpop.permute.xlu0 %1371
      %1373 = vrot.lane.b32.xlu0 %v1359, 32
      %v1374 = vpop.permute.xlu0 %1373
      %1375 = vrot.lane.b32.xlu0 %v1360, 32
      %v1376 = vpop.permute.xlu0 %1375
      %1377 = vrot.lane.b32.xlu0 %v1361, 32
      %v1378 = vpop.permute.xlu0 %1377
      %1379 = vrot.lane.b32.xlu0 %v1362, 32
      %v1380 = vpop.permute.xlu0 %1379
      %1381 = vrot.lane.b32.xlu0 %v1363, 32
      %v1382 = vpop.permute.xlu0 %1381
      %1383 = vrot.lane.b32.xlu0 %v1364, 32
      %v1384 = vpop.permute.xlu0 %1383
      %vm1395 = vcmask 388352
      %1396 = vst.msk [vmem:[%s116] sm:$0xf] %vm1395, %v1366
      %1397 = vst.msk [vmem:[%s116 + $0x4] sm:$0xf] %vm1395, %v1368
      %1398 = vst.msk [vmem:[%s116 + $0x8] sm:$0xf] %vm1395, %v1370
      %1399 = vst.msk [vmem:[%s116 + $0xc] sm:$0xf] %vm1395, %v1372
      %1400 = vst.msk [vmem:[%s116 + $0x10] sm:$0xf] %vm1395, %v1374
      %1401 = vst.msk [vmem:[%s116 + $0x14] sm:$0xf] %vm1395, %v1376
      %1402 = vst.msk [vmem:[%s116 + $0x18] sm:$0xf] %vm1395, %v1378
      %1403 = vst.msk [vmem:[%s116 + $0x1c] sm:$0xf] %vm1395, %v1380
      %1404 = vst.msk [vmem:[%s116 + $0x20] sm:$0xf] %vm1395, %v1382
      %vm1405 = vcmask 386304
      %1406 = vst.msk [vmem:[%s116 + $0x24] sm:$0x3] %vm1405, %v1384
      %1407 = vrot.lane.b32.xlu0 %v148, 80
      %v1408 = vpop.permute.xlu0 %1407
      %1409 = vrot.lane.b32.xlu0 %v149, 80
      %v1410 = vpop.permute.xlu0 %1409
      %1411 = vrot.lane.b32.xlu0 %v150, 80
      %v1412 = vpop.permute.xlu0 %1411
      %1413 = vrot.lane.b32.xlu0 %v151, 80
      %v1414 = vpop.permute.xlu0 %1413
      %1415 = vrot.lane.b32.xlu0 %v152, 80
      %v1416 = vpop.permute.xlu0 %1415
      %1417 = vrot.lane.b32.xlu0 %v173, 16
      %v1418 = vpop.permute.xlu0 %1417
      %1419 = vrot.lane.b32.xlu0 %v174, 16
      %v1420 = vpop.permute.xlu0 %1419
      %1421 = vrot.lane.b32.xlu0 %v175, 16
      %v1422 = vpop.permute.xlu0 %1421
      %1423 = vrot.lane.b32.xlu0 %v176, 16
      %v1424 = vpop.permute.xlu0 %1423
      %1425 = vrot.lane.b32.xlu0 %v177, 16
      %v1426 = vpop.permute.xlu0 %1425
      %v1428 = vsel %vm188, %v1408, 0
      %v1431 = vsel %vm188, %v1410, 0
      %v1434 = vsel %vm188, %v1412, 0
      %v1437 = vsel %vm188, %v1414, 0
      %v1440 = vsel %vm188, %v1416, 0
      %v1443 = vsel %vm188, %v1418, 0
      %v1446 = vsel %vm188, %v1420, 0
      %v1449 = vsel %vm188, %v1422, 0
      %v1452 = vsel %vm188, %v1424, 0
      %v1455 = vsel %vm188, %v1426, 0
      %1457 = vmatprep.subr.bf16.mxu0 0
      %1458 = vmatpush1.bf16.xpose.msra.mxu0 0
      %1459 = vmatprep.subr.bf16.mxu0 0
      %1460 = vmatpush1.bf16.xpose.msra.mxu0 0
      %1461 = vmatprep.subr.bf16.mxu0 0
      %1462 = vmatpush1.bf16.xpose.msra.mxu0 0
      %1463 = vmatprep.subr.bf16.mxu0 0
      %1464 = vmatpush1.bf16.xpose.msra.mxu0 %v1455
      %1465 = vmatprep.subr.bf16.mxu0 0
      %1466 = vmatpush1.bf16.xpose.msra.mxu0 %v1452
      %1467 = vmatprep.subr.bf16.mxu0 0
      %1468 = vmatpush1.bf16.xpose.msra.mxu0 %v1449
      %1469 = vmatprep.subr.bf16.mxu0 0
      %1470 = vmatpush1.bf16.xpose.msra.mxu0 %v1446
      %1471 = vmatprep.subr.bf16.mxu0 0
      %1472 = vmatpush1.bf16.xpose.msra.mxu0 %v1443
      %1473 = vmatprep.subr.bf16.mxu0 0
      %1474 = vmatpush2.bf16.xpose.msra.mxu0 0
      %1475 = vmatprep.subr.bf16.mxu0 0
      %1476 = vmatpush2.bf16.xpose.msra.mxu0 0
      %1477 = vmatprep.subr.bf16.mxu0 0
      %1478 = vmatpush2.bf16.xpose.msra.mxu0 0
      %1479 = vmatprep.subr.bf16.mxu0 0
      %1480 = vmatpush2.bf16.xpose.msra.mxu0 0
      %1481 = vmatprep.subr.bf16.mxu0 0
      %1482 = vmatpush2.bf16.xpose.msra.mxu0 0
      %1483 = vmatprep.subr.bf16.mxu0 0
      %1484 = vmatpush2.bf16.xpose.msra.mxu0 0
      %1485 = vmatprep.subr.bf16.mxu0 0
      %1486 = vmatpush2.bf16.xpose.msra.mxu0 0
      %1487 = vmatprep.subr.bf16.mxu0 0
      %1488 = vmatpush2.bf16.xpose.msra.mxu0 0
      %1489 = vmatprep.mubr.bf16.mxu0 0
      %1490 = vmatmul.mubr.bf16.gmra.mxu0 %v1428
      %v1491 = vpop.f32.mrf.mxu0
      %v1492 = vadd.f32 0.0, %v1491
      %v1493 = vpop.f32.mrf.mxu0
      %v1494 = vpop.f32.mrf.mxu0
      %v1495 = vadd.f32 0.0, %v1494
      %v1496 = vpop.f32.mrf.mxu0
      %1497 = vmatprep.mubr.bf16.mxu0 0
      %1498 = vmatmul.mubr.bf16.gmra.mxu0 %v1431
      %v1499 = vpop.f32.mrf.mxu0
      %v1500 = vadd.f32 0.0, %v1499
      %v1501 = vpop.f32.mrf.mxu0
      %v1502 = vpop.f32.mrf.mxu0
      %v1503 = vadd.f32 0.0, %v1502
      %v1504 = vpop.f32.mrf.mxu0
      %1505 = vmatprep.mubr.bf16.mxu0 0
      %1506 = vmatmul.mubr.bf16.gmra.mxu0 %v1434
      %v1507 = vpop.f32.mrf.mxu0
      %v1508 = vadd.f32 0.0, %v1507
      %v1509 = vpop.f32.mrf.mxu0
      %v1510 = vpop.f32.mrf.mxu0
      %v1511 = vadd.f32 0.0, %v1510
      %v1512 = vpop.f32.mrf.mxu0
      %1513 = vmatprep.mubr.bf16.mxu0 0
      %1514 = vmatmul.mubr.bf16.gmra.mxu0 %v1437
      %v1515 = vpop.f32.mrf.mxu0
      %v1516 = vadd.f32 0.0, %v1515
      %v1517 = vpop.f32.mrf.mxu0
      %v1518 = vpop.f32.mrf.mxu0
      %v1519 = vadd.f32 0.0, %v1518
      %v1520 = vpop.f32.mrf.mxu0
      %1521 = vmatprep.mubr.bf16.mxu0 0
      %1522 = vmatmul.mubr.bf16.gmra.mxu0 %v1440
      %v1523 = vpop.f32.mrf.mxu0
      %v1524 = vadd.f32 0.0, %v1523
      %v1525 = vpop.f32.mrf.mxu0
      %v1526 = vpop.f32.mrf.mxu0
      %v1527 = vadd.f32 0.0, %v1526
      %v1528 = vpop.f32.mrf.mxu0
      %1529 = vdwg.mxu0
      %v1530 = vsel %vm292, %v1492, -inf
      %1531 = vmax.xlane.f32.xlu0 %v1530
      %v1532 = vpop.xlane.xlu0 %1531
      %v1533 = vsel %vm292, %v1495, -inf
      %1534 = vmax.xlane.f32.xlu0 %v1533
      %v1535 = vpop.xlane.xlu0 %1534
      %v1536 = vsel %vm292, %v1500, -inf
      %1537 = vmax.xlane.f32.xlu0 %v1536
      %v1538 = vpop.xlane.xlu0 %1537
      %v1539 = vsel %vm292, %v1503, -inf
      %1540 = vmax.xlane.f32.xlu0 %v1539
      %v1541 = vpop.xlane.xlu0 %1540
      %v1542 = vsel %vm292, %v1508, -inf
      %1543 = vmax.xlane.f32.xlu0 %v1542
      %v1544 = vpop.xlane.xlu0 %1543
      %v1545 = vsel %vm292, %v1511, -inf
      %1546 = vmax.xlane.f32.xlu0 %v1545
      %v1547 = vpop.xlane.xlu0 %1546
      %v1548 = vsel %vm292, %v1516, -inf
      %1549 = vmax.xlane.f32.xlu0 %v1548
      %v1550 = vpop.xlane.xlu0 %1549
      %v1551 = vsel %vm292, %v1519, -inf
      %1552 = vmax.xlane.f32.xlu0 %v1551
      %v1553 = vpop.xlane.xlu0 %1552
      %v1554 = vsel %vm292, %v1524, -inf
      %1555 = vmax.xlane.f32.xlu0 %v1554
      %v1556 = vpop.xlane.xlu0 %1555
      %v1557 = vsel %vm320, %v1527, -inf
      %1558 = vmax.xlane.f32.xlu0 %v1557
      %v1559 = vpop.xlane.xlu0 %1558
      %v1560 = vsub.f32 %v1492, %v1532
      %v1561 = vsub.f32 %v1495, %v1535
      %v1562 = vsub.f32 %v1500, %v1538
      %v1563 = vsub.f32 %v1503, %v1541
      %v1564 = vsub.f32 %v1508, %v1544
      %v1565 = vsub.f32 %v1511, %v1547
      %v1566 = vsub.f32 %v1516, %v1550
      %v1567 = vsub.f32 %v1519, %v1553
      %v1568 = vsub.f32 %v1524, %v1556
      %v1569 = vsub.f32 %v1527, %v1559
      %v1570 = vmul.f32 %v1560, 1.442695
      %v1571 = vpow.pop %v1570
      %v1572 = vmul.f32 %v1561, 1.442695
      %v1573 = vpow.pop %v1572
      %v1574 = vmul.f32 %v1562, 1.442695
      %v1575 = vpow.pop %v1574
      %v1576 = vmul.f32 %v1563, 1.442695
      %v1577 = vpow.pop %v1576
      %v1578 = vmul.f32 %v1564, 1.442695
      %v1579 = vpow.pop %v1578
      %v1580 = vmul.f32 %v1565, 1.442695
      %v1581 = vpow.pop %v1580
      %v1582 = vmul.f32 %v1566, 1.442695
      %v1583 = vpow.pop %v1582
      %v1584 = vmul.f32 %v1567, 1.442695
      %v1585 = vpow.pop %v1584
      %v1586 = vmul.f32 %v1568, 1.442695
      %v1587 = vpow.pop %v1586
      %v1588 = vmul.f32 %v1569, 1.442695
      %v1589 = vpow.pop %v1588
      %v1590 = vsel %vm292, %v1571, 0.0
      %1591 = vadd.xlane.f32.xlu0 %v1590
      %v1592 = vpop.xlane.xlu0 %1591
      %v1593 = vsel %vm292, %v1573, 0.0
      %1594 = vadd.xlane.f32.xlu0 %v1593
      %v1595 = vpop.xlane.xlu0 %1594
      %v1596 = vsel %vm292, %v1575, 0.0
      %1597 = vadd.xlane.f32.xlu0 %v1596
      %v1598 = vpop.xlane.xlu0 %1597
      %v1599 = vsel %vm292, %v1577, 0.0
      %1600 = vadd.xlane.f32.xlu0 %v1599
      %v1601 = vpop.xlane.xlu0 %1600
      %v1602 = vsel %vm292, %v1579, 0.0
      %1603 = vadd.xlane.f32.xlu0 %v1602
      %v1604 = vpop.xlane.xlu0 %1603
      %v1605 = vsel %vm292, %v1581, 0.0
      %1606 = vadd.xlane.f32.xlu0 %v1605
      %v1607 = vpop.xlane.xlu0 %1606
      %v1608 = vsel %vm292, %v1583, 0.0
      %1609 = vadd.xlane.f32.xlu0 %v1608
      %v1610 = vpop.xlane.xlu0 %1609
      %v1611 = vsel %vm292, %v1585, 0.0
      %1612 = vadd.xlane.f32.xlu0 %v1611
      %v1613 = vpop.xlane.xlu0 %1612
      %v1614 = vsel %vm292, %v1587, 0.0
      %1615 = vadd.xlane.f32.xlu0 %v1614
      %v1616 = vpop.xlane.xlu0 %1615
      %v1617 = vsel %vm320, %v1589, 0.0
      %1618 = vadd.xlane.f32.xlu0 %v1617
      %v1619 = vpop.xlane.xlu0 %1618
      %v1620 = vrcp.pop %v1592
      %v1621 = vrcp.pop %v1595
      %v1622 = vrcp.pop %v1598
      %v1623 = vrcp.pop %v1601
      %v1624 = vrcp.pop %v1604
      %v1625 = vrcp.pop %v1607
      %v1626 = vrcp.pop %v1610
      %v1627 = vrcp.pop %v1613
      %v1628 = vrcp.pop %v1616
      %v1629 = vrcp.pop %v1619
      %v1630 = vmul.f32 %v1571, %v1620
      %v1631 = vmul.f32 %v1573, %v1621
      %v1632 = vmul.f32 %v1575, %v1622
      %v1633 = vmul.f32 %v1577, %v1623
      %v1634 = vmul.f32 %v1579, %v1624
      %v1635 = vmul.f32 %v1581, %v1625
      %v1636 = vmul.f32 %v1583, %v1626
      %v1637 = vmul.f32 %v1585, %v1627
      %v1638 = vmul.f32 %v1587, %v1628
      %v1639 = vmul.f32 %v1589, %v1629
      %v1640 = vpack.c.bf16 %v1631, %v1630
      %v1641 = vpack.c.bf16 %v1633, %v1632
      %v1642 = vpack.c.bf16 %v1635, %v1634
      %v1643 = vpack.c.bf16 %v1637, %v1636
      %v1644 = vpack.c.bf16 %v1639, %v1638
      %1645 = vrot.lane.b32.xlu0 %v419, 80
      %v1646 = vpop.permute.xlu0 %1645
      %1647 = vrot.lane.b32.xlu0 %v420, 80
      %v1648 = vpop.permute.xlu0 %1647
      %1649 = vrot.lane.b32.xlu0 %v421, 80
      %v1650 = vpop.permute.xlu0 %1649
      %1651 = vrot.lane.b32.xlu0 %v422, 80
      %v1652 = vpop.permute.xlu0 %1651
      %1653 = vrot.lane.b32.xlu0 %v423, 80
      %v1654 = vpop.permute.xlu0 %1653
      %v1660 = vsel %vm292, %v1640, 0
      %v1663 = vsel %vm292, %v1641, 0
      %v1666 = vsel %vm292, %v1642, 0
      %v1669 = vsel %vm292, %v1643, 0
      %v1672 = vsel %vm292, %v1644, 0
      %v1675 = vsel %vm443, %v1654, 0
      %1677 = vmatprep.subr.bf16.mxu0 0
      %1678 = vmatpush1.bf16.msra.mxu0 0
      %1679 = vmatprep.subr.bf16.mxu0 0
      %1680 = vmatpush1.bf16.msra.mxu0 0
      %1681 = vmatprep.subr.bf16.mxu0 0
      %1682 = vmatpush1.bf16.msra.mxu0 0
      %1683 = vmatprep.subr.bf16.mxu0 0
      %1684 = vmatpush1.bf16.msra.mxu0 %v1675
      %1685 = vmatprep.subr.bf16.mxu0 0
      %1686 = vmatpush1.bf16.msra.mxu0 %v1652
      %1687 = vmatprep.subr.bf16.mxu0 0
      %1688 = vmatpush1.bf16.msra.mxu0 %v1650
      %1689 = vmatprep.subr.bf16.mxu0 0
      %1690 = vmatpush1.bf16.msra.mxu0 %v1648
      %1691 = vmatprep.subr.bf16.mxu0 0
      %1692 = vmatpush1.bf16.msra.mxu0 %v1646
      %1693 = vmatprep.subr.bf16.mxu0 0
      %1694 = vmatpush2.bf16.msra.mxu0 0
      %1695 = vmatprep.subr.bf16.mxu0 0
      %1696 = vmatpush2.bf16.msra.mxu0 0
      %1697 = vmatprep.subr.bf16.mxu0 0
      %1698 = vmatpush2.bf16.msra.mxu0 0
      %1699 = vmatprep.subr.bf16.mxu0 0
      %1700 = vmatpush2.bf16.msra.mxu0 0
      %1701 = vmatprep.subr.bf16.mxu0 0
      %1702 = vmatpush2.bf16.msra.mxu0 0
      %1703 = vmatprep.subr.bf16.mxu0 0
      %1704 = vmatpush2.bf16.msra.mxu0 0
      %1705 = vmatprep.subr.bf16.mxu0 0
      %1706 = vmatpush2.bf16.msra.mxu0 0
      %1707 = vmatprep.subr.bf16.mxu0 0
      %1708 = vmatpush2.bf16.msra.mxu0 0
      %1709 = vmatprep.mubr.bf16.mxu0 0
      %1710 = vmatmul.mubr.bf16.gmra.mxu0 %v1660
      %v1711 = vpop.f32.mrf.mxu0
      %v1712 = vadd.f32 0.0, %v1711
      %v1713 = vpop.f32.mrf.mxu0
      %v1714 = vpop.f32.mrf.mxu0
      %v1715 = vadd.f32 0.0, %v1714
      %v1716 = vpop.f32.mrf.mxu0
      %1717 = vmatprep.mubr.bf16.mxu0 0
      %1718 = vmatmul.mubr.bf16.gmra.mxu0 %v1663
      %v1719 = vpop.f32.mrf.mxu0
      %v1720 = vadd.f32 0.0, %v1719
      %v1721 = vpop.f32.mrf.mxu0
      %v1722 = vpop.f32.mrf.mxu0
      %v1723 = vadd.f32 0.0, %v1722
      %v1724 = vpop.f32.mrf.mxu0
      %1725 = vmatprep.mubr.bf16.mxu0 0
      %1726 = vmatmul.mubr.bf16.gmra.mxu0 %v1666
      %v1727 = vpop.f32.mrf.mxu0
      %v1728 = vadd.f32 0.0, %v1727
      %v1729 = vpop.f32.mrf.mxu0
      %v1730 = vpop.f32.mrf.mxu0
      %v1731 = vadd.f32 0.0, %v1730
      %v1732 = vpop.f32.mrf.mxu0
      %1733 = vmatprep.mubr.bf16.mxu0 0
      %1734 = vmatmul.mubr.bf16.gmra.mxu0 %v1669
      %v1735 = vpop.f32.mrf.mxu0
      %v1736 = vadd.f32 0.0, %v1735
      %v1737 = vpop.f32.mrf.mxu0
      %v1738 = vpop.f32.mrf.mxu0
      %v1739 = vadd.f32 0.0, %v1738
      %v1740 = vpop.f32.mrf.mxu0
      %1741 = vmatprep.mubr.bf16.mxu0 0
      %1742 = vmatmul.mubr.bf16.gmra.mxu0 %v1672
      %v1743 = vpop.f32.mrf.mxu0
      %v1744 = vadd.f32 0.0, %v1743
      %v1745 = vpop.f32.mrf.mxu0
      %v1746 = vpop.f32.mrf.mxu0
      %v1747 = vadd.f32 0.0, %v1746
      %v1748 = vpop.f32.mrf.mxu0
      %1749 = vdwg.mxu0
      %v1750 = vpack.c.bf16 %v1715, %v1712
      %v1751 = vpack.c.bf16 %v1723, %v1720
      %v1752 = vpack.c.bf16 %v1731, %v1728
      %v1753 = vpack.c.bf16 %v1739, %v1736
      %v1754 = vpack.c.bf16 %v1747, %v1744
      %v1760 = vunpack.c.l.b16 %v1750
      %v1761 = vunpack.c.h.b16 %v1750
      %v1762 = vunpack.c.l.b16 %v1751
      %v1763 = vunpack.c.h.b16 %v1751
      %v1764 = vunpack.c.l.b16 %v1752
      %v1765 = vunpack.c.h.b16 %v1752
      %v1766 = vunpack.c.l.b16 %v1753
      %v1767 = vunpack.c.h.b16 %v1753
      %v1768 = vunpack.c.l.b16 %v1754
      %v1769 = vunpack.c.h.b16 %v1754
      %v1770 = vpack.c.b16 %v1760, %v1760
      %v1771 = vpack.c.b16 %v1761, %v1761
      %v1772 = vpack.c.b16 %v1762, %v1762
      %v1773 = vpack.c.b16 %v1763, %v1763
      %v1774 = vpack.c.b16 %v1764, %v1764
      %v1775 = vpack.c.b16 %v1765, %v1765
      %v1776 = vpack.c.b16 %v1766, %v1766
      %v1777 = vpack.c.b16 %v1767, %v1767
      %v1778 = vpack.c.b16 %v1768, %v1768
      %v1779 = vpack.c.b16 %v1769, %v1769
      %1780 = vrot.lane.b32.xlu0 %v1770, 48
      %v1781 = vpop.permute.xlu0 %1780
      %1782 = vrot.lane.b32.xlu0 %v1771, 48
      %v1783 = vpop.permute.xlu0 %1782
      %1784 = vrot.lane.b32.xlu0 %v1772, 48
      %v1785 = vpop.permute.xlu0 %1784
      %1786 = vrot.lane.b32.xlu0 %v1773, 48
      %v1787 = vpop.permute.xlu0 %1786
      %1788 = vrot.lane.b32.xlu0 %v1774, 48
      %v1789 = vpop.permute.xlu0 %1788
      %1790 = vrot.lane.b32.xlu0 %v1775, 48
      %v1791 = vpop.permute.xlu0 %1790
      %1792 = vrot.lane.b32.xlu0 %v1776, 48
      %v1793 = vpop.permute.xlu0 %1792
      %1794 = vrot.lane.b32.xlu0 %v1777, 48
      %v1795 = vpop.permute.xlu0 %1794
      %1796 = vrot.lane.b32.xlu0 %v1778, 48
      %v1797 = vpop.permute.xlu0 %1796
      %1798 = vrot.lane.b32.xlu0 %v1779, 48
      %v1799 = vpop.permute.xlu0 %1798
      %vm1810 = vcmask 519552
      %1811 = vst.msk [vmem:[%s116] sm:$0xf] %vm1810, %v1781
      %1812 = vst.msk [vmem:[%s116 + $0x4] sm:$0xf] %vm1810, %v1783
      %1813 = vst.msk [vmem:[%s116 + $0x8] sm:$0xf] %vm1810, %v1785
      %1814 = vst.msk [vmem:[%s116 + $0xc] sm:$0xf] %vm1810, %v1787
      %1815 = vst.msk [vmem:[%s116 + $0x10] sm:$0xf] %vm1810, %v1789
      %1816 = vst.msk [vmem:[%s116 + $0x14] sm:$0xf] %vm1810, %v1791
      %1817 = vst.msk [vmem:[%s116 + $0x18] sm:$0xf] %vm1810, %v1793
      %1818 = vst.msk [vmem:[%s116 + $0x1c] sm:$0xf] %vm1810, %v1795
      %1819 = vst.msk [vmem:[%s116 + $0x20] sm:$0xf] %vm1810, %v1797
      %vm1820 = vcmask 517504
      %1821 = vst.msk [vmem:[%s116 + $0x24] sm:$0x3] %vm1820, %v1799
      %p1822 = scmp.lt.s32.totalorder %s12, 1
      %s1823 = scalar_select %p1822, %s12, 1
      %s1824 = smul.addr %s1823, 10
      %s1825 = smul.addr %s1824, 4
      %s1826 = scalar_lea.vmem %s1, %s1825
      // Predicated region
      $region25: #{forward.26} parent=23 // pred_check
        %p1827 = pneg %p56
      $region26: #{forward.26} parent=23 // pred_check_branch
        %1829 = sbr.rel (%p1827) target = $region28
      $region27: #{forward.26} parent=23 // pred_region
        _
      $region28: #{forward.26} parent=23 // pred_fallthru
        _
    $region24: #{forward.26} parent=5 // pred_fallthru
      _
    %p1830 = scmp.le.s32.totalorder 2, %s7
    // Predicated region
    $region29: #{forward.26} parent=5 // pred_check
      %p1831 = pneg %p1830
    $region30: #{forward.26} parent=5 // pred_check_branch
      %1833 = sbr.rel (%p1831) target = $region32
    $region31: #{forward.26} parent=5 // pred_region
      %s1834 = ssub.s32 %s7, 2
      // Predicated region
      $region33: #{forward.26} parent=31 // pred_check
        %p1835 = pneg %p62
      $region34: #{forward.26} parent=31 // pred_check_branch
        %1837 = sbr.rel (%p1835) target = $region36
      $region35: #{forward.26} parent=31 // pred_region
        %p1838 = scmp.lt.s32.totalorder %s13, 1
        %s1839 = scalar_select %p1838, %s13, 1
        %s1840 = smul.addr %s1839, 10
        %s1841 = smul.addr %s1840, 4
        %s1842 = scalar_lea.vmem %s1, %s1841
      $region36: #{forward.26} parent=31 // pred_fallthru
        _
    $region32: #{forward.26} parent=5 // pred_fallthru
      _
  $region6: #{forward.26} parent=0 // loop_footer
    %s11 = sadd.s32 1, %s7
  $region7: #{forward.26} parent=0 // loop_footer_branch
    %6 = sbr.rel target = $region3
  $region8: #{forward.26} parent=0 // loop_exit
    _

// kernel: forward.25
$region0: #{forward.25}
  #allocation0 [shape = 'u32[]', space=smem, size = 0x4, offset = 0x4, fixed_abs, tag = 'smem constant byte address 0x4 - core index']
  #allocation1 [shape = 'u32[144,128]{1,0:T(1,128)}', space=vmem, size = 0x12000, scoped, tag = 'internal scratch']
  #allocation2 [shape = 'f32[152,192]{1,0:T(8,128)}', space=vmem, size = 0x26000, scoped, tag = 'scratch operand']
  %s0 = inlined_call_operand.vmem [shape: bf16[152,64], index: 0, kind: input, shape index: {}]
  %s1 = inlined_call_operand.vmem [shape: bf16[64,192], index: 1, kind: input, shape index: {}]
  %s2 = inlined_call_operand.vmem [shape: bf16[152,192], index: 2, kind: output, shape index: {}]
  %s3 = sld [smem:[#allocation0]]
  $region26: #{forward.25} parent=0
    _
  %s5 = ssub.s32 1, %s3
  %s6 = scalar_select 0, %s5, %s3
  // Predicated region
  $region2: #{forward.25} parent=0 // pred_check
    _
  $region3: #{forward.25} parent=0 // pred_check_branch
    %8 = sbr.rel (0) target = $region5
  $region4: #{forward.25} parent=0 // pred_region
    _
  $region5: #{forward.25} parent=0 // pred_fallthru
    _
  // Predicated region
  $region6: #{forward.25} parent=0 // pred_check
    _
  $region7: #{forward.25} parent=0 // pred_check_branch
    %10 = sbr.rel (0) target = $region9
  $region8: #{forward.25} parent=0 // pred_region
    _
  $region9: #{forward.25} parent=0 // pred_fallthru
    _
  %p12 = scmp.eq.s32.totalorder 0, 0
  // Predicated region
  $region10: #{forward.25} parent=0 // pred_check
    %p13 = pneg %p12
  $region11: #{forward.25} parent=0 // pred_check_branch
    %15 = sbr.rel (%p13) target = $region13
  $region12: #{forward.25} parent=0 // pred_region
    %16 = vst [vmem:[#allocation2] sm:$0xff] 0.0
    %vm17 = vcmask 523264
    %18 = vst.msk [vmem:[#allocation2 + $0x8] sm:$0xff] %vm17, 0.0
    %19 = vst [vmem:[#allocation2 + $0x10] sm:$0xff] 0.0
    %20 = vst.msk [vmem:[#allocation2 + $0x18] sm:$0xff] %vm17, 0.0
    %21 = vst [vmem:[#allocation2 + $0x20] sm:$0xff] 0.0
    %22 = vst.msk [vmem:[#allocation2 + $0x28] sm:$0xff] %vm17, 0.0
    %23 = vst [vmem:[#allocation2 + $0x30] sm:$0xff] 0.0
    %24 = vst.msk [vmem:[#allocation2 + $0x38] sm:$0xff] %vm17, 0.0
    %25 = vst [vmem:[#allocation2 + $0x40] sm:$0xff] 0.0
    %26 = vst.msk [vmem:[#allocation2 + $0x48] sm:$0xff] %vm17, 0.0
    %27 = vst [vmem:[#allocation2 + $0x50] sm:$0xff] 0.0
    %28 = vst.msk [vmem:[#allocation2 + $0x58] sm:$0xff] %vm17, 0.0
    %29 = vst [vmem:[#allocation2 + $0x60] sm:$0xff] 0.0
    %30 = vst.msk [vmem:[#allocation2 + $0x68] sm:$0xff] %vm17, 0.0
    %31 = vst [vmem:[#allocation2 + $0x70] sm:$0xff] 0.0
    %32 = vst.msk [vmem:[#allocation2 + $0x78] sm:$0xff] %vm17, 0.0
    %33 = vst [vmem:[#allocation2 + $0x80] sm:$0xff] 0.0
    %34 = vst.msk [vmem:[#allocation2 + $0x88] sm:$0xff] %vm17, 0.0
    %35 = vst [vmem:[#allocation2 + $0x90] sm:$0xff] 0.0
    %36 = vst.msk [vmem:[#allocation2 + $0x98] sm:$0xff] %vm17, 0.0
    %37 = vst [vmem:[#allocation2 + $0xa0] sm:$0xff] 0.0
    %38 = vst.msk [vmem:[#allocation2 + $0xa8] sm:$0xff] %vm17, 0.0
    %39 = vst [vmem:[#allocation2 + $0xb0] sm:$0xff] 0.0
    %40 = vst.msk [vmem:[#allocation2 + $0xb8] sm:$0xff] %vm17, 0.0
    %41 = vst [vmem:[#allocation2 + $0xc0] sm:$0xff] 0.0
    %42 = vst.msk [vmem:[#allocation2 + $0xc8] sm:$0xff] %vm17, 0.0
    %43 = vst [vmem:[#allocation2 + $0xd0] sm:$0xff] 0.0
    %44 = vst.msk [vmem:[#allocation2 + $0xd8] sm:$0xff] %vm17, 0.0
    %45 = vst [vmem:[#allocation2 + $0xe0] sm:$0xff] 0.0
    %46 = vst.msk [vmem:[#allocation2 + $0xe8] sm:$0xff] %vm17, 0.0
    %47 = vst [vmem:[#allocation2 + $0xf0] sm:$0xff] 0.0
    %48 = vst.msk [vmem:[#allocation2 + $0xf8] sm:$0xff] %vm17, 0.0
    %49 = vst [vmem:[#allocation2 + $0x100] sm:$0xff] 0.0
    %50 = vst.msk [vmem:[#allocation2 + $0x108] sm:$0xff] %vm17, 0.0
    %51 = vst [vmem:[#allocation2 + $0x110] sm:$0xff] 0.0
    %52 = vst.msk [vmem:[#allocation2 + $0x118] sm:$0xff] %vm17, 0.0
    %53 = vst [vmem:[#allocation2 + $0x120] sm:$0xff] 0.0
    %54 = vst.msk [vmem:[#allocation2 + $0x128] sm:$0xff] %vm17, 0.0
  $region13: #{forward.25} parent=0 // pred_fallthru
    _
  %v55 = vld [vmem:[%s0] sm:$0xf]
  %v56 = vld [vmem:[%s0 + $0x4] sm:$0xf]
  %v57 = vld [vmem:[%s0 + $0x8] sm:$0xf]
  %v58 = vld [vmem:[%s0 + $0xc] sm:$0xf]
  %v59 = vld [vmem:[%s0 + $0x10] sm:$0xf]
  %v60 = vld [vmem:[%s0 + $0x14] sm:$0xf]
  %v61 = vld [vmem:[%s0 + $0x18] sm:$0xf]
  %v62 = vld [vmem:[%s0 + $0x1c] sm:$0xf]
  %v63 = vld [vmem:[%s0 + $0x20] sm:$0xf]
  %v64 = vld [vmem:[%s0 + $0x24] sm:$0xf]
  %v65 = vld [vmem:[%s0 + $0x28] sm:$0xf]
  %v66 = vld [vmem:[%s0 + $0x2c] sm:$0xf]
  %v67 = vld [vmem:[%s0 + $0x30] sm:$0xf]
  %v68 = vld [vmem:[%s0 + $0x34] sm:$0xf]
  %v69 = vld [vmem:[%s0 + $0x38] sm:$0xf]
  %v70 = vld [vmem:[%s0 + $0x3c] sm:$0xf]
  %v71 = vld [vmem:[%s0 + $0x40] sm:$0xf]
  %v72 = vld [vmem:[%s0 + $0x44] sm:$0xf]
  %v73 = vld [vmem:[%s0 + $0x48] sm:$0xf]
  %v74 = vld [vmem:[%s1] sm:$0xff]
  %v75 = vld [vmem:[%s1 + $0x8] sm:$0xff]
  %v76 = vld [vmem:[%s1 + $0x10] sm:$0xff]
  %v77 = vld [vmem:[%s1 + $0x18] sm:$0xff]
  %v78 = vld [vmem:[%s1 + $0x20] sm:$0xff]
  %v79 = vld [vmem:[%s1 + $0x28] sm:$0xff]
  %v80 = vld [vmem:[%s1 + $0x30] sm:$0xff]
  %v81 = vld [vmem:[%s1 + $0x38] sm:$0xff]
  %v101 = vunpack.c.l.b16 %v55
  %v102 = vunpack.c.l.b16 %v56
  %v103 = vunpack.c.l.b16 %v57
  %v104 = vunpack.c.l.b16 %v58
  %v105 = vunpack.c.l.b16 %v59
  %v106 = vunpack.c.l.b16 %v60
  %v107 = vunpack.c.l.b16 %v61
  %v108 = vunpack.c.l.b16 %v62
  %v109 = vunpack.c.l.b16 %v63
  %v110 = vunpack.c.l.b16 %v64
  %v111 = vunpack.c.l.b16 %v65
  %v112 = vunpack.c.l.b16 %v66
  %v113 = vunpack.c.l.b16 %v67
  %v114 = vunpack.c.l.b16 %v68
  %v115 = vunpack.c.l.b16 %v69
  %v116 = vunpack.c.l.b16 %v70
  %v117 = vunpack.c.l.b16 %v71
  %v118 = vunpack.c.l.b16 %v72
  %v119 = vunpack.c.l.b16 %v73
  %v120 = vpack.c.b16 %v102, %v101
  %v121 = vpack.c.b16 %v104, %v103
  %v122 = vpack.c.b16 %v106, %v105
  %v123 = vpack.c.b16 %v108, %v107
  %v124 = vpack.c.b16 %v110, %v109
  %v125 = vpack.c.b16 %v112, %v111
  %v126 = vpack.c.b16 %v114, %v113
  %v127 = vpack.c.b16 %v116, %v115
  %v128 = vpack.c.b16 %v118, %v117
  %v129 = vpack.c.b16 %v119, %v119
  %v138 = vunpack.c.l.b16 %v74
  %v139 = vunpack.c.h.b16 %v74
  %v140 = vunpack.c.l.b16 %v75
  %v141 = vunpack.c.h.b16 %v75
  %v142 = vunpack.c.l.b16 %v76
  %v143 = vunpack.c.h.b16 %v76
  %v144 = vunpack.c.l.b16 %v77
  %v145 = vunpack.c.h.b16 %v77
  %v146 = vunpack.c.l.b16 %v78
  %v147 = vunpack.c.h.b16 %v78
  %v148 = vunpack.c.l.b16 %v79
  %v149 = vunpack.c.h.b16 %v79
  %v150 = vunpack.c.l.b16 %v80
  %v151 = vunpack.c.h.b16 %v80
  %v152 = vunpack.c.l.b16 %v81
  %v153 = vunpack.c.h.b16 %v81
  %v154 = vpack.c.b16 %v140, %v138
  %v155 = vpack.c.b16 %v141, %v139
  %v156 = vpack.c.b16 %v144, %v142
  %v157 = vpack.c.b16 %v145, %v143
  %v158 = vpack.c.b16 %v148, %v146
  %v159 = vpack.c.b16 %v149, %v147
  %v160 = vpack.c.b16 %v152, %v150
  %v161 = vpack.c.b16 %v153, %v151
  %vm170 = vcmask 523264
  %v172 = vsel %vm170, %v120, 0
  %v175 = vsel %vm170, %v121, 0
  %v178 = vsel %vm170, %v122, 0
  %v181 = vsel %vm170, %v123, 0
  %v184 = vsel %vm170, %v124, 0
  %v187 = vsel %vm170, %v125, 0
  %v190 = vsel %vm170, %v126, 0
  %v193 = vsel %vm170, %v127, 0
  %v196 = vsel %vm170, %v128, 0
  %v199 = vsel %vm170, %v129, 0
  %201 = vmatprep.subr.bf16.mxu0 0
  %202 = vmatpush1.bf16.msra.mxu0 0
  %203 = vmatprep.subr.bf16.mxu0 0
  %204 = vmatpush1.bf16.msra.mxu0 0
  %205 = vmatprep.subr.bf16.mxu0 0
  %206 = vmatpush1.bf16.msra.mxu0 0
  %207 = vmatprep.subr.bf16.mxu0 0
  %208 = vmatpush1.bf16.msra.mxu0 0
  %209 = vmatprep.subr.bf16.mxu0 %v161
  %210 = vmatpush1.bf16.msra.mxu0 %v160
  %211 = vmatprep.subr.bf16.mxu0 %v159
  %212 = vmatpush1.bf16.msra.mxu0 %v158
  %213 = vmatprep.subr.bf16.mxu0 %v157
  %214 = vmatpush1.bf16.msra.mxu0 %v156
  %215 = vmatprep.subr.bf16.mxu0 %v155
  %216 = vmatpush1.bf16.msra.mxu0 %v154
  %217 = vmatprep.subr.bf16.mxu0 0
  %218 = vmatpush2.bf16.msra.mxu0 0
  %219 = vmatprep.subr.bf16.mxu0 0
  %220 = vmatpush2.bf16.msra.mxu0 0
  %221 = vmatprep.subr.bf16.mxu0 0
  %222 = vmatpush2.bf16.msra.mxu0 0
  %223 = vmatprep.subr.bf16.mxu0 0
  %224 = vmatpush2.bf16.msra.mxu0 0
  %225 = vmatprep.subr.bf16.mxu0 0
  %226 = vmatpush2.bf16.msra.mxu0 0
  %227 = vmatprep.subr.bf16.mxu0 0
  %228 = vmatpush2.bf16.msra.mxu0 0
  %229 = vmatprep.subr.bf16.mxu0 0
  %230 = vmatpush2.bf16.msra.mxu0 0
  %231 = vmatprep.subr.bf16.mxu0 0
  %232 = vmatpush2.bf16.msra.mxu0 0
  %233 = vmatprep.mubr.bf16.mxu0 0
  %234 = vmatmul.mubr.bf16.gmra.mxu0 %v172
  %v235 = vpop.f32.mrf.mxu0
  %v236 = vadd.f32 0.0, %v235
  %v237 = vpop.f32.mrf.mxu0
  %v238 = vadd.f32 0.0, %v237
  %v239 = vpop.f32.mrf.mxu0
  %v240 = vadd.f32 0.0, %v239
  %v241 = vpop.f32.mrf.mxu0
  %v242 = vadd.f32 0.0, %v241
  %243 = vmatprep.mubr.bf16.mxu0 0
  %244 = vmatmul.mubr.bf16.gmra.mxu0 %v175
  %v245 = vpop.f32.mrf.mxu0
  %v246 = vadd.f32 0.0, %v245
  %v247 = vpop.f32.mrf.mxu0
  %v248 = vadd.f32 0.0, %v247
  %v249 = vpop.f32.mrf.mxu0
  %v250 = vadd.f32 0.0, %v249
  %v251 = vpop.f32.mrf.mxu0
  %v252 = vadd.f32 0.0, %v251
  %253 = vmatprep.mubr.bf16.mxu0 0
  %254 = vmatmul.mubr.bf16.gmra.mxu0 %v178
  %v255 = vpop.f32.mrf.mxu0
  %v256 = vadd.f32 0.0, %v255
  %v257 = vpop.f32.mrf.mxu0
  %v258 = vadd.f32 0.0, %v257
  %v259 = vpop.f32.mrf.mxu0
  %v260 = vadd.f32 0.0, %v259
  %v261 = vpop.f32.mrf.mxu0
  %v262 = vadd.f32 0.0, %v261
  %263 = vmatprep.mubr.bf16.mxu0 0
  %264 = vmatmul.mubr.bf16.gmra.mxu0 %v181
  %v265 = vpop.f32.mrf.mxu0
  %v266 = vadd.f32 0.0, %v265
  %v267 = vpop.f32.mrf.mxu0
  %v268 = vadd.f32 0.0, %v267
  %v269 = vpop.f32.mrf.mxu0
  %v270 = vadd.f32 0.0, %v269
  %v271 = vpop.f32.mrf.mxu0
  %v272 = vadd.f32 0.0, %v271
  %273 = vmatprep.mubr.bf16.mxu0 0
  %274 = vmatmul.mubr.bf16.gmra.mxu0 %v184
  %v275 = vpop.f32.mrf.mxu0
  %v276 = vadd.f32 0.0, %v275
  %v277 = vpop.f32.mrf.mxu0
  %v278 = vadd.f32 0.0, %v277
  %v279 = vpop.f32.mrf.mxu0
  %v280 = vadd.f32 0.0, %v279
  %v281 = vpop.f32.mrf.mxu0
  %v282 = vadd.f32 0.0, %v281
  %283 = vmatprep.mubr.bf16.mxu0 0
  %284 = vmatmul.mubr.bf16.gmra.mxu0 %v187
  %v285 = vpop.f32.mrf.mxu0
  %v286 = vadd.f32 0.0, %v285
  %v287 = vpop.f32.mrf.mxu0
  %v288 = vadd.f32 0.0, %v287
  %v289 = vpop.f32.mrf.mxu0
  %v290 = vadd.f32 0.0, %v289
  %v291 = vpop.f32.mrf.mxu0
  %v292 = vadd.f32 0.0, %v291
  %293 = vmatprep.mubr.bf16.mxu0 0
  %294 = vmatmul.mubr.bf16.gmra.mxu0 %v190
  %v295 = vpop.f32.mrf.mxu0
  %v296 = vadd.f32 0.0, %v295
  %v297 = vpop.f32.mrf.mxu0
  %v298 = vadd.f32 0.0, %v297
  %v299 = vpop.f32.mrf.mxu0
  %v300 = vadd.f32 0.0, %v299
  %v301 = vpop.f32.mrf.mxu0
  %v302 = vadd.f32 0.0, %v301
  %303 = vmatprep.mubr.bf16.mxu0 0
  %304 = vmatmul.mubr.bf16.gmra.mxu0 %v193
  %v305 = vpop.f32.mrf.mxu0
  %v306 = vadd.f32 0.0, %v305
  %v307 = vpop.f32.mrf.mxu0
  %v308 = vadd.f32 0.0, %v307
  %v309 = vpop.f32.mrf.mxu0
  %v310 = vadd.f32 0.0, %v309
  %v311 = vpop.f32.mrf.mxu0
  %v312 = vadd.f32 0.0, %v311
  %313 = vmatprep.mubr.bf16.mxu0 0
  %314 = vmatmul.mubr.bf16.gmra.mxu0 %v196
  %v315 = vpop.f32.mrf.mxu0
  %v316 = vadd.f32 0.0, %v315
  %v317 = vpop.f32.mrf.mxu0
  %v318 = vadd.f32 0.0, %v317
  %v319 = vpop.f32.mrf.mxu0
  %v320 = vadd.f32 0.0, %v319
  %v321 = vpop.f32.mrf.mxu0
  %v322 = vadd.f32 0.0, %v321
  %323 = vmatprep.mubr.bf16.mxu0 0
  %324 = vmatmul.mubr.bf16.gmra.mxu0 %v199
  %v325 = vpop.f32.mrf.mxu0
  %v326 = vadd.f32 0.0, %v325
  %v327 = vpop.f32.mrf.mxu0
  %v328 = vadd.f32 0.0, %v327
  %v329 = vpop.f32.mrf.mxu0
  %v330 = vpop.f32.mrf.mxu0
  %331 = vdwg.mxu0
  %v332 = vld [vmem:[#allocation2] sm:$0xff]
  %v333 = vld [vmem:[#allocation2 + $0x8] sm:$0xff]
  %v334 = vld [vmem:[#allocation2 + $0x10] sm:$0xff]
  %v335 = vld [vmem:[#allocation2 + $0x18] sm:$0xff]
  %v336 = vld [vmem:[#allocation2 + $0x20] sm:$0xff]
  %v337 = vld [vmem:[#allocation2 + $0x28] sm:$0xff]
  %v338 = vld [vmem:[#allocation2 + $0x30] sm:$0xff]
  %v339 = vld [vmem:[#allocation2 + $0x38] sm:$0xff]
  %v340 = vld [vmem:[#allocation2 + $0x40] sm:$0xff]
  %v341 = vld [vmem:[#allocation2 + $0x48] sm:$0xff]
  %v342 = vld [vmem:[#allocation2 + $0x50] sm:$0xff]
  %v343 = vld [vmem:[#allocation2 + $0x58] sm:$0xff]
  %v344 = vld [vmem:[#allocation2 + $0x60] sm:$0xff]
  %v345 = vld [vmem:[#allocation2 + $0x68] sm:$0xff]
  %v346 = vld [vmem:[#allocation2 + $0x70] sm:$0xff]
  %v347 = vld [vmem:[#allocation2 + $0x78] sm:$0xff]
  %v348 = vld [vmem:[#allocation2 + $0x80] sm:$0xff]
  %v349 = vld [vmem:[#allocation2 + $0x88] sm:$0xff]
  %v350 = vld [vmem:[#allocation2 + $0x90] sm:$0xff]
  %v351 = vld [vmem:[#allocation2 + $0x98] sm:$0xff]
  %v352 = vld [vmem:[#allocation2 + $0xa0] sm:$0xff]
  %v353 = vld [vmem:[#allocation2 + $0xa8] sm:$0xff]
  %v354 = vld [vmem:[#allocation2 + $0xb0] sm:$0xff]
  %v355 = vld [vmem:[#allocation2 + $0xb8] sm:$0xff]
  %v356 = vld [vmem:[#allocation2 + $0xc0] sm:$0xff]
  %v357 = vld [vmem:[#allocation2 + $0xc8] sm:$0xff]
  %v358 = vld [vmem:[#allocation2 + $0xd0] sm:$0xff]
  %v359 = vld [vmem:[#allocation2 + $0xd8] sm:$0xff]
  %v360 = vld [vmem:[#allocation2 + $0xe0] sm:$0xff]
  %v361 = vld [vmem:[#allocation2 + $0xe8] sm:$0xff]
  %v362 = vld [vmem:[#allocation2 + $0xf0] sm:$0xff]
  %v363 = vld [vmem:[#allocation2 + $0xf8] sm:$0xff]
  %v364 = vld [vmem:[#allocation2 + $0x100] sm:$0xff]
  %v365 = vld [vmem:[#allocation2 + $0x108] sm:$0xff]
  %v366 = vld [vmem:[#allocation2 + $0x110] sm:$0xff]
  %v367 = vld [vmem:[#allocation2 + $0x118] sm:$0xff]
  %v368 = vld [vmem:[#allocation2 + $0x120] sm:$0xff]
  %v369 = vld [vmem:[#allocation2 + $0x128] sm:$0xff]
  %v370 = vadd.f32 %v332, %v236
  %v371 = vadd.f32 %v333, %v238
  %v372 = vadd.f32 %v334, %v240
  %v373 = vadd.f32 %v335, %v242
  %v374 = vadd.f32 %v336, %v246
  %v375 = vadd.f32 %v337, %v248
  %v376 = vadd.f32 %v338, %v250
  %v377 = vadd.f32 %v339, %v252
  %v378 = vadd.f32 %v340, %v256
  %v379 = vadd.f32 %v341, %v258
  %v380 = vadd.f32 %v342, %v260
  %v381 = vadd.f32 %v343, %v262
  %v382 = vadd.f32 %v344, %v266
  %v383 = vadd.f32 %v345, %v268
  %v384 = vadd.f32 %v346, %v270
  %v385 = vadd.f32 %v347, %v272
  %v386 = vadd.f32 %v348, %v276
  %v387 = vadd.f32 %v349, %v278
  %v388 = vadd.f32 %v350, %v280
  %v389 = vadd.f32 %v351, %v282
  %v390 = vadd.f32 %v352, %v286
  %v391 = vadd.f32 %v353, %v288
  %v392 = vadd.f32 %v354, %v290
  %v393 = vadd.f32 %v355, %v292
  %v394 = vadd.f32 %v356, %v296
  %v395 = vadd.f32 %v357, %v298
  %v396 = vadd.f32 %v358, %v300
  %v397 = vadd.f32 %v359, %v302
  %v398 = vadd.f32 %v360, %v306
  %v399 = vadd.f32 %v361, %v308
  %v400 = vadd.f32 %v362, %v310
  %v401 = vadd.f32 %v363, %v312
  %v402 = vadd.f32 %v364, %v316
  %v403 = vadd.f32 %v365, %v318
  %v404 = vadd.f32 %v366, %v320
  %v405 = vadd.f32 %v367, %v322
  %v406 = vadd.f32 %v368, %v326
  %v407 = vadd.f32 %v369, %v328
  %408 = vst [vmem:[#allocation2] sm:$0xff] %v370
  %409 = vst.msk [vmem:[#allocation2 + $0x8] sm:$0xff] %vm170, %v371
  %410 = vst [vmem:[#allocation2 + $0x10] sm:$0xff] %v372
  %411 = vst.msk [vmem:[#allocation2 + $0x18] sm:$0xff] %vm170, %v373
  %412 = vst [vmem:[#allocation2 + $0x20] sm:$0xff] %v374
  %413 = vst.msk [vmem:[#allocation2 + $0x28] sm:$0xff] %vm170, %v375
  %414 = vst [vmem:[#allocation2 + $0x30] sm:$0xff] %v376
  %415 = vst.msk [vmem:[#allocation2 + $0x38] sm:$0xff] %vm170, %v377
  %416 = vst [vmem:[#allocation2 + $0x40] sm:$0xff] %v378
  %417 = vst.msk [vmem:[#allocation2 + $0x48] sm:$0xff] %vm170, %v379
  %418 = vst [vmem:[#allocation2 + $0x50] sm:$0xff] %v380
  %419 = vst.msk [vmem:[#allocation2 + $0x58] sm:$0xff] %vm170, %v381
  %420 = vst [vmem:[#allocation2 + $0x60] sm:$0xff] %v382
  %421 = vst.msk [vmem:[#allocation2 + $0x68] sm:$0xff] %vm170, %v383
  %422 = vst [vmem:[#allocation2 + $0x70] sm:$0xff] %v384
  %423 = vst.msk [vmem:[#allocation2 + $0x78] sm:$0xff] %vm170, %v385
  %424 = vst [vmem:[#allocation2 + $0x80] sm:$0xff] %v386
  %425 = vst.msk [vmem:[#allocation2 + $0x88] sm:$0xff] %vm170, %v387
  %426 = vst [vmem:[#allocation2 + $0x90] sm:$0xff] %v388
  %427 = vst.msk [vmem:[#allocation2 + $0x98] sm:$0xff] %vm170, %v389
  %428 = vst [vmem:[#allocation2 + $0xa0] sm:$0xff] %v390
  %429 = vst.msk [vmem:[#allocation2 + $0xa8] sm:$0xff] %vm170, %v391
  %430 = vst [vmem:[#allocation2 + $0xb0] sm:$0xff] %v392
  %431 = vst.msk [vmem:[#allocation2 + $0xb8] sm:$0xff] %vm170, %v393
  %432 = vst [vmem:[#allocation2 + $0xc0] sm:$0xff] %v394
  %433 = vst.msk [vmem:[#allocation2 + $0xc8] sm:$0xff] %vm170, %v395
  %434 = vst [vmem:[#allocation2 + $0xd0] sm:$0xff] %v396
  %435 = vst.msk [vmem:[#allocation2 + $0xd8] sm:$0xff] %vm170, %v397
  %436 = vst [vmem:[#allocation2 + $0xe0] sm:$0xff] %v398
  %437 = vst.msk [vmem:[#allocation2 + $0xe8] sm:$0xff] %vm170, %v399
  %438 = vst [vmem:[#allocation2 + $0xf0] sm:$0xff] %v400
  %439 = vst.msk [vmem:[#allocation2 + $0xf8] sm:$0xff] %vm170, %v401
  %440 = vst [vmem:[#allocation2 + $0x100] sm:$0xff] %v402
  %441 = vst.msk [vmem:[#allocation2 + $0x108] sm:$0xff] %vm170, %v403
  %442 = vst [vmem:[#allocation2 + $0x110] sm:$0xff] %v404
  %443 = vst.msk [vmem:[#allocation2 + $0x118] sm:$0xff] %vm170, %v405
  %444 = vst [vmem:[#allocation2 + $0x120] sm:$0xff] %v406
  %445 = vst.msk [vmem:[#allocation2 + $0x128] sm:$0xff] %vm170, %v407
  // Predicated region
  $region14: #{forward.25} parent=0 // pred_check
    %p446 = pneg %p12
  $region15: #{forward.25} parent=0 // pred_check_branch
    %448 = sbr.rel (%p446) target = $region17
  $region16: #{forward.25} parent=0 // pred_region
    %v449 = vld [vmem:[#allocation2] sm:$0xff]
    %v450 = vld [vmem:[#allocation2 + $0x8] sm:$0xff]
    %v451 = vld [vmem:[#allocation2 + $0x10] sm:$0xff]
    %v452 = vld [vmem:[#allocation2 + $0x18] sm:$0xff]
    %v453 = vld [vmem:[#allocation2 + $0x20] sm:$0xff]
    %v454 = vld [vmem:[#allocation2 + $0x28] sm:$0xff]
    %v455 = vld [vmem:[#allocation2 + $0x30] sm:$0xff]
    %v456 = vld [vmem:[#allocation2 + $0x38] sm:$0xff]
    %v457 = vld [vmem:[#allocation2 + $0x40] sm:$0xff]
    %v458 = vld [vmem:[#allocation2 + $0x48] sm:$0xff]
    %v459 = vld [vmem:[#allocation2 + $0x50] sm:$0xff]
    %v460 = vld [vmem:[#allocation2 + $0x58] sm:$0xff]
    %v461 = vld [vmem:[#allocation2 + $0x60] sm:$0xff]
    %v462 = vld [vmem:[#allocation2 + $0x68] sm:$0xff]
    %v463 = vld [vmem:[#allocation2 + $0x70] sm:$0xff]
    %v464 = vld [vmem:[#allocation2 + $0x78] sm:$0xff]
    %v465 = vld [vmem:[#allocation2 + $0x80] sm:$0xff]
    %v466 = vld [vmem:[#allocation2 + $0x88] sm:$0xff]
    %v467 = vld [vmem:[#allocation2 + $0x90] sm:$0xff]
    %v468 = vld [vmem:[#allocation2 + $0x98] sm:$0xff]
    %v469 = vld [vmem:[#allocation2 + $0xa0] sm:$0xff]
    %v470 = vld [vmem:[#allocation2 + $0xa8] sm:$0xff]
    %v471 = vld [vmem:[#allocation2 + $0xb0] sm:$0xff]
    %v472 = vld [vmem:[#allocation2 + $0xb8] sm:$0xff]
    %v473 = vld [vmem:[#allocation2 + $0xc0] sm:$0xff]
    %v474 = vld [vmem:[#allocation2 + $0xc8] sm:$0xff]
    %v475 = vld [vmem:[#allocation2 + $0xd0] sm:$0xff]
    %v476 = vld [vmem:[#allocation2 + $0xd8] sm:$0xff]
    %v477 = vld [vmem:[#allocation2 + $0xe0] sm:$0xff]
    %v478 = vld [vmem:[#allocation2 + $0xe8] sm:$0xff]
    %v479 = vld [vmem:[#allocation2 + $0xf0] sm:$0xff]
    %v480 = vld [vmem:[#allocation2 + $0xf8] sm:$0xff]
    %v481 = vld [vmem:[#allocation2 + $0x100] sm:$0xff]
    %v482 = vld [vmem:[#allocation2 + $0x108] sm:$0xff]
    %v483 = vld [vmem:[#allocation2 + $0x110] sm:$0xff]
    %v484 = vld [vmem:[#allocation2 + $0x118] sm:$0xff]
    %v485 = vld [vmem:[#allocation2 + $0x120] sm:$0xff]
    %v486 = vld [vmem:[#allocation2 + $0x128] sm:$0xff]
    %v487 = vpack.c.bf16 %v451, %v449
    %v488 = vpack.c.bf16 %v452, %v450
    %v489 = vpack.c.bf16 %v455, %v453
    %v490 = vpack.c.bf16 %v456, %v454
    %v491 = vpack.c.bf16 %v459, %v457
    %v492 = vpack.c.bf16 %v460, %v458
    %v493 = vpack.c.bf16 %v463, %v461
    %v494 = vpack.c.bf16 %v464, %v462
    %v495 = vpack.c.bf16 %v467, %v465
    %v496 = vpack.c.bf16 %v468, %v466
    %v497 = vpack.c.bf16 %v471, %v469
    %v498 = vpack.c.bf16 %v472, %v470
    %v499 = vpack.c.bf16 %v475, %v473
    %v500 = vpack.c.bf16 %v476, %v474
    %v501 = vpack.c.bf16 %v479, %v477
    %v502 = vpack.c.bf16 %v480, %v478
    %v503 = vpack.c.bf16 %v483, %v481
    %v504 = vpack.c.bf16 %v484, %v482
    %v505 = vpack.c.bf16 %v485, %v485
    %v506 = vpack.c.bf16 %v486, %v486
    %v527 = vunpack.c.l.b16 %v487
    %v528 = vunpack.c.l.b16 %v488
    %v529 = vunpack.c.h.b16 %v487
    %v530 = vunpack.c.h.b16 %v488
    %v531 = vunpack.c.l.b16 %v489
    %v532 = vunpack.c.l.b16 %v490
    %v533 = vunpack.c.h.b16 %v489
    %v534 = vunpack.c.h.b16 %v490
    %v535 = vunpack.c.l.b16 %v491
    %v536 = vunpack.c.l.b16 %v492
    %v537 = vunpack.c.h.b16 %v491
    %v538 = vunpack.c.h.b16 %v492
    %v539 = vunpack.c.l.b16 %v493
    %v540 = vunpack.c.l.b16 %v494
    %v541 = vunpack.c.h.b16 %v493
    %v542 = vunpack.c.h.b16 %v494
    %v543 = vunpack.c.l.b16 %v495
    %v544 = vunpack.c.l.b16 %v496
    %v545 = vunpack.c.h.b16 %v495
    %v546 = vunpack.c.h.b16 %v496
    %v547 = vunpack.c.l.b16 %v497
    %v548 = vunpack.c.l.b16 %v498
    %v549 = vunpack.c.h.b16 %v497
    %v550 = vunpack.c.h.b16 %v498
    %v551 = vunpack.c.l.b16 %v499
    %v552 = vunpack.c.l.b16 %v500
    %v553 = vunpack.c.h.b16 %v499
    %v554 = vunpack.c.h.b16 %v500
    %v555 = vunpack.c.l.b16 %v501
    %v556 = vunpack.c.l.b16 %v502
    %v557 = vunpack.c.h.b16 %v501
    %v558 = vunpack.c.h.b16 %v502
    %v559 = vunpack.c.l.b16 %v503
    %v560 = vunpack.c.l.b16 %v504
    %v561 = vunpack.c.h.b16 %v503
    %v562 = vunpack.c.h.b16 %v504
    %v563 = vunpack.c.l.b16 %v505
    %v564 = vunpack.c.l.b16 %v506
    %v565 = vpack.c.b16 %v528, %v527
    %v566 = vpack.c.b16 %v530, %v529
    %v567 = vpack.c.b16 %v532, %v531
    %v568 = vpack.c.b16 %v534, %v533
    %v569 = vpack.c.b16 %v536, %v535
    %v570 = vpack.c.b16 %v538, %v537
    %v571 = vpack.c.b16 %v540, %v539
    %v572 = vpack.c.b16 %v542, %v541
    %v573 = vpack.c.b16 %v544, %v543
    %v574 = vpack.c.b16 %v546, %v545
    %v575 = vpack.c.b16 %v548, %v547
    %v576 = vpack.c.b16 %v550, %v549
    %v577 = vpack.c.b16 %v552, %v551
    %v578 = vpack.c.b16 %v554, %v553
    %v579 = vpack.c.b16 %v556, %v555
    %v580 = vpack.c.b16 %v558, %v557
    %v581 = vpack.c.b16 %v560, %v559
    %v582 = vpack.c.b16 %v562, %v561
    %v583 = vpack.c.b16 %v564, %v563
    %vm603 = vcmask 1043456
    %vm604 = vcmask 523268
    %vm605 = vmor %vm604, %vm603
    %606 = vst.msk [vmem:[%s2] sm:$0xff] %vm605, %v565
    %607 = vst.msk [vmem:[%s2 + $0x8] sm:$0xff] %vm605, %v566
    %608 = vst.msk [vmem:[%s2 + $0x10] sm:$0xff] %vm605, %v567
    %609 = vst.msk [vmem:[%s2 + $0x18] sm:$0xff] %vm605, %v568
    %610 = vst.msk [vmem:[%s2 + $0x20] sm:$0xff] %vm605, %v569
    %611 = vst.msk [vmem:[%s2 + $0x28] sm:$0xff] %vm605, %v570
    %612 = vst.msk [vmem:[%s2 + $0x30] sm:$0xff] %vm605, %v571
    %613 = vst.msk [vmem:[%s2 + $0x38] sm:$0xff] %vm605, %v572
    %614 = vst.msk [vmem:[%s2 + $0x40] sm:$0xff] %vm605, %v573
    %615 = vst.msk [vmem:[%s2 + $0x48] sm:$0xff] %vm605, %v574
    %616 = vst.msk [vmem:[%s2 + $0x50] sm:$0xff] %vm605, %v575
    %617 = vst.msk [vmem:[%s2 + $0x58] sm:$0xff] %vm605, %v576
    %618 = vst.msk [vmem:[%s2 + $0x60] sm:$0xff] %vm605, %v577
    %619 = vst.msk [vmem:[%s2 + $0x68] sm:$0xff] %vm605, %v578
    %620 = vst.msk [vmem:[%s2 + $0x70] sm:$0xff] %vm605, %v579
    %621 = vst.msk [vmem:[%s2 + $0x78] sm:$0xff] %vm605, %v580
    %622 = vst.msk [vmem:[%s2 + $0x80] sm:$0xff] %vm605, %v581
    %623 = vst.msk [vmem:[%s2 + $0x88] sm:$0xff] %vm605, %v582
    %624 = vst.msk [vmem:[%s2 + $0x90] sm:$0xff] %vm605, %v583
  $region17: #{forward.25} parent=0 // pred_fallthru
    _
  // Predicated region
  $region18: #{forward.25} parent=0 // pred_check
    _
  $region19: #{forward.25} parent=0 // pred_check_branch
    %626 = sbr.rel (0) target = $region21
  $region20: #{forward.25} parent=0 // pred_region
    _
  $region21: #{forward.25} parent=0 // pred_fallthru
    _
  // Predicated region
  $region22: #{forward.25} parent=0 // pred_check
    _
  $region23: #{forward.25} parent=0 // pred_check_branch
    %628 = sbr.rel (0) target = $region25
  $region24: #{forward.25} parent=0 // pred_region
    _
  $region25: #{forward.25} parent=0 // pred_fallthru
    _

// kernel: forward.41
$region0: #{forward.41}
  #allocation0 [shape = 'u32[]', space=smem, size = 0x4, offset = 0x4, fixed_abs, tag = 'smem constant byte address 0x4 - core index']
  #allocation1 [shape = 'u32[144,128]{1,0:T(1,128)}', space=vmem, size = 0x12000, scoped, tag = 'internal scratch']
  %s0 = inlined_call_operand.vmem [shape: bf16[152,64], index: 0, kind: input, shape index: {}]
  %s1 = inlined_call_operand.vmem [shape: f32[1,64], index: 1, kind: input, shape index: {}]
  %s2 = inlined_call_operand.vmem [shape: f32[1,64], index: 2, kind: input, shape index: {}]
  %s3 = inlined_call_operand.vmem [shape: bf16[152,64], index: 3, kind: output, shape index: {}]
  %s4 = sld [smem:[#allocation0]]
  $region22: #{forward.41} parent=0
    _
  %s6 = ssub.s32 1, %s4
  %s7 = scalar_select 0, %s6, %s4
  // Predicated region
  $region2: #{forward.41} parent=0 // pred_check
    _
  $region3: #{forward.41} parent=0 // pred_check_branch
    %9 = sbr.rel (0) target = $region5
  $region4: #{forward.41} parent=0 // pred_region
    _
  $region5: #{forward.41} parent=0 // pred_fallthru
    _
  // Predicated region
  $region6: #{forward.41} parent=0 // pred_check
    _
  $region7: #{forward.41} parent=0 // pred_check_branch
    %11 = sbr.rel (0) target = $region9
  $region8: #{forward.41} parent=0 // pred_region
    _
  $region9: #{forward.41} parent=0 // pred_fallthru
    _
  // Predicated region
  $region10: #{forward.41} parent=0 // pred_check
    _
  $region11: #{forward.41} parent=0 // pred_check_branch
    %13 = sbr.rel (0) target = $region13
  $region12: #{forward.41} parent=0 // pred_region
    _
  $region13: #{forward.41} parent=0 // pred_fallthru
    _
  %v14 = vld [vmem:[%s0] sm:$0xf]
  %v15 = vld [vmem:[%s0 + $0x4] sm:$0xf]
  %v16 = vld [vmem:[%s0 + $0x8] sm:$0xf]
  %v17 = vld [vmem:[%s0 + $0xc] sm:$0xf]
  %v18 = vld [vmem:[%s0 + $0x10] sm:$0xf]
  %v19 = vld [vmem:[%s0 + $0x14] sm:$0xf]
  %v20 = vld [vmem:[%s0 + $0x18] sm:$0xf]
  %v21 = vld [vmem:[%s0 + $0x1c] sm:$0xf]
  %v22 = vld [vmem:[%s0 + $0x20] sm:$0xf]
  %v23 = vld [vmem:[%s0 + $0x24] sm:$0xf]
  %v24 = vld [vmem:[%s0 + $0x28] sm:$0xf]
  %v25 = vld [vmem:[%s0 + $0x2c] sm:$0xf]
  %v26 = vld [vmem:[%s0 + $0x30] sm:$0xf]
  %v27 = vld [vmem:[%s0 + $0x34] sm:$0xf]
  %v28 = vld [vmem:[%s0 + $0x38] sm:$0xf]
  %v29 = vld [vmem:[%s0 + $0x3c] sm:$0xf]
  %v30 = vld [vmem:[%s0 + $0x40] sm:$0xf]
  %v31 = vld [vmem:[%s0 + $0x44] sm:$0xf]
  %v32 = vld [vmem:[%s0 + $0x48] sm:$0xf]
  %v33 = vunpack.c.l.bf16 %v14
  %v34 = vunpack.c.l.bf16 %v15
  %v35 = vunpack.c.l.bf16 %v16
  %v36 = vunpack.c.l.bf16 %v17
  %v37 = vunpack.c.l.bf16 %v18
  %v38 = vunpack.c.l.bf16 %v19
  %v39 = vunpack.c.l.bf16 %v20
  %v40 = vunpack.c.l.bf16 %v21
  %v41 = vunpack.c.l.bf16 %v22
  %v42 = vunpack.c.l.bf16 %v23
  %v43 = vunpack.c.l.bf16 %v24
  %v44 = vunpack.c.l.bf16 %v25
  %v45 = vunpack.c.l.bf16 %v26
  %v46 = vunpack.c.l.bf16 %v27
  %v47 = vunpack.c.l.bf16 %v28
  %v48 = vunpack.c.l.bf16 %v29
  %v49 = vunpack.c.l.bf16 %v30
  %v50 = vunpack.c.l.bf16 %v31
  %v51 = vunpack.c.l.bf16 %v32
  %vm52 = vcmask 523264
  %v53 = vsel %vm52, %v33, 0.0
  %54 = vadd.xlane.f32.xlu0 %v53
  %v55 = vpop.xlane.xlu0 %54
  %v56 = vsel %vm52, %v34, 0.0
  %57 = vadd.xlane.f32.xlu0 %v56
  %v58 = vpop.xlane.xlu0 %57
  %v59 = vsel %vm52, %v35, 0.0
  %60 = vadd.xlane.f32.xlu0 %v59
  %v61 = vpop.xlane.xlu0 %60
  %v62 = vsel %vm52, %v36, 0.0
  %63 = vadd.xlane.f32.xlu0 %v62
  %v64 = vpop.xlane.xlu0 %63
  %v65 = vsel %vm52, %v37, 0.0
  %66 = vadd.xlane.f32.xlu0 %v65
  %v67 = vpop.xlane.xlu0 %66
  %v68 = vsel %vm52, %v38, 0.0
  %69 = vadd.xlane.f32.xlu0 %v68
  %v70 = vpop.xlane.xlu0 %69
  %v71 = vsel %vm52, %v39, 0.0
  %72 = vadd.xlane.f32.xlu0 %v71
  %v73 = vpop.xlane.xlu0 %72
  %v74 = vsel %vm52, %v40, 0.0
  %75 = vadd.xlane.f32.xlu0 %v74
  %v76 = vpop.xlane.xlu0 %75
  %v77 = vsel %vm52, %v41, 0.0
  %78 = vadd.xlane.f32.xlu0 %v77
  %v79 = vpop.xlane.xlu0 %78
  %v80 = vsel %vm52, %v42, 0.0
  %81 = vadd.xlane.f32.xlu0 %v80
  %v82 = vpop.xlane.xlu0 %81
  %v83 = vsel %vm52, %v43, 0.0
  %84 = vadd.xlane.f32.xlu0 %v83
  %v85 = vpop.xlane.xlu0 %84
  %v86 = vsel %vm52, %v44, 0.0
  %87 = vadd.xlane.f32.xlu0 %v86
  %v88 = vpop.xlane.xlu0 %87
  %v89 = vsel %vm52, %v45, 0.0
  %90 = vadd.xlane.f32.xlu0 %v89
  %v91 = vpop.xlane.xlu0 %90
  %v92 = vsel %vm52, %v46, 0.0
  %93 = vadd.xlane.f32.xlu0 %v92
  %v94 = vpop.xlane.xlu0 %93
  %v95 = vsel %vm52, %v47, 0.0
  %96 = vadd.xlane.f32.xlu0 %v95
  %v97 = vpop.xlane.xlu0 %96
  %v98 = vsel %vm52, %v48, 0.0
  %99 = vadd.xlane.f32.xlu0 %v98
  %v100 = vpop.xlane.xlu0 %99
  %v101 = vsel %vm52, %v49, 0.0
  %102 = vadd.xlane.f32.xlu0 %v101
  %v103 = vpop.xlane.xlu0 %102
  %v104 = vsel %vm52, %v50, 0.0
  %105 = vadd.xlane.f32.xlu0 %v104
  %v106 = vpop.xlane.xlu0 %105
  %v107 = vsel %vm52, %v51, 0.0
  %108 = vadd.xlane.f32.xlu0 %v107
  %v109 = vpop.xlane.xlu0 %108
  %v110 = vrcp.pop 64.0
  %v111 = vmul.f32 %v55, %v110
  %v112 = vmul.f32 %v58, %v110
  %v113 = vmul.f32 %v61, %v110
  %v114 = vmul.f32 %v64, %v110
  %v115 = vmul.f32 %v67, %v110
  %v116 = vmul.f32 %v70, %v110
  %v117 = vmul.f32 %v73, %v110
  %v118 = vmul.f32 %v76, %v110
  %v119 = vmul.f32 %v79, %v110
  %v120 = vmul.f32 %v82, %v110
  %v121 = vmul.f32 %v85, %v110
  %v122 = vmul.f32 %v88, %v110
  %v123 = vmul.f32 %v91, %v110
  %v124 = vmul.f32 %v94, %v110
  %v125 = vmul.f32 %v97, %v110
  %v126 = vmul.f32 %v100, %v110
  %v127 = vmul.f32 %v103, %v110
  %v128 = vmul.f32 %v106, %v110
  %v129 = vmul.f32 %v109, %v110
  %v130 = vsub.f32 %v33, %v111
  %v131 = vsub.f32 %v34, %v112
  %v132 = vsub.f32 %v35, %v113
  %v133 = vsub.f32 %v36, %v114
  %v134 = vsub.f32 %v37, %v115
  %v135 = vsub.f32 %v38, %v116
  %v136 = vsub.f32 %v39, %v117
  %v137 = vsub.f32 %v40, %v118
  %v138 = vsub.f32 %v41, %v119
  %v139 = vsub.f32 %v42, %v120
  %v140 = vsub.f32 %v43, %v121
  %v141 = vsub.f32 %v44, %v122
  %v142 = vsub.f32 %v45, %v123
  %v143 = vsub.f32 %v46, %v124
  %v144 = vsub.f32 %v47, %v125
  %v145 = vsub.f32 %v48, %v126
  %v146 = vsub.f32 %v49, %v127
  %v147 = vsub.f32 %v50, %v128
  %v148 = vsub.f32 %v51, %v129
  %v149 = vmul.f32 %v130, %v130
  %v150 = vmul.f32 %v131, %v131
  %v151 = vmul.f32 %v132, %v132
  %v152 = vmul.f32 %v133, %v133
  %v153 = vmul.f32 %v134, %v134
  %v154 = vmul.f32 %v135, %v135
  %v155 = vmul.f32 %v136, %v136
  %v156 = vmul.f32 %v137, %v137
  %v157 = vmul.f32 %v138, %v138
  %v158 = vmul.f32 %v139, %v139
  %v159 = vmul.f32 %v140, %v140
  %v160 = vmul.f32 %v141, %v141
  %v161 = vmul.f32 %v142, %v142
  %v162 = vmul.f32 %v143, %v143
  %v163 = vmul.f32 %v144, %v144
  %v164 = vmul.f32 %v145, %v145
  %v165 = vmul.f32 %v146, %v146
  %v166 = vmul.f32 %v147, %v147
  %v167 = vmul.f32 %v148, %v148
  %v168 = vsel %vm52, %v149, 0.0
  %169 = vadd.xlane.f32.xlu0 %v168
  %v170 = vpop.xlane.xlu0 %169
  %v171 = vsel %vm52, %v150, 0.0
  %172 = vadd.xlane.f32.xlu0 %v171
  %v173 = vpop.xlane.xlu0 %172
  %v174 = vsel %vm52, %v151, 0.0
  %175 = vadd.xlane.f32.xlu0 %v174
  %v176 = vpop.xlane.xlu0 %175
  %v177 = vsel %vm52, %v152, 0.0
  %178 = vadd.xlane.f32.xlu0 %v177
  %v179 = vpop.xlane.xlu0 %178
  %v180 = vsel %vm52, %v153, 0.0
  %181 = vadd.xlane.f32.xlu0 %v180
  %v182 = vpop.xlane.xlu0 %181
  %v183 = vsel %vm52, %v154, 0.0
  %184 = vadd.xlane.f32.xlu0 %v183
  %v185 = vpop.xlane.xlu0 %184
  %v186 = vsel %vm52, %v155, 0.0
  %187 = vadd.xlane.f32.xlu0 %v186
  %v188 = vpop.xlane.xlu0 %187
  %v189 = vsel %vm52, %v156, 0.0
  %190 = vadd.xlane.f32.xlu0 %v189
  %v191 = vpop.xlane.xlu0 %190
  %v192 = vsel %vm52, %v157, 0.0
  %193 = vadd.xlane.f32.xlu0 %v192
  %v194 = vpop.xlane.xlu0 %193
  %v195 = vsel %vm52, %v158, 0.0
  %196 = vadd.xlane.f32.xlu0 %v195
  %v197 = vpop.xlane.xlu0 %196
  %v198 = vsel %vm52, %v159, 0.0
  %199 = vadd.xlane.f32.xlu0 %v198
  %v200 = vpop.xlane.xlu0 %199
  %v201 = vsel %vm52, %v160, 0.0
  %202 = vadd.xlane.f32.xlu0 %v201
  %v203 = vpop.xlane.xlu0 %202
  %v204 = vsel %vm52, %v161, 0.0
  %205 = vadd.xlane.f32.xlu0 %v204
  %v206 = vpop.xlane.xlu0 %205
  %v207 = vsel %vm52, %v162, 0.0
  %208 = vadd.xlane.f32.xlu0 %v207
  %v209 = vpop.xlane.xlu0 %208
  %v210 = vsel %vm52, %v163, 0.0
  %211 = vadd.xlane.f32.xlu0 %v210
  %v212 = vpop.xlane.xlu0 %211
  %v213 = vsel %vm52, %v164, 0.0
  %214 = vadd.xlane.f32.xlu0 %v213
  %v215 = vpop.xlane.xlu0 %214
  %v216 = vsel %vm52, %v165, 0.0
  %217 = vadd.xlane.f32.xlu0 %v216
  %v218 = vpop.xlane.xlu0 %217
  %v219 = vsel %vm52, %v166, 0.0
  %220 = vadd.xlane.f32.xlu0 %v219
  %v221 = vpop.xlane.xlu0 %220
  %v222 = vsel %vm52, %v167, 0.0
  %223 = vadd.xlane.f32.xlu0 %v222
  %v224 = vpop.xlane.xlu0 %223
  %v225 = vmul.f32 %v170, %v110
  %v226 = vmul.f32 %v173, %v110
  %v227 = vmul.f32 %v176, %v110
  %v228 = vmul.f32 %v179, %v110
  %v229 = vmul.f32 %v182, %v110
  %v230 = vmul.f32 %v185, %v110
  %v231 = vmul.f32 %v188, %v110
  %v232 = vmul.f32 %v191, %v110
  %v233 = vmul.f32 %v194, %v110
  %v234 = vmul.f32 %v197, %v110
  %v235 = vmul.f32 %v200, %v110
  %v236 = vmul.f32 %v203, %v110
  %v237 = vmul.f32 %v206, %v110
  %v238 = vmul.f32 %v209, %v110
  %v239 = vmul.f32 %v212, %v110
  %v240 = vmul.f32 %v215, %v110
  %v241 = vmul.f32 %v218, %v110
  %v242 = vmul.f32 %v221, %v110
  %v243 = vmul.f32 %v224, %v110
  %v244 = vadd.f32 %v225, 1e-05
  %v245 = vadd.f32 %v226, 1e-05
  %v246 = vadd.f32 %v227, 1e-05
  %v247 = vadd.f32 %v228, 1e-05
  %v248 = vadd.f32 %v229, 1e-05
  %v249 = vadd.f32 %v230, 1e-05
  %v250 = vadd.f32 %v231, 1e-05
  %v251 = vadd.f32 %v232, 1e-05
  %v252 = vadd.f32 %v233, 1e-05
  %v253 = vadd.f32 %v234, 1e-05
  %v254 = vadd.f32 %v235, 1e-05
  %v255 = vadd.f32 %v236, 1e-05
  %v256 = vadd.f32 %v237, 1e-05
  %v257 = vadd.f32 %v238, 1e-05
  %v258 = vadd.f32 %v239, 1e-05
  %v259 = vadd.f32 %v240, 1e-05
  %v260 = vadd.f32 %v241, 1e-05
  %v261 = vadd.f32 %v242, 1e-05
  %v262 = vadd.f32 %v243, 1e-05
  %v263 = vrsqrt.pop %v244
  %v264 = vrsqrt.pop %v245
  %v265 = vrsqrt.pop %v246
  %v266 = vrsqrt.pop %v247
  %v267 = vrsqrt.pop %v248
  %v268 = vrsqrt.pop %v249
  %v269 = vrsqrt.pop %v250
  %v270 = vrsqrt.pop %v251
  %v271 = vrsqrt.pop %v252
  %v272 = vrsqrt.pop %v253
  %v273 = vrsqrt.pop %v254
  %v274 = vrsqrt.pop %v255
  %v275 = vrsqrt.pop %v256
  %v276 = vrsqrt.pop %v257
  %v277 = vrsqrt.pop %v258
  %v278 = vrsqrt.pop %v259
  %v279 = vrsqrt.pop %v260
  %v280 = vrsqrt.pop %v261
  %v281 = vrsqrt.pop %v262
  %v282 = vmul.f32 %v130, %v263
  %v283 = vmul.f32 %v131, %v264
  %v284 = vmul.f32 %v132, %v265
  %v285 = vmul.f32 %v133, %v266
  %v286 = vmul.f32 %v134, %v267
  %v287 = vmul.f32 %v135, %v268
  %v288 = vmul.f32 %v136, %v269
  %v289 = vmul.f32 %v137, %v270
  %v290 = vmul.f32 %v138, %v271
  %v291 = vmul.f32 %v139, %v272
  %v292 = vmul.f32 %v140, %v273
  %v293 = vmul.f32 %v141, %v274
  %v294 = vmul.f32 %v142, %v275
  %v295 = vmul.f32 %v143, %v276
  %v296 = vmul.f32 %v144, %v277
  %v297 = vmul.f32 %v145, %v278
  %v298 = vmul.f32 %v146, %v279
  %v299 = vmul.f32 %v147, %v280
  %v300 = vmul.f32 %v148, %v281
  %v301 = vld [vmem:[%s1] sm:$0x1]
  %v303 = vlaneseq
  %v304 = vshrl.u32 %v303, 7
  %v305 = vsub.s32 0, %v304
  %v306 = vrot.slane %v301, %v305
  %v308 = vmul.f32 %v282, %v306
  %v309 = vmul.f32 %v283, %v306
  %v310 = vmul.f32 %v284, %v306
  %v311 = vmul.f32 %v285, %v306
  %v312 = vmul.f32 %v286, %v306
  %v313 = vmul.f32 %v287, %v306
  %v314 = vmul.f32 %v288, %v306
  %v315 = vmul.f32 %v289, %v306
  %v316 = vmul.f32 %v290, %v306
  %v317 = vmul.f32 %v291, %v306
  %v318 = vmul.f32 %v292, %v306
  %v319 = vmul.f32 %v293, %v306
  %v320 = vmul.f32 %v294, %v306
  %v321 = vmul.f32 %v295, %v306
  %v322 = vmul.f32 %v296, %v306
  %v323 = vmul.f32 %v297, %v306
  %v324 = vmul.f32 %v298, %v306
  %v325 = vmul.f32 %v299, %v306
  %v326 = vmul.f32 %v300, %v306
  %v327 = vld [vmem:[%s2] sm:$0x1]
  %v329 = vlaneseq
  %v330 = vshrl.u32 %v329, 7
  %v331 = vsub.s32 0, %v330
  %v332 = vrot.slane %v327, %v331
  %v334 = vadd.f32 %v308, %v332
  %v335 = vadd.f32 %v309, %v332
  %v336 = vadd.f32 %v310, %v332
  %v337 = vadd.f32 %v311, %v332
  %v338 = vadd.f32 %v312, %v332
  %v339 = vadd.f32 %v313, %v332
  %v340 = vadd.f32 %v314, %v332
  %v341 = vadd.f32 %v315, %v332
  %v342 = vadd.f32 %v316, %v332
  %v343 = vadd.f32 %v317, %v332
  %v344 = vadd.f32 %v318, %v332
  %v345 = vadd.f32 %v319, %v332
  %v346 = vadd.f32 %v320, %v332
  %v347 = vadd.f32 %v321, %v332
  %v348 = vadd.f32 %v322, %v332
  %v349 = vadd.f32 %v323, %v332
  %v350 = vadd.f32 %v324, %v332
  %v351 = vadd.f32 %v325, %v332
  %v352 = vadd.f32 %v326, %v332
  %v353 = vpack.c.bf16 %v335, %v334
  %v354 = vpack.c.bf16 %v337, %v336
  %v355 = vpack.c.bf16 %v339, %v338
  %v356 = vpack.c.bf16 %v341, %v340
  %v357 = vpack.c.bf16 %v343, %v342
  %v358 = vpack.c.bf16 %v345, %v344
  %v359 = vpack.c.bf16 %v347, %v346
  %v360 = vpack.c.bf16 %v349, %v348
  %v361 = vpack.c.bf16 %v351, %v350
  %v362 = vpack.c.bf16 %v352, %v352
  %v373 = vunpack.c.l.b16 %v353
  %v374 = vunpack.c.h.b16 %v353
  %v375 = vunpack.c.l.b16 %v354
  %v376 = vunpack.c.h.b16 %v354
  %v377 = vunpack.c.l.b16 %v355
  %v378 = vunpack.c.h.b16 %v355
  %v379 = vunpack.c.l.b16 %v356
  %v380 = vunpack.c.h.b16 %v356
  %v381 = vunpack.c.l.b16 %v357
  %v382 = vunpack.c.h.b16 %v357
  %v383 = vunpack.c.l.b16 %v358
  %v384 = vunpack.c.h.b16 %v358
  %v385 = vunpack.c.l.b16 %v359
  %v386 = vunpack.c.h.b16 %v359
  %v387 = vunpack.c.l.b16 %v360
  %v388 = vunpack.c.h.b16 %v360
  %v389 = vunpack.c.l.b16 %v361
  %v390 = vunpack.c.h.b16 %v361
  %v391 = vunpack.c.l.b16 %v362
  %v392 = vpack.c.b16 %v373, %v373
  %v393 = vpack.c.b16 %v374, %v374
  %v394 = vpack.c.b16 %v375, %v375
  %v395 = vpack.c.b16 %v376, %v376
  %v396 = vpack.c.b16 %v377, %v377
  %v397 = vpack.c.b16 %v378, %v378
  %v398 = vpack.c.b16 %v379, %v379
  %v399 = vpack.c.b16 %v380, %v380
  %v400 = vpack.c.b16 %v381, %v381
  %v401 = vpack.c.b16 %v382, %v382
  %v402 = vpack.c.b16 %v383, %v383
  %v403 = vpack.c.b16 %v384, %v384
  %v404 = vpack.c.b16 %v385, %v385
  %v405 = vpack.c.b16 %v386, %v386
  %v406 = vpack.c.b16 %v387, %v387
  %v407 = vpack.c.b16 %v388, %v388
  %v408 = vpack.c.b16 %v389, %v389
  %v409 = vpack.c.b16 %v390, %v390
  %v410 = vpack.c.b16 %v391, %v391
  %vm430 = vcmask 519168
  %431 = vst.msk [vmem:[%s3] sm:$0xf] %vm430, %v392
  %432 = vst.msk [vmem:[%s3 + $0x4] sm:$0xf] %vm430, %v393
  %433 = vst.msk [vmem:[%s3 + $0x8] sm:$0xf] %vm430, %v394
  %434 = vst.msk [vmem:[%s3 + $0xc] sm:$0xf] %vm430, %v395
  %435 = vst.msk [vmem:[%s3 + $0x10] sm:$0xf] %vm430, %v396
  %436 = vst.msk [vmem:[%s3 + $0x14] sm:$0xf] %vm430, %v397
  %437 = vst.msk [vmem:[%s3 + $0x18] sm:$0xf] %vm430, %v398
  %438 = vst.msk [vmem:[%s3 + $0x1c] sm:$0xf] %vm430, %v399
  %439 = vst.msk [vmem:[%s3 + $0x20] sm:$0xf] %vm430, %v400
  %440 = vst.msk [vmem:[%s3 + $0x24] sm:$0xf] %vm430, %v401
  %441 = vst.msk [vmem:[%s3 + $0x28] sm:$0xf] %vm430, %v402
  %442 = vst.msk [vmem:[%s3 + $0x2c] sm:$0xf] %vm430, %v403
  %443 = vst.msk [vmem:[%s3 + $0x30] sm:$0xf] %vm430, %v404
  %444 = vst.msk [vmem:[%s3 + $0x34] sm:$0xf] %vm430, %v405
  %445 = vst.msk [vmem:[%s3 + $0x38] sm:$0xf] %vm430, %v406
  %446 = vst.msk [vmem:[%s3 + $0x3c] sm:$0xf] %vm430, %v407
  %447 = vst.msk [vmem:[%s3 + $0x40] sm:$0xf] %vm430, %v408
  %448 = vst.msk [vmem:[%s3 + $0x44] sm:$0xf] %vm430, %v409
  %449 = vst.msk [vmem:[%s3 + $0x48] sm:$0xf] %vm430, %v410
  // Predicated region
  $region14: #{forward.41} parent=0 // pred_check
    _
  $region15: #{forward.41} parent=0 // pred_check_branch
    %451 = sbr.rel (0) target = $region17
  $region16: #{forward.41} parent=0 // pred_region
    _
  $region17: #{forward.41} parent=0 // pred_fallthru
    _
  // Predicated region
  $region18: #{forward.41} parent=0 // pred_check
    _
  $region19: #{forward.41} parent=0 // pred_check_branch
    %453 = sbr.rel (0) target = $region21
  $region20: #{forward.41} parent=0 // pred_region
    _
  $region21: #{forward.41} parent=0 // pred_fallthru
    _

// kernel: forward.29
$region0: #{forward.29}
  #allocation0 [shape = 'u32[]', space=smem, size = 0x4, offset = 0x4, fixed_abs, tag = 'smem constant byte address 0x4 - core index']
  #allocation1 [shape = 'u32[144,128]{1,0:T(1,128)}', space=vmem, size = 0x12000, scoped, tag = 'internal scratch']
  #allocation2 [shape = 'f32[152,64]{1,0:T(8,128)}', space=vmem, size = 0x13000, scoped, tag = 'scratch operand']
  %s0 = inlined_call_operand.vmem [shape: bf16[152,256], index: 0, kind: input, shape index: {}]
  %s1 = inlined_call_operand.vmem [shape: bf16[256,64], index: 1, kind: input, shape index: {}]
  %s2 = inlined_call_operand.vmem [shape: f32[1,64], index: 2, kind: input, shape index: {}]
  %s3 = inlined_call_operand.vmem [shape: bf16[152,64], index: 3, kind: input, shape index: {}]
  %s4 = inlined_call_operand.vmem [shape: f32[1,64], index: 4, kind: input, shape index: {}]
  %s5 = inlined_call_operand.vmem [shape: f32[1,64], index: 5, kind: input, shape index: {}]
  %s6 = inlined_call_operand.vmem [shape: bf16[152,64], index: 6, kind: output, shape index: {}]
  %s7 = sld [smem:[#allocation0]]
  $region42: #{forward.29} parent=0
    _
  %s9 = ssub.s32 1, %s7
  %s10 = scalar_select 0, %s9, %s7
  // Predicated region
  $region2: #{forward.29} parent=0 // pred_check
    _
  $region3: #{forward.29} parent=0 // pred_check_branch
    %12 = sbr.rel (0) target = $region5
  $region4: #{forward.29} parent=0 // pred_region
    _
  $region5: #{forward.29} parent=0 // pred_fallthru
    _
  // Predicated region
  $region6: #{forward.29} parent=0 // pred_check
    _
  $region7: #{forward.29} parent=0 // pred_check_branch
    %14 = sbr.rel (0) target = $region9
  $region8: #{forward.29} parent=0 // pred_region
    _
  $region9: #{forward.29} parent=0 // pred_fallthru
    _
  // Predicated region
  $region10: #{forward.29} parent=0 // pred_check
    _
  $region11: #{forward.29} parent=0 // pred_check_branch
    %16 = sbr.rel (0) target = $region13
  $region12: #{forward.29} parent=0 // pred_region
    _
  $region13: #{forward.29} parent=0 // pred_fallthru
    _
  // Predicated region
  $region14: #{forward.29} parent=0 // pred_check
    _
  $region15: #{forward.29} parent=0 // pred_check_branch
    %18 = sbr.rel (0) target = $region17
  $region16: #{forward.29} parent=0 // pred_region
    _
  $region17: #{forward.29} parent=0 // pred_fallthru
    _
  // Predicated region
  $region18: #{forward.29} parent=0 // pred_check
    _
  $region19: #{forward.29} parent=0 // pred_check_branch
    %20 = sbr.rel (0) target = $region21
  $region20: #{forward.29} parent=0 // pred_region
    _
  $region21: #{forward.29} parent=0 // pred_fallthru
    _
  // Predicated region
  $region22: #{forward.29} parent=0 // pred_check
    _
  $region23: #{forward.29} parent=0 // pred_check_branch
    %22 = sbr.rel (0) target = $region25
  $region24: #{forward.29} parent=0 // pred_region
    _
  $region25: #{forward.29} parent=0 // pred_fallthru
    _
  %p24 = scmp.eq.s32.totalorder 0, 0
  // Predicated region
  $region26: #{forward.29} parent=0 // pred_check
    %p25 = pneg %p24
  $region27: #{forward.29} parent=0 // pred_check_branch
    %27 = sbr.rel (%p25) target = $region29
  $region28: #{forward.29} parent=0 // pred_region
    %vm28 = vcmask 523264
    %29 = vst.msk [vmem:[#allocation2] sm:$0xff] %vm28, 0.0
    %30 = vst.msk [vmem:[#allocation2 + $0x8] sm:$0xff] %vm28, 0.0
    %31 = vst.msk [vmem:[#allocation2 + $0x10] sm:$0xff] %vm28, 0.0
    %32 = vst.msk [vmem:[#allocation2 + $0x18] sm:$0xff] %vm28, 0.0
    %33 = vst.msk [vmem:[#allocation2 + $0x20] sm:$0xff] %vm28, 0.0
    %34 = vst.msk [vmem:[#allocation2 + $0x28] sm:$0xff] %vm28, 0.0
    %35 = vst.msk [vmem:[#allocation2 + $0x30] sm:$0xff] %vm28, 0.0
    %36 = vst.msk [vmem:[#allocation2 + $0x38] sm:$0xff] %vm28, 0.0
    %37 = vst.msk [vmem:[#allocation2 + $0x40] sm:$0xff] %vm28, 0.0
    %38 = vst.msk [vmem:[#allocation2 + $0x48] sm:$0xff] %vm28, 0.0
    %39 = vst.msk [vmem:[#allocation2 + $0x50] sm:$0xff] %vm28, 0.0
    %40 = vst.msk [vmem:[#allocation2 + $0x58] sm:$0xff] %vm28, 0.0
    %41 = vst.msk [vmem:[#allocation2 + $0x60] sm:$0xff] %vm28, 0.0
    %42 = vst.msk [vmem:[#allocation2 + $0x68] sm:$0xff] %vm28, 0.0
    %43 = vst.msk [vmem:[#allocation2 + $0x70] sm:$0xff] %vm28, 0.0
    %44 = vst.msk [vmem:[#allocation2 + $0x78] sm:$0xff] %vm28, 0.0
    %45 = vst.msk [vmem:[#allocation2 + $0x80] sm:$0xff] %vm28, 0.0
    %46 = vst.msk [vmem:[#allocation2 + $0x88] sm:$0xff] %vm28, 0.0
    %47 = vst.msk [vmem:[#allocation2 + $0x90] sm:$0xff] %vm28, 0.0
  $region29: #{forward.29} parent=0 // pred_fallthru
    _
  %v48 = vld [vmem:[%s0] sm:$0xff]
  %v49 = vld [vmem:[%s0 + $0x8] sm:$0xff]
  %v50 = vld [vmem:[%s0 + $0x10] sm:$0xff]
  %v51 = vld [vmem:[%s0 + $0x18] sm:$0xff]
  %v52 = vld [vmem:[%s0 + $0x20] sm:$0xff]
  %v53 = vld [vmem:[%s0 + $0x28] sm:$0xff]
  %v54 = vld [vmem:[%s0 + $0x30] sm:$0xff]
  %v55 = vld [vmem:[%s0 + $0x38] sm:$0xff]
  %v56 = vld [vmem:[%s0 + $0x40] sm:$0xff]
  %v57 = vld [vmem:[%s0 + $0x48] sm:$0xff]
  %v58 = vld [vmem:[%s0 + $0x50] sm:$0xff]
  %v59 = vld [vmem:[%s0 + $0x58] sm:$0xff]
  %v60 = vld [vmem:[%s0 + $0x60] sm:$0xff]
  %v61 = vld [vmem:[%s0 + $0x68] sm:$0xff]
  %v62 = vld [vmem:[%s0 + $0x70] sm:$0xff]
  %v63 = vld [vmem:[%s0 + $0x78] sm:$0xff]
  %v64 = vld [vmem:[%s0 + $0x80] sm:$0xff]
  %v65 = vld [vmem:[%s0 + $0x88] sm:$0xff]
  %v66 = vld [vmem:[%s0 + $0x90] sm:$0xff]
  %v67 = vld [vmem:[%s1] sm:$0xf]
  %v68 = vld [vmem:[%s1 + $0x4] sm:$0xf]
  %v69 = vld [vmem:[%s1 + $0x8] sm:$0xf]
  %v70 = vld [vmem:[%s1 + $0xc] sm:$0xf]
  %v71 = vld [vmem:[%s1 + $0x10] sm:$0xf]
  %v72 = vld [vmem:[%s1 + $0x14] sm:$0xf]
  %v73 = vld [vmem:[%s1 + $0x18] sm:$0xf]
  %v74 = vld [vmem:[%s1 + $0x1c] sm:$0xf]
  %v75 = vld [vmem:[%s1 + $0x20] sm:$0xf]
  %v76 = vld [vmem:[%s1 + $0x24] sm:$0xf]
  %v77 = vld [vmem:[%s1 + $0x28] sm:$0xf]
  %v78 = vld [vmem:[%s1 + $0x2c] sm:$0xf]
  %v79 = vld [vmem:[%s1 + $0x30] sm:$0xf]
  %v80 = vld [vmem:[%s1 + $0x34] sm:$0xf]
  %v81 = vld [vmem:[%s1 + $0x38] sm:$0xf]
  %v82 = vld [vmem:[%s1 + $0x3c] sm:$0xf]
  %v83 = vld [vmem:[%s1 + $0x40] sm:$0xf]
  %v84 = vld [vmem:[%s1 + $0x44] sm:$0xf]
  %v85 = vld [vmem:[%s1 + $0x48] sm:$0xf]
  %v86 = vld [vmem:[%s1 + $0x4c] sm:$0xf]
  %v87 = vld [vmem:[%s1 + $0x50] sm:$0xf]
  %v88 = vld [vmem:[%s1 + $0x54] sm:$0xf]
  %v89 = vld [vmem:[%s1 + $0x58] sm:$0xf]
  %v90 = vld [vmem:[%s1 + $0x5c] sm:$0xf]
  %v91 = vld [vmem:[%s1 + $0x60] sm:$0xf]
  %v92 = vld [vmem:[%s1 + $0x64] sm:$0xf]
  %v93 = vld [vmem:[%s1 + $0x68] sm:$0xf]
  %v94 = vld [vmem:[%s1 + $0x6c] sm:$0xf]
  %v95 = vld [vmem:[%s1 + $0x70] sm:$0xf]
  %v96 = vld [vmem:[%s1 + $0x74] sm:$0xf]
  %v97 = vld [vmem:[%s1 + $0x78] sm:$0xf]
  %v98 = vld [vmem:[%s1 + $0x7c] sm:$0xf]
  %v118 = vunpack.c.l.b16 %v48
  %v119 = vunpack.c.h.b16 %v48
  %v120 = vunpack.c.l.b16 %v49
  %v121 = vunpack.c.h.b16 %v49
  %v122 = vunpack.c.l.b16 %v50
  %v123 = vunpack.c.h.b16 %v50
  %v124 = vunpack.c.l.b16 %v51
  %v125 = vunpack.c.h.b16 %v51
  %v126 = vunpack.c.l.b16 %v52
  %v127 = vunpack.c.h.b16 %v52
  %v128 = vunpack.c.l.b16 %v53
  %v129 = vunpack.c.h.b16 %v53
  %v130 = vunpack.c.l.b16 %v54
  %v131 = vunpack.c.h.b16 %v54
  %v132 = vunpack.c.l.b16 %v55
  %v133 = vunpack.c.h.b16 %v55
  %v134 = vunpack.c.l.b16 %v56
  %v135 = vunpack.c.h.b16 %v56
  %v136 = vunpack.c.l.b16 %v57
  %v137 = vunpack.c.h.b16 %v57
  %v138 = vunpack.c.l.b16 %v58
  %v139 = vunpack.c.h.b16 %v58
  %v140 = vunpack.c.l.b16 %v59
  %v141 = vunpack.c.h.b16 %v59
  %v142 = vunpack.c.l.b16 %v60
  %v143 = vunpack.c.h.b16 %v60
  %v144 = vunpack.c.l.b16 %v61
  %v145 = vunpack.c.h.b16 %v61
  %v146 = vunpack.c.l.b16 %v62
  %v147 = vunpack.c.h.b16 %v62
  %v148 = vunpack.c.l.b16 %v63
  %v149 = vunpack.c.h.b16 %v63
  %v150 = vunpack.c.l.b16 %v64
  %v151 = vunpack.c.h.b16 %v64
  %v152 = vunpack.c.l.b16 %v65
  %v153 = vunpack.c.h.b16 %v65
  %v154 = vunpack.c.l.b16 %v66
  %v155 = vunpack.c.h.b16 %v66
  %v156 = vpack.c.b16 %v120, %v118
  %v157 = vpack.c.b16 %v121, %v119
  %v158 = vpack.c.b16 %v124, %v122
  %v159 = vpack.c.b16 %v125, %v123
  %v160 = vpack.c.b16 %v128, %v126
  %v161 = vpack.c.b16 %v129, %v127
  %v162 = vpack.c.b16 %v132, %v130
  %v163 = vpack.c.b16 %v133, %v131
  %v164 = vpack.c.b16 %v136, %v134
  %v165 = vpack.c.b16 %v137, %v135
  %v166 = vpack.c.b16 %v140, %v138
  %v167 = vpack.c.b16 %v141, %v139
  %v168 = vpack.c.b16 %v144, %v142
  %v169 = vpack.c.b16 %v145, %v143
  %v170 = vpack.c.b16 %v148, %v146
  %v171 = vpack.c.b16 %v149, %v147
  %v172 = vpack.c.b16 %v152, %v150
  %v173 = vpack.c.b16 %v153, %v151
  %v174 = vpack.c.b16 %v154, %v154
  %v175 = vpack.c.b16 %v155, %v155
  %v228 = vunpack.c.l.b16 %v67
  %v229 = vunpack.c.l.b16 %v68
  %v230 = vunpack.c.l.b16 %v69
  %v231 = vunpack.c.l.b16 %v70
  %v232 = vunpack.c.l.b16 %v71
  %v233 = vunpack.c.l.b16 %v72
  %v234 = vunpack.c.l.b16 %v73
  %v235 = vunpack.c.l.b16 %v74
  %v236 = vunpack.c.l.b16 %v75
  %v237 = vunpack.c.l.b16 %v76
  %v238 = vunpack.c.l.b16 %v77
  %v239 = vunpack.c.l.b16 %v78
  %v240 = vunpack.c.l.b16 %v79
  %v241 = vunpack.c.l.b16 %v80
  %v242 = vunpack.c.l.b16 %v81
  %v243 = vunpack.c.l.b16 %v82
  %v244 = vunpack.c.l.b16 %v83
  %v245 = vunpack.c.l.b16 %v84
  %v246 = vunpack.c.l.b16 %v85
  %v247 = vunpack.c.l.b16 %v86
  %v248 = vunpack.c.l.b16 %v87
  %v249 = vunpack.c.l.b16 %v88
  %v250 = vunpack.c.l.b16 %v89
  %v251 = vunpack.c.l.b16 %v90
  %v252 = vunpack.c.l.b16 %v91
  %v253 = vunpack.c.l.b16 %v92
  %v254 = vunpack.c.l.b16 %v93
  %v255 = vunpack.c.l.b16 %v94
  %v256 = vunpack.c.l.b16 %v95
  %v257 = vunpack.c.l.b16 %v96
  %v258 = vunpack.c.l.b16 %v97
  %v259 = vunpack.c.l.b16 %v98
  %v260 = vpack.c.b16 %v229, %v228
  %v261 = vpack.c.b16 %v231, %v230
  %v262 = vpack.c.b16 %v233, %v232
  %v263 = vpack.c.b16 %v235, %v234
  %v264 = vpack.c.b16 %v237, %v236
  %v265 = vpack.c.b16 %v239, %v238
  %v266 = vpack.c.b16 %v241, %v240
  %v267 = vpack.c.b16 %v243, %v242
  %v268 = vpack.c.b16 %v245, %v244
  %v269 = vpack.c.b16 %v247, %v246
  %v270 = vpack.c.b16 %v249, %v248
  %v271 = vpack.c.b16 %v251, %v250
  %v272 = vpack.c.b16 %v253, %v252
  %v273 = vpack.c.b16 %v255, %v254
  %v274 = vpack.c.b16 %v257, %v256
  %v275 = vpack.c.b16 %v259, %v258
  %292 = vmatprep.subr.bf16.mxu0 0
  %293 = vmatpush1.bf16.msra.mxu0 %v267
  %294 = vmatprep.subr.bf16.mxu0 0
  %295 = vmatpush1.bf16.msra.mxu0 %v266
  %296 = vmatprep.subr.bf16.mxu0 0
  %297 = vmatpush1.bf16.msra.mxu0 %v265
  %298 = vmatprep.subr.bf16.mxu0 0
  %299 = vmatpush1.bf16.msra.mxu0 %v264
  %300 = vmatprep.subr.bf16.mxu0 0
  %301 = vmatpush1.bf16.msra.mxu0 %v263
  %302 = vmatprep.subr.bf16.mxu0 0
  %303 = vmatpush1.bf16.msra.mxu0 %v262
  %304 = vmatprep.subr.bf16.mxu0 0
  %305 = vmatpush1.bf16.msra.mxu0 %v261
  %306 = vmatprep.subr.bf16.mxu0 0
  %307 = vmatpush1.bf16.msra.mxu0 %v260
  %308 = vmatprep.subr.bf16.mxu0 0
  %309 = vmatpush2.bf16.msra.mxu0 %v275
  %310 = vmatprep.subr.bf16.mxu0 0
  %311 = vmatpush2.bf16.msra.mxu0 %v274
  %312 = vmatprep.subr.bf16.mxu0 0
  %313 = vmatpush2.bf16.msra.mxu0 %v273
  %314 = vmatprep.subr.bf16.mxu0 0
  %315 = vmatpush2.bf16.msra.mxu0 %v272
  %316 = vmatprep.subr.bf16.mxu0 0
  %317 = vmatpush2.bf16.msra.mxu0 %v271
  %318 = vmatprep.subr.bf16.mxu0 0
  %319 = vmatpush2.bf16.msra.mxu0 %v270
  %320 = vmatprep.subr.bf16.mxu0 0
  %321 = vmatpush2.bf16.msra.mxu0 %v269
  %322 = vmatprep.subr.bf16.mxu0 0
  %323 = vmatpush2.bf16.msra.mxu0 %v268
  %324 = vmatprep.mubr.bf16.mxu0 %v157
  %325 = vmatmul.mubr.bf16.gmra.mxu0 %v156
  %v326 = vpop.f32.mrf.mxu0
  %v327 = vadd.f32 0.0, %v326
  %v328 = vpop.f32.mrf.mxu0
  %v329 = vpop.f32.mrf.mxu0
  %v330 = vadd.f32 0.0, %v329
  %v331 = vpop.f32.mrf.mxu0
  %332 = vmatprep.mubr.bf16.mxu0 %v159
  %333 = vmatmul.mubr.bf16.gmra.mxu0 %v158
  %v334 = vpop.f32.mrf.mxu0
  %v335 = vadd.f32 0.0, %v334
  %v336 = vpop.f32.mrf.mxu0
  %v337 = vpop.f32.mrf.mxu0
  %v338 = vadd.f32 0.0, %v337
  %v339 = vpop.f32.mrf.mxu0
  %340 = vmatprep.mubr.bf16.mxu0 %v161
  %341 = vmatmul.mubr.bf16.gmra.mxu0 %v160
  %v342 = vpop.f32.mrf.mxu0
  %v343 = vadd.f32 0.0, %v342
  %v344 = vpop.f32.mrf.mxu0
  %v345 = vpop.f32.mrf.mxu0
  %v346 = vadd.f32 0.0, %v345
  %v347 = vpop.f32.mrf.mxu0
  %348 = vmatprep.mubr.bf16.mxu0 %v163
  %349 = vmatmul.mubr.bf16.gmra.mxu0 %v162
  %v350 = vpop.f32.mrf.mxu0
  %v351 = vadd.f32 0.0, %v350
  %v352 = vpop.f32.mrf.mxu0
  %v353 = vpop.f32.mrf.mxu0
  %v354 = vadd.f32 0.0, %v353
  %v355 = vpop.f32.mrf.mxu0
  %356 = vmatprep.mubr.bf16.mxu0 %v165
  %357 = vmatmul.mubr.bf16.gmra.mxu0 %v164
  %v358 = vpop.f32.mrf.mxu0
  %v359 = vadd.f32 0.0, %v358
  %v360 = vpop.f32.mrf.mxu0
  %v361 = vpop.f32.mrf.mxu0
  %v362 = vadd.f32 0.0, %v361
  %v363 = vpop.f32.mrf.mxu0
  %364 = vmatprep.mubr.bf16.mxu0 %v167
  %365 = vmatmul.mubr.bf16.gmra.mxu0 %v166
  %v366 = vpop.f32.mrf.mxu0
  %v367 = vadd.f32 0.0, %v366
  %v368 = vpop.f32.mrf.mxu0
  %v369 = vpop.f32.mrf.mxu0
  %v370 = vadd.f32 0.0, %v369
  %v371 = vpop.f32.mrf.mxu0
  %372 = vmatprep.mubr.bf16.mxu0 %v169
  %373 = vmatmul.mubr.bf16.gmra.mxu0 %v168
  %v374 = vpop.f32.mrf.mxu0
  %v375 = vadd.f32 0.0, %v374
  %v376 = vpop.f32.mrf.mxu0
  %v377 = vpop.f32.mrf.mxu0
  %v378 = vadd.f32 0.0, %v377
  %v379 = vpop.f32.mrf.mxu0
  %380 = vmatprep.mubr.bf16.mxu0 %v171
  %381 = vmatmul.mubr.bf16.gmra.mxu0 %v170
  %v382 = vpop.f32.mrf.mxu0
  %v383 = vadd.f32 0.0, %v382
  %v384 = vpop.f32.mrf.mxu0
  %v385 = vpop.f32.mrf.mxu0
  %v386 = vadd.f32 0.0, %v385
  %v387 = vpop.f32.mrf.mxu0
  %388 = vmatprep.mubr.bf16.mxu0 %v173
  %389 = vmatmul.mubr.bf16.gmra.mxu0 %v172
  %v390 = vpop.f32.mrf.mxu0
  %v391 = vadd.f32 0.0, %v390
  %v392 = vpop.f32.mrf.mxu0
  %v393 = vpop.f32.mrf.mxu0
  %v394 = vadd.f32 0.0, %v393
  %v395 = vpop.f32.mrf.mxu0
  %396 = vmatprep.mubr.bf16.mxu0 %v175
  %397 = vmatmul.mubr.bf16.gmra.mxu0 %v174
  %v398 = vpop.f32.mrf.mxu0
  %v399 = vadd.f32 0.0, %v398
  %v400 = vpop.f32.mrf.mxu0
  %v401 = vpop.f32.mrf.mxu0
  %v402 = vpop.f32.mrf.mxu0
  %403 = vdwg.mxu0
  %v404 = vld [vmem:[#allocation2] sm:$0xff]
  %v405 = vld [vmem:[#allocation2 + $0x8] sm:$0xff]
  %v406 = vld [vmem:[#allocation2 + $0x10] sm:$0xff]
  %v407 = vld [vmem:[#allocation2 + $0x18] sm:$0xff]
  %v408 = vld [vmem:[#allocation2 + $0x20] sm:$0xff]
  %v409 = vld [vmem:[#allocation2 + $0x28] sm:$0xff]
  %v410 = vld [vmem:[#allocation2 + $0x30] sm:$0xff]
  %v411 = vld [vmem:[#allocation2 + $0x38] sm:$0xff]
  %v412 = vld [vmem:[#allocation2 + $0x40] sm:$0xff]
  %v413 = vld [vmem:[#allocation2 + $0x48] sm:$0xff]
  %v414 = vld [vmem:[#allocation2 + $0x50] sm:$0xff]
  %v415 = vld [vmem:[#allocation2 + $0x58] sm:$0xff]
  %v416 = vld [vmem:[#allocation2 + $0x60] sm:$0xff]
  %v417 = vld [vmem:[#allocation2 + $0x68] sm:$0xff]
  %v418 = vld [vmem:[#allocation2 + $0x70] sm:$0xff]
  %v419 = vld [vmem:[#allocation2 + $0x78] sm:$0xff]
  %v420 = vld [vmem:[#allocation2 + $0x80] sm:$0xff]
  %v421 = vld [vmem:[#allocation2 + $0x88] sm:$0xff]
  %v422 = vld [vmem:[#allocation2 + $0x90] sm:$0xff]
  %v423 = vadd.f32 %v404, %v327
  %v424 = vadd.f32 %v405, %v330
  %v425 = vadd.f32 %v406, %v335
  %v426 = vadd.f32 %v407, %v338
  %v427 = vadd.f32 %v408, %v343
  %v428 = vadd.f32 %v409, %v346
  %v429 = vadd.f32 %v410, %v351
  %v430 = vadd.f32 %v411, %v354
  %v431 = vadd.f32 %v412, %v359
  %v432 = vadd.f32 %v413, %v362
  %v433 = vadd.f32 %v414, %v367
  %v434 = vadd.f32 %v415, %v370
  %v435 = vadd.f32 %v416, %v375
  %v436 = vadd.f32 %v417, %v378
  %v437 = vadd.f32 %v418, %v383
  %v438 = vadd.f32 %v419, %v386
  %v439 = vadd.f32 %v420, %v391
  %v440 = vadd.f32 %v421, %v394
  %v441 = vadd.f32 %v422, %v399
  %vm442 = vcmask 523264
  %443 = vst.msk [vmem:[#allocation2] sm:$0xff] %vm442, %v423
  %444 = vst.msk [vmem:[#allocation2 + $0x8] sm:$0xff] %vm442, %v424
  %445 = vst.msk [vmem:[#allocation2 + $0x10] sm:$0xff] %vm442, %v425
  %446 = vst.msk [vmem:[#allocation2 + $0x18] sm:$0xff] %vm442, %v426
  %447 = vst.msk [vmem:[#allocation2 + $0x20] sm:$0xff] %vm442, %v427
  %448 = vst.msk [vmem:[#allocation2 + $0x28] sm:$0xff] %vm442, %v428
  %449 = vst.msk [vmem:[#allocation2 + $0x30] sm:$0xff] %vm442, %v429
  %450 = vst.msk [vmem:[#allocation2 + $0x38] sm:$0xff] %vm442, %v430
  %451 = vst.msk [vmem:[#allocation2 + $0x40] sm:$0xff] %vm442, %v431
  %452 = vst.msk [vmem:[#allocation2 + $0x48] sm:$0xff] %vm442, %v432
  %453 = vst.msk [vmem:[#allocation2 + $0x50] sm:$0xff] %vm442, %v433
  %454 = vst.msk [vmem:[#allocation2 + $0x58] sm:$0xff] %vm442, %v434
  %455 = vst.msk [vmem:[#allocation2 + $0x60] sm:$0xff] %vm442, %v435
  %456 = vst.msk [vmem:[#allocation2 + $0x68] sm:$0xff] %vm442, %v436
  %457 = vst.msk [vmem:[#allocation2 + $0x70] sm:$0xff] %vm442, %v437
  %458 = vst.msk [vmem:[#allocation2 + $0x78] sm:$0xff] %vm442, %v438
  %459 = vst.msk [vmem:[#allocation2 + $0x80] sm:$0xff] %vm442, %v439
  %460 = vst.msk [vmem:[#allocation2 + $0x88] sm:$0xff] %vm442, %v440
  %461 = vst.msk [vmem:[#allocation2 + $0x90] sm:$0xff] %vm442, %v441
  // Predicated region
  $region30: #{forward.29} parent=0 // pred_check
    %p462 = pneg %p24
  $region31: #{forward.29} parent=0 // pred_check_branch
    %464 = sbr.rel (%p462) target = $region33
  $region32: #{forward.29} parent=0 // pred_region
    %v465 = vld [vmem:[#allocation2] sm:$0xff]
    %v466 = vld [vmem:[#allocation2 + $0x8] sm:$0xff]
    %v467 = vld [vmem:[#allocation2 + $0x10] sm:$0xff]
    %v468 = vld [vmem:[#allocation2 + $0x18] sm:$0xff]
    %v469 = vld [vmem:[#allocation2 + $0x20] sm:$0xff]
    %v470 = vld [vmem:[#allocation2 + $0x28] sm:$0xff]
    %v471 = vld [vmem:[#allocation2 + $0x30] sm:$0xff]
    %v472 = vld [vmem:[#allocation2 + $0x38] sm:$0xff]
    %v473 = vld [vmem:[#allocation2 + $0x40] sm:$0xff]
    %v474 = vld [vmem:[#allocation2 + $0x48] sm:$0xff]
    %v475 = vld [vmem:[#allocation2 + $0x50] sm:$0xff]
    %v476 = vld [vmem:[#allocation2 + $0x58] sm:$0xff]
    %v477 = vld [vmem:[#allocation2 + $0x60] sm:$0xff]
    %v478 = vld [vmem:[#allocation2 + $0x68] sm:$0xff]
    %v479 = vld [vmem:[#allocation2 + $0x70] sm:$0xff]
    %v480 = vld [vmem:[#allocation2 + $0x78] sm:$0xff]
    %v481 = vld [vmem:[#allocation2 + $0x80] sm:$0xff]
    %v482 = vld [vmem:[#allocation2 + $0x88] sm:$0xff]
    %v483 = vld [vmem:[#allocation2 + $0x90] sm:$0xff]
    %v484 = vld [vmem:[%s2] sm:$0x1]
    %v486 = vlaneseq
    %v487 = vshrl.u32 %v486, 7
    %v488 = vsub.s32 0, %v487
    %v489 = vrot.slane %v484, %v488
    %v491 = vadd.f32 %v465, %v489
    %v492 = vadd.f32 %v466, %v489
    %v493 = vadd.f32 %v467, %v489
    %v494 = vadd.f32 %v468, %v489
    %v495 = vadd.f32 %v469, %v489
    %v496 = vadd.f32 %v470, %v489
    %v497 = vadd.f32 %v471, %v489
    %v498 = vadd.f32 %v472, %v489
    %v499 = vadd.f32 %v473, %v489
    %v500 = vadd.f32 %v474, %v489
    %v501 = vadd.f32 %v475, %v489
    %v502 = vadd.f32 %v476, %v489
    %v503 = vadd.f32 %v477, %v489
    %v504 = vadd.f32 %v478, %v489
    %v505 = vadd.f32 %v479, %v489
    %v506 = vadd.f32 %v480, %v489
    %v507 = vadd.f32 %v481, %v489
    %v508 = vadd.f32 %v482, %v489
    %v509 = vadd.f32 %v483, %v489
    %v510 = vld [vmem:[%s3] sm:$0xf]
    %v511 = vld [vmem:[%s3 + $0x4] sm:$0xf]
    %v512 = vld [vmem:[%s3 + $0x8] sm:$0xf]
    %v513 = vld [vmem:[%s3 + $0xc] sm:$0xf]
    %v514 = vld [vmem:[%s3 + $0x10] sm:$0xf]
    %v515 = vld [vmem:[%s3 + $0x14] sm:$0xf]
    %v516 = vld [vmem:[%s3 + $0x18] sm:$0xf]
    %v517 = vld [vmem:[%s3 + $0x1c] sm:$0xf]
    %v518 = vld [vmem:[%s3 + $0x20] sm:$0xf]
    %v519 = vld [vmem:[%s3 + $0x24] sm:$0xf]
    %v520 = vld [vmem:[%s3 + $0x28] sm:$0xf]
    %v521 = vld [vmem:[%s3 + $0x2c] sm:$0xf]
    %v522 = vld [vmem:[%s3 + $0x30] sm:$0xf]
    %v523 = vld [vmem:[%s3 + $0x34] sm:$0xf]
    %v524 = vld [vmem:[%s3 + $0x38] sm:$0xf]
    %v525 = vld [vmem:[%s3 + $0x3c] sm:$0xf]
    %v526 = vld [vmem:[%s3 + $0x40] sm:$0xf]
    %v527 = vld [vmem:[%s3 + $0x44] sm:$0xf]
    %v528 = vld [vmem:[%s3 + $0x48] sm:$0xf]
    %v529 = vunpack.c.l.bf16 %v510
    %v530 = vunpack.c.l.bf16 %v511
    %v531 = vunpack.c.l.bf16 %v512
    %v532 = vunpack.c.l.bf16 %v513
    %v533 = vunpack.c.l.bf16 %v514
    %v534 = vunpack.c.l.bf16 %v515
    %v535 = vunpack.c.l.bf16 %v516
    %v536 = vunpack.c.l.bf16 %v517
    %v537 = vunpack.c.l.bf16 %v518
    %v538 = vunpack.c.l.bf16 %v519
    %v539 = vunpack.c.l.bf16 %v520
    %v540 = vunpack.c.l.bf16 %v521
    %v541 = vunpack.c.l.bf16 %v522
    %v542 = vunpack.c.l.bf16 %v523
    %v543 = vunpack.c.l.bf16 %v524
    %v544 = vunpack.c.l.bf16 %v525
    %v545 = vunpack.c.l.bf16 %v526
    %v546 = vunpack.c.l.bf16 %v527
    %v547 = vunpack.c.l.bf16 %v528
    %v548 = vadd.f32 %v491, %v529
    %v549 = vadd.f32 %v492, %v530
    %v550 = vadd.f32 %v493, %v531
    %v551 = vadd.f32 %v494, %v532
    %v552 = vadd.f32 %v495, %v533
    %v553 = vadd.f32 %v496, %v534
    %v554 = vadd.f32 %v497, %v535
    %v555 = vadd.f32 %v498, %v536
    %v556 = vadd.f32 %v499, %v537
    %v557 = vadd.f32 %v500, %v538
    %v558 = vadd.f32 %v501, %v539
    %v559 = vadd.f32 %v502, %v540
    %v560 = vadd.f32 %v503, %v541
    %v561 = vadd.f32 %v504, %v542
    %v562 = vadd.f32 %v505, %v543
    %v563 = vadd.f32 %v506, %v544
    %v564 = vadd.f32 %v507, %v545
    %v565 = vadd.f32 %v508, %v546
    %v566 = vadd.f32 %v509, %v547
    %v567 = vld [vmem:[%s4] sm:$0x1]
    %v568 = vld [vmem:[%s5] sm:$0x1]
    %v569 = vsel %vm442, %v548, 0.0
    %570 = vadd.xlane.f32.xlu0 %v569
    %v571 = vpop.xlane.xlu0 %570
    %v572 = vsel %vm442, %v549, 0.0
    %573 = vadd.xlane.f32.xlu0 %v572
    %v574 = vpop.xlane.xlu0 %573
    %v575 = vsel %vm442, %v550, 0.0
    %576 = vadd.xlane.f32.xlu0 %v575
    %v577 = vpop.xlane.xlu0 %576
    %v578 = vsel %vm442, %v551, 0.0
    %579 = vadd.xlane.f32.xlu0 %v578
    %v580 = vpop.xlane.xlu0 %579
    %v581 = vsel %vm442, %v552, 0.0
    %582 = vadd.xlane.f32.xlu0 %v581
    %v583 = vpop.xlane.xlu0 %582
    %v584 = vsel %vm442, %v553, 0.0
    %585 = vadd.xlane.f32.xlu0 %v584
    %v586 = vpop.xlane.xlu0 %585
    %v587 = vsel %vm442, %v554, 0.0
    %588 = vadd.xlane.f32.xlu0 %v587
    %v589 = vpop.xlane.xlu0 %588
    %v590 = vsel %vm442, %v555, 0.0
    %591 = vadd.xlane.f32.xlu0 %v590
    %v592 = vpop.xlane.xlu0 %591
    %v593 = vsel %vm442, %v556, 0.0
    %594 = vadd.xlane.f32.xlu0 %v593
    %v595 = vpop.xlane.xlu0 %594
    %v596 = vsel %vm442, %v557, 0.0
    %597 = vadd.xlane.f32.xlu0 %v596
    %v598 = vpop.xlane.xlu0 %597
    %v599 = vsel %vm442, %v558, 0.0
    %600 = vadd.xlane.f32.xlu0 %v599
    %v601 = vpop.xlane.xlu0 %600
    %v602 = vsel %vm442, %v559, 0.0
    %603 = vadd.xlane.f32.xlu0 %v602
    %v604 = vpop.xlane.xlu0 %603
    %v605 = vsel %vm442, %v560, 0.0
    %606 = vadd.xlane.f32.xlu0 %v605
    %v607 = vpop.xlane.xlu0 %606
    %v608 = vsel %vm442, %v561, 0.0
    %609 = vadd.xlane.f32.xlu0 %v608
    %v610 = vpop.xlane.xlu0 %609
    %v611 = vsel %vm442, %v562, 0.0
    %612 = vadd.xlane.f32.xlu0 %v611
    %v613 = vpop.xlane.xlu0 %612
    %v614 = vsel %vm442, %v563, 0.0
    %615 = vadd.xlane.f32.xlu0 %v614
    %v616 = vpop.xlane.xlu0 %615
    %v617 = vsel %vm442, %v564, 0.0
    %618 = vadd.xlane.f32.xlu0 %v617
    %v619 = vpop.xlane.xlu0 %618
    %v620 = vsel %vm442, %v565, 0.0
    %621 = vadd.xlane.f32.xlu0 %v620
    %v622 = vpop.xlane.xlu0 %621
    %v623 = vsel %vm442, %v566, 0.0
    %624 = vadd.xlane.f32.xlu0 %v623
    %v625 = vpop.xlane.xlu0 %624
    %v626 = vrcp.pop 64.0
    %v627 = vmul.f32 %v571, %v626
    %v628 = vmul.f32 %v574, %v626
    %v629 = vmul.f32 %v577, %v626
    %v630 = vmul.f32 %v580, %v626
    %v631 = vmul.f32 %v583, %v626
    %v632 = vmul.f32 %v586, %v626
    %v633 = vmul.f32 %v589, %v626
    %v634 = vmul.f32 %v592, %v626
    %v635 = vmul.f32 %v595, %v626
    %v636 = vmul.f32 %v598, %v626
    %v637 = vmul.f32 %v601, %v626
    %v638 = vmul.f32 %v604, %v626
    %v639 = vmul.f32 %v607, %v626
    %v640 = vmul.f32 %v610, %v626
    %v641 = vmul.f32 %v613, %v626
    %v642 = vmul.f32 %v616, %v626
    %v643 = vmul.f32 %v619, %v626
    %v644 = vmul.f32 %v622, %v626
    %v645 = vmul.f32 %v625, %v626
    %v646 = vsub.f32 %v548, %v627
    %v647 = vsub.f32 %v549, %v628
    %v648 = vsub.f32 %v550, %v629
    %v649 = vsub.f32 %v551, %v630
    %v650 = vsub.f32 %v552, %v631
    %v651 = vsub.f32 %v553, %v632
    %v652 = vsub.f32 %v554, %v633
    %v653 = vsub.f32 %v555, %v634
    %v654 = vsub.f32 %v556, %v635
    %v655 = vsub.f32 %v557, %v636
    %v656 = vsub.f32 %v558, %v637
    %v657 = vsub.f32 %v559, %v638
    %v658 = vsub.f32 %v560, %v639
    %v659 = vsub.f32 %v561, %v640
    %v660 = vsub.f32 %v562, %v641
    %v661 = vsub.f32 %v563, %v642
    %v662 = vsub.f32 %v564, %v643
    %v663 = vsub.f32 %v565, %v644
    %v664 = vsub.f32 %v566, %v645
    %v665 = vmul.f32 %v646, %v646
    %v666 = vmul.f32 %v647, %v647
    %v667 = vmul.f32 %v648, %v648
    %v668 = vmul.f32 %v649, %v649
    %v669 = vmul.f32 %v650, %v650
    %v670 = vmul.f32 %v651, %v651
    %v671 = vmul.f32 %v652, %v652
    %v672 = vmul.f32 %v653, %v653
    %v673 = vmul.f32 %v654, %v654
    %v674 = vmul.f32 %v655, %v655
    %v675 = vmul.f32 %v656, %v656
    %v676 = vmul.f32 %v657, %v657
    %v677 = vmul.f32 %v658, %v658
    %v678 = vmul.f32 %v659, %v659
    %v679 = vmul.f32 %v660, %v660
    %v680 = vmul.f32 %v661, %v661
    %v681 = vmul.f32 %v662, %v662
    %v682 = vmul.f32 %v663, %v663
    %v683 = vmul.f32 %v664, %v664
    %v684 = vsel %vm442, %v665, 0.0
    %685 = vadd.xlane.f32.xlu0 %v684
    %v686 = vpop.xlane.xlu0 %685
    %v687 = vsel %vm442, %v666, 0.0
    %688 = vadd.xlane.f32.xlu0 %v687
    %v689 = vpop.xlane.xlu0 %688
    %v690 = vsel %vm442, %v667, 0.0
    %691 = vadd.xlane.f32.xlu0 %v690
    %v692 = vpop.xlane.xlu0 %691
    %v693 = vsel %vm442, %v668, 0.0
    %694 = vadd.xlane.f32.xlu0 %v693
    %v695 = vpop.xlane.xlu0 %694
    %v696 = vsel %vm442, %v669, 0.0
    %697 = vadd.xlane.f32.xlu0 %v696
    %v698 = vpop.xlane.xlu0 %697
    %v699 = vsel %vm442, %v670, 0.0
    %700 = vadd.xlane.f32.xlu0 %v699
    %v701 = vpop.xlane.xlu0 %700
    %v702 = vsel %vm442, %v671, 0.0
    %703 = vadd.xlane.f32.xlu0 %v702
    %v704 = vpop.xlane.xlu0 %703
    %v705 = vsel %vm442, %v672, 0.0
    %706 = vadd.xlane.f32.xlu0 %v705
    %v707 = vpop.xlane.xlu0 %706
    %v708 = vsel %vm442, %v673, 0.0
    %709 = vadd.xlane.f32.xlu0 %v708
    %v710 = vpop.xlane.xlu0 %709
    %v711 = vsel %vm442, %v674, 0.0
    %712 = vadd.xlane.f32.xlu0 %v711
    %v713 = vpop.xlane.xlu0 %712
    %v714 = vsel %vm442, %v675, 0.0
    %715 = vadd.xlane.f32.xlu0 %v714
    %v716 = vpop.xlane.xlu0 %715
    %v717 = vsel %vm442, %v676, 0.0
    %718 = vadd.xlane.f32.xlu0 %v717
    %v719 = vpop.xlane.xlu0 %718
    %v720 = vsel %vm442, %v677, 0.0
    %721 = vadd.xlane.f32.xlu0 %v720
    %v722 = vpop.xlane.xlu0 %721
    %v723 = vsel %vm442, %v678, 0.0
    %724 = vadd.xlane.f32.xlu0 %v723
    %v725 = vpop.xlane.xlu0 %724
    %v726 = vsel %vm442, %v679, 0.0
    %727 = vadd.xlane.f32.xlu0 %v726
    %v728 = vpop.xlane.xlu0 %727
    %v729 = vsel %vm442, %v680, 0.0
    %730 = vadd.xlane.f32.xlu0 %v729
    %v731 = vpop.xlane.xlu0 %730
    %v732 = vsel %vm442, %v681, 0.0
    %733 = vadd.xlane.f32.xlu0 %v732
    %v734 = vpop.xlane.xlu0 %733
    %v735 = vsel %vm442, %v682, 0.0
    %736 = vadd.xlane.f32.xlu0 %v735
    %v737 = vpop.xlane.xlu0 %736
    %v738 = vsel %vm442, %v683, 0.0
    %739 = vadd.xlane.f32.xlu0 %v738
    %v740 = vpop.xlane.xlu0 %739
    %v741 = vmul.f32 %v686, %v626
    %v742 = vmul.f32 %v689, %v626
    %v743 = vmul.f32 %v692, %v626
    %v744 = vmul.f32 %v695, %v626
    %v745 = vmul.f32 %v698, %v626
    %v746 = vmul.f32 %v701, %v626
    %v747 = vmul.f32 %v704, %v626
    %v748 = vmul.f32 %v707, %v626
    %v749 = vmul.f32 %v710, %v626
    %v750 = vmul.f32 %v713, %v626
    %v751 = vmul.f32 %v716, %v626
    %v752 = vmul.f32 %v719, %v626
    %v753 = vmul.f32 %v722, %v626
    %v754 = vmul.f32 %v725, %v626
    %v755 = vmul.f32 %v728, %v626
    %v756 = vmul.f32 %v731, %v626
    %v757 = vmul.f32 %v734, %v626
    %v758 = vmul.f32 %v737, %v626
    %v759 = vmul.f32 %v740, %v626
    %v760 = vadd.f32 %v741, 1e-05
    %v761 = vadd.f32 %v742, 1e-05
    %v762 = vadd.f32 %v743, 1e-05
    %v763 = vadd.f32 %v744, 1e-05
    %v764 = vadd.f32 %v745, 1e-05
    %v765 = vadd.f32 %v746, 1e-05
    %v766 = vadd.f32 %v747, 1e-05
    %v767 = vadd.f32 %v748, 1e-05
    %v768 = vadd.f32 %v749, 1e-05
    %v769 = vadd.f32 %v750, 1e-05
    %v770 = vadd.f32 %v751, 1e-05
    %v771 = vadd.f32 %v752, 1e-05
    %v772 = vadd.f32 %v753, 1e-05
    %v773 = vadd.f32 %v754, 1e-05
    %v774 = vadd.f32 %v755, 1e-05
    %v775 = vadd.f32 %v756, 1e-05
    %v776 = vadd.f32 %v757, 1e-05
    %v777 = vadd.f32 %v758, 1e-05
    %v778 = vadd.f32 %v759, 1e-05
    %v779 = vrsqrt.pop %v760
    %v780 = vrsqrt.pop %v761
    %v781 = vrsqrt.pop %v762
    %v782 = vrsqrt.pop %v763
    %v783 = vrsqrt.pop %v764
    %v784 = vrsqrt.pop %v765
    %v785 = vrsqrt.pop %v766
    %v786 = vrsqrt.pop %v767
    %v787 = vrsqrt.pop %v768
    %v788 = vrsqrt.pop %v769
    %v789 = vrsqrt.pop %v770
    %v790 = vrsqrt.pop %v771
    %v791 = vrsqrt.pop %v772
    %v792 = vrsqrt.pop %v773
    %v793 = vrsqrt.pop %v774
    %v794 = vrsqrt.pop %v775
    %v795 = vrsqrt.pop %v776
    %v796 = vrsqrt.pop %v777
    %v797 = vrsqrt.pop %v778
    %v798 = vmul.f32 %v646, %v779
    %v799 = vmul.f32 %v647, %v780
    %v800 = vmul.f32 %v648, %v781
    %v801 = vmul.f32 %v649, %v782
    %v802 = vmul.f32 %v650, %v783
    %v803 = vmul.f32 %v651, %v784
    %v804 = vmul.f32 %v652, %v785
    %v805 = vmul.f32 %v653, %v786
    %v806 = vmul.f32 %v654, %v787
    %v807 = vmul.f32 %v655, %v788
    %v808 = vmul.f32 %v656, %v789
    %v809 = vmul.f32 %v657, %v790
    %v810 = vmul.f32 %v658, %v791
    %v811 = vmul.f32 %v659, %v792
    %v812 = vmul.f32 %v660, %v793
    %v813 = vmul.f32 %v661, %v794
    %v814 = vmul.f32 %v662, %v795
    %v815 = vmul.f32 %v663, %v796
    %v816 = vmul.f32 %v664, %v797
    %v818 = vlaneseq
    %v819 = vshrl.u32 %v818, 7
    %v820 = vsub.s32 0, %v819
    %v821 = vrot.slane %v567, %v820
    %v823 = vmul.f32 %v798, %v821
    %v824 = vmul.f32 %v799, %v821
    %v825 = vmul.f32 %v800, %v821
    %v826 = vmul.f32 %v801, %v821
    %v827 = vmul.f32 %v802, %v821
    %v828 = vmul.f32 %v803, %v821
    %v829 = vmul.f32 %v804, %v821
    %v830 = vmul.f32 %v805, %v821
    %v831 = vmul.f32 %v806, %v821
    %v832 = vmul.f32 %v807, %v821
    %v833 = vmul.f32 %v808, %v821
    %v834 = vmul.f32 %v809, %v821
    %v835 = vmul.f32 %v810, %v821
    %v836 = vmul.f32 %v811, %v821
    %v837 = vmul.f32 %v812, %v821
    %v838 = vmul.f32 %v813, %v821
    %v839 = vmul.f32 %v814, %v821
    %v840 = vmul.f32 %v815, %v821
    %v841 = vmul.f32 %v816, %v821
    %v843 = vlaneseq
    %v844 = vshrl.u32 %v843, 7
    %v845 = vsub.s32 0, %v844
    %v846 = vrot.slane %v568, %v845
    %v848 = vadd.f32 %v823, %v846
    %v849 = vadd.f32 %v824, %v846
    %v850 = vadd.f32 %v825, %v846
    %v851 = vadd.f32 %v826, %v846
    %v852 = vadd.f32 %v827, %v846
    %v853 = vadd.f32 %v828, %v846
    %v854 = vadd.f32 %v829, %v846
    %v855 = vadd.f32 %v830, %v846
    %v856 = vadd.f32 %v831, %v846
    %v857 = vadd.f32 %v832, %v846
    %v858 = vadd.f32 %v833, %v846
    %v859 = vadd.f32 %v834, %v846
    %v860 = vadd.f32 %v835, %v846
    %v861 = vadd.f32 %v836, %v846
    %v862 = vadd.f32 %v837, %v846
    %v863 = vadd.f32 %v838, %v846
    %v864 = vadd.f32 %v839, %v846
    %v865 = vadd.f32 %v840, %v846
    %v866 = vadd.f32 %v841, %v846
    %v867 = vpack.c.bf16 %v849, %v848
    %v868 = vpack.c.bf16 %v851, %v850
    %v869 = vpack.c.bf16 %v853, %v852
    %v870 = vpack.c.bf16 %v855, %v854
    %v871 = vpack.c.bf16 %v857, %v856
    %v872 = vpack.c.bf16 %v859, %v858
    %v873 = vpack.c.bf16 %v861, %v860
    %v874 = vpack.c.bf16 %v863, %v862
    %v875 = vpack.c.bf16 %v865, %v864
    %v876 = vpack.c.bf16 %v866, %v866
    %v887 = vunpack.c.l.b16 %v867
    %v888 = vunpack.c.h.b16 %v867
    %v889 = vunpack.c.l.b16 %v868
    %v890 = vunpack.c.h.b16 %v868
    %v891 = vunpack.c.l.b16 %v869
    %v892 = vunpack.c.h.b16 %v869
    %v893 = vunpack.c.l.b16 %v870
    %v894 = vunpack.c.h.b16 %v870
    %v895 = vunpack.c.l.b16 %v871
    %v896 = vunpack.c.h.b16 %v871
    %v897 = vunpack.c.l.b16 %v872
    %v898 = vunpack.c.h.b16 %v872
    %v899 = vunpack.c.l.b16 %v873
    %v900 = vunpack.c.h.b16 %v873
    %v901 = vunpack.c.l.b16 %v874
    %v902 = vunpack.c.h.b16 %v874
    %v903 = vunpack.c.l.b16 %v875
    %v904 = vunpack.c.h.b16 %v875
    %v905 = vunpack.c.l.b16 %v876
    %v906 = vpack.c.b16 %v887, %v887
    %v907 = vpack.c.b16 %v888, %v888
    %v908 = vpack.c.b16 %v889, %v889
    %v909 = vpack.c.b16 %v890, %v890
    %v910 = vpack.c.b16 %v891, %v891
    %v911 = vpack.c.b16 %v892, %v892
    %v912 = vpack.c.b16 %v893, %v893
    %v913 = vpack.c.b16 %v894, %v894
    %v914 = vpack.c.b16 %v895, %v895
    %v915 = vpack.c.b16 %v896, %v896
    %v916 = vpack.c.b16 %v897, %v897
    %v917 = vpack.c.b16 %v898, %v898
    %v918 = vpack.c.b16 %v899, %v899
    %v919 = vpack.c.b16 %v900, %v900
    %v920 = vpack.c.b16 %v901, %v901
    %v921 = vpack.c.b16 %v902, %v902
    %v922 = vpack.c.b16 %v903, %v903
    %v923 = vpack.c.b16 %v904, %v904
    %v924 = vpack.c.b16 %v905, %v905
    %vm944 = vcmask 519168
    %945 = vst.msk [vmem:[%s6] sm:$0xf] %vm944, %v906
    %946 = vst.msk [vmem:[%s6 + $0x4] sm:$0xf] %vm944, %v907
    %947 = vst.msk [vmem:[%s6 + $0x8] sm:$0xf] %vm944, %v908
    %948 = vst.msk [vmem:[%s6 + $0xc] sm:$0xf] %vm944, %v909
    %949 = vst.msk [vmem:[%s6 + $0x10] sm:$0xf] %vm944, %v910
    %950 = vst.msk [vmem:[%s6 + $0x14] sm:$0xf] %vm944, %v911
    %951 = vst.msk [vmem:[%s6 + $0x18] sm:$0xf] %vm944, %v912
    %952 = vst.msk [vmem:[%s6 + $0x1c] sm:$0xf] %vm944, %v913
    %953 = vst.msk [vmem:[%s6 + $0x20] sm:$0xf] %vm944, %v914
    %954 = vst.msk [vmem:[%s6 + $0x24] sm:$0xf] %vm944, %v915
    %955 = vst.msk [vmem:[%s6 + $0x28] sm:$0xf] %vm944, %v916
    %956 = vst.msk [vmem:[%s6 + $0x2c] sm:$0xf] %vm944, %v917
    %957 = vst.msk [vmem:[%s6 + $0x30] sm:$0xf] %vm944, %v918
    %958 = vst.msk [vmem:[%s6 + $0x34] sm:$0xf] %vm944, %v919
    %959 = vst.msk [vmem:[%s6 + $0x38] sm:$0xf] %vm944, %v920
    %960 = vst.msk [vmem:[%s6 + $0x3c] sm:$0xf] %vm944, %v921
    %961 = vst.msk [vmem:[%s6 + $0x40] sm:$0xf] %vm944, %v922
    %962 = vst.msk [vmem:[%s6 + $0x44] sm:$0xf] %vm944, %v923
    %963 = vst.msk [vmem:[%s6 + $0x48] sm:$0xf] %vm944, %v924
  $region33: #{forward.29} parent=0 // pred_fallthru
    _
  // Predicated region
  $region34: #{forward.29} parent=0 // pred_check
    _
  $region35: #{forward.29} parent=0 // pred_check_branch
    %965 = sbr.rel (0) target = $region37
  $region36: #{forward.29} parent=0 // pred_region
    _
  $region37: #{forward.29} parent=0 // pred_fallthru
    _
  // Predicated region
  $region38: #{forward.29} parent=0 // pred_check
    _
  $region39: #{forward.29} parent=0 // pred_check_branch
    %967 = sbr.rel (0) target = $region41
  $region40: #{forward.29} parent=0 // pred_region
    _
  $region41: #{forward.29} parent=0 // pred_fallthru
    _

// kernel: forward.35
$region0: #{forward.35}
  #allocation0 [shape = 'u32[]', space=smem, size = 0x4, offset = 0x4, fixed_abs, tag = 'smem constant byte address 0x4 - core index']
  #allocation1 [shape = 'u32[144,128]{1,0:T(1,128)}', space=vmem, size = 0x12000, scoped, tag = 'internal scratch']
  #allocation2 [shape = 'f32[152,64]{1,0:T(8,128)}', space=vmem, size = 0x13000, scoped, tag = 'scratch operand']
  %s0 = inlined_call_operand.vmem [shape: bf16[152,64], index: 0, kind: input, shape index: {}]
  %s1 = inlined_call_operand.vmem [shape: bf16[64,64], index: 1, kind: input, shape index: {}]
  %s2 = inlined_call_operand.vmem [shape: bf16[152,64], index: 2, kind: input, shape index: {}]
  %s3 = inlined_call_operand.vmem [shape: bf16[64,64], index: 3, kind: input, shape index: {}]
  %s4 = inlined_call_operand.vmem [shape: f32[1,64], index: 4, kind: input, shape index: {}]
  %s5 = inlined_call_operand.vmem [shape: f32[1,64], index: 5, kind: input, shape index: {}]
  %s6 = inlined_call_operand.vmem [shape: f32[1,64], index: 6, kind: input, shape index: {}]
  %s7 = inlined_call_operand.vmem [shape: bf16[152,64], index: 7, kind: output, shape index: {}]
  %s8 = sld [smem:[#allocation0]]
  $region46: #{forward.35} parent=0
    _
  %s10 = ssub.s32 1, %s8
  %s11 = scalar_select 0, %s10, %s8
  // Predicated region
  $region2: #{forward.35} parent=0 // pred_check
    _
  $region3: #{forward.35} parent=0 // pred_check_branch
    %13 = sbr.rel (0) target = $region5
  $region4: #{forward.35} parent=0 // pred_region
    _
  $region5: #{forward.35} parent=0 // pred_fallthru
    _
  // Predicated region
  $region6: #{forward.35} parent=0 // pred_check
    _
  $region7: #{forward.35} parent=0 // pred_check_branch
    %15 = sbr.rel (0) target = $region9
  $region8: #{forward.35} parent=0 // pred_region
    _
  $region9: #{forward.35} parent=0 // pred_fallthru
    _
  // Predicated region
  $region10: #{forward.35} parent=0 // pred_check
    _
  $region11: #{forward.35} parent=0 // pred_check_branch
    %17 = sbr.rel (0) target = $region13
  $region12: #{forward.35} parent=0 // pred_region
    _
  $region13: #{forward.35} parent=0 // pred_fallthru
    _
  // Predicated region
  $region14: #{forward.35} parent=0 // pred_check
    _
  $region15: #{forward.35} parent=0 // pred_check_branch
    %19 = sbr.rel (0) target = $region17
  $region16: #{forward.35} parent=0 // pred_region
    _
  $region17: #{forward.35} parent=0 // pred_fallthru
    _
  // Predicated region
  $region18: #{forward.35} parent=0 // pred_check
    _
  $region19: #{forward.35} parent=0 // pred_check_branch
    %21 = sbr.rel (0) target = $region21
  $region20: #{forward.35} parent=0 // pred_region
    _
  $region21: #{forward.35} parent=0 // pred_fallthru
    _
  // Predicated region
  $region22: #{forward.35} parent=0 // pred_check
    _
  $region23: #{forward.35} parent=0 // pred_check_branch
    %23 = sbr.rel (0) target = $region25
  $region24: #{forward.35} parent=0 // pred_region
    _
  $region25: #{forward.35} parent=0 // pred_fallthru
    _
  // Predicated region
  $region26: #{forward.35} parent=0 // pred_check
    _
  $region27: #{forward.35} parent=0 // pred_check_branch
    %25 = sbr.rel (0) target = $region29
  $region28: #{forward.35} parent=0 // pred_region
    _
  $region29: #{forward.35} parent=0 // pred_fallthru
    _
  %p27 = scmp.eq.s32.totalorder 0, 0
  // Predicated region
  $region30: #{forward.35} parent=0 // pred_check
    %p28 = pneg %p27
  $region31: #{forward.35} parent=0 // pred_check_branch
    %30 = sbr.rel (%p28) target = $region33
  $region32: #{forward.35} parent=0 // pred_region
    %vm31 = vcmask 523264
    %32 = vst.msk [vmem:[#allocation2] sm:$0xff] %vm31, 0.0
    %33 = vst.msk [vmem:[#allocation2 + $0x8] sm:$0xff] %vm31, 0.0
    %34 = vst.msk [vmem:[#allocation2 + $0x10] sm:$0xff] %vm31, 0.0
    %35 = vst.msk [vmem:[#allocation2 + $0x18] sm:$0xff] %vm31, 0.0
    %36 = vst.msk [vmem:[#allocation2 + $0x20] sm:$0xff] %vm31, 0.0
    %37 = vst.msk [vmem:[#allocation2 + $0x28] sm:$0xff] %vm31, 0.0
    %38 = vst.msk [vmem:[#allocation2 + $0x30] sm:$0xff] %vm31, 0.0
    %39 = vst.msk [vmem:[#allocation2 + $0x38] sm:$0xff] %vm31, 0.0
    %40 = vst.msk [vmem:[#allocation2 + $0x40] sm:$0xff] %vm31, 0.0
    %41 = vst.msk [vmem:[#allocation2 + $0x48] sm:$0xff] %vm31, 0.0
    %42 = vst.msk [vmem:[#allocation2 + $0x50] sm:$0xff] %vm31, 0.0
    %43 = vst.msk [vmem:[#allocation2 + $0x58] sm:$0xff] %vm31, 0.0
    %44 = vst.msk [vmem:[#allocation2 + $0x60] sm:$0xff] %vm31, 0.0
    %45 = vst.msk [vmem:[#allocation2 + $0x68] sm:$0xff] %vm31, 0.0
    %46 = vst.msk [vmem:[#allocation2 + $0x70] sm:$0xff] %vm31, 0.0
    %47 = vst.msk [vmem:[#allocation2 + $0x78] sm:$0xff] %vm31, 0.0
    %48 = vst.msk [vmem:[#allocation2 + $0x80] sm:$0xff] %vm31, 0.0
    %49 = vst.msk [vmem:[#allocation2 + $0x88] sm:$0xff] %vm31, 0.0
    %50 = vst.msk [vmem:[#allocation2 + $0x90] sm:$0xff] %vm31, 0.0
  $region33: #{forward.35} parent=0 // pred_fallthru
    _
  %v51 = vld [vmem:[%s0] sm:$0xf]
  %v52 = vld [vmem:[%s0 + $0x4] sm:$0xf]
  %v53 = vld [vmem:[%s0 + $0x8] sm:$0xf]
  %v54 = vld [vmem:[%s0 + $0xc] sm:$0xf]
  %v55 = vld [vmem:[%s0 + $0x10] sm:$0xf]
  %v56 = vld [vmem:[%s0 + $0x14] sm:$0xf]
  %v57 = vld [vmem:[%s0 + $0x18] sm:$0xf]
  %v58 = vld [vmem:[%s0 + $0x1c] sm:$0xf]
  %v59 = vld [vmem:[%s0 + $0x20] sm:$0xf]
  %v60 = vld [vmem:[%s0 + $0x24] sm:$0xf]
  %v61 = vld [vmem:[%s0 + $0x28] sm:$0xf]
  %v62 = vld [vmem:[%s0 + $0x2c] sm:$0xf]
  %v63 = vld [vmem:[%s0 + $0x30] sm:$0xf]
  %v64 = vld [vmem:[%s0 + $0x34] sm:$0xf]
  %v65 = vld [vmem:[%s0 + $0x38] sm:$0xf]
  %v66 = vld [vmem:[%s0 + $0x3c] sm:$0xf]
  %v67 = vld [vmem:[%s0 + $0x40] sm:$0xf]
  %v68 = vld [vmem:[%s0 + $0x44] sm:$0xf]
  %v69 = vld [vmem:[%s0 + $0x48] sm:$0xf]
  %v70 = vld [vmem:[%s1] sm:$0xf]
  %v71 = vld [vmem:[%s1 + $0x4] sm:$0xf]
  %v72 = vld [vmem:[%s1 + $0x8] sm:$0xf]
  %v73 = vld [vmem:[%s1 + $0xc] sm:$0xf]
  %v74 = vld [vmem:[%s1 + $0x10] sm:$0xf]
  %v75 = vld [vmem:[%s1 + $0x14] sm:$0xf]
  %v76 = vld [vmem:[%s1 + $0x18] sm:$0xf]
  %v77 = vld [vmem:[%s1 + $0x1c] sm:$0xf]
  %v78 = vld [vmem:[%s2] sm:$0xf]
  %v79 = vld [vmem:[%s2 + $0x4] sm:$0xf]
  %v80 = vld [vmem:[%s2 + $0x8] sm:$0xf]
  %v81 = vld [vmem:[%s2 + $0xc] sm:$0xf]
  %v82 = vld [vmem:[%s2 + $0x10] sm:$0xf]
  %v83 = vld [vmem:[%s2 + $0x14] sm:$0xf]
  %v84 = vld [vmem:[%s2 + $0x18] sm:$0xf]
  %v85 = vld [vmem:[%s2 + $0x1c] sm:$0xf]
  %v86 = vld [vmem:[%s2 + $0x20] sm:$0xf]
  %v87 = vld [vmem:[%s2 + $0x24] sm:$0xf]
  %v88 = vld [vmem:[%s2 + $0x28] sm:$0xf]
  %v89 = vld [vmem:[%s2 + $0x2c] sm:$0xf]
  %v90 = vld [vmem:[%s2 + $0x30] sm:$0xf]
  %v91 = vld [vmem:[%s2 + $0x34] sm:$0xf]
  %v92 = vld [vmem:[%s2 + $0x38] sm:$0xf]
  %v93 = vld [vmem:[%s2 + $0x3c] sm:$0xf]
  %v94 = vld [vmem:[%s2 + $0x40] sm:$0xf]
  %v95 = vld [vmem:[%s2 + $0x44] sm:$0xf]
  %v96 = vld [vmem:[%s2 + $0x48] sm:$0xf]
  %v97 = vld [vmem:[%s3] sm:$0xf]
  %v98 = vld [vmem:[%s3 + $0x4] sm:$0xf]
  %v99 = vld [vmem:[%s3 + $0x8] sm:$0xf]
  %v100 = vld [vmem:[%s3 + $0xc] sm:$0xf]
  %v101 = vld [vmem:[%s3 + $0x10] sm:$0xf]
  %v102 = vld [vmem:[%s3 + $0x14] sm:$0xf]
  %v103 = vld [vmem:[%s3 + $0x18] sm:$0xf]
  %v104 = vld [vmem:[%s3 + $0x1c] sm:$0xf]
  %v124 = vunpack.c.l.b16 %v78
  %v125 = vunpack.c.l.b16 %v79
  %v126 = vunpack.c.l.b16 %v80
  %v127 = vunpack.c.l.b16 %v81
  %v128 = vunpack.c.l.b16 %v82
  %v129 = vunpack.c.l.b16 %v83
  %v130 = vunpack.c.l.b16 %v84
  %v131 = vunpack.c.l.b16 %v85
  %v132 = vunpack.c.l.b16 %v86
  %v133 = vunpack.c.l.b16 %v87
  %v134 = vunpack.c.l.b16 %v88
  %v135 = vunpack.c.l.b16 %v89
  %v136 = vunpack.c.l.b16 %v90
  %v137 = vunpack.c.l.b16 %v91
  %v138 = vunpack.c.l.b16 %v92
  %v139 = vunpack.c.l.b16 %v93
  %v140 = vunpack.c.l.b16 %v94
  %v141 = vunpack.c.l.b16 %v95
  %v142 = vunpack.c.l.b16 %v96
  %v143 = vpack.c.b16 %v125, %v124
  %v144 = vpack.c.b16 %v127, %v126
  %v145 = vpack.c.b16 %v129, %v128
  %v146 = vpack.c.b16 %v131, %v130
  %v147 = vpack.c.b16 %v133, %v132
  %v148 = vpack.c.b16 %v135, %v134
  %v149 = vpack.c.b16 %v137, %v136
  %v150 = vpack.c.b16 %v139, %v138
  %v151 = vpack.c.b16 %v141, %v140
  %v152 = vpack.c.b16 %v142, %v142
  %v161 = vunpack.c.l.b16 %v97
  %v162 = vunpack.c.l.b16 %v98
  %v163 = vunpack.c.l.b16 %v99
  %v164 = vunpack.c.l.b16 %v100
  %v165 = vunpack.c.l.b16 %v101
  %v166 = vunpack.c.l.b16 %v102
  %v167 = vunpack.c.l.b16 %v103
  %v168 = vunpack.c.l.b16 %v104
  %v169 = vpack.c.b16 %v162, %v161
  %v170 = vpack.c.b16 %v164, %v163
  %v171 = vpack.c.b16 %v166, %v165
  %v172 = vpack.c.b16 %v168, %v167
  %vm177 = vcmask 523264
  %v179 = vsel %vm177, %v143, 0
  %v182 = vsel %vm177, %v144, 0
  %v185 = vsel %vm177, %v145, 0
  %v188 = vsel %vm177, %v146, 0
  %v191 = vsel %vm177, %v147, 0
  %v194 = vsel %vm177, %v148, 0
  %v197 = vsel %vm177, %v149, 0
  %v200 = vsel %vm177, %v150, 0
  %v203 = vsel %vm177, %v151, 0
  %v206 = vsel %vm177, %v152, 0
  %208 = vmatprep.subr.bf16.mxu0 0
  %209 = vmatpush1.bf16.msra.mxu0 0
  %210 = vmatprep.subr.bf16.mxu0 0
  %211 = vmatpush1.bf16.msra.mxu0 0
  %212 = vmatprep.subr.bf16.mxu0 0
  %213 = vmatpush1.bf16.msra.mxu0 0
  %214 = vmatprep.subr.bf16.mxu0 0
  %215 = vmatpush1.bf16.msra.mxu0 0
  %216 = vmatprep.subr.bf16.mxu0 0
  %217 = vmatpush1.bf16.msra.mxu0 %v172
  %218 = vmatprep.subr.bf16.mxu0 0
  %219 = vmatpush1.bf16.msra.mxu0 %v171
  %220 = vmatprep.subr.bf16.mxu0 0
  %221 = vmatpush1.bf16.msra.mxu0 %v170
  %222 = vmatprep.subr.bf16.mxu0 0
  %223 = vmatpush1.bf16.msra.mxu0 %v169
  %224 = vmatprep.subr.bf16.mxu0 0
  %225 = vmatpush2.bf16.msra.mxu0 0
  %226 = vmatprep.subr.bf16.mxu0 0
  %227 = vmatpush2.bf16.msra.mxu0 0
  %228 = vmatprep.subr.bf16.mxu0 0
  %229 = vmatpush2.bf16.msra.mxu0 0
  %230 = vmatprep.subr.bf16.mxu0 0
  %231 = vmatpush2.bf16.msra.mxu0 0
  %232 = vmatprep.subr.bf16.mxu0 0
  %233 = vmatpush2.bf16.msra.mxu0 0
  %234 = vmatprep.subr.bf16.mxu0 0
  %235 = vmatpush2.bf16.msra.mxu0 0
  %236 = vmatprep.subr.bf16.mxu0 0
  %237 = vmatpush2.bf16.msra.mxu0 0
  %238 = vmatprep.subr.bf16.mxu0 0
  %239 = vmatpush2.bf16.msra.mxu0 0
  %240 = vmatprep.mubr.bf16.mxu0 0
  %241 = vmatmul.mubr.bf16.gmra.mxu0 %v179
  %v242 = vpop.f32.mrf.mxu0
  %v243 = vadd.f32 0.0, %v242
  %v244 = vpop.f32.mrf.mxu0
  %v245 = vpop.f32.mrf.mxu0
  %v246 = vadd.f32 0.0, %v245
  %v247 = vpop.f32.mrf.mxu0
  %248 = vmatprep.mubr.bf16.mxu0 0
  %249 = vmatmul.mubr.bf16.gmra.mxu0 %v182
  %v250 = vpop.f32.mrf.mxu0
  %v251 = vadd.f32 0.0, %v250
  %v252 = vpop.f32.mrf.mxu0
  %v253 = vpop.f32.mrf.mxu0
  %v254 = vadd.f32 0.0, %v253
  %v255 = vpop.f32.mrf.mxu0
  %256 = vmatprep.mubr.bf16.mxu0 0
  %257 = vmatmul.mubr.bf16.gmra.mxu0 %v185
  %v258 = vpop.f32.mrf.mxu0
  %v259 = vadd.f32 0.0, %v258
  %v260 = vpop.f32.mrf.mxu0
  %v261 = vpop.f32.mrf.mxu0
  %v262 = vadd.f32 0.0, %v261
  %v263 = vpop.f32.mrf.mxu0
  %264 = vmatprep.mubr.bf16.mxu0 0
  %265 = vmatmul.mubr.bf16.gmra.mxu0 %v188
  %v266 = vpop.f32.mrf.mxu0
  %v267 = vadd.f32 0.0, %v266
  %v268 = vpop.f32.mrf.mxu0
  %v269 = vpop.f32.mrf.mxu0
  %v270 = vadd.f32 0.0, %v269
  %v271 = vpop.f32.mrf.mxu0
  %272 = vmatprep.mubr.bf16.mxu0 0
  %273 = vmatmul.mubr.bf16.gmra.mxu0 %v191
  %v274 = vpop.f32.mrf.mxu0
  %v275 = vadd.f32 0.0, %v274
  %v276 = vpop.f32.mrf.mxu0
  %v277 = vpop.f32.mrf.mxu0
  %v278 = vadd.f32 0.0, %v277
  %v279 = vpop.f32.mrf.mxu0
  %280 = vmatprep.mubr.bf16.mxu0 0
  %281 = vmatmul.mubr.bf16.gmra.mxu0 %v194
  %v282 = vpop.f32.mrf.mxu0
  %v283 = vadd.f32 0.0, %v282
  %v284 = vpop.f32.mrf.mxu0
  %v285 = vpop.f32.mrf.mxu0
  %v286 = vadd.f32 0.0, %v285
  %v287 = vpop.f32.mrf.mxu0
  %288 = vmatprep.mubr.bf16.mxu0 0
  %289 = vmatmul.mubr.bf16.gmra.mxu0 %v197
  %v290 = vpop.f32.mrf.mxu0
  %v291 = vadd.f32 0.0, %v290
  %v292 = vpop.f32.mrf.mxu0
  %v293 = vpop.f32.mrf.mxu0
  %v294 = vadd.f32 0.0, %v293
  %v295 = vpop.f32.mrf.mxu0
  %296 = vmatprep.mubr.bf16.mxu0 0
  %297 = vmatmul.mubr.bf16.gmra.mxu0 %v200
  %v298 = vpop.f32.mrf.mxu0
  %v299 = vadd.f32 0.0, %v298
  %v300 = vpop.f32.mrf.mxu0
  %v301 = vpop.f32.mrf.mxu0
  %v302 = vadd.f32 0.0, %v301
  %v303 = vpop.f32.mrf.mxu0
  %304 = vmatprep.mubr.bf16.mxu0 0
  %305 = vmatmul.mubr.bf16.gmra.mxu0 %v203
  %v306 = vpop.f32.mrf.mxu0
  %v307 = vadd.f32 0.0, %v306
  %v308 = vpop.f32.mrf.mxu0
  %v309 = vpop.f32.mrf.mxu0
  %v310 = vadd.f32 0.0, %v309
  %v311 = vpop.f32.mrf.mxu0
  %312 = vmatprep.mubr.bf16.mxu0 0
  %313 = vmatmul.mubr.bf16.gmra.mxu0 %v206
  %v314 = vpop.f32.mrf.mxu0
  %v315 = vadd.f32 0.0, %v314
  %v316 = vpop.f32.mrf.mxu0
  %v317 = vpop.f32.mrf.mxu0
  %v318 = vpop.f32.mrf.mxu0
  %319 = vdwg.mxu0
  %v339 = vunpack.c.l.b16 %v51
  %v340 = vunpack.c.l.b16 %v52
  %v341 = vunpack.c.l.b16 %v53
  %v342 = vunpack.c.l.b16 %v54
  %v343 = vunpack.c.l.b16 %v55
  %v344 = vunpack.c.l.b16 %v56
  %v345 = vunpack.c.l.b16 %v57
  %v346 = vunpack.c.l.b16 %v58
  %v347 = vunpack.c.l.b16 %v59
  %v348 = vunpack.c.l.b16 %v60
  %v349 = vunpack.c.l.b16 %v61
  %v350 = vunpack.c.l.b16 %v62
  %v351 = vunpack.c.l.b16 %v63
  %v352 = vunpack.c.l.b16 %v64
  %v353 = vunpack.c.l.b16 %v65
  %v354 = vunpack.c.l.b16 %v66
  %v355 = vunpack.c.l.b16 %v67
  %v356 = vunpack.c.l.b16 %v68
  %v357 = vunpack.c.l.b16 %v69
  %v358 = vpack.c.b16 %v340, %v339
  %v359 = vpack.c.b16 %v342, %v341
  %v360 = vpack.c.b16 %v344, %v343
  %v361 = vpack.c.b16 %v346, %v345
  %v362 = vpack.c.b16 %v348, %v347
  %v363 = vpack.c.b16 %v350, %v349
  %v364 = vpack.c.b16 %v352, %v351
  %v365 = vpack.c.b16 %v354, %v353
  %v366 = vpack.c.b16 %v356, %v355
  %v367 = vpack.c.b16 %v357, %v357
  %v376 = vunpack.c.l.b16 %v70
  %v377 = vunpack.c.l.b16 %v71
  %v378 = vunpack.c.l.b16 %v72
  %v379 = vunpack.c.l.b16 %v73
  %v380 = vunpack.c.l.b16 %v74
  %v381 = vunpack.c.l.b16 %v75
  %v382 = vunpack.c.l.b16 %v76
  %v383 = vunpack.c.l.b16 %v77
  %v384 = vpack.c.b16 %v377, %v376
  %v385 = vpack.c.b16 %v379, %v378
  %v386 = vpack.c.b16 %v381, %v380
  %v387 = vpack.c.b16 %v383, %v382
  %v393 = vsel %vm177, %v358, 0
  %v396 = vsel %vm177, %v359, 0
  %v399 = vsel %vm177, %v360, 0
  %v402 = vsel %vm177, %v361, 0
  %v405 = vsel %vm177, %v362, 0
  %v408 = vsel %vm177, %v363, 0
  %v411 = vsel %vm177, %v364, 0
  %v414 = vsel %vm177, %v365, 0
  %v417 = vsel %vm177, %v366, 0
  %v420 = vsel %vm177, %v367, 0
  %422 = vmatprep.subr.bf16.mxu0 0
  %423 = vmatpush1.bf16.msra.mxu0 0
  %424 = vmatprep.subr.bf16.mxu0 0
  %425 = vmatpush1.bf16.msra.mxu0 0
  %426 = vmatprep.subr.bf16.mxu0 0
  %427 = vmatpush1.bf16.msra.mxu0 0
  %428 = vmatprep.subr.bf16.mxu0 0
  %429 = vmatpush1.bf16.msra.mxu0 0
  %430 = vmatprep.subr.bf16.mxu0 0
  %431 = vmatpush1.bf16.msra.mxu0 %v387
  %432 = vmatprep.subr.bf16.mxu0 0
  %433 = vmatpush1.bf16.msra.mxu0 %v386
  %434 = vmatprep.subr.bf16.mxu0 0
  %435 = vmatpush1.bf16.msra.mxu0 %v385
  %436 = vmatprep.subr.bf16.mxu0 0
  %437 = vmatpush1.bf16.msra.mxu0 %v384
  %438 = vmatprep.subr.bf16.mxu0 0
  %439 = vmatpush2.bf16.msra.mxu0 0
  %440 = vmatprep.subr.bf16.mxu0 0
  %441 = vmatpush2.bf16.msra.mxu0 0
  %442 = vmatprep.subr.bf16.mxu0 0
  %443 = vmatpush2.bf16.msra.mxu0 0
  %444 = vmatprep.subr.bf16.mxu0 0
  %445 = vmatpush2.bf16.msra.mxu0 0
  %446 = vmatprep.subr.bf16.mxu0 0
  %447 = vmatpush2.bf16.msra.mxu0 0
  %448 = vmatprep.subr.bf16.mxu0 0
  %449 = vmatpush2.bf16.msra.mxu0 0
  %450 = vmatprep.subr.bf16.mxu0 0
  %451 = vmatpush2.bf16.msra.mxu0 0
  %452 = vmatprep.subr.bf16.mxu0 0
  %453 = vmatpush2.bf16.msra.mxu0 0
  %454 = vmatprep.mubr.bf16.mxu0 0
  %455 = vmatmul.mubr.bf16.gmra.mxu0 %v393
  %v456 = vpop.f32.mrf.mxu0
  %v457 = vadd.f32 %v243, %v456
  %v458 = vpop.f32.mrf.mxu0
  %v459 = vpop.f32.mrf.mxu0
  %v460 = vadd.f32 %v246, %v459
  %v461 = vpop.f32.mrf.mxu0
  %462 = vmatprep.mubr.bf16.mxu0 0
  %463 = vmatmul.mubr.bf16.gmra.mxu0 %v396
  %v464 = vpop.f32.mrf.mxu0
  %v465 = vadd.f32 %v251, %v464
  %v466 = vpop.f32.mrf.mxu0
  %v467 = vpop.f32.mrf.mxu0
  %v468 = vadd.f32 %v254, %v467
  %v469 = vpop.f32.mrf.mxu0
  %470 = vmatprep.mubr.bf16.mxu0 0
  %471 = vmatmul.mubr.bf16.gmra.mxu0 %v399
  %v472 = vpop.f32.mrf.mxu0
  %v473 = vadd.f32 %v259, %v472
  %v474 = vpop.f32.mrf.mxu0
  %v475 = vpop.f32.mrf.mxu0
  %v476 = vadd.f32 %v262, %v475
  %v477 = vpop.f32.mrf.mxu0
  %478 = vmatprep.mubr.bf16.mxu0 0
  %479 = vmatmul.mubr.bf16.gmra.mxu0 %v402
  %v480 = vpop.f32.mrf.mxu0
  %v481 = vadd.f32 %v267, %v480
  %v482 = vpop.f32.mrf.mxu0
  %v483 = vpop.f32.mrf.mxu0
  %v484 = vadd.f32 %v270, %v483
  %v485 = vpop.f32.mrf.mxu0
  %486 = vmatprep.mubr.bf16.mxu0 0
  %487 = vmatmul.mubr.bf16.gmra.mxu0 %v405
  %v488 = vpop.f32.mrf.mxu0
  %v489 = vadd.f32 %v275, %v488
  %v490 = vpop.f32.mrf.mxu0
  %v491 = vpop.f32.mrf.mxu0
  %v492 = vadd.f32 %v278, %v491
  %v493 = vpop.f32.mrf.mxu0
  %494 = vmatprep.mubr.bf16.mxu0 0
  %495 = vmatmul.mubr.bf16.gmra.mxu0 %v408
  %v496 = vpop.f32.mrf.mxu0
  %v497 = vadd.f32 %v283, %v496
  %v498 = vpop.f32.mrf.mxu0
  %v499 = vpop.f32.mrf.mxu0
  %v500 = vadd.f32 %v286, %v499
  %v501 = vpop.f32.mrf.mxu0
  %502 = vmatprep.mubr.bf16.mxu0 0
  %503 = vmatmul.mubr.bf16.gmra.mxu0 %v411
  %v504 = vpop.f32.mrf.mxu0
  %v505 = vadd.f32 %v291, %v504
  %v506 = vpop.f32.mrf.mxu0
  %v507 = vpop.f32.mrf.mxu0
  %v508 = vadd.f32 %v294, %v507
  %v509 = vpop.f32.mrf.mxu0
  %510 = vmatprep.mubr.bf16.mxu0 0
  %511 = vmatmul.mubr.bf16.gmra.mxu0 %v414
  %v512 = vpop.f32.mrf.mxu0
  %v513 = vadd.f32 %v299, %v512
  %v514 = vpop.f32.mrf.mxu0
  %v515 = vpop.f32.mrf.mxu0
  %v516 = vadd.f32 %v302, %v515
  %v517 = vpop.f32.mrf.mxu0
  %518 = vmatprep.mubr.bf16.mxu0 0
  %519 = vmatmul.mubr.bf16.gmra.mxu0 %v417
  %v520 = vpop.f32.mrf.mxu0
  %v521 = vadd.f32 %v307, %v520
  %v522 = vpop.f32.mrf.mxu0
  %v523 = vpop.f32.mrf.mxu0
  %v524 = vadd.f32 %v310, %v523
  %v525 = vpop.f32.mrf.mxu0
  %526 = vmatprep.mubr.bf16.mxu0 0
  %527 = vmatmul.mubr.bf16.gmra.mxu0 %v420
  %v528 = vpop.f32.mrf.mxu0
  %v529 = vadd.f32 %v315, %v528
  %v530 = vpop.f32.mrf.mxu0
  %v531 = vpop.f32.mrf.mxu0
  %v532 = vpop.f32.mrf.mxu0
  %533 = vdwg.mxu0
  %v534 = vld [vmem:[#allocation2] sm:$0xff]
  %v535 = vld [vmem:[#allocation2 + $0x8] sm:$0xff]
  %v536 = vld [vmem:[#allocation2 + $0x10] sm:$0xff]
  %v537 = vld [vmem:[#allocation2 + $0x18] sm:$0xff]
  %v538 = vld [vmem:[#allocation2 + $0x20] sm:$0xff]
  %v539 = vld [vmem:[#allocation2 + $0x28] sm:$0xff]
  %v540 = vld [vmem:[#allocation2 + $0x30] sm:$0xff]
  %v541 = vld [vmem:[#allocation2 + $0x38] sm:$0xff]
  %v542 = vld [vmem:[#allocation2 + $0x40] sm:$0xff]
  %v543 = vld [vmem:[#allocation2 + $0x48] sm:$0xff]
  %v544 = vld [vmem:[#allocation2 + $0x50] sm:$0xff]
  %v545 = vld [vmem:[#allocation2 + $0x58] sm:$0xff]
  %v546 = vld [vmem:[#allocation2 + $0x60] sm:$0xff]
  %v547 = vld [vmem:[#allocation2 + $0x68] sm:$0xff]
  %v548 = vld [vmem:[#allocation2 + $0x70] sm:$0xff]
  %v549 = vld [vmem:[#allocation2 + $0x78] sm:$0xff]
  %v550 = vld [vmem:[#allocation2 + $0x80] sm:$0xff]
  %v551 = vld [vmem:[#allocation2 + $0x88] sm:$0xff]
  %v552 = vld [vmem:[#allocation2 + $0x90] sm:$0xff]
  %v553 = vadd.f32 %v534, %v457
  %v554 = vadd.f32 %v535, %v460
  %v555 = vadd.f32 %v536, %v465
  %v556 = vadd.f32 %v537, %v468
  %v557 = vadd.f32 %v538, %v473
  %v558 = vadd.f32 %v539, %v476
  %v559 = vadd.f32 %v540, %v481
  %v560 = vadd.f32 %v541, %v484
  %v561 = vadd.f32 %v542, %v489
  %v562 = vadd.f32 %v543, %v492
  %v563 = vadd.f32 %v544, %v497
  %v564 = vadd.f32 %v545, %v500
  %v565 = vadd.f32 %v546, %v505
  %v566 = vadd.f32 %v547, %v508
  %v567 = vadd.f32 %v548, %v513
  %v568 = vadd.f32 %v549, %v516
  %v569 = vadd.f32 %v550, %v521
  %v570 = vadd.f32 %v551, %v524
  %v571 = vadd.f32 %v552, %v529
  %572 = vst.msk [vmem:[#allocation2] sm:$0xff] %vm177, %v553
  %573 = vst.msk [vmem:[#allocation2 + $0x8] sm:$0xff] %vm177, %v554
  %574 = vst.msk [vmem:[#allocation2 + $0x10] sm:$0xff] %vm177, %v555
  %575 = vst.msk [vmem:[#allocation2 + $0x18] sm:$0xff] %vm177, %v556
  %576 = vst.msk [vmem:[#allocation2 + $0x20] sm:$0xff] %vm177, %v557
  %577 = vst.msk [vmem:[#allocation2 + $0x28] sm:$0xff] %vm177, %v558
  %578 = vst.msk [vmem:[#allocation2 + $0x30] sm:$0xff] %vm177, %v559
  %579 = vst.msk [vmem:[#allocation2 + $0x38] sm:$0xff] %vm177, %v560
  %580 = vst.msk [vmem:[#allocation2 + $0x40] sm:$0xff] %vm177, %v561
  %581 = vst.msk [vmem:[#allocation2 + $0x48] sm:$0xff] %vm177, %v562
  %582 = vst.msk [vmem:[#allocation2 + $0x50] sm:$0xff] %vm177, %v563
  %583 = vst.msk [vmem:[#allocation2 + $0x58] sm:$0xff] %vm177, %v564
  %584 = vst.msk [vmem:[#allocation2 + $0x60] sm:$0xff] %vm177, %v565
  %585 = vst.msk [vmem:[#allocation2 + $0x68] sm:$0xff] %vm177, %v566
  %586 = vst.msk [vmem:[#allocation2 + $0x70] sm:$0xff] %vm177, %v567
  %587 = vst.msk [vmem:[#allocation2 + $0x78] sm:$0xff] %vm177, %v568
  %588 = vst.msk [vmem:[#allocation2 + $0x80] sm:$0xff] %vm177, %v569
  %589 = vst.msk [vmem:[#allocation2 + $0x88] sm:$0xff] %vm177, %v570
  %590 = vst.msk [vmem:[#allocation2 + $0x90] sm:$0xff] %vm177, %v571
  // Predicated region
  $region34: #{forward.35} parent=0 // pred_check
    %p591 = pneg %p27
  $region35: #{forward.35} parent=0 // pred_check_branch
    %593 = sbr.rel (%p591) target = $region37
  $region36: #{forward.35} parent=0 // pred_region
    %v594 = vld [vmem:[#allocation2] sm:$0xff]
    %v595 = vld [vmem:[#allocation2 + $0x8] sm:$0xff]
    %v596 = vld [vmem:[#allocation2 + $0x10] sm:$0xff]
    %v597 = vld [vmem:[#allocation2 + $0x18] sm:$0xff]
    %v598 = vld [vmem:[#allocation2 + $0x20] sm:$0xff]
    %v599 = vld [vmem:[#allocation2 + $0x28] sm:$0xff]
    %v600 = vld [vmem:[#allocation2 + $0x30] sm:$0xff]
    %v601 = vld [vmem:[#allocation2 + $0x38] sm:$0xff]
    %v602 = vld [vmem:[#allocation2 + $0x40] sm:$0xff]
    %v603 = vld [vmem:[#allocation2 + $0x48] sm:$0xff]
    %v604 = vld [vmem:[#allocation2 + $0x50] sm:$0xff]
    %v605 = vld [vmem:[#allocation2 + $0x58] sm:$0xff]
    %v606 = vld [vmem:[#allocation2 + $0x60] sm:$0xff]
    %v607 = vld [vmem:[#allocation2 + $0x68] sm:$0xff]
    %v608 = vld [vmem:[#allocation2 + $0x70] sm:$0xff]
    %v609 = vld [vmem:[#allocation2 + $0x78] sm:$0xff]
    %v610 = vld [vmem:[#allocation2 + $0x80] sm:$0xff]
    %v611 = vld [vmem:[#allocation2 + $0x88] sm:$0xff]
    %v612 = vld [vmem:[#allocation2 + $0x90] sm:$0xff]
    %v613 = vld [vmem:[%s4] sm:$0x1]
    %v615 = vlaneseq
    %v616 = vshrl.u32 %v615, 7
    %v617 = vsub.s32 0, %v616
    %v618 = vrot.slane %v613, %v617
    %v620 = vadd.f32 %v594, %v618
    %v621 = vadd.f32 %v595, %v618
    %v622 = vadd.f32 %v596, %v618
    %v623 = vadd.f32 %v597, %v618
    %v624 = vadd.f32 %v598, %v618
    %v625 = vadd.f32 %v599, %v618
    %v626 = vadd.f32 %v600, %v618
    %v627 = vadd.f32 %v601, %v618
    %v628 = vadd.f32 %v602, %v618
    %v629 = vadd.f32 %v603, %v618
    %v630 = vadd.f32 %v604, %v618
    %v631 = vadd.f32 %v605, %v618
    %v632 = vadd.f32 %v606, %v618
    %v633 = vadd.f32 %v607, %v618
    %v634 = vadd.f32 %v608, %v618
    %v635 = vadd.f32 %v609, %v618
    %v636 = vadd.f32 %v610, %v618
    %v637 = vadd.f32 %v611, %v618
    %v638 = vadd.f32 %v612, %v618
    %v639 = vld [vmem:[%s5] sm:$0x1]
    %v640 = vld [vmem:[%s6] sm:$0x1]
    %v641 = vsel %vm177, %v620, 0.0
    %642 = vadd.xlane.f32.xlu0 %v641
    %v643 = vpop.xlane.xlu0 %642
    %v644 = vsel %vm177, %v621, 0.0
    %645 = vadd.xlane.f32.xlu0 %v644
    %v646 = vpop.xlane.xlu0 %645
    %v647 = vsel %vm177, %v622, 0.0
    %648 = vadd.xlane.f32.xlu0 %v647
    %v649 = vpop.xlane.xlu0 %648
    %v650 = vsel %vm177, %v623, 0.0
    %651 = vadd.xlane.f32.xlu0 %v650
    %v652 = vpop.xlane.xlu0 %651
    %v653 = vsel %vm177, %v624, 0.0
    %654 = vadd.xlane.f32.xlu0 %v653
    %v655 = vpop.xlane.xlu0 %654
    %v656 = vsel %vm177, %v625, 0.0
    %657 = vadd.xlane.f32.xlu0 %v656
    %v658 = vpop.xlane.xlu0 %657
    %v659 = vsel %vm177, %v626, 0.0
    %660 = vadd.xlane.f32.xlu0 %v659
    %v661 = vpop.xlane.xlu0 %660
    %v662 = vsel %vm177, %v627, 0.0
    %663 = vadd.xlane.f32.xlu0 %v662
    %v664 = vpop.xlane.xlu0 %663
    %v665 = vsel %vm177, %v628, 0.0
    %666 = vadd.xlane.f32.xlu0 %v665
    %v667 = vpop.xlane.xlu0 %666
    %v668 = vsel %vm177, %v629, 0.0
    %669 = vadd.xlane.f32.xlu0 %v668
    %v670 = vpop.xlane.xlu0 %669
    %v671 = vsel %vm177, %v630, 0.0
    %672 = vadd.xlane.f32.xlu0 %v671
    %v673 = vpop.xlane.xlu0 %672
    %v674 = vsel %vm177, %v631, 0.0
    %675 = vadd.xlane.f32.xlu0 %v674
    %v676 = vpop.xlane.xlu0 %675
    %v677 = vsel %vm177, %v632, 0.0
    %678 = vadd.xlane.f32.xlu0 %v677
    %v679 = vpop.xlane.xlu0 %678
    %v680 = vsel %vm177, %v633, 0.0
    %681 = vadd.xlane.f32.xlu0 %v680
    %v682 = vpop.xlane.xlu0 %681
    %v683 = vsel %vm177, %v634, 0.0
    %684 = vadd.xlane.f32.xlu0 %v683
    %v685 = vpop.xlane.xlu0 %684
    %v686 = vsel %vm177, %v635, 0.0
    %687 = vadd.xlane.f32.xlu0 %v686
    %v688 = vpop.xlane.xlu0 %687
    %v689 = vsel %vm177, %v636, 0.0
    %690 = vadd.xlane.f32.xlu0 %v689
    %v691 = vpop.xlane.xlu0 %690
    %v692 = vsel %vm177, %v637, 0.0
    %693 = vadd.xlane.f32.xlu0 %v692
    %v694 = vpop.xlane.xlu0 %693
    %v695 = vsel %vm177, %v638, 0.0
    %696 = vadd.xlane.f32.xlu0 %v695
    %v697 = vpop.xlane.xlu0 %696
    %v698 = vrcp.pop 64.0
    %v699 = vmul.f32 %v643, %v698
    %v700 = vmul.f32 %v646, %v698
    %v701 = vmul.f32 %v649, %v698
    %v702 = vmul.f32 %v652, %v698
    %v703 = vmul.f32 %v655, %v698
    %v704 = vmul.f32 %v658, %v698
    %v705 = vmul.f32 %v661, %v698
    %v706 = vmul.f32 %v664, %v698
    %v707 = vmul.f32 %v667, %v698
    %v708 = vmul.f32 %v670, %v698
    %v709 = vmul.f32 %v673, %v698
    %v710 = vmul.f32 %v676, %v698
    %v711 = vmul.f32 %v679, %v698
    %v712 = vmul.f32 %v682, %v698
    %v713 = vmul.f32 %v685, %v698
    %v714 = vmul.f32 %v688, %v698
    %v715 = vmul.f32 %v691, %v698
    %v716 = vmul.f32 %v694, %v698
    %v717 = vmul.f32 %v697, %v698
    %v718 = vsub.f32 %v620, %v699
    %v719 = vsub.f32 %v621, %v700
    %v720 = vsub.f32 %v622, %v701
    %v721 = vsub.f32 %v623, %v702
    %v722 = vsub.f32 %v624, %v703
    %v723 = vsub.f32 %v625, %v704
    %v724 = vsub.f32 %v626, %v705
    %v725 = vsub.f32 %v627, %v706
    %v726 = vsub.f32 %v628, %v707
    %v727 = vsub.f32 %v629, %v708
    %v728 = vsub.f32 %v630, %v709
    %v729 = vsub.f32 %v631, %v710
    %v730 = vsub.f32 %v632, %v711
    %v731 = vsub.f32 %v633, %v712
    %v732 = vsub.f32 %v634, %v713
    %v733 = vsub.f32 %v635, %v714
    %v734 = vsub.f32 %v636, %v715
    %v735 = vsub.f32 %v637, %v716
    %v736 = vsub.f32 %v638, %v717
    %v737 = vmul.f32 %v718, %v718
    %v738 = vmul.f32 %v719, %v719
    %v739 = vmul.f32 %v720, %v720
    %v740 = vmul.f32 %v721, %v721
    %v741 = vmul.f32 %v722, %v722
    %v742 = vmul.f32 %v723, %v723
    %v743 = vmul.f32 %v724, %v724
    %v744 = vmul.f32 %v725, %v725
    %v745 = vmul.f32 %v726, %v726
    %v746 = vmul.f32 %v727, %v727
    %v747 = vmul.f32 %v728, %v728
    %v748 = vmul.f32 %v729, %v729
    %v749 = vmul.f32 %v730, %v730
    %v750 = vmul.f32 %v731, %v731
    %v751 = vmul.f32 %v732, %v732
    %v752 = vmul.f32 %v733, %v733
    %v753 = vmul.f32 %v734, %v734
    %v754 = vmul.f32 %v735, %v735
    %v755 = vmul.f32 %v736, %v736
    %v756 = vsel %vm177, %v737, 0.0
    %757 = vadd.xlane.f32.xlu0 %v756
    %v758 = vpop.xlane.xlu0 %757
    %v759 = vsel %vm177, %v738, 0.0
    %760 = vadd.xlane.f32.xlu0 %v759
    %v761 = vpop.xlane.xlu0 %760
    %v762 = vsel %vm177, %v739, 0.0
    %763 = vadd.xlane.f32.xlu0 %v762
    %v764 = vpop.xlane.xlu0 %763
    %v765 = vsel %vm177, %v740, 0.0
    %766 = vadd.xlane.f32.xlu0 %v765
    %v767 = vpop.xlane.xlu0 %766
    %v768 = vsel %vm177, %v741, 0.0
    %769 = vadd.xlane.f32.xlu0 %v768
    %v770 = vpop.xlane.xlu0 %769
    %v771 = vsel %vm177, %v742, 0.0
    %772 = vadd.xlane.f32.xlu0 %v771
    %v773 = vpop.xlane.xlu0 %772
    %v774 = vsel %vm177, %v743, 0.0
    %775 = vadd.xlane.f32.xlu0 %v774
    %v776 = vpop.xlane.xlu0 %775
    %v777 = vsel %vm177, %v744, 0.0
    %778 = vadd.xlane.f32.xlu0 %v777
    %v779 = vpop.xlane.xlu0 %778
    %v780 = vsel %vm177, %v745, 0.0
    %781 = vadd.xlane.f32.xlu0 %v780
    %v782 = vpop.xlane.xlu0 %781
    %v783 = vsel %vm177, %v746, 0.0
    %784 = vadd.xlane.f32.xlu0 %v783
    %v785 = vpop.xlane.xlu0 %784
    %v786 = vsel %vm177, %v747, 0.0
    %787 = vadd.xlane.f32.xlu0 %v786
    %v788 = vpop.xlane.xlu0 %787
    %v789 = vsel %vm177, %v748, 0.0
    %790 = vadd.xlane.f32.xlu0 %v789
    %v791 = vpop.xlane.xlu0 %790
    %v792 = vsel %vm177, %v749, 0.0
    %793 = vadd.xlane.f32.xlu0 %v792
    %v794 = vpop.xlane.xlu0 %793
    %v795 = vsel %vm177, %v750, 0.0
    %796 = vadd.xlane.f32.xlu0 %v795
    %v797 = vpop.xlane.xlu0 %796
    %v798 = vsel %vm177, %v751, 0.0
    %799 = vadd.xlane.f32.xlu0 %v798
    %v800 = vpop.xlane.xlu0 %799
    %v801 = vsel %vm177, %v752, 0.0
    %802 = vadd.xlane.f32.xlu0 %v801
    %v803 = vpop.xlane.xlu0 %802
    %v804 = vsel %vm177, %v753, 0.0
    %805 = vadd.xlane.f32.xlu0 %v804
    %v806 = vpop.xlane.xlu0 %805
    %v807 = vsel %vm177, %v754, 0.0
    %808 = vadd.xlane.f32.xlu0 %v807
    %v809 = vpop.xlane.xlu0 %808
    %v810 = vsel %vm177, %v755, 0.0
    %811 = vadd.xlane.f32.xlu0 %v810
    %v812 = vpop.xlane.xlu0 %811
    %v813 = vmul.f32 %v758, %v698
    %v814 = vmul.f32 %v761, %v698
    %v815 = vmul.f32 %v764, %v698
    %v816 = vmul.f32 %v767, %v698
    %v817 = vmul.f32 %v770, %v698
    %v818 = vmul.f32 %v773, %v698
    %v819 = vmul.f32 %v776, %v698
    %v820 = vmul.f32 %v779, %v698
    %v821 = vmul.f32 %v782, %v698
    %v822 = vmul.f32 %v785, %v698
    %v823 = vmul.f32 %v788, %v698
    %v824 = vmul.f32 %v791, %v698
    %v825 = vmul.f32 %v794, %v698
    %v826 = vmul.f32 %v797, %v698
    %v827 = vmul.f32 %v800, %v698
    %v828 = vmul.f32 %v803, %v698
    %v829 = vmul.f32 %v806, %v698
    %v830 = vmul.f32 %v809, %v698
    %v831 = vmul.f32 %v812, %v698
    %v832 = vadd.f32 %v813, 1e-05
    %v833 = vadd.f32 %v814, 1e-05
    %v834 = vadd.f32 %v815, 1e-05
    %v835 = vadd.f32 %v816, 1e-05
    %v836 = vadd.f32 %v817, 1e-05
    %v837 = vadd.f32 %v818, 1e-05
    %v838 = vadd.f32 %v819, 1e-05
    %v839 = vadd.f32 %v820, 1e-05
    %v840 = vadd.f32 %v821, 1e-05
    %v841 = vadd.f32 %v822, 1e-05
    %v842 = vadd.f32 %v823, 1e-05
    %v843 = vadd.f32 %v824, 1e-05
    %v844 = vadd.f32 %v825, 1e-05
    %v845 = vadd.f32 %v826, 1e-05
    %v846 = vadd.f32 %v827, 1e-05
    %v847 = vadd.f32 %v828, 1e-05
    %v848 = vadd.f32 %v829, 1e-05
    %v849 = vadd.f32 %v830, 1e-05
    %v850 = vadd.f32 %v831, 1e-05
    %v851 = vrsqrt.pop %v832
    %v852 = vrsqrt.pop %v833
    %v853 = vrsqrt.pop %v834
    %v854 = vrsqrt.pop %v835
    %v855 = vrsqrt.pop %v836
    %v856 = vrsqrt.pop %v837
    %v857 = vrsqrt.pop %v838
    %v858 = vrsqrt.pop %v839
    %v859 = vrsqrt.pop %v840
    %v860 = vrsqrt.pop %v841
    %v861 = vrsqrt.pop %v842
    %v862 = vrsqrt.pop %v843
    %v863 = vrsqrt.pop %v844
    %v864 = vrsqrt.pop %v845
    %v865 = vrsqrt.pop %v846
    %v866 = vrsqrt.pop %v847
    %v867 = vrsqrt.pop %v848
    %v868 = vrsqrt.pop %v849
    %v869 = vrsqrt.pop %v850
    %v870 = vmul.f32 %v718, %v851
    %v871 = vmul.f32 %v719, %v852
    %v872 = vmul.f32 %v720, %v853
    %v873 = vmul.f32 %v721, %v854
    %v874 = vmul.f32 %v722, %v855
    %v875 = vmul.f32 %v723, %v856
    %v876 = vmul.f32 %v724, %v857
    %v877 = vmul.f32 %v725, %v858
    %v878 = vmul.f32 %v726, %v859
    %v879 = vmul.f32 %v727, %v860
    %v880 = vmul.f32 %v728, %v861
    %v881 = vmul.f32 %v729, %v862
    %v882 = vmul.f32 %v730, %v863
    %v883 = vmul.f32 %v731, %v864
    %v884 = vmul.f32 %v732, %v865
    %v885 = vmul.f32 %v733, %v866
    %v886 = vmul.f32 %v734, %v867
    %v887 = vmul.f32 %v735, %v868
    %v888 = vmul.f32 %v736, %v869
    %v890 = vlaneseq
    %v891 = vshrl.u32 %v890, 7
    %v892 = vsub.s32 0, %v891
    %v893 = vrot.slane %v639, %v892
    %v895 = vmul.f32 %v870, %v893
    %v896 = vmul.f32 %v871, %v893
    %v897 = vmul.f32 %v872, %v893
    %v898 = vmul.f32 %v873, %v893
    %v899 = vmul.f32 %v874, %v893
    %v900 = vmul.f32 %v875, %v893
    %v901 = vmul.f32 %v876, %v893
    %v902 = vmul.f32 %v877, %v893
    %v903 = vmul.f32 %v878, %v893
    %v904 = vmul.f32 %v879, %v893
    %v905 = vmul.f32 %v880, %v893
    %v906 = vmul.f32 %v881, %v893
    %v907 = vmul.f32 %v882, %v893
    %v908 = vmul.f32 %v883, %v893
    %v909 = vmul.f32 %v884, %v893
    %v910 = vmul.f32 %v885, %v893
    %v911 = vmul.f32 %v886, %v893
    %v912 = vmul.f32 %v887, %v893
    %v913 = vmul.f32 %v888, %v893
    %v915 = vlaneseq
    %v916 = vshrl.u32 %v915, 7
    %v917 = vsub.s32 0, %v916
    %v918 = vrot.slane %v640, %v917
    %v920 = vadd.f32 %v895, %v918
    %v921 = vadd.f32 %v896, %v918
    %v922 = vadd.f32 %v897, %v918
    %v923 = vadd.f32 %v898, %v918
    %v924 = vadd.f32 %v899, %v918
    %v925 = vadd.f32 %v900, %v918
    %v926 = vadd.f32 %v901, %v918
    %v927 = vadd.f32 %v902, %v918
    %v928 = vadd.f32 %v903, %v918
    %v929 = vadd.f32 %v904, %v918
    %v930 = vadd.f32 %v905, %v918
    %v931 = vadd.f32 %v906, %v918
    %v932 = vadd.f32 %v907, %v918
    %v933 = vadd.f32 %v908, %v918
    %v934 = vadd.f32 %v909, %v918
    %v935 = vadd.f32 %v910, %v918
    %v936 = vadd.f32 %v911, %v918
    %v937 = vadd.f32 %v912, %v918
    %v938 = vadd.f32 %v913, %v918
    %v939 = vpack.c.bf16 %v921, %v920
    %v940 = vpack.c.bf16 %v923, %v922
    %v941 = vpack.c.bf16 %v925, %v924
    %v942 = vpack.c.bf16 %v927, %v926
    %v943 = vpack.c.bf16 %v929, %v928
    %v944 = vpack.c.bf16 %v931, %v930
    %v945 = vpack.c.bf16 %v933, %v932
    %v946 = vpack.c.bf16 %v935, %v934
    %v947 = vpack.c.bf16 %v937, %v936
    %v948 = vpack.c.bf16 %v938, %v938
    %v959 = vunpack.c.l.b16 %v939
    %v960 = vunpack.c.h.b16 %v939
    %v961 = vunpack.c.l.b16 %v940
    %v962 = vunpack.c.h.b16 %v940
    %v963 = vunpack.c.l.b16 %v941
    %v964 = vunpack.c.h.b16 %v941
    %v965 = vunpack.c.l.b16 %v942
    %v966 = vunpack.c.h.b16 %v942
    %v967 = vunpack.c.l.b16 %v943
    %v968 = vunpack.c.h.b16 %v943
    %v969 = vunpack.c.l.b16 %v944
    %v970 = vunpack.c.h.b16 %v944
    %v971 = vunpack.c.l.b16 %v945
    %v972 = vunpack.c.h.b16 %v945
    %v973 = vunpack.c.l.b16 %v946
    %v974 = vunpack.c.h.b16 %v946
    %v975 = vunpack.c.l.b16 %v947
    %v976 = vunpack.c.h.b16 %v947
    %v977 = vunpack.c.l.b16 %v948
    %v978 = vpack.c.b16 %v959, %v959
    %v979 = vpack.c.b16 %v960, %v960
    %v980 = vpack.c.b16 %v961, %v961
    %v981 = vpack.c.b16 %v962, %v962
    %v982 = vpack.c.b16 %v963, %v963
    %v983 = vpack.c.b16 %v964, %v964
    %v984 = vpack.c.b16 %v965, %v965
    %v985 = vpack.c.b16 %v966, %v966
    %v986 = vpack.c.b16 %v967, %v967
    %v987 = vpack.c.b16 %v968, %v968
    %v988 = vpack.c.b16 %v969, %v969
    %v989 = vpack.c.b16 %v970, %v970
    %v990 = vpack.c.b16 %v971, %v971
    %v991 = vpack.c.b16 %v972, %v972
    %v992 = vpack.c.b16 %v973, %v973
    %v993 = vpack.c.b16 %v974, %v974
    %v994 = vpack.c.b16 %v975, %v975
    %v995 = vpack.c.b16 %v976, %v976
    %v996 = vpack.c.b16 %v977, %v977
    %vm1016 = vcmask 519168
    %1017 = vst.msk [vmem:[%s7] sm:$0xf] %vm1016, %v978
    %1018 = vst.msk [vmem:[%s7 + $0x4] sm:$0xf] %vm1016, %v979
    %1019 = vst.msk [vmem:[%s7 + $0x8] sm:$0xf] %vm1016, %v980
    %1020 = vst.msk [vmem:[%s7 + $0xc] sm:$0xf] %vm1016, %v981
    %1021 = vst.msk [vmem:[%s7 + $0x10] sm:$0xf] %vm1016, %v982
    %1022 = vst.msk [vmem:[%s7 + $0x14] sm:$0xf] %vm1016, %v983
    %1023 = vst.msk [vmem:[%s7 + $0x18] sm:$0xf] %vm1016, %v984
    %1024 = vst.msk [vmem:[%s7 + $0x1c] sm:$0xf] %vm1016, %v985
    %1025 = vst.msk [vmem:[%s7 + $0x20] sm:$0xf] %vm1016, %v986
    %1026 = vst.msk [vmem:[%s7 + $0x24] sm:$0xf] %vm1016, %v987
    %1027 = vst.msk [vmem:[%s7 + $0x28] sm:$0xf] %vm1016, %v988
    %1028 = vst.msk [vmem:[%s7 + $0x2c] sm:$0xf] %vm1016, %v989
    %1029 = vst.msk [vmem:[%s7 + $0x30] sm:$0xf] %vm1016, %v990
    %1030 = vst.msk [vmem:[%s7 + $0x34] sm:$0xf] %vm1016, %v991
    %1031 = vst.msk [vmem:[%s7 + $0x38] sm:$0xf] %vm1016, %v992
    %1032 = vst.msk [vmem:[%s7 + $0x3c] sm:$0xf] %vm1016, %v993
    %1033 = vst.msk [vmem:[%s7 + $0x40] sm:$0xf] %vm1016, %v994
    %1034 = vst.msk [vmem:[%s7 + $0x44] sm:$0xf] %vm1016, %v995
    %1035 = vst.msk [vmem:[%s7 + $0x48] sm:$0xf] %vm1016, %v996
  $region37: #{forward.35} parent=0 // pred_fallthru
    _
  // Predicated region
  $region38: #{forward.35} parent=0 // pred_check
    _
  $region39: #{forward.35} parent=0 // pred_check_branch
    %1037 = sbr.rel (0) target = $region41
  $region40: #{forward.35} parent=0 // pred_region
    _
  $region41: #{forward.35} parent=0 // pred_fallthru
    _
  // Predicated region
  $region42: #{forward.35} parent=0 // pred_check
    _
  $region43: #{forward.35} parent=0 // pred_check_branch
    %1039 = sbr.rel (0) target = $region45
  $region44: #{forward.35} parent=0 // pred_region
    _
  $region45: #{forward.35} parent=0 // pred_fallthru
    _

// kernel: forward.42
$region0: #{forward.42}
  #allocation0 [shape = 'u32[]', space=smem, size = 0x4, offset = 0x4, fixed_abs, tag = 'smem constant byte address 0x4 - core index']
  #allocation1 [shape = 'u32[144,128]{1,0:T(1,128)}', space=vmem, size = 0x12000, scoped, tag = 'internal scratch']
  #allocation2 [shape = 'f32[128,16]{1,0:T(8,128)}', space=vmem, size = 0x10000, scoped, tag = 'scratch operand']
  %s0 = inlined_call_operand.vmem [shape: bf16[128,64], index: 0, kind: input, shape index: {}]
  %s1 = inlined_call_operand.vmem [shape: bf16[64,16], index: 1, kind: input, shape index: {}]
  %s2 = inlined_call_operand.vmem [shape: f32[1,16], index: 2, kind: input, shape index: {}]
  %s3 = inlined_call_operand.vmem [shape: f32[128,16], index: 3, kind: output, shape index: {}]
  %s4 = sld [smem:[#allocation0]]
  $region30: #{forward.42} parent=0
    _
  %s6 = ssub.s32 1, %s4
  %s7 = scalar_select 0, %s6, %s4
  // Predicated region
  $region2: #{forward.42} parent=0 // pred_check
    _
  $region3: #{forward.42} parent=0 // pred_check_branch
    %9 = sbr.rel (0) target = $region5
  $region4: #{forward.42} parent=0 // pred_region
    _
  $region5: #{forward.42} parent=0 // pred_fallthru
    _
  // Predicated region
  $region6: #{forward.42} parent=0 // pred_check
    _
  $region7: #{forward.42} parent=0 // pred_check_branch
    %11 = sbr.rel (0) target = $region9
  $region8: #{forward.42} parent=0 // pred_region
    _
  $region9: #{forward.42} parent=0 // pred_fallthru
    _
  // Predicated region
  $region10: #{forward.42} parent=0 // pred_check
    _
  $region11: #{forward.42} parent=0 // pred_check_branch
    %13 = sbr.rel (0) target = $region13
  $region12: #{forward.42} parent=0 // pred_region
    _
  $region13: #{forward.42} parent=0 // pred_fallthru
    _
  %p15 = scmp.eq.s32.totalorder 0, 0
  // Predicated region
  $region14: #{forward.42} parent=0 // pred_check
    %p16 = pneg %p15
  $region15: #{forward.42} parent=0 // pred_check_branch
    %18 = sbr.rel (%p16) target = $region17
  $region16: #{forward.42} parent=0 // pred_region
    %vm19 = vcmask 130048
    %20 = vst.msk [vmem:[#allocation2] sm:$0xff] %vm19, 0.0
    %21 = vst.msk [vmem:[#allocation2 + $0x8] sm:$0xff] %vm19, 0.0
    %22 = vst.msk [vmem:[#allocation2 + $0x10] sm:$0xff] %vm19, 0.0
    %23 = vst.msk [vmem:[#allocation2 + $0x18] sm:$0xff] %vm19, 0.0
    %24 = vst.msk [vmem:[#allocation2 + $0x20] sm:$0xff] %vm19, 0.0
    %25 = vst.msk [vmem:[#allocation2 + $0x28] sm:$0xff] %vm19, 0.0
    %26 = vst.msk [vmem:[#allocation2 + $0x30] sm:$0xff] %vm19, 0.0
    %27 = vst.msk [vmem:[#allocation2 + $0x38] sm:$0xff] %vm19, 0.0
    %28 = vst.msk [vmem:[#allocation2 + $0x40] sm:$0xff] %vm19, 0.0
    %29 = vst.msk [vmem:[#allocation2 + $0x48] sm:$0xff] %vm19, 0.0
    %30 = vst.msk [vmem:[#allocation2 + $0x50] sm:$0xff] %vm19, 0.0
    %31 = vst.msk [vmem:[#allocation2 + $0x58] sm:$0xff] %vm19, 0.0
    %32 = vst.msk [vmem:[#allocation2 + $0x60] sm:$0xff] %vm19, 0.0
    %33 = vst.msk [vmem:[#allocation2 + $0x68] sm:$0xff] %vm19, 0.0
    %34 = vst.msk [vmem:[#allocation2 + $0x70] sm:$0xff] %vm19, 0.0
    %35 = vst.msk [vmem:[#allocation2 + $0x78] sm:$0xff] %vm19, 0.0
  $region17: #{forward.42} parent=0 // pred_fallthru
    _
  %v36 = vld [vmem:[%s0] sm:$0xf]
  %v37 = vld [vmem:[%s0 + $0x4] sm:$0xf]
  %v38 = vld [vmem:[%s0 + $0x8] sm:$0xf]
  %v39 = vld [vmem:[%s0 + $0xc] sm:$0xf]
  %v40 = vld [vmem:[%s0 + $0x10] sm:$0xf]
  %v41 = vld [vmem:[%s0 + $0x14] sm:$0xf]
  %v42 = vld [vmem:[%s0 + $0x18] sm:$0xf]
  %v43 = vld [vmem:[%s0 + $0x1c] sm:$0xf]
  %v44 = vld [vmem:[%s0 + $0x20] sm:$0xf]
  %v45 = vld [vmem:[%s0 + $0x24] sm:$0xf]
  %v46 = vld [vmem:[%s0 + $0x28] sm:$0xf]
  %v47 = vld [vmem:[%s0 + $0x2c] sm:$0xf]
  %v48 = vld [vmem:[%s0 + $0x30] sm:$0xf]
  %v49 = vld [vmem:[%s0 + $0x34] sm:$0xf]
  %v50 = vld [vmem:[%s0 + $0x38] sm:$0xf]
  %v51 = vld [vmem:[%s0 + $0x3c] sm:$0xf]
  %v52 = vld [vmem:[%s1] sm:$0xf]
  %v53 = vld [vmem:[%s1 + $0x4] sm:$0xf]
  %v54 = vld [vmem:[%s1 + $0x8] sm:$0xf]
  %v55 = vld [vmem:[%s1 + $0xc] sm:$0xf]
  %v56 = vld [vmem:[%s1 + $0x10] sm:$0xf]
  %v57 = vld [vmem:[%s1 + $0x14] sm:$0xf]
  %v58 = vld [vmem:[%s1 + $0x18] sm:$0xf]
  %v59 = vld [vmem:[%s1 + $0x1c] sm:$0xf]
  %v76 = vunpack.c.l.b16 %v36
  %v77 = vunpack.c.l.b16 %v37
  %v78 = vunpack.c.l.b16 %v38
  %v79 = vunpack.c.l.b16 %v39
  %v80 = vunpack.c.l.b16 %v40
  %v81 = vunpack.c.l.b16 %v41
  %v82 = vunpack.c.l.b16 %v42
  %v83 = vunpack.c.l.b16 %v43
  %v84 = vunpack.c.l.b16 %v44
  %v85 = vunpack.c.l.b16 %v45
  %v86 = vunpack.c.l.b16 %v46
  %v87 = vunpack.c.l.b16 %v47
  %v88 = vunpack.c.l.b16 %v48
  %v89 = vunpack.c.l.b16 %v49
  %v90 = vunpack.c.l.b16 %v50
  %v91 = vunpack.c.l.b16 %v51
  %v92 = vpack.c.b16 %v77, %v76
  %v93 = vpack.c.b16 %v79, %v78
  %v94 = vpack.c.b16 %v81, %v80
  %v95 = vpack.c.b16 %v83, %v82
  %v96 = vpack.c.b16 %v85, %v84
  %v97 = vpack.c.b16 %v87, %v86
  %v98 = vpack.c.b16 %v89, %v88
  %v99 = vpack.c.b16 %v91, %v90
  %v108 = vunpack.c.l.b16 %v52
  %v109 = vunpack.c.l.b16 %v53
  %v110 = vunpack.c.l.b16 %v54
  %v111 = vunpack.c.l.b16 %v55
  %v112 = vunpack.c.l.b16 %v56
  %v113 = vunpack.c.l.b16 %v57
  %v114 = vunpack.c.l.b16 %v58
  %v115 = vunpack.c.l.b16 %v59
  %v116 = vpack.c.b16 %v109, %v108
  %v117 = vpack.c.b16 %v111, %v110
  %v118 = vpack.c.b16 %v113, %v112
  %v119 = vpack.c.b16 %v115, %v114
  %vm124 = vcmask 523264
  %v126 = vsel %vm124, %v92, 0
  %v129 = vsel %vm124, %v93, 0
  %v132 = vsel %vm124, %v94, 0
  %v135 = vsel %vm124, %v95, 0
  %v138 = vsel %vm124, %v96, 0
  %v141 = vsel %vm124, %v97, 0
  %v144 = vsel %vm124, %v98, 0
  %v147 = vsel %vm124, %v99, 0
  %149 = vmatprep.subr.bf16.mxu0 0
  %150 = vmatpush1.bf16.msra.mxu0 0
  %151 = vmatprep.subr.bf16.mxu0 0
  %152 = vmatpush1.bf16.msra.mxu0 0
  %153 = vmatprep.subr.bf16.mxu0 0
  %154 = vmatpush1.bf16.msra.mxu0 0
  %155 = vmatprep.subr.bf16.mxu0 0
  %156 = vmatpush1.bf16.msra.mxu0 0
  %157 = vmatprep.subr.bf16.mxu0 0
  %158 = vmatpush1.bf16.msra.mxu0 %v119
  %159 = vmatprep.subr.bf16.mxu0 0
  %160 = vmatpush1.bf16.msra.mxu0 %v118
  %161 = vmatprep.subr.bf16.mxu0 0
  %162 = vmatpush1.bf16.msra.mxu0 %v117
  %163 = vmatprep.subr.bf16.mxu0 0
  %164 = vmatpush1.bf16.msra.mxu0 %v116
  %165 = vmatprep.subr.bf16.mxu0 0
  %166 = vmatpush2.bf16.msra.mxu0 0
  %167 = vmatprep.subr.bf16.mxu0 0
  %168 = vmatpush2.bf16.msra.mxu0 0
  %169 = vmatprep.subr.bf16.mxu0 0
  %170 = vmatpush2.bf16.msra.mxu0 0
  %171 = vmatprep.subr.bf16.mxu0 0
  %172 = vmatpush2.bf16.msra.mxu0 0
  %173 = vmatprep.subr.bf16.mxu0 0
  %174 = vmatpush2.bf16.msra.mxu0 0
  %175 = vmatprep.subr.bf16.mxu0 0
  %176 = vmatpush2.bf16.msra.mxu0 0
  %177 = vmatprep.subr.bf16.mxu0 0
  %178 = vmatpush2.bf16.msra.mxu0 0
  %179 = vmatprep.subr.bf16.mxu0 0
  %180 = vmatpush2.bf16.msra.mxu0 0
  %181 = vmatprep.mubr.bf16.mxu0 0
  %182 = vmatmul.mubr.bf16.gmra.mxu0 %v126
  %v183 = vpop.f32.mrf.mxu0
  %v184 = vadd.f32 0.0, %v183
  %v185 = vpop.f32.mrf.mxu0
  %v186 = vpop.f32.mrf.mxu0
  %v187 = vadd.f32 0.0, %v186
  %v188 = vpop.f32.mrf.mxu0
  %189 = vmatprep.mubr.bf16.mxu0 0
  %190 = vmatmul.mubr.bf16.gmra.mxu0 %v129
  %v191 = vpop.f32.mrf.mxu0
  %v192 = vadd.f32 0.0, %v191
  %v193 = vpop.f32.mrf.mxu0
  %v194 = vpop.f32.mrf.mxu0
  %v195 = vadd.f32 0.0, %v194
  %v196 = vpop.f32.mrf.mxu0
  %197 = vmatprep.mubr.bf16.mxu0 0
  %198 = vmatmul.mubr.bf16.gmra.mxu0 %v132
  %v199 = vpop.f32.mrf.mxu0
  %v200 = vadd.f32 0.0, %v199
  %v201 = vpop.f32.mrf.mxu0
  %v202 = vpop.f32.mrf.mxu0
  %v203 = vadd.f32 0.0, %v202
  %v204 = vpop.f32.mrf.mxu0
  %205 = vmatprep.mubr.bf16.mxu0 0
  %206 = vmatmul.mubr.bf16.gmra.mxu0 %v135
  %v207 = vpop.f32.mrf.mxu0
  %v208 = vadd.f32 0.0, %v207
  %v209 = vpop.f32.mrf.mxu0
  %v210 = vpop.f32.mrf.mxu0
  %v211 = vadd.f32 0.0, %v210
  %v212 = vpop.f32.mrf.mxu0
  %213 = vmatprep.mubr.bf16.mxu0 0
  %214 = vmatmul.mubr.bf16.gmra.mxu0 %v138
  %v215 = vpop.f32.mrf.mxu0
  %v216 = vadd.f32 0.0, %v215
  %v217 = vpop.f32.mrf.mxu0
  %v218 = vpop.f32.mrf.mxu0
  %v219 = vadd.f32 0.0, %v218
  %v220 = vpop.f32.mrf.mxu0
  %221 = vmatprep.mubr.bf16.mxu0 0
  %222 = vmatmul.mubr.bf16.gmra.mxu0 %v141
  %v223 = vpop.f32.mrf.mxu0
  %v224 = vadd.f32 0.0, %v223
  %v225 = vpop.f32.mrf.mxu0
  %v226 = vpop.f32.mrf.mxu0
  %v227 = vadd.f32 0.0, %v226
  %v228 = vpop.f32.mrf.mxu0
  %229 = vmatprep.mubr.bf16.mxu0 0
  %230 = vmatmul.mubr.bf16.gmra.mxu0 %v144
  %v231 = vpop.f32.mrf.mxu0
  %v232 = vadd.f32 0.0, %v231
  %v233 = vpop.f32.mrf.mxu0
  %v234 = vpop.f32.mrf.mxu0
  %v235 = vadd.f32 0.0, %v234
  %v236 = vpop.f32.mrf.mxu0
  %237 = vmatprep.mubr.bf16.mxu0 0
  %238 = vmatmul.mubr.bf16.gmra.mxu0 %v147
  %v239 = vpop.f32.mrf.mxu0
  %v240 = vadd.f32 0.0, %v239
  %v241 = vpop.f32.mrf.mxu0
  %v242 = vpop.f32.mrf.mxu0
  %v243 = vadd.f32 0.0, %v242
  %v244 = vpop.f32.mrf.mxu0
  %245 = vdwg.mxu0
  %v246 = vld [vmem:[#allocation2] sm:$0xff]
  %v247 = vld [vmem:[#allocation2 + $0x8] sm:$0xff]
  %v248 = vld [vmem:[#allocation2 + $0x10] sm:$0xff]
  %v249 = vld [vmem:[#allocation2 + $0x18] sm:$0xff]
  %v250 = vld [vmem:[#allocation2 + $0x20] sm:$0xff]
  %v251 = vld [vmem:[#allocation2 + $0x28] sm:$0xff]
  %v252 = vld [vmem:[#allocation2 + $0x30] sm:$0xff]
  %v253 = vld [vmem:[#allocation2 + $0x38] sm:$0xff]
  %v254 = vld [vmem:[#allocation2 + $0x40] sm:$0xff]
  %v255 = vld [vmem:[#allocation2 + $0x48] sm:$0xff]
  %v256 = vld [vmem:[#allocation2 + $0x50] sm:$0xff]
  %v257 = vld [vmem:[#allocation2 + $0x58] sm:$0xff]
  %v258 = vld [vmem:[#allocation2 + $0x60] sm:$0xff]
  %v259 = vld [vmem:[#allocation2 + $0x68] sm:$0xff]
  %v260 = vld [vmem:[#allocation2 + $0x70] sm:$0xff]
  %v261 = vld [vmem:[#allocation2 + $0x78] sm:$0xff]
  %v262 = vadd.f32 %v246, %v184
  %v263 = vadd.f32 %v247, %v187
  %v264 = vadd.f32 %v248, %v192
  %v265 = vadd.f32 %v249, %v195
  %v266 = vadd.f32 %v250, %v200
  %v267 = vadd.f32 %v251, %v203
  %v268 = vadd.f32 %v252, %v208
  %v269 = vadd.f32 %v253, %v211
  %v270 = vadd.f32 %v254, %v216
  %v271 = vadd.f32 %v255, %v219
  %v272 = vadd.f32 %v256, %v224
  %v273 = vadd.f32 %v257, %v227
  %v274 = vadd.f32 %v258, %v232
  %v275 = vadd.f32 %v259, %v235
  %v276 = vadd.f32 %v260, %v240
  %v277 = vadd.f32 %v261, %v243
  %vm278 = vcmask 130048
  %279 = vst.msk [vmem:[#allocation2] sm:$0xff] %vm278, %v262
  %280 = vst.msk [vmem:[#allocation2 + $0x8] sm:$0xff] %vm278, %v263
  %281 = vst.msk [vmem:[#allocation2 + $0x10] sm:$0xff] %vm278, %v264
  %282 = vst.msk [vmem:[#allocation2 + $0x18] sm:$0xff] %vm278, %v265
  %283 = vst.msk [vmem:[#allocation2 + $0x20] sm:$0xff] %vm278, %v266
  %284 = vst.msk [vmem:[#allocation2 + $0x28] sm:$0xff] %vm278, %v267
  %285 = vst.msk [vmem:[#allocation2 + $0x30] sm:$0xff] %vm278, %v268
  %286 = vst.msk [vmem:[#allocation2 + $0x38] sm:$0xff] %vm278, %v269
  %287 = vst.msk [vmem:[#allocation2 + $0x40] sm:$0xff] %vm278, %v270
  %288 = vst.msk [vmem:[#allocation2 + $0x48] sm:$0xff] %vm278, %v271
  %289 = vst.msk [vmem:[#allocation2 + $0x50] sm:$0xff] %vm278, %v272
  %290 = vst.msk [vmem:[#allocation2 + $0x58] sm:$0xff] %vm278, %v273
  %291 = vst.msk [vmem:[#allocation2 + $0x60] sm:$0xff] %vm278, %v274
  %292 = vst.msk [vmem:[#allocation2 + $0x68] sm:$0xff] %vm278, %v275
  %293 = vst.msk [vmem:[#allocation2 + $0x70] sm:$0xff] %vm278, %v276
  %294 = vst.msk [vmem:[#allocation2 + $0x78] sm:$0xff] %vm278, %v277
  // Predicated region
  $region18: #{forward.42} parent=0 // pred_check
    %p295 = pneg %p15
  $region19: #{forward.42} parent=0 // pred_check_branch
    %297 = sbr.rel (%p295) target = $region21
  $region20: #{forward.42} parent=0 // pred_region
    %v298 = vld [vmem:[#allocation2] sm:$0xff]
    %v299 = vld [vmem:[#allocation2 + $0x8] sm:$0xff]
    %v300 = vld [vmem:[#allocation2 + $0x10] sm:$0xff]
    %v301 = vld [vmem:[#allocation2 + $0x18] sm:$0xff]
    %v302 = vld [vmem:[#allocation2 + $0x20] sm:$0xff]
    %v303 = vld [vmem:[#allocation2 + $0x28] sm:$0xff]
    %v304 = vld [vmem:[#allocation2 + $0x30] sm:$0xff]
    %v305 = vld [vmem:[#allocation2 + $0x38] sm:$0xff]
    %v306 = vld [vmem:[#allocation2 + $0x40] sm:$0xff]
    %v307 = vld [vmem:[#allocation2 + $0x48] sm:$0xff]
    %v308 = vld [vmem:[#allocation2 + $0x50] sm:$0xff]
    %v309 = vld [vmem:[#allocation2 + $0x58] sm:$0xff]
    %v310 = vld [vmem:[#allocation2 + $0x60] sm:$0xff]
    %v311 = vld [vmem:[#allocation2 + $0x68] sm:$0xff]
    %v312 = vld [vmem:[#allocation2 + $0x70] sm:$0xff]
    %v313 = vld [vmem:[#allocation2 + $0x78] sm:$0xff]
    %v314 = vld [vmem:[%s2] sm:$0x1]
    %v316 = vlaneseq
    %v317 = vshrl.u32 %v316, 7
    %v318 = vsub.s32 0, %v317
    %v319 = vrot.slane %v314, %v318
    %v321 = vadd.f32 %v298, %v319
    %v322 = vadd.f32 %v299, %v319
    %v323 = vadd.f32 %v300, %v319
    %v324 = vadd.f32 %v301, %v319
    %v325 = vadd.f32 %v302, %v319
    %v326 = vadd.f32 %v303, %v319
    %v327 = vadd.f32 %v304, %v319
    %v328 = vadd.f32 %v305, %v319
    %v329 = vadd.f32 %v306, %v319
    %v330 = vadd.f32 %v307, %v319
    %v331 = vadd.f32 %v308, %v319
    %v332 = vadd.f32 %v309, %v319
    %v333 = vadd.f32 %v310, %v319
    %v334 = vadd.f32 %v311, %v319
    %v335 = vadd.f32 %v312, %v319
    %v336 = vadd.f32 %v313, %v319
    %337 = vst.msk [vmem:[%s3] sm:$0xff] %vm278, %v321
    %338 = vst.msk [vmem:[%s3 + $0x8] sm:$0xff] %vm278, %v322
    %339 = vst.msk [vmem:[%s3 + $0x10] sm:$0xff] %vm278, %v323
    %340 = vst.msk [vmem:[%s3 + $0x18] sm:$0xff] %vm278, %v324
    %341 = vst.msk [vmem:[%s3 + $0x20] sm:$0xff] %vm278, %v325
    %342 = vst.msk [vmem:[%s3 + $0x28] sm:$0xff] %vm278, %v326
    %343 = vst.msk [vmem:[%s3 + $0x30] sm:$0xff] %vm278, %v327
    %344 = vst.msk [vmem:[%s3 + $0x38] sm:$0xff] %vm278, %v328
    %345 = vst.msk [vmem:[%s3 + $0x40] sm:$0xff] %vm278, %v329
    %346 = vst.msk [vmem:[%s3 + $0x48] sm:$0xff] %vm278, %v330
    %347 = vst.msk [vmem:[%s3 + $0x50] sm:$0xff] %vm278, %v331
    %348 = vst.msk [vmem:[%s3 + $0x58] sm:$0xff] %vm278, %v332
    %349 = vst.msk [vmem:[%s3 + $0x60] sm:$0xff] %vm278, %v333
    %350 = vst.msk [vmem:[%s3 + $0x68] sm:$0xff] %vm278, %v334
    %351 = vst.msk [vmem:[%s3 + $0x70] sm:$0xff] %vm278, %v335
    %352 = vst.msk [vmem:[%s3 + $0x78] sm:$0xff] %vm278, %v336
  $region21: #{forward.42} parent=0 // pred_fallthru
    _
  // Predicated region
  $region22: #{forward.42} parent=0 // pred_check
    _
  $region23: #{forward.42} parent=0 // pred_check_branch
    %354 = sbr.rel (0) target = $region25
  $region24: #{forward.42} parent=0 // pred_region
    _
  $region25: #{forward.42} parent=0 // pred_fallthru
    _
  // Predicated region
  $region26: #{forward.42} parent=0 // pred_check
    _
  $region27: #{forward.42} parent=0 // pred_check_branch
    %356 = sbr.rel (0) target = $region29
  $region28: #{forward.42} parent=0 // pred_region
    _
  $region29: #{forward.42} parent=0 // pred_fallthru
    _

// kernel: forward.43
$region0: #{forward.43}
  #allocation0 [shape = 'u32[]', space=smem, size = 0x4, offset = 0x4, fixed_abs, tag = 'smem constant byte address 0x4 - core index']
  #allocation1 [shape = 'u32[144,128]{1,0:T(1,128)}', space=vmem, size = 0x12000, scoped, tag = 'internal scratch']
  #allocation2 [shape = 'f32[2,32]{1,0:T(2,128)}', space=vmem, size = 0x400, scoped, tag = 'scratch operand']
  %s0 = inlined_call_operand.vmem [shape: bf16[2,64], index: 0, kind: input, shape index: {}]
  %s1 = inlined_call_operand.vmem [shape: bf16[64,32], index: 1, kind: input, shape index: {}]
  %s2 = inlined_call_operand.vmem [shape: f32[1,32], index: 2, kind: input, shape index: {}]
  %s3 = inlined_call_operand.hbm [shape: f32[2,32], index: 3, kind: output, shape index: {}]
  %s4 = sld [smem:[#allocation0]]
  $region30: #{forward.43} parent=0
    _
  %s6 = ssub.s32 1, %s4
  %s7 = scalar_select 0, %s6, %s4
  $region1: #{forward.43} parent=0
    #allocation3 [shape = 'u8[1024]{0}', space=vmem, size = 0x400, scoped, tag = 'output window, operand 0, single buffered']
    #allocation4 [shape = 's32[1]{0}', space=sflag, size = 0x4, scoped, tag = 'scoped memory for forward.43']
    %8 = vsyncpa [#allocation4], 0
    // Predicated region
    $region2: #{forward.43} parent=1 // pred_check
      _
    $region3: #{forward.43} parent=1 // pred_check_branch
      %10 = sbr.rel (0) target = $region5
    $region4: #{forward.43} parent=1 // pred_region
      _
    $region5: #{forward.43} parent=1 // pred_fallthru
      _
    // Predicated region
    $region6: #{forward.43} parent=1 // pred_check
      _
    $region7: #{forward.43} parent=1 // pred_check_branch
      %12 = sbr.rel (0) target = $region9
    $region8: #{forward.43} parent=1 // pred_region
      _
    $region9: #{forward.43} parent=1 // pred_fallthru
      _
    // Predicated region
    $region10: #{forward.43} parent=1 // pred_check
      _
    $region11: #{forward.43} parent=1 // pred_check_branch
      %14 = sbr.rel (0) target = $region13
    $region12: #{forward.43} parent=1 // pred_region
      _
    $region13: #{forward.43} parent=1 // pred_fallthru
      _
    %p16 = scmp.eq.s32.totalorder 0, 0
    // Predicated region
    $region14: #{forward.43} parent=1 // pred_check
      %p17 = pneg %p16
    $region15: #{forward.43} parent=1 // pred_check_branch
      %19 = sbr.rel (%p17) target = $region17
    $region16: #{forward.43} parent=1 // pred_region
      %vm20 = vcmask 254976
      %21 = vst.msk [vmem:[#allocation2] sm:$0x3] %vm20, 0.0
    $region17: #{forward.43} parent=1 // pred_fallthru
      _
    %v22 = vld [vmem:[%s0] sm:$0x1]
    %v23 = vld [vmem:[%s1] sm:$0xf]
    %v24 = vld [vmem:[%s1 + $0x4] sm:$0xf]
    %v25 = vld [vmem:[%s1 + $0x8] sm:$0xf]
    %v26 = vld [vmem:[%s1 + $0xc] sm:$0xf]
    %v27 = vld [vmem:[%s1 + $0x10] sm:$0xf]
    %v28 = vld [vmem:[%s1 + $0x14] sm:$0xf]
    %v29 = vld [vmem:[%s1 + $0x18] sm:$0xf]
    %v30 = vld [vmem:[%s1 + $0x1c] sm:$0xf]
    %v39 = vunpack.c.l.b16 %v23
    %v40 = vunpack.c.l.b16 %v24
    %v41 = vunpack.c.l.b16 %v25
    %v42 = vunpack.c.l.b16 %v26
    %v43 = vunpack.c.l.b16 %v27
    %v44 = vunpack.c.l.b16 %v28
    %v45 = vunpack.c.l.b16 %v29
    %v46 = vunpack.c.l.b16 %v30
    %v47 = vpack.c.b16 %v40, %v39
    %v48 = vpack.c.b16 %v42, %v41
    %v49 = vpack.c.b16 %v44, %v43
    %v50 = vpack.c.b16 %v46, %v45
    %vm55 = vcmask 523264
    %v57 = vsel %vm55, %v22, 0
    %59 = vmatprep.subr.bf16.mxu0 0
    %60 = vmatpush1.bf16.msra.mxu0 0
    %61 = vmatprep.subr.bf16.mxu0 0
    %62 = vmatpush1.bf16.msra.mxu0 0
    %63 = vmatprep.subr.bf16.mxu0 0
    %64 = vmatpush1.bf16.msra.mxu0 0
    %65 = vmatprep.subr.bf16.mxu0 0
    %66 = vmatpush1.bf16.msra.mxu0 0
    %67 = vmatprep.subr.bf16.mxu0 0
    %68 = vmatpush1.bf16.msra.mxu0 %v50
    %69 = vmatprep.subr.bf16.mxu0 0
    %70 = vmatpush1.bf16.msra.mxu0 %v49
    %71 = vmatprep.subr.bf16.mxu0 0
    %72 = vmatpush1.bf16.msra.mxu0 %v48
    %73 = vmatprep.subr.bf16.mxu0 0
    %74 = vmatpush1.bf16.msra.mxu0 %v47
    %75 = vmatprep.subr.bf16.mxu0 0
    %76 = vmatpush2.bf16.msra.mxu0 0
    %77 = vmatprep.subr.bf16.mxu0 0
    %78 = vmatpush2.bf16.msra.mxu0 0
    %79 = vmatprep.subr.bf16.mxu0 0
    %80 = vmatpush2.bf16.msra.mxu0 0
    %81 = vmatprep.subr.bf16.mxu0 0
    %82 = vmatpush2.bf16.msra.mxu0 0
    %83 = vmatprep.subr.bf16.mxu0 0
    %84 = vmatpush2.bf16.msra.mxu0 0
    %85 = vmatprep.subr.bf16.mxu0 0
    %86 = vmatpush2.bf16.msra.mxu0 0
    %87 = vmatprep.subr.bf16.mxu0 0
    %88 = vmatpush2.bf16.msra.mxu0 0
    %89 = vmatprep.subr.bf16.mxu0 0
    %90 = vmatpush2.bf16.msra.mxu0 0
    %91 = vmatprep.mubr.bf16.mxu0 0
    %92 = vmatmul.mubr.bf16.gmra.mxu0 %v57
    %v93 = vpop.f32.mrf.mxu0
    %v94 = vadd.f32 0.0, %v93
    %v95 = vpop.f32.mrf.mxu0
    %v96 = vpop.f32.mrf.mxu0
    %v97 = vpop.f32.mrf.mxu0
    %98 = vdwg.mxu0
    %v99 = vld [vmem:[#allocation2] sm:$0x3]
    %v100 = vadd.f32 %v99, %v94
    %vm101 = vcmask 254976
    %102 = vst.msk [vmem:[#allocation2] sm:$0x3] %vm101, %v100
    // Predicated region
    $region18: #{forward.43} parent=1 // pred_check
      %p103 = pneg %p16
    $region19: #{forward.43} parent=1 // pred_check_branch
      %105 = sbr.rel (%p103) target = $region21
    $region20: #{forward.43} parent=1 // pred_region
      %v106 = vld [vmem:[#allocation2] sm:$0x3]
      %v107 = vld [vmem:[%s2] sm:$0x1]
      %v109 = vlaneseq
      %v110 = vshrl.u32 %v109, 7
      %v111 = vsub.s32 0, %v110
      %v112 = vrot.slane %v107, %v111
      %v114 = vadd.f32 %v106, %v112
      %115 = vst.msk [vmem:[#allocation3] sm:$0x3] %vm101, %v114
    $region21: #{forward.43} parent=1 // pred_fallthru
      _
    // Predicated region
    $region22: #{forward.43} parent=1 // pred_check
      _
    $region23: #{forward.43} parent=1 // pred_check_branch
      %117 = sbr.rel (0) target = $region25
    $region24: #{forward.43} parent=1 // pred_region
      %s119 = ssub.s32 32, 32
      %120 = vsyncadd [#allocation4], %s119
      %s122 = sshll.u32 [#allocation3], 4
      %s123 = int_to_ptr.vmem [resolvable:$true] %s122
      %125 = dma.vmem_to_hbm [thread:$0]  %s123, 32, %s3, [#allocation4]
    $region25: #{forward.43} parent=1 // pred_fallthru
      _
    // Predicated region
    $region26: #{forward.43} parent=1 // pred_check
      _
    $region27: #{forward.43} parent=1 // pred_check_branch
      %127 = sbr.rel (0) target = $region29
    $region28: #{forward.43} parent=1 // pred_region
      %128 = dma.done [#allocation4], 32
    $region29: #{forward.43} parent=1 // pred_fallthru
      _
    %129 = vsyncpa [#allocation4], 1

</llo_original>
